<compile_context>
chip_gen: v7x
topology: tpu7x:2x2x1
jax: 0.10.0
libtpu: 0.0.40
codegen_flags: <defaults>
</compile_context>

<pallas_src>
import functools

import jax
import jax.numpy as jnp
from jax import lax
from jax.experimental import pallas as pl
from jax.experimental.pallas import tpu as pltpu


def _round_up(x, m):
    return ((x + m - 1) // m) * m


# -----------------------------------------------------------------------------
# Pallas kernel: fused Conv2d (+ optional InstanceNorm) (+ optional LeakyReLU)
# for one batch sample.  The (rows, KH*KW*Cin) patch tile is built in VMEM
# from unit-stride slices of the phase-decomposed input (no HBM im2col), then
# fed to a single MXU matmul per row block.
# -----------------------------------------------------------------------------
def _conv_kernel(*refs, stride, KH, KW, Hout, Wout, Hph, GR,
                 do_norm, do_act, has_bias):
    x_ref, w_ref = refs[0], refs[1]
    pos = 2
    b_ref = refs[pos] if has_bias else None
    pos += int(has_bias)
    o_ref = refs[pos]
    pos += 1
    yscr_ref = refs[pos] if do_norm else None

    s = stride
    Coutp = o_ref.shape[-1]

    w_all = w_ref[...]                                   # (Kdim, Coutp) bf16
    bias = b_ref[...] if has_bias else None              # (1, Coutp) f32

    def patch_rows(r):
        # (Wout, KH*KW*Cin) bf16 patch tile for output row `r`.
        pieces = []
        for kh in range(KH):
            rows = []
            for wp in range(s):                          # wp == kw % s
                ph = (kh % s) * s + wp
                rows.append(x_ref[ph * Hph + (kh // s) + r])   # (Wph, Cin)
            for kw in range(KW):
                co = kw // s
                pieces.append(rows[kw % s][co:co + Wout, :])   # (Wout, Cin)
        return jnp.concatenate(pieces, axis=1)

    def conv_block(r0, gr):
        # f32 conv outputs for output rows [r0, r0 + gr): (gr*Wout, Coutp).
        if gr == 1:
            lhs = patch_rows(r0)
        else:
            lhs = jnp.concatenate([patch_rows(r0 + i) for i in range(gr)],
                                  axis=0)
        return jnp.dot(lhs, w_all, preferred_element_type=jnp.float32)

    nblk = Hout // GR
    tail = Hout - nblk * GR

    if do_norm:
        # Pass 1: conv rows -> f32 scratch, accumulating sum / sum-of-squares.
        # Bias is skipped: it cancels exactly under InstanceNorm(affine=False).
        def write_and_stats(r0, gr, s1, s2):
            acc = conv_block(r0, gr)
            for i in range(gr):
                yscr_ref[r0 + i] = acc[i * Wout:(i + 1) * Wout, :]
            s1 = s1 + jnp.sum(acc, axis=0, keepdims=True)
            s2 = s2 + jnp.sum(acc * acc, axis=0, keepdims=True)
            return s1, s2

        def blk_body(b, carry):
            return write_and_stats(b * GR, GR, *carry)

        zero = jnp.zeros((1, Coutp), jnp.float32)
        s1, s2 = lax.fori_loop(0, nblk, blk_body, (zero, zero))
        if tail:
            s1, s2 = write_and_stats(nblk * GR, tail, s1, s2)

        inv_hw = 1.0 / float(Hout * Wout)
        mean = s1 * inv_hw
        var = jnp.maximum(s2 * inv_hw - mean * mean, 0.0)
        scale = lax.rsqrt(var + 1e-5)

        # Pass 2: normalize + LeakyReLU + store (bf16 for inner layers).
        def norm_body(r, _):
            y = (yscr_ref[r] - mean) * scale
            if do_act:
                y = jnp.where(y > 0, y, 0.2 * y)
            o_ref[r] = y.astype(o_ref.dtype)
            return 0

        lax.fori_loop(0, Hout, norm_body, 0)
    else:
        def store_block(r0, gr):
            y = conv_block(r0, gr)
            if has_bias:
                y = y + bias
            if do_act:
                y = jnp.where(y > 0, y, 0.2 * y)
            y = y.astype(o_ref.dtype)
            for i in range(gr):
                o_ref[r0 + i] = y[i * Wout:(i + 1) * Wout, :]

        def blk_body(b, _):
            store_block(b * GR, GR)
            return 0

        lax.fori_loop(0, nblk, blk_body, 0)
        if tail:
            store_block(nblk * GR, tail)


# -----------------------------------------------------------------------------
# Conv2d layer wrapper: pad + bf16 cast + stride-phase re-layout in plain JAX
# (1x traffic), everything else (patch assembly, matmul, norm, act) in Pallas.
# -----------------------------------------------------------------------------
def conv2d_pallas(x_nhwc, weight, bias, *, stride, padding, do_norm, do_act,
                  out_dtype=jnp.bfloat16):
    N, H, W, Cin = x_nhwc.shape
    Cout, Cin_w, KH, KW = weight.shape
    assert Cin == Cin_w
    s = stride
    Hout = (H + 2 * padding - KH) // s + 1
    Wout = (W + 2 * padding - KW) // s + 1
    assert Hout > 0 and Wout > 0

    # Zero-pad spatially and cast to bf16 (MXU operand dtype).
    xp = jnp.pad(x_nhwc.astype(jnp.bfloat16),
                 ((0, 0), (padding, padding), (padding, padding), (0, 0)))

    # Stride-phase (space-to-depth) re-layout so the kernel only ever needs
    # unit-stride slices: phase (i, j) holds xp[:, i::s, j::s, :].  Phases are
    # stacked along H; total extra traffic ~1x the input (no KH*KW blow-up).
    Hph = Hout + (KH - 1) // s
    Wph = Wout + (KW - 1) // s
    phases = []
    for i in range(s):
        for j in range(s):
            phs = xp[:, i::s, j::s, :][:, :Hph, :Wph, :]
            pad_h, pad_w = Hph - phs.shape[1], Wph - phs.shape[2]
            if pad_h or pad_w:
                phs = jnp.pad(phs, ((0, 0), (0, pad_h), (0, pad_w), (0, 0)))
            phases.append(phs)
    xph = jnp.concatenate(phases, axis=1)        # (N, s*s*Hph, Wph, Cin)

    Kdim = KH * KW * Cin
    Coutp = _round_up(Cout, 128)                 # lane-dense output stores

    # PyTorch (Cout, Cin, KH, KW) -> (Kdim, Coutp), (kh, kw, cin) major->minor.
    w_mat = jnp.transpose(weight, (2, 3, 1, 0)).reshape(Kdim, Cout)
    w_mat = jnp.pad(w_mat, ((0, 0), (0, Coutp - Cout))).astype(jnp.bfloat16)

    has_bias = not do_norm   # bias cancels under InstanceNorm(affine=False)
    args = [xph, w_mat]
    in_specs = [
        pl.BlockSpec((None, s * s * Hph, Wph, Cin), lambda n: (n, 0, 0, 0)),
        pl.BlockSpec((Kdim, Coutp), lambda n: (0, 0)),
    ]
    if has_bias:
        b_mat = jnp.pad(bias.reshape(1, Cout),
                        ((0, 0), (0, Coutp - Cout))).astype(jnp.float32)
        args.append(b_mat)
        in_specs.append(pl.BlockSpec((1, Coutp), lambda n: (0, 0)))

    scratch_shapes = []
    if do_norm:
        scratch_shapes.append(pltpu.VMEM((Hout, Wout, Coutp), jnp.float32))

    # Row-block size: target ~128 MXU rows per matmul call.
    GR = max(1, min(Hout, (128 + Wout - 1) // Wout))

    kernel = functools.partial(
        _conv_kernel, stride=s, KH=KH, KW=KW, Hout=Hout, Wout=Wout, Hph=Hph,
        GR=GR, do_norm=do_norm, do_act=do_act, has_bias=has_bias)

    # Explicit VMEM budget from the actual resident blocks (+ margin).
    out_isize = jnp.dtype(out_dtype).itemsize
    vmem_bytes = (2 * (s * s * Hph * Wph * Cin * 2
                       + Kdim * Coutp * 2
                       + Hout * Wout * Coutp * out_isize)
                  + (Hout * Wout * Coutp * 4 if do_norm else 0)
                  + (4 << 20))
    vmem_bytes = int(min(max(vmem_bytes, 8 << 20), 128 << 20))

    out = pl.pallas_call(
        kernel,
        out_shape=jax.ShapeDtypeStruct((N, Hout, Wout, Coutp), out_dtype),
        grid=(N,),
        in_specs=in_specs,
        out_specs=pl.BlockSpec((None, Hout, Wout, Coutp),
                               lambda n: (n, 0, 0, 0)),
        scratch_shapes=scratch_shapes,
        compiler_params=pltpu.CompilerParams(
            dimension_semantics=("parallel",),
            vmem_limit_bytes=vmem_bytes),
    )(*args)

    return out[..., :Cout]                       # strip channel padding


# -----------------------------------------------------------------------------
# Discriminator: parameter setup + layer chaining (glue)
# -----------------------------------------------------------------------------
def init_discriminator_params(key, in_channels=8):
    # Conv2d shapes: (Cout, Cin, KH, KW); deterministic synthetic init.
    shapes = [
        (in_channels, 3, 4, 4),
        (in_channels * 2, in_channels, 4, 4),
        (in_channels * 4, in_channels * 2, 4, 4),
        (in_channels * 8, in_channels * 4, 4, 4),
        (1, in_channels * 8, 4, 4),
    ]
    params = []
    for i, shp in enumerate(shapes):
        kw_, kb_ = jax.random.split(jax.random.fold_in(key, i))
        w = 0.05 * jax.random.normal(kw_, shp, dtype=jnp.float32)
        b = 0.05 * jax.random.normal(kb_, (shp[0],), dtype=jnp.float32)
        params.append((w, b))
    return params


def discriminator_forward(params, x_nchw):
    # Input arrives NCHW (PyTorch convention); convert to NHWC for the kernels.
    x = jnp.transpose(x_nchw, (0, 2, 3, 1)).astype(jnp.float32)

    (w1, b1), (w2, b2), (w3, b3), (w4, b4), (w5, b5) = params

    # conv1: Conv(3 -> C, k4, s2, p1) + LeakyReLU
    x = conv2d_pallas(x, w1, b1, stride=2, padding=1, do_norm=False, do_act=True)
    # conv2: Conv(C -> 2C, k4, s2, p1) + InstanceNorm + LeakyReLU
    x = conv2d_pallas(x, w2, b2, stride=2, padding=1, do_norm=True, do_act=True)
    # conv3: Conv(2C -> 4C, k4, s2, p1) + InstanceNorm + LeakyReLU
    x = conv2d_pallas(x, w3, b3, stride=2, padding=1, do_norm=True, do_act=True)
    # conv4: Conv(4C -> 8C, k4, s1, p1) + InstanceNorm + LeakyReLU
    x = conv2d_pallas(x, w4, b4, stride=1, padding=1, do_norm=True, do_act=True)
    # conv5: Conv(8C -> 1, k4, s1, p1), no norm / no activation, f32 output
    x = conv2d_pallas(x, w5, b5, stride=1, padding=1, do_norm=False,
                      do_act=False, out_dtype=jnp.float32)

    # Back to NCHW to match the PyTorch module output.
    return jnp.transpose(x, (0, 3, 1, 2))


# -----------------------------------------------------------------------------
# Pure-JAX f32 reference (validation only; not the kernel path)
# -----------------------------------------------------------------------------
def _reference_forward(params, x_nchw):
    def conv(x, w, b, stride):
        y = lax.conv_general_dilated(
            x, w, window_strides=(stride, stride), padding=((1, 1), (1, 1)),
            dimension_numbers=("NCHW", "OIHW", "NCHW"),
            precision=lax.Precision.HIGHEST)
        return y + b.reshape(1, -1, 1, 1)

    def inorm(x):
        mean = jnp.mean(x, axis=(2, 3), keepdims=True)
        var = jnp.mean(jnp.square(x - mean), axis=(2, 3), keepdims=True)
        return (x - mean) * lax.rsqrt(var + 1e-5)

    def lrelu(x):
        return jnp.where(x > 0, x, 0.2 * x)

    (w1, b1), (w2, b2), (w3, b3), (w4, b4), (w5, b5) = params
    x = lrelu(conv(x_nchw, w1, b1, 2))
    x = lrelu(inorm(conv(x, w2, b2, 2)))
    x = lrelu(inorm(conv(x, w3, b3, 2)))
    x = lrelu(inorm(conv(x, w4, b4, 1)))
    return conv(x, w5, b5, 1)


if __name__ == "__main__":
    key = jax.random.PRNGKey(0)
    in_channels = 8  # small stand-in for the default 64
    params = init_discriminator_params(jax.random.fold_in(key, 1), in_channels)

    # NCHW input; spatial 32 so all five conv stages have valid (>0) sizes:
    # 32 -> 16 -> 8 -> 4 -> 3 -> 2.
    x = jax.random.normal(jax.random.fold_in(key, 2), (2, 3, 32, 32),
                          dtype=jnp.float32)

    out = jax.block_until_ready(jax.jit(discriminator_forward)(params, x))
    assert out.shape == (2, 1, 2, 2), out.shape
    assert bool(jnp.all(jnp.isfinite(out)))

    # Loose check against an f32 XLA reference (kernel runs the conv in bf16).
    ref = _reference_forward(params, x)
    max_err = float(jnp.max(jnp.abs(out - ref)))
    assert max_err < 0.5, max_err

    print("KERNEL_OK")
</pallas_src>

<mosaic_0001>
module attributes {stable_mosaic.version = 11 : i64} {
  func.func @_conv_kernel(%arg0: i32, %arg1: memref<1x68x17x3xbf16, #tpu.memory_space<vmem>>, %arg2: memref<48x128xbf16, #tpu.memory_space<vmem>>, %arg3: memref<1x128xf32, #tpu.memory_space<vmem>>, %arg4: memref<1x16x16x128xbf16, #tpu.memory_space<vmem>>) attributes {dimension_semantics = [#tpu.dimension_semantics<parallel>], iteration_bounds = array<i64: 2>, scalar_prefetch = 0 : i64, scratch_operands = 0 : i64, tpu.core_type = #tpu.core_type<tc>, window_params = [{transform_indices = @transform_0, window_bounds = array<i64: 1, 68, 17, 3>}, {pipeline_mode = #tpu.pipeline_mode<synchronous>, transform_indices = @transform_1, window_bounds = array<i64: 48, 128>}, {pipeline_mode = #tpu.pipeline_mode<synchronous>, transform_indices = @transform_2, window_bounds = array<i64: 1, 128>}, {transform_indices = @transform_3, window_bounds = array<i64: 1, 16, 16, 128>}]} {
    %c0 = arith.constant 0 : index
    %c0_0 = arith.constant 0 : index
    %0 = vector.load %arg2[%c0, %c0_0] : memref<48x128xbf16, #tpu.memory_space<vmem>>, vector<48x128xbf16>
    %c0_1 = arith.constant 0 : index
    %c0_2 = arith.constant 0 : index
    %1 = vector.load %arg3[%c0_1, %c0_2] : memref<1x128xf32, #tpu.memory_space<vmem>>, vector<1x128xf32>
    %c0_i32 = arith.constant 0 : i32
    %c2_i32 = arith.constant 2 : i32
    %2 = arith.addi %c0_i32, %c2_i32 : i32
    %c1_i32 = arith.constant 1 : i32
    scf.for %arg5 = %c0_i32 to %2 step %c1_i32  : i32 {
      %c8_i32 = arith.constant 8 : i32
      %3 = arith.muli %arg5, %c8_i32 : i32
      %c0_i32_4 = arith.constant 0 : i32
      %4 = arith.addi %3, %c0_i32_4 : i32
      %c0_i32_5 = arith.constant 0 : i32
      %5 = arith.addi %c0_i32_5, %4 : i32
      %c0_6 = arith.constant 0 : index
      %6 = arith.index_cast %5 : i32 to index
      %c0_7 = arith.constant 0 : index
      %c0_8 = arith.constant 0 : index
      %7 = vector.load %arg1[%c0_6, %6, %c0_7, %c0_8] : memref<1x68x17x3xbf16, #tpu.memory_space<vmem>>, vector<1x1x17x3xbf16>
      %8 = vector.shape_cast %7 : vector<1x1x17x3xbf16> to vector<17x3xbf16>
      %c17_i32 = arith.constant 17 : i32
      %9 = arith.addi %c17_i32, %4 : i32
      %c0_9 = arith.constant 0 : index
      %10 = arith.index_cast %9 : i32 to index
      %c0_10 = arith.constant 0 : index
      %c0_11 = arith.constant 0 : index
      %11 = vector.load %arg1[%c0_9, %10, %c0_10, %c0_11] : memref<1x68x17x3xbf16, #tpu.memory_space<vmem>>, vector<1x1x17x3xbf16>
      %12 = vector.shape_cast %11 : vector<1x1x17x3xbf16> to vector<17x3xbf16>
      %13 = vector.extract_strided_slice %8 {offsets = [0, 0], sizes = [16, 3], strides = [1, 1]} : vector<17x3xbf16> to vector<16x3xbf16>
      %14 = vector.extract_strided_slice %12 {offsets = [0, 0], sizes = [16, 3], strides = [1, 1]} : vector<17x3xbf16> to vector<16x3xbf16>
      %15 = vector.extract_strided_slice %8 {offsets = [1, 0], sizes = [16, 3], strides = [1, 1]} : vector<17x3xbf16> to vector<16x3xbf16>
      %16 = vector.extract_strided_slice %12 {offsets = [1, 0], sizes = [16, 3], strides = [1, 1]} : vector<17x3xbf16> to vector<16x3xbf16>
      %c34_i32 = arith.constant 34 : i32
      %17 = arith.addi %c34_i32, %4 : i32
      %c0_12 = arith.constant 0 : index
      %18 = arith.index_cast %17 : i32 to index
      %c0_13 = arith.constant 0 : index
      %c0_14 = arith.constant 0 : index
      %19 = vector.load %arg1[%c0_12, %18, %c0_13, %c0_14] : memref<1x68x17x3xbf16, #tpu.memory_space<vmem>>, vector<1x1x17x3xbf16>
      %20 = vector.shape_cast %19 : vector<1x1x17x3xbf16> to vector<17x3xbf16>
      %c51_i32 = arith.constant 51 : i32
      %21 = arith.addi %c51_i32, %4 : i32
      %c0_15 = arith.constant 0 : index
      %22 = arith.index_cast %21 : i32 to index
      %c0_16 = arith.constant 0 : index
      %c0_17 = arith.constant 0 : index
      %23 = vector.load %arg1[%c0_15, %22, %c0_16, %c0_17] : memref<1x68x17x3xbf16, #tpu.memory_space<vmem>>, vector<1x1x17x3xbf16>
      %24 = vector.shape_cast %23 : vector<1x1x17x3xbf16> to vector<17x3xbf16>
      %25 = vector.extract_strided_slice %20 {offsets = [0, 0], sizes = [16, 3], strides = [1, 1]} : vector<17x3xbf16> to vector<16x3xbf16>
      %26 = vector.extract_strided_slice %24 {offsets = [0, 0], sizes = [16, 3], strides = [1, 1]} : vector<17x3xbf16> to vector<16x3xbf16>
      %27 = vector.extract_strided_slice %20 {offsets = [1, 0], sizes = [16, 3], strides = [1, 1]} : vector<17x3xbf16> to vector<16x3xbf16>
      %28 = vector.extract_strided_slice %24 {offsets = [1, 0], sizes = [16, 3], strides = [1, 1]} : vector<17x3xbf16> to vector<16x3xbf16>
      %c1_i32_18 = arith.constant 1 : i32
      %29 = arith.addi %c1_i32_18, %4 : i32
      %c0_19 = arith.constant 0 : index
      %30 = arith.index_cast %29 : i32 to index
      %c0_20 = arith.constant 0 : index
      %c0_21 = arith.constant 0 : index
      %31 = vector.load %arg1[%c0_19, %30, %c0_20, %c0_21] : memref<1x68x17x3xbf16, #tpu.memory_space<vmem>>, vector<1x1x17x3xbf16>
      %32 = vector.shape_cast %31 : vector<1x1x17x3xbf16> to vector<17x3xbf16>
      %c18_i32 = arith.constant 18 : i32
      %33 = arith.addi %c18_i32, %4 : i32
      %c0_22 = arith.constant 0 : index
      %34 = arith.index_cast %33 : i32 to index
      %c0_23 = arith.constant 0 : index
      %c0_24 = arith.constant 0 : index
      %35 = vector.load %arg1[%c0_22, %34, %c0_23, %c0_24] : memref<1x68x17x3xbf16, #tpu.memory_space<vmem>>, vector<1x1x17x3xbf16>
      %36 = vector.shape_cast %35 : vector<1x1x17x3xbf16> to vector<17x3xbf16>
      %37 = vector.extract_strided_slice %32 {offsets = [0, 0], sizes = [16, 3], strides = [1, 1]} : vector<17x3xbf16> to vector<16x3xbf16>
      %38 = vector.extract_strided_slice %36 {offsets = [0, 0], sizes = [16, 3], strides = [1, 1]} : vector<17x3xbf16> to vector<16x3xbf16>
      %39 = vector.extract_strided_slice %32 {offsets = [1, 0], sizes = [16, 3], strides = [1, 1]} : vector<17x3xbf16> to vector<16x3xbf16>
      %40 = vector.extract_strided_slice %36 {offsets = [1, 0], sizes = [16, 3], strides = [1, 1]} : vector<17x3xbf16> to vector<16x3xbf16>
      %c35_i32 = arith.constant 35 : i32
      %41 = arith.addi %c35_i32, %4 : i32
      %c0_25 = arith.constant 0 : index
      %42 = arith.index_cast %41 : i32 to index
      %c0_26 = arith.constant 0 : index
      %c0_27 = arith.constant 0 : index
      %43 = vector.load %arg1[%c0_25, %42, %c0_26, %c0_27] : memref<1x68x17x3xbf16, #tpu.memory_space<vmem>>, vector<1x1x17x3xbf16>
      %44 = vector.shape_cast %43 : vector<1x1x17x3xbf16> to vector<17x3xbf16>
      %c52_i32 = arith.constant 52 : i32
      %45 = arith.addi %c52_i32, %4 : i32
      %c0_28 = arith.constant 0 : index
      %46 = arith.index_cast %45 : i32 to index
      %c0_29 = arith.constant 0 : index
      %c0_30 = arith.constant 0 : index
      %47 = vector.load %arg1[%c0_28, %46, %c0_29, %c0_30] : memref<1x68x17x3xbf16, #tpu.memory_space<vmem>>, vector<1x1x17x3xbf16>
      %48 = vector.shape_cast %47 : vector<1x1x17x3xbf16> to vector<17x3xbf16>
      %49 = vector.extract_strided_slice %44 {offsets = [0, 0], sizes = [16, 3], strides = [1, 1]} : vector<17x3xbf16> to vector<16x3xbf16>
      %50 = vector.extract_strided_slice %48 {offsets = [0, 0], sizes = [16, 3], strides = [1, 1]} : vector<17x3xbf16> to vector<16x3xbf16>
      %51 = vector.extract_strided_slice %44 {offsets = [1, 0], sizes = [16, 3], strides = [1, 1]} : vector<17x3xbf16> to vector<16x3xbf16>
      %52 = vector.extract_strided_slice %48 {offsets = [1, 0], sizes = [16, 3], strides = [1, 1]} : vector<17x3xbf16> to vector<16x3xbf16>
      %53 = tpu.concatenate %13, %14, %15, %16, %25, %26, %27, %28, %37, %38, %39, %40, %49, %50, %51, %52 in 1 : vector<16x3xbf16>, vector<16x3xbf16>, vector<16x3xbf16>, vector<16x3xbf16>, vector<16x3xbf16>, vector<16x3xbf16>, vector<16x3xbf16>, vector<16x3xbf16>, vector<16x3xbf16>, vector<16x3xbf16>, vector<16x3xbf16>, vector<16x3xbf16>, vector<16x3xbf16>, vector<16x3xbf16>, vector<16x3xbf16>, vector<16x3xbf16> -> vector<16x48xbf16>
      %c1_i32_31 = arith.constant 1 : i32
      %54 = arith.addi %3, %c1_i32_31 : i32
      %c0_i32_32 = arith.constant 0 : i32
      %55 = arith.addi %c0_i32_32, %54 : i32
      %c0_33 = arith.constant 0 : index
      %56 = arith.index_cast %55 : i32 to index
      %c0_34 = arith.constant 0 : index
      %c0_35 = arith.constant 0 : index
      %57 = vector.load %arg1[%c0_33, %56, %c0_34, %c0_35] : memref<1x68x17x3xbf16, #tpu.memory_space<vmem>>, vector<1x1x17x3xbf16>
      %58 = vector.shape_cast %57 : vector<1x1x17x3xbf16> to vector<17x3xbf16>
      %c17_i32_36 = arith.constant 17 : i32
      %59 = arith.addi %c17_i32_36, %54 : i32
      %c0_37 = arith.constant 0 : index
      %60 = arith.index_cast %59 : i32 to index
      %c0_38 = arith.constant 0 : index
      %c0_39 = arith.constant 0 : index
      %61 = vector.load %arg1[%c0_37, %60, %c0_38, %c0_39] : memref<1x68x17x3xbf16, #tpu.memory_space<vmem>>, vector<1x1x17x3xbf16>
      %62 = vector.shape_cast %61 : vector<1x1x17x3xbf16> to vector<17x3xbf16>
      %63 = vector.extract_strided_slice %58 {offsets = [0, 0], sizes = [16, 3], strides = [1, 1]} : vector<17x3xbf16> to vector<16x3xbf16>
      %64 = vector.extract_strided_slice %62 {offsets = [0, 0], sizes = [16, 3], strides = [1, 1]} : vector<17x3xbf16> to vector<16x3xbf16>
      %65 = vector.extract_strided_slice %58 {offsets = [1, 0], sizes = [16, 3], strides = [1, 1]} : vector<17x3xbf16> to vector<16x3xbf16>
      %66 = vector.extract_strided_slice %62 {offsets = [1, 0], sizes = [16, 3], strides = [1, 1]} : vector<17x3xbf16> to vector<16x3xbf16>
      %c34_i32_40 = arith.constant 34 : i32
      %67 = arith.addi %c34_i32_40, %54 : i32
      %c0_41 = arith.constant 0 : index
      %68 = arith.index_cast %67 : i32 to index
      %c0_42 = arith.constant 0 : index
      %c0_43 = arith.constant 0 : index
      %69 = vector.load %arg1[%c0_41, %68, %c0_42, %c0_43] : memref<1x68x17x3xbf16, #tpu.memory_space<vmem>>, vector<1x1x17x3xbf16>
      %70 = vector.shape_cast %69 : vector<1x1x17x3xbf16> to vector<17x3xbf16>
      %c51_i32_44 = arith.constant 51 : i32
      %71 = arith.addi %c51_i32_44, %54 : i32
      %c0_45 = arith.constant 0 : index
      %72 = arith.index_cast %71 : i32 to index
      %c0_46 = arith.constant 0 : index
      %c0_47 = arith.constant 0 : index
      %73 = vector.load %arg1[%c0_45, %72, %c0_46, %c0_47] : memref<1x68x17x3xbf16, #tpu.memory_space<vmem>>, vector<1x1x17x3xbf16>
      %74 = vector.shape_cast %73 : vector<1x1x17x3xbf16> to vector<17x3xbf16>
      %75 = vector.extract_strided_slice %70 {offsets = [0, 0], sizes = [16, 3], strides = [1, 1]} : vector<17x3xbf16> to vector<16x3xbf16>
      %76 = vector.extract_strided_slice %74 {offsets = [0, 0], sizes = [16, 3], strides = [1, 1]} : vector<17x3xbf16> to vector<16x3xbf16>
      %77 = vector.extract_strided_slice %70 {offsets = [1, 0], sizes = [16, 3], strides = [1, 1]} : vector<17x3xbf16> to vector<16x3xbf16>
      %78 = vector.extract_strided_slice %74 {offsets = [1, 0], sizes = [16, 3], strides = [1, 1]} : vector<17x3xbf16> to vector<16x3xbf16>
      %c1_i32_48 = arith.constant 1 : i32
      %79 = arith.addi %c1_i32_48, %54 : i32
      %c0_49 = arith.constant 0 : index
      %80 = arith.index_cast %79 : i32 to index
      %c0_50 = arith.constant 0 : index
      %c0_51 = arith.constant 0 : index
      %81 = vector.load %arg1[%c0_49, %80, %c0_50, %c0_51] : memref<1x68x17x3xbf16, #tpu.memory_space<vmem>>, vector<1x1x17x3xbf16>
      %82 = vector.shape_cast %81 : vector<1x1x17x3xbf16> to vector<17x3xbf16>
      %c18_i32_52 = arith.constant 18 : i32
      %83 = arith.addi %c18_i32_52, %54 : i32
      %c0_53 = arith.constant 0 : index
      %84 = arith.index_cast %83 : i32 to index
      %c0_54 = arith.constant 0 : index
      %c0_55 = arith.constant 0 : index
      %85 = vector.load %arg1[%c0_53, %84, %c0_54, %c0_55] : memref<1x68x17x3xbf16, #tpu.memory_space<vmem>>, vector<1x1x17x3xbf16>
      %86 = vector.shape_cast %85 : vector<1x1x17x3xbf16> to vector<17x3xbf16>
      %87 = vector.extract_strided_slice %82 {offsets = [0, 0], sizes = [16, 3], strides = [1, 1]} : vector<17x3xbf16> to vector<16x3xbf16>
      %88 = vector.extract_strided_slice %86 {offsets = [0, 0], sizes = [16, 3], strides = [1, 1]} : vector<17x3xbf16> to vector<16x3xbf16>
      %89 = vector.extract_strided_slice %82 {offsets = [1, 0], sizes = [16, 3], strides = [1, 1]} : vector<17x3xbf16> to vector<16x3xbf16>
      %90 = vector.extract_strided_slice %86 {offsets = [1, 0], sizes = [16, 3], strides = [1, 1]} : vector<17x3xbf16> to vector<16x3xbf16>
      %c35_i32_56 = arith.constant 35 : i32
      %91 = arith.addi %c35_i32_56, %54 : i32
      %c0_57 = arith.constant 0 : index
      %92 = arith.index_cast %91 : i32 to index
      %c0_58 = arith.constant 0 : index
      %c0_59 = arith.constant 0 : index
      %93 = vector.load %arg1[%c0_57, %92, %c0_58, %c0_59] : memref<1x68x17x3xbf16, #tpu.memory_space<vmem>>, vector<1x1x17x3xbf16>
      %94 = vector.shape_cast %93 : vector<1x1x17x3xbf16> to vector<17x3xbf16>
      %c52_i32_60 = arith.constant 52 : i32
      %95 = arith.addi %c52_i32_60, %54 : i32
      %c0_61 = arith.constant 0 : index
      %96 = arith.index_cast %95 : i32 to index
      %c0_62 = arith.constant 0 : index
      %c0_63 = arith.constant 0 : index
      %97 = vector.load %arg1[%c0_61, %96, %c0_62, %c0_63] : memref<1x68x17x3xbf16, #tpu.memory_space<vmem>>, vector<1x1x17x3xbf16>
      %98 = vector.shape_cast %97 : vector<1x1x17x3xbf16> to vector<17x3xbf16>
      %99 = vector.extract_strided_slice %94 {offsets = [0, 0], sizes = [16, 3], strides = [1, 1]} : vector<17x3xbf16> to vector<16x3xbf16>
      %100 = vector.extract_strided_slice %98 {offsets = [0, 0], sizes = [16, 3], strides = [1, 1]} : vector<17x3xbf16> to vector<16x3xbf16>
      %101 = vector.extract_strided_slice %94 {offsets = [1, 0], sizes = [16, 3], strides = [1, 1]} : vector<17x3xbf16> to vector<16x3xbf16>
      %102 = vector.extract_strided_slice %98 {offsets = [1, 0], sizes = [16, 3], strides = [1, 1]} : vector<17x3xbf16> to vector<16x3xbf16>
      %103 = tpu.concatenate %63, %64, %65, %66, %75, %76, %77, %78, %87, %88, %89, %90, %99, %100, %101, %102 in 1 : vector<16x3xbf16>, vector<16x3xbf16>, vector<16x3xbf16>, vector<16x3xbf16>, vector<16x3xbf16>, vector<16x3xbf16>, vector<16x3xbf16>, vector<16x3xbf16>, vector<16x3xbf16>, vector<16x3xbf16>, vector<16x3xbf16>, vector<16x3xbf16>, vector<16x3xbf16>, vector<16x3xbf16>, vector<16x3xbf16>, vector<16x3xbf16> -> vector<16x48xbf16>
      %c2_i32_64 = arith.constant 2 : i32
      %104 = arith.addi %3, %c2_i32_64 : i32
      %c0_i32_65 = arith.constant 0 : i32
      %105 = arith.addi %c0_i32_65, %104 : i32
      %c0_66 = arith.constant 0 : index
      %106 = arith.index_cast %105 : i32 to index
      %c0_67 = arith.constant 0 : index
      %c0_68 = arith.constant 0 : index
      %107 = vector.load %arg1[%c0_66, %106, %c0_67, %c0_68] : memref<1x68x17x3xbf16, #tpu.memory_space<vmem>>, vector<1x1x17x3xbf16>
      %108 = vector.shape_cast %107 : vector<1x1x17x3xbf16> to vector<17x3xbf16>
      %c17_i32_69 = arith.constant 17 : i32
      %109 = arith.addi %c17_i32_69, %104 : i32
      %c0_70 = arith.constant 0 : index
      %110 = arith.index_cast %109 : i32 to index
      %c0_71 = arith.constant 0 : index
      %c0_72 = arith.constant 0 : index
      %111 = vector.load %arg1[%c0_70, %110, %c0_71, %c0_72] : memref<1x68x17x3xbf16, #tpu.memory_space<vmem>>, vector<1x1x17x3xbf16>
      %112 = vector.shape_cast %111 : vector<1x1x17x3xbf16> to vector<17x3xbf16>
      %113 = vector.extract_strided_slice %108 {offsets = [0, 0], sizes = [16, 3], strides = [1, 1]} : vector<17x3xbf16> to vector<16x3xbf16>
      %114 = vector.extract_strided_slice %112 {offsets = [0, 0], sizes = [16, 3], strides = [1, 1]} : vector<17x3xbf16> to vector<16x3xbf16>
      %115 = vector.extract_strided_slice %108 {offsets = [1, 0], sizes = [16, 3], strides = [1, 1]} : vector<17x3xbf16> to vector<16x3xbf16>
      %116 = vector.extract_strided_slice %112 {offsets = [1, 0], sizes = [16, 3], strides = [1, 1]} : vector<17x3xbf16> to vector<16x3xbf16>
      %c34_i32_73 = arith.constant 34 : i32
      %117 = arith.addi %c34_i32_73, %104 : i32
      %c0_74 = arith.constant 0 : index
      %118 = arith.index_cast %117 : i32 to index
      %c0_75 = arith.constant 0 : index
      %c0_76 = arith.constant 0 : index
      %119 = vector.load %arg1[%c0_74, %118, %c0_75, %c0_76] : memref<1x68x17x3xbf16, #tpu.memory_space<vmem>>, vector<1x1x17x3xbf16>
      %120 = vector.shape_cast %119 : vector<1x1x17x3xbf16> to vector<17x3xbf16>
      %c51_i32_77 = arith.constant 51 : i32
      %121 = arith.addi %c51_i32_77, %104 : i32
      %c0_78 = arith.constant 0 : index
      %122 = arith.index_cast %121 : i32 to index
      %c0_79 = arith.constant 0 : index
      %c0_80 = arith.constant 0 : index
      %123 = vector.load %arg1[%c0_78, %122, %c0_79, %c0_80] : memref<1x68x17x3xbf16, #tpu.memory_space<vmem>>, vector<1x1x17x3xbf16>
      %124 = vector.shape_cast %123 : vector<1x1x17x3xbf16> to vector<17x3xbf16>
      %125 = vector.extract_strided_slice %120 {offsets = [0, 0], sizes = [16, 3], strides = [1, 1]} : vector<17x3xbf16> to vector<16x3xbf16>
      %126 = vector.extract_strided_slice %124 {offsets = [0, 0], sizes = [16, 3], strides = [1, 1]} : vector<17x3xbf16> to vector<16x3xbf16>
      %127 = vector.extract_strided_slice %120 {offsets = [1, 0], sizes = [16, 3], strides = [1, 1]} : vector<17x3xbf16> to vector<16x3xbf16>
      %128 = vector.extract_strided_slice %124 {offsets = [1, 0], sizes = [16, 3], strides = [1, 1]} : vector<17x3xbf16> to vector<16x3xbf16>
      %c1_i32_81 = arith.constant 1 : i32
      %129 = arith.addi %c1_i32_81, %104 : i32
      %c0_82 = arith.constant 0 : index
      %130 = arith.index_cast %129 : i32 to index
      %c0_83 = arith.constant 0 : index
      %c0_84 = arith.constant 0 : index
      %131 = vector.load %arg1[%c0_82, %130, %c0_83, %c0_84] : memref<1x68x17x3xbf16, #tpu.memory_space<vmem>>, vector<1x1x17x3xbf16>
      %132 = vector.shape_cast %131 : vector<1x1x17x3xbf16> to vector<17x3xbf16>
      %c18_i32_85 = arith.constant 18 : i32
      %133 = arith.addi %c18_i32_85, %104 : i32
      %c0_86 = arith.constant 0 : index
      %134 = arith.index_cast %133 : i32 to index
      %c0_87 = arith.constant 0 : index
      %c0_88 = arith.constant 0 : index
      %135 = vector.load %arg1[%c0_86, %134, %c0_87, %c0_88] : memref<1x68x17x3xbf16, #tpu.memory_space<vmem>>, vector<1x1x17x3xbf16>
      %136 = vector.shape_cast %135 : vector<1x1x17x3xbf16> to vector<17x3xbf16>
      %137 = vector.extract_strided_slice %132 {offsets = [0, 0], sizes = [16, 3], strides = [1, 1]} : vector<17x3xbf16> to vector<16x3xbf16>
      %138 = vector.extract_strided_slice %136 {offsets = [0, 0], sizes = [16, 3], strides = [1, 1]} : vector<17x3xbf16> to vector<16x3xbf16>
      %139 = vector.extract_strided_slice %132 {offsets = [1, 0], sizes = [16, 3], strides = [1, 1]} : vector<17x3xbf16> to vector<16x3xbf16>
      %140 = vector.extract_strided_slice %136 {offsets = [1, 0], sizes = [16, 3], strides = [1, 1]} : vector<17x3xbf16> to vector<16x3xbf16>
      %c35_i32_89 = arith.constant 35 : i32
      %141 = arith.addi %c35_i32_89, %104 : i32
      %c0_90 = arith.constant 0 : index
      %142 = arith.index_cast %141 : i32 to index
      %c0_91 = arith.constant 0 : index
      %c0_92 = arith.constant 0 : index
      %143 = vector.load %arg1[%c0_90, %142, %c0_91, %c0_92] : memref<1x68x17x3xbf16, #tpu.memory_space<vmem>>, vector<1x1x17x3xbf16>
      %144 = vector.shape_cast %143 : vector<1x1x17x3xbf16> to vector<17x3xbf16>
      %c52_i32_93 = arith.constant 52 : i32
      %145 = arith.addi %c52_i32_93, %104 : i32
      %c0_94 = arith.constant 0 : index
      %146 = arith.index_cast %145 : i32 to index
      %c0_95 = arith.constant 0 : index
      %c0_96 = arith.constant 0 : index
      %147 = vector.load %arg1[%c0_94, %146, %c0_95, %c0_96] : memref<1x68x17x3xbf16, #tpu.memory_space<vmem>>, vector<1x1x17x3xbf16>
      %148 = vector.shape_cast %147 : vector<1x1x17x3xbf16> to vector<17x3xbf16>
      %149 = vector.extract_strided_slice %144 {offsets = [0, 0], sizes = [16, 3], strides = [1, 1]} : vector<17x3xbf16> to vector<16x3xbf16>
      %150 = vector.extract_strided_slice %148 {offsets = [0, 0], sizes = [16, 3], strides = [1, 1]} : vector<17x3xbf16> to vector<16x3xbf16>
      %151 = vector.extract_strided_slice %144 {offsets = [1, 0], sizes = [16, 3], strides = [1, 1]} : vector<17x3xbf16> to vector<16x3xbf16>
      %152 = vector.extract_strided_slice %148 {offsets = [1, 0], sizes = [16, 3], strides = [1, 1]} : vector<17x3xbf16> to vector<16x3xbf16>
      %153 = tpu.concatenate %113, %114, %115, %116, %125, %126, %127, %128, %137, %138, %139, %140, %149, %150, %151, %152 in 1 : vector<16x3xbf16>, vector<16x3xbf16>, vector<16x3xbf16>, vector<16x3xbf16>, vector<16x3xbf16>, vector<16x3xbf16>, vector<16x3xbf16>, vector<16x3xbf16>, vector<16x3xbf16>, vector<16x3xbf16>, vector<16x3xbf16>, vector<16x3xbf16>, vector<16x3xbf16>, vector<16x3xbf16>, vector<16x3xbf16>, vector<16x3xbf16> -> vector<16x48xbf16>
      %c3_i32 = arith.constant 3 : i32
      %154 = arith.addi %3, %c3_i32 : i32
      %c0_i32_97 = arith.constant 0 : i32
      %155 = arith.addi %c0_i32_97, %154 : i32
      %c0_98 = arith.constant 0 : index
      %156 = arith.index_cast %155 : i32 to index
      %c0_99 = arith.constant 0 : index
      %c0_100 = arith.constant 0 : index
      %157 = vector.load %arg1[%c0_98, %156, %c0_99, %c0_100] : memref<1x68x17x3xbf16, #tpu.memory_space<vmem>>, vector<1x1x17x3xbf16>
      %158 = vector.shape_cast %157 : vector<1x1x17x3xbf16> to vector<17x3xbf16>
      %c17_i32_101 = arith.constant 17 : i32
      %159 = arith.addi %c17_i32_101, %154 : i32
      %c0_102 = arith.constant 0 : index
      %160 = arith.index_cast %159 : i32 to index
      %c0_103 = arith.constant 0 : index
      %c0_104 = arith.constant 0 : index
      %161 = vector.load %arg1[%c0_102, %160, %c0_103, %c0_104] : memref<1x68x17x3xbf16, #tpu.memory_space<vmem>>, vector<1x1x17x3xbf16>
      %162 = vector.shape_cast %161 : vector<1x1x17x3xbf16> to vector<17x3xbf16>
      %163 = vector.extract_strided_slice %158 {offsets = [0, 0], sizes = [16, 3], strides = [1, 1]} : vector<17x3xbf16> to vector<16x3xbf16>
      %164 = vector.extract_strided_slice %162 {offsets = [0, 0], sizes = [16, 3], strides = [1, 1]} : vector<17x3xbf16> to vector<16x3xbf16>
      %165 = vector.extract_strided_slice %158 {offsets = [1, 0], sizes = [16, 3], strides = [1, 1]} : vector<17x3xbf16> to vector<16x3xbf16>
      %166 = vector.extract_strided_slice %162 {offsets = [1, 0], sizes = [16, 3], strides = [1, 1]} : vector<17x3xbf16> to vector<16x3xbf16>
      %c34_i32_105 = arith.constant 34 : i32
      %167 = arith.addi %c34_i32_105, %154 : i32
      %c0_106 = arith.constant 0 : index
      %168 = arith.index_cast %167 : i32 to index
      %c0_107 = arith.constant 0 : index
      %c0_108 = arith.constant 0 : index
      %169 = vector.load %arg1[%c0_106, %168, %c0_107, %c0_108] : memref<1x68x17x3xbf16, #tpu.memory_space<vmem>>, vector<1x1x17x3xbf16>
      %170 = vector.shape_cast %169 : vector<1x1x17x3xbf16> to vector<17x3xbf16>
      %c51_i32_109 = arith.constant 51 : i32
      %171 = arith.addi %c51_i32_109, %154 : i32
      %c0_110 = arith.constant 0 : index
      %172 = arith.index_cast %171 : i32 to index
      %c0_111 = arith.constant 0 : index
      %c0_112 = arith.constant 0 : index
      %173 = vector.load %arg1[%c0_110, %172, %c0_111, %c0_112] : memref<1x68x17x3xbf16, #tpu.memory_space<vmem>>, vector<1x1x17x3xbf16>
      %174 = vector.shape_cast %173 : vector<1x1x17x3xbf16> to vector<17x3xbf16>
      %175 = vector.extract_strided_slice %170 {offsets = [0, 0], sizes = [16, 3], strides = [1, 1]} : vector<17x3xbf16> to vector<16x3xbf16>
      %176 = vector.extract_strided_slice %174 {offsets = [0, 0], sizes = [16, 3], strides = [1, 1]} : vector<17x3xbf16> to vector<16x3xbf16>
      %177 = vector.extract_strided_slice %170 {offsets = [1, 0], sizes = [16, 3], strides = [1, 1]} : vector<17x3xbf16> to vector<16x3xbf16>
      %178 = vector.extract_strided_slice %174 {offsets = [1, 0], sizes = [16, 3], strides = [1, 1]} : vector<17x3xbf16> to vector<16x3xbf16>
      %c1_i32_113 = arith.constant 1 : i32
      %179 = arith.addi %c1_i32_113, %154 : i32
      %c0_114 = arith.constant 0 : index
      %180 = arith.index_cast %179 : i32 to index
      %c0_115 = arith.constant 0 : index
      %c0_116 = arith.constant 0 : index
      %181 = vector.load %arg1[%c0_114, %180, %c0_115, %c0_116] : memref<1x68x17x3xbf16, #tpu.memory_space<vmem>>, vector<1x1x17x3xbf16>
      %182 = vector.shape_cast %181 : vector<1x1x17x3xbf16> to vector<17x3xbf16>
      %c18_i32_117 = arith.constant 18 : i32
      %183 = arith.addi %c18_i32_117, %154 : i32
      %c0_118 = arith.constant 0 : index
      %184 = arith.index_cast %183 : i32 to index
      %c0_119 = arith.constant 0 : index
      %c0_120 = arith.constant 0 : index
      %185 = vector.load %arg1[%c0_118, %184, %c0_119, %c0_120] : memref<1x68x17x3xbf16, #tpu.memory_space<vmem>>, vector<1x1x17x3xbf16>
      %186 = vector.shape_cast %185 : vector<1x1x17x3xbf16> to vector<17x3xbf16>
      %187 = vector.extract_strided_slice %182 {offsets = [0, 0], sizes = [16, 3], strides = [1, 1]} : vector<17x3xbf16> to vector<16x3xbf16>
      %188 = vector.extract_strided_slice %186 {offsets = [0, 0], sizes = [16, 3], strides = [1, 1]} : vector<17x3xbf16> to vector<16x3xbf16>
      %189 = vector.extract_strided_slice %182 {offsets = [1, 0], sizes = [16, 3], strides = [1, 1]} : vector<17x3xbf16> to vector<16x3xbf16>
      %190 = vector.extract_strided_slice %186 {offsets = [1, 0], sizes = [16, 3], strides = [1, 1]} : vector<17x3xbf16> to vector<16x3xbf16>
      %c35_i32_121 = arith.constant 35 : i32
      %191 = arith.addi %c35_i32_121, %154 : i32
      %c0_122 = arith.constant 0 : index
      %192 = arith.index_cast %191 : i32 to index
      %c0_123 = arith.constant 0 : index
      %c0_124 = arith.constant 0 : index
      %193 = vector.load %arg1[%c0_122, %192, %c0_123, %c0_124] : memref<1x68x17x3xbf16, #tpu.memory_space<vmem>>, vector<1x1x17x3xbf16>
      %194 = vector.shape_cast %193 : vector<1x1x17x3xbf16> to vector<17x3xbf16>
      %c52_i32_125 = arith.constant 52 : i32
      %195 = arith.addi %c52_i32_125, %154 : i32
      %c0_126 = arith.constant 0 : index
      %196 = arith.index_cast %195 : i32 to index
      %c0_127 = arith.constant 0 : index
      %c0_128 = arith.constant 0 : index
      %197 = vector.load %arg1[%c0_126, %196, %c0_127, %c0_128] : memref<1x68x17x3xbf16, #tpu.memory_space<vmem>>, vector<1x1x17x3xbf16>
      %198 = vector.shape_cast %197 : vector<1x1x17x3xbf16> to vector<17x3xbf16>
      %199 = vector.extract_strided_slice %194 {offsets = [0, 0], sizes = [16, 3], strides = [1, 1]} : vector<17x3xbf16> to vector<16x3xbf16>
      %200 = vector.extract_strided_slice %198 {offsets = [0, 0], sizes = [16, 3], strides = [1, 1]} : vector<17x3xbf16> to vector<16x3xbf16>
      %201 = vector.extract_strided_slice %194 {offsets = [1, 0], sizes = [16, 3], strides = [1, 1]} : vector<17x3xbf16> to vector<16x3xbf16>
      %202 = vector.extract_strided_slice %198 {offsets = [1, 0], sizes = [16, 3], strides = [1, 1]} : vector<17x3xbf16> to vector<16x3xbf16>
      %203 = tpu.concatenate %163, %164, %165, %166, %175, %176, %177, %178, %187, %188, %189, %190, %199, %200, %201, %202 in 1 : vector<16x3xbf16>, vector<16x3xbf16>, vector<16x3xbf16>, vector<16x3xbf16>, vector<16x3xbf16>, vector<16x3xbf16>, vector<16x3xbf16>, vector<16x3xbf16>, vector<16x3xbf16>, vector<16x3xbf16>, vector<16x3xbf16>, vector<16x3xbf16>, vector<16x3xbf16>, vector<16x3xbf16>, vector<16x3xbf16>, vector<16x3xbf16> -> vector<16x48xbf16>
      %c4_i32 = arith.constant 4 : i32
      %204 = arith.addi %3, %c4_i32 : i32
      %c0_i32_129 = arith.constant 0 : i32
      %205 = arith.addi %c0_i32_129, %204 : i32
      %c0_130 = arith.constant 0 : index
      %206 = arith.index_cast %205 : i32 to index
      %c0_131 = arith.constant 0 : index
      %c0_132 = arith.constant 0 : index
      %207 = vector.load %arg1[%c0_130, %206, %c0_131, %c0_132] : memref<1x68x17x3xbf16, #tpu.memory_space<vmem>>, vector<1x1x17x3xbf16>
      %208 = vector.shape_cast %207 : vector<1x1x17x3xbf16> to vector<17x3xbf16>
      %c17_i32_133 = arith.constant 17 : i32
      %209 = arith.addi %c17_i32_133, %204 : i32
      %c0_134 = arith.constant 0 : index
      %210 = arith.index_cast %209 : i32 to index
      %c0_135 = arith.constant 0 : index
      %c0_136 = arith.constant 0 : index
      %211 = vector.load %arg1[%c0_134, %210, %c0_135, %c0_136] : memref<1x68x17x3xbf16, #tpu.memory_space<vmem>>, vector<1x1x17x3xbf16>
      %212 = vector.shape_cast %211 : vector<1x1x17x3xbf16> to vector<17x3xbf16>
      %213 = vector.extract_strided_slice %208 {offsets = [0, 0], sizes = [16, 3], strides = [1, 1]} : vector<17x3xbf16> to vector<16x3xbf16>
      %214 = vector.extract_strided_slice %212 {offsets = [0, 0], sizes = [16, 3], strides = [1, 1]} : vector<17x3xbf16> to vector<16x3xbf16>
      %215 = vector.extract_strided_slice %208 {offsets = [1, 0], sizes = [16, 3], strides = [1, 1]} : vector<17x3xbf16> to vector<16x3xbf16>
      %216 = vector.extract_strided_slice %212 {offsets = [1, 0], sizes = [16, 3], strides = [1, 1]} : vector<17x3xbf16> to vector<16x3xbf16>
      %c34_i32_137 = arith.constant 34 : i32
      %217 = arith.addi %c34_i32_137, %204 : i32
      %c0_138 = arith.constant 0 : index
      %218 = arith.index_cast %217 : i32 to index
      %c0_139 = arith.constant 0 : index
      %c0_140 = arith.constant 0 : index
      %219 = vector.load %arg1[%c0_138, %218, %c0_139, %c0_140] : memref<1x68x17x3xbf16, #tpu.memory_space<vmem>>, vector<1x1x17x3xbf16>
      %220 = vector.shape_cast %219 : vector<1x1x17x3xbf16> to vector<17x3xbf16>
      %c51_i32_141 = arith.constant 51 : i32
      %221 = arith.addi %c51_i32_141, %204 : i32
      %c0_142 = arith.constant 0 : index
      %222 = arith.index_cast %221 : i32 to index
      %c0_143 = arith.constant 0 : index
      %c0_144 = arith.constant 0 : index
      %223 = vector.load %arg1[%c0_142, %222, %c0_143, %c0_144] : memref<1x68x17x3xbf16, #tpu.memory_space<vmem>>, vector<1x1x17x3xbf16>
      %224 = vector.shape_cast %223 : vector<1x1x17x3xbf16> to vector<17x3xbf16>
      %225 = vector.extract_strided_slice %220 {offsets = [0, 0], sizes = [16, 3], strides = [1, 1]} : vector<17x3xbf16> to vector<16x3xbf16>
      %226 = vector.extract_strided_slice %224 {offsets = [0, 0], sizes = [16, 3], strides = [1, 1]} : vector<17x3xbf16> to vector<16x3xbf16>
      %227 = vector.extract_strided_slice %220 {offsets = [1, 0], sizes = [16, 3], strides = [1, 1]} : vector<17x3xbf16> to vector<16x3xbf16>
      %228 = vector.extract_strided_slice %224 {offsets = [1, 0], sizes = [16, 3], strides = [1, 1]} : vector<17x3xbf16> to vector<16x3xbf16>
      %c1_i32_145 = arith.constant 1 : i32
      %229 = arith.addi %c1_i32_145, %204 : i32
      %c0_146 = arith.constant 0 : index
      %230 = arith.index_cast %229 : i32 to index
      %c0_147 = arith.constant 0 : index
      %c0_148 = arith.constant 0 : index
      %231 = vector.load %arg1[%c0_146, %230, %c0_147, %c0_148] : memref<1x68x17x3xbf16, #tpu.memory_space<vmem>>, vector<1x1x17x3xbf16>
      %232 = vector.shape_cast %231 : vector<1x1x17x3xbf16> to vector<17x3xbf16>
      %c18_i32_149 = arith.constant 18 : i32
      %233 = arith.addi %c18_i32_149, %204 : i32
      %c0_150 = arith.constant 0 : index
      %234 = arith.index_cast %233 : i32 to index
      %c0_151 = arith.constant 0 : index
      %c0_152 = arith.constant 0 : index
      %235 = vector.load %arg1[%c0_150, %234, %c0_151, %c0_152] : memref<1x68x17x3xbf16, #tpu.memory_space<vmem>>, vector<1x1x17x3xbf16>
      %236 = vector.shape_cast %235 : vector<1x1x17x3xbf16> to vector<17x3xbf16>
      %237 = vector.extract_strided_slice %232 {offsets = [0, 0], sizes = [16, 3], strides = [1, 1]} : vector<17x3xbf16> to vector<16x3xbf16>
      %238 = vector.extract_strided_slice %236 {offsets = [0, 0], sizes = [16, 3], strides = [1, 1]} : vector<17x3xbf16> to vector<16x3xbf16>
      %239 = vector.extract_strided_slice %232 {offsets = [1, 0], sizes = [16, 3], strides = [1, 1]} : vector<17x3xbf16> to vector<16x3xbf16>
      %240 = vector.extract_strided_slice %236 {offsets = [1, 0], sizes = [16, 3], strides = [1, 1]} : vector<17x3xbf16> to vector<16x3xbf16>
      %c35_i32_153 = arith.constant 35 : i32
      %241 = arith.addi %c35_i32_153, %204 : i32
      %c0_154 = arith.constant 0 : index
      %242 = arith.index_cast %241 : i32 to index
      %c0_155 = arith.constant 0 : index
      %c0_156 = arith.constant 0 : index
      %243 = vector.load %arg1[%c0_154, %242, %c0_155, %c0_156] : memref<1x68x17x3xbf16, #tpu.memory_space<vmem>>, vector<1x1x17x3xbf16>
      %244 = vector.shape_cast %243 : vector<1x1x17x3xbf16> to vector<17x3xbf16>
      %c52_i32_157 = arith.constant 52 : i32
      %245 = arith.addi %c52_i32_157, %204 : i32
      %c0_158 = arith.constant 0 : index
      %246 = arith.index_cast %245 : i32 to index
      %c0_159 = arith.constant 0 : index
      %c0_160 = arith.constant 0 : index
      %247 = vector.load %arg1[%c0_158, %246, %c0_159, %c0_160] : memref<1x68x17x3xbf16, #tpu.memory_space<vmem>>, vector<1x1x17x3xbf16>
      %248 = vector.shape_cast %247 : vector<1x1x17x3xbf16> to vector<17x3xbf16>
      %249 = vector.extract_strided_slice %244 {offsets = [0, 0], sizes = [16, 3], strides = [1, 1]} : vector<17x3xbf16> to vector<16x3xbf16>
      %250 = vector.extract_strided_slice %248 {offsets = [0, 0], sizes = [16, 3], strides = [1, 1]} : vector<17x3xbf16> to vector<16x3xbf16>
      %251 = vector.extract_strided_slice %244 {offsets = [1, 0], sizes = [16, 3], strides = [1, 1]} : vector<17x3xbf16> to vector<16x3xbf16>
      %252 = vector.extract_strided_slice %248 {offsets = [1, 0], sizes = [16, 3], strides = [1, 1]} : vector<17x3xbf16> to vector<16x3xbf16>
      %253 = tpu.concatenate %213, %214, %215, %216, %225, %226, %227, %228, %237, %238, %239, %240, %249, %250, %251, %252 in 1 : vector<16x3xbf16>, vector<16x3xbf16>, vector<16x3xbf16>, vector<16x3xbf16>, vector<16x3xbf16>, vector<16x3xbf16>, vector<16x3xbf16>, vector<16x3xbf16>, vector<16x3xbf16>, vector<16x3xbf16>, vector<16x3xbf16>, vector<16x3xbf16>, vector<16x3xbf16>, vector<16x3xbf16>, vector<16x3xbf16>, vector<16x3xbf16> -> vector<16x48xbf16>
      %c5_i32 = arith.constant 5 : i32
      %254 = arith.addi %3, %c5_i32 : i32
      %c0_i32_161 = arith.constant 0 : i32
      %255 = arith.addi %c0_i32_161, %254 : i32
      %c0_162 = arith.constant 0 : index
      %256 = arith.index_cast %255 : i32 to index
      %c0_163 = arith.constant 0 : index
      %c0_164 = arith.constant 0 : index
      %257 = vector.load %arg1[%c0_162, %256, %c0_163, %c0_164] : memref<1x68x17x3xbf16, #tpu.memory_space<vmem>>, vector<1x1x17x3xbf16>
      %258 = vector.shape_cast %257 : vector<1x1x17x3xbf16> to vector<17x3xbf16>
      %c17_i32_165 = arith.constant 17 : i32
      %259 = arith.addi %c17_i32_165, %254 : i32
      %c0_166 = arith.constant 0 : index
      %260 = arith.index_cast %259 : i32 to index
      %c0_167 = arith.constant 0 : index
      %c0_168 = arith.constant 0 : index
      %261 = vector.load %arg1[%c0_166, %260, %c0_167, %c0_168] : memref<1x68x17x3xbf16, #tpu.memory_space<vmem>>, vector<1x1x17x3xbf16>
      %262 = vector.shape_cast %261 : vector<1x1x17x3xbf16> to vector<17x3xbf16>
      %263 = vector.extract_strided_slice %258 {offsets = [0, 0], sizes = [16, 3], strides = [1, 1]} : vector<17x3xbf16> to vector<16x3xbf16>
      %264 = vector.extract_strided_slice %262 {offsets = [0, 0], sizes = [16, 3], strides = [1, 1]} : vector<17x3xbf16> to vector<16x3xbf16>
      %265 = vector.extract_strided_slice %258 {offsets = [1, 0], sizes = [16, 3], strides = [1, 1]} : vector<17x3xbf16> to vector<16x3xbf16>
      %266 = vector.extract_strided_slice %262 {offsets = [1, 0], sizes = [16, 3], strides = [1, 1]} : vector<17x3xbf16> to vector<16x3xbf16>
      %c34_i32_169 = arith.constant 34 : i32
      %267 = arith.addi %c34_i32_169, %254 : i32
      %c0_170 = arith.constant 0 : index
      %268 = arith.index_cast %267 : i32 to index
      %c0_171 = arith.constant 0 : index
      %c0_172 = arith.constant 0 : index
      %269 = vector.load %arg1[%c0_170, %268, %c0_171, %c0_172] : memref<1x68x17x3xbf16, #tpu.memory_space<vmem>>, vector<1x1x17x3xbf16>
      %270 = vector.shape_cast %269 : vector<1x1x17x3xbf16> to vector<17x3xbf16>
      %c51_i32_173 = arith.constant 51 : i32
      %271 = arith.addi %c51_i32_173, %254 : i32
      %c0_174 = arith.constant 0 : index
      %272 = arith.index_cast %271 : i32 to index
      %c0_175 = arith.constant 0 : index
      %c0_176 = arith.constant 0 : index
      %273 = vector.load %arg1[%c0_174, %272, %c0_175, %c0_176] : memref<1x68x17x3xbf16, #tpu.memory_space<vmem>>, vector<1x1x17x3xbf16>
      %274 = vector.shape_cast %273 : vector<1x1x17x3xbf16> to vector<17x3xbf16>
      %275 = vector.extract_strided_slice %270 {offsets = [0, 0], sizes = [16, 3], strides = [1, 1]} : vector<17x3xbf16> to vector<16x3xbf16>
      %276 = vector.extract_strided_slice %274 {offsets = [0, 0], sizes = [16, 3], strides = [1, 1]} : vector<17x3xbf16> to vector<16x3xbf16>
      %277 = vector.extract_strided_slice %270 {offsets = [1, 0], sizes = [16, 3], strides = [1, 1]} : vector<17x3xbf16> to vector<16x3xbf16>
      %278 = vector.extract_strided_slice %274 {offsets = [1, 0], sizes = [16, 3], strides = [1, 1]} : vector<17x3xbf16> to vector<16x3xbf16>
      %c1_i32_177 = arith.constant 1 : i32
      %279 = arith.addi %c1_i32_177, %254 : i32
      %c0_178 = arith.constant 0 : index
      %280 = arith.index_cast %279 : i32 to index
      %c0_179 = arith.constant 0 : index
      %c0_180 = arith.constant 0 : index
      %281 = vector.load %arg1[%c0_178, %280, %c0_179, %c0_180] : memref<1x68x17x3xbf16, #tpu.memory_space<vmem>>, vector<1x1x17x3xbf16>
      %282 = vector.shape_cast %281 : vector<1x1x17x3xbf16> to vector<17x3xbf16>
      %c18_i32_181 = arith.constant 18 : i32
      %283 = arith.addi %c18_i32_181, %254 : i32
      %c0_182 = arith.constant 0 : index
      %284 = arith.index_cast %283 : i32 to index
      %c0_183 = arith.constant 0 : index
      %c0_184 = arith.constant 0 : index
      %285 = vector.load %arg1[%c0_182, %284, %c0_183, %c0_184] : memref<1x68x17x3xbf16, #tpu.memory_space<vmem>>, vector<1x1x17x3xbf16>
      %286 = vector.shape_cast %285 : vector<1x1x17x3xbf16> to vector<17x3xbf16>
      %287 = vector.extract_strided_slice %282 {offsets = [0, 0], sizes = [16, 3], strides = [1, 1]} : vector<17x3xbf16> to vector<16x3xbf16>
      %288 = vector.extract_strided_slice %286 {offsets = [0, 0], sizes = [16, 3], strides = [1, 1]} : vector<17x3xbf16> to vector<16x3xbf16>
      %289 = vector.extract_strided_slice %282 {offsets = [1, 0], sizes = [16, 3], strides = [1, 1]} : vector<17x3xbf16> to vector<16x3xbf16>
      %290 = vector.extract_strided_slice %286 {offsets = [1, 0], sizes = [16, 3], strides = [1, 1]} : vector<17x3xbf16> to vector<16x3xbf16>
      %c35_i32_185 = arith.constant 35 : i32
      %291 = arith.addi %c35_i32_185, %254 : i32
      %c0_186 = arith.constant 0 : index
      %292 = arith.index_cast %291 : i32 to index
      %c0_187 = arith.constant 0 : index
      %c0_188 = arith.constant 0 : index
      %293 = vector.load %arg1[%c0_186, %292, %c0_187, %c0_188] : memref<1x68x17x3xbf16, #tpu.memory_space<vmem>>, vector<1x1x17x3xbf16>
      %294 = vector.shape_cast %293 : vector<1x1x17x3xbf16> to vector<17x3xbf16>
      %c52_i32_189 = arith.constant 52 : i32
      %295 = arith.addi %c52_i32_189, %254 : i32
      %c0_190 = arith.constant 0 : index
      %296 = arith.index_cast %295 : i32 to index
      %c0_191 = arith.constant 0 : index
      %c0_192 = arith.constant 0 : index
      %297 = vector.load %arg1[%c0_190, %296, %c0_191, %c0_192] : memref<1x68x17x3xbf16, #tpu.memory_space<vmem>>, vector<1x1x17x3xbf16>
      %298 = vector.shape_cast %297 : vector<1x1x17x3xbf16> to vector<17x3xbf16>
      %299 = vector.extract_strided_slice %294 {offsets = [0, 0], sizes = [16, 3], strides = [1, 1]} : vector<17x3xbf16> to vector<16x3xbf16>
      %300 = vector.extract_strided_slice %298 {offsets = [0, 0], sizes = [16, 3], strides = [1, 1]} : vector<17x3xbf16> to vector<16x3xbf16>
      %301 = vector.extract_strided_slice %294 {offsets = [1, 0], sizes = [16, 3], strides = [1, 1]} : vector<17x3xbf16> to vector<16x3xbf16>
      %302 = vector.extract_strided_slice %298 {offsets = [1, 0], sizes = [16, 3], strides = [1, 1]} : vector<17x3xbf16> to vector<16x3xbf16>
      %303 = tpu.concatenate %263, %264, %265, %266, %275, %276, %277, %278, %287, %288, %289, %290, %299, %300, %301, %302 in 1 : vector<16x3xbf16>, vector<16x3xbf16>, vector<16x3xbf16>, vector<16x3xbf16>, vector<16x3xbf16>, vector<16x3xbf16>, vector<16x3xbf16>, vector<16x3xbf16>, vector<16x3xbf16>, vector<16x3xbf16>, vector<16x3xbf16>, vector<16x3xbf16>, vector<16x3xbf16>, vector<16x3xbf16>, vector<16x3xbf16>, vector<16x3xbf16> -> vector<16x48xbf16>
      %c6_i32 = arith.constant 6 : i32
      %304 = arith.addi %3, %c6_i32 : i32
      %c0_i32_193 = arith.constant 0 : i32
      %305 = arith.addi %c0_i32_193, %304 : i32
      %c0_194 = arith.constant 0 : index
      %306 = arith.index_cast %305 : i32 to index
      %c0_195 = arith.constant 0 : index
      %c0_196 = arith.constant 0 : index
      %307 = vector.load %arg1[%c0_194, %306, %c0_195, %c0_196] : memref<1x68x17x3xbf16, #tpu.memory_space<vmem>>, vector<1x1x17x3xbf16>
      %308 = vector.shape_cast %307 : vector<1x1x17x3xbf16> to vector<17x3xbf16>
      %c17_i32_197 = arith.constant 17 : i32
      %309 = arith.addi %c17_i32_197, %304 : i32
      %c0_198 = arith.constant 0 : index
      %310 = arith.index_cast %309 : i32 to index
      %c0_199 = arith.constant 0 : index
      %c0_200 = arith.constant 0 : index
      %311 = vector.load %arg1[%c0_198, %310, %c0_199, %c0_200] : memref<1x68x17x3xbf16, #tpu.memory_space<vmem>>, vector<1x1x17x3xbf16>
      %312 = vector.shape_cast %311 : vector<1x1x17x3xbf16> to vector<17x3xbf16>
      %313 = vector.extract_strided_slice %308 {offsets = [0, 0], sizes = [16, 3], strides = [1, 1]} : vector<17x3xbf16> to vector<16x3xbf16>
      %314 = vector.extract_strided_slice %312 {offsets = [0, 0], sizes = [16, 3], strides = [1, 1]} : vector<17x3xbf16> to vector<16x3xbf16>
      %315 = vector.extract_strided_slice %308 {offsets = [1, 0], sizes = [16, 3], strides = [1, 1]} : vector<17x3xbf16> to vector<16x3xbf16>
      %316 = vector.extract_strided_slice %312 {offsets = [1, 0], sizes = [16, 3], strides = [1, 1]} : vector<17x3xbf16> to vector<16x3xbf16>
      %c34_i32_201 = arith.constant 34 : i32
      %317 = arith.addi %c34_i32_201, %304 : i32
      %c0_202 = arith.constant 0 : index
      %318 = arith.index_cast %317 : i32 to index
      %c0_203 = arith.constant 0 : index
      %c0_204 = arith.constant 0 : index
      %319 = vector.load %arg1[%c0_202, %318, %c0_203, %c0_204] : memref<1x68x17x3xbf16, #tpu.memory_space<vmem>>, vector<1x1x17x3xbf16>
      %320 = vector.shape_cast %319 : vector<1x1x17x3xbf16> to vector<17x3xbf16>
      %c51_i32_205 = arith.constant 51 : i32
      %321 = arith.addi %c51_i32_205, %304 : i32
      %c0_206 = arith.constant 0 : index
      %322 = arith.index_cast %321 : i32 to index
      %c0_207 = arith.constant 0 : index
      %c0_208 = arith.constant 0 : index
      %323 = vector.load %arg1[%c0_206, %322, %c0_207, %c0_208] : memref<1x68x17x3xbf16, #tpu.memory_space<vmem>>, vector<1x1x17x3xbf16>
      %324 = vector.shape_cast %323 : vector<1x1x17x3xbf16> to vector<17x3xbf16>
      %325 = vector.extract_strided_slice %320 {offsets = [0, 0], sizes = [16, 3], strides = [1, 1]} : vector<17x3xbf16> to vector<16x3xbf16>
      %326 = vector.extract_strided_slice %324 {offsets = [0, 0], sizes = [16, 3], strides = [1, 1]} : vector<17x3xbf16> to vector<16x3xbf16>
      %327 = vector.extract_strided_slice %320 {offsets = [1, 0], sizes = [16, 3], strides = [1, 1]} : vector<17x3xbf16> to vector<16x3xbf16>
      %328 = vector.extract_strided_slice %324 {offsets = [1, 0], sizes = [16, 3], strides = [1, 1]} : vector<17x3xbf16> to vector<16x3xbf16>
      %c1_i32_209 = arith.constant 1 : i32
      %329 = arith.addi %c1_i32_209, %304 : i32
      %c0_210 = arith.constant 0 : index
      %330 = arith.index_cast %329 : i32 to index
      %c0_211 = arith.constant 0 : index
      %c0_212 = arith.constant 0 : index
      %331 = vector.load %arg1[%c0_210, %330, %c0_211, %c0_212] : memref<1x68x17x3xbf16, #tpu.memory_space<vmem>>, vector<1x1x17x3xbf16>
      %332 = vector.shape_cast %331 : vector<1x1x17x3xbf16> to vector<17x3xbf16>
      %c18_i32_213 = arith.constant 18 : i32
      %333 = arith.addi %c18_i32_213, %304 : i32
      %c0_214 = arith.constant 0 : index
      %334 = arith.index_cast %333 : i32 to index
      %c0_215 = arith.constant 0 : index
      %c0_216 = arith.constant 0 : index
      %335 = vector.load %arg1[%c0_214, %334, %c0_215, %c0_216] : memref<1x68x17x3xbf16, #tpu.memory_space<vmem>>, vector<1x1x17x3xbf16>
      %336 = vector.shape_cast %335 : vector<1x1x17x3xbf16> to vector<17x3xbf16>
      %337 = vector.extract_strided_slice %332 {offsets = [0, 0], sizes = [16, 3], strides = [1, 1]} : vector<17x3xbf16> to vector<16x3xbf16>
      %338 = vector.extract_strided_slice %336 {offsets = [0, 0], sizes = [16, 3], strides = [1, 1]} : vector<17x3xbf16> to vector<16x3xbf16>
      %339 = vector.extract_strided_slice %332 {offsets = [1, 0], sizes = [16, 3], strides = [1, 1]} : vector<17x3xbf16> to vector<16x3xbf16>
      %340 = vector.extract_strided_slice %336 {offsets = [1, 0], sizes = [16, 3], strides = [1, 1]} : vector<17x3xbf16> to vector<16x3xbf16>
      %c35_i32_217 = arith.constant 35 : i32
      %341 = arith.addi %c35_i32_217, %304 : i32
      %c0_218 = arith.constant 0 : index
      %342 = arith.index_cast %341 : i32 to index
      %c0_219 = arith.constant 0 : index
      %c0_220 = arith.constant 0 : index
      %343 = vector.load %arg1[%c0_218, %342, %c0_219, %c0_220] : memref<1x68x17x3xbf16, #tpu.memory_space<vmem>>, vector<1x1x17x3xbf16>
      %344 = vector.shape_cast %343 : vector<1x1x17x3xbf16> to vector<17x3xbf16>
      %c52_i32_221 = arith.constant 52 : i32
      %345 = arith.addi %c52_i32_221, %304 : i32
      %c0_222 = arith.constant 0 : index
      %346 = arith.index_cast %345 : i32 to index
      %c0_223 = arith.constant 0 : index
      %c0_224 = arith.constant 0 : index
      %347 = vector.load %arg1[%c0_222, %346, %c0_223, %c0_224] : memref<1x68x17x3xbf16, #tpu.memory_space<vmem>>, vector<1x1x17x3xbf16>
      %348 = vector.shape_cast %347 : vector<1x1x17x3xbf16> to vector<17x3xbf16>
      %349 = vector.extract_strided_slice %344 {offsets = [0, 0], sizes = [16, 3], strides = [1, 1]} : vector<17x3xbf16> to vector<16x3xbf16>
      %350 = vector.extract_strided_slice %348 {offsets = [0, 0], sizes = [16, 3], strides = [1, 1]} : vector<17x3xbf16> to vector<16x3xbf16>
      %351 = vector.extract_strided_slice %344 {offsets = [1, 0], sizes = [16, 3], strides = [1, 1]} : vector<17x3xbf16> to vector<16x3xbf16>
      %352 = vector.extract_strided_slice %348 {offsets = [1, 0], sizes = [16, 3], strides = [1, 1]} : vector<17x3xbf16> to vector<16x3xbf16>
      %353 = tpu.concatenate %313, %314, %315, %316, %325, %326, %327, %328, %337, %338, %339, %340, %349, %350, %351, %352 in 1 : vector<16x3xbf16>, vector<16x3xbf16>, vector<16x3xbf16>, vector<16x3xbf16>, vector<16x3xbf16>, vector<16x3xbf16>, vector<16x3xbf16>, vector<16x3xbf16>, vector<16x3xbf16>, vector<16x3xbf16>, vector<16x3xbf16>, vector<16x3xbf16>, vector<16x3xbf16>, vector<16x3xbf16>, vector<16x3xbf16>, vector<16x3xbf16> -> vector<16x48xbf16>
      %c7_i32 = arith.constant 7 : i32
      %354 = arith.addi %3, %c7_i32 : i32
      %c0_i32_225 = arith.constant 0 : i32
      %355 = arith.addi %c0_i32_225, %354 : i32
      %c0_226 = arith.constant 0 : index
      %356 = arith.index_cast %355 : i32 to index
      %c0_227 = arith.constant 0 : index
      %c0_228 = arith.constant 0 : index
      %357 = vector.load %arg1[%c0_226, %356, %c0_227, %c0_228] : memref<1x68x17x3xbf16, #tpu.memory_space<vmem>>, vector<1x1x17x3xbf16>
      %358 = vector.shape_cast %357 : vector<1x1x17x3xbf16> to vector<17x3xbf16>
      %c17_i32_229 = arith.constant 17 : i32
      %359 = arith.addi %c17_i32_229, %354 : i32
      %c0_230 = arith.constant 0 : index
      %360 = arith.index_cast %359 : i32 to index
      %c0_231 = arith.constant 0 : index
      %c0_232 = arith.constant 0 : index
      %361 = vector.load %arg1[%c0_230, %360, %c0_231, %c0_232] : memref<1x68x17x3xbf16, #tpu.memory_space<vmem>>, vector<1x1x17x3xbf16>
      %362 = vector.shape_cast %361 : vector<1x1x17x3xbf16> to vector<17x3xbf16>
      %363 = vector.extract_strided_slice %358 {offsets = [0, 0], sizes = [16, 3], strides = [1, 1]} : vector<17x3xbf16> to vector<16x3xbf16>
      %364 = vector.extract_strided_slice %362 {offsets = [0, 0], sizes = [16, 3], strides = [1, 1]} : vector<17x3xbf16> to vector<16x3xbf16>
      %365 = vector.extract_strided_slice %358 {offsets = [1, 0], sizes = [16, 3], strides = [1, 1]} : vector<17x3xbf16> to vector<16x3xbf16>
      %366 = vector.extract_strided_slice %362 {offsets = [1, 0], sizes = [16, 3], strides = [1, 1]} : vector<17x3xbf16> to vector<16x3xbf16>
      %c34_i32_233 = arith.constant 34 : i32
      %367 = arith.addi %c34_i32_233, %354 : i32
      %c0_234 = arith.constant 0 : index
      %368 = arith.index_cast %367 : i32 to index
      %c0_235 = arith.constant 0 : index
      %c0_236 = arith.constant 0 : index
      %369 = vector.load %arg1[%c0_234, %368, %c0_235, %c0_236] : memref<1x68x17x3xbf16, #tpu.memory_space<vmem>>, vector<1x1x17x3xbf16>
      %370 = vector.shape_cast %369 : vector<1x1x17x3xbf16> to vector<17x3xbf16>
      %c51_i32_237 = arith.constant 51 : i32
      %371 = arith.addi %c51_i32_237, %354 : i32
      %c0_238 = arith.constant 0 : index
      %372 = arith.index_cast %371 : i32 to index
      %c0_239 = arith.constant 0 : index
      %c0_240 = arith.constant 0 : index
      %373 = vector.load %arg1[%c0_238, %372, %c0_239, %c0_240] : memref<1x68x17x3xbf16, #tpu.memory_space<vmem>>, vector<1x1x17x3xbf16>
      %374 = vector.shape_cast %373 : vector<1x1x17x3xbf16> to vector<17x3xbf16>
      %375 = vector.extract_strided_slice %370 {offsets = [0, 0], sizes = [16, 3], strides = [1, 1]} : vector<17x3xbf16> to vector<16x3xbf16>
      %376 = vector.extract_strided_slice %374 {offsets = [0, 0], sizes = [16, 3], strides = [1, 1]} : vector<17x3xbf16> to vector<16x3xbf16>
      %377 = vector.extract_strided_slice %370 {offsets = [1, 0], sizes = [16, 3], strides = [1, 1]} : vector<17x3xbf16> to vector<16x3xbf16>
      %378 = vector.extract_strided_slice %374 {offsets = [1, 0], sizes = [16, 3], strides = [1, 1]} : vector<17x3xbf16> to vector<16x3xbf16>
      %c1_i32_241 = arith.constant 1 : i32
      %379 = arith.addi %c1_i32_241, %354 : i32
      %c0_242 = arith.constant 0 : index
      %380 = arith.index_cast %379 : i32 to index
      %c0_243 = arith.constant 0 : index
      %c0_244 = arith.constant 0 : index
      %381 = vector.load %arg1[%c0_242, %380, %c0_243, %c0_244] : memref<1x68x17x3xbf16, #tpu.memory_space<vmem>>, vector<1x1x17x3xbf16>
      %382 = vector.shape_cast %381 : vector<1x1x17x3xbf16> to vector<17x3xbf16>
      %c18_i32_245 = arith.constant 18 : i32
      %383 = arith.addi %c18_i32_245, %354 : i32
      %c0_246 = arith.constant 0 : index
      %384 = arith.index_cast %383 : i32 to index
      %c0_247 = arith.constant 0 : index
      %c0_248 = arith.constant 0 : index
      %385 = vector.load %arg1[%c0_246, %384, %c0_247, %c0_248] : memref<1x68x17x3xbf16, #tpu.memory_space<vmem>>, vector<1x1x17x3xbf16>
      %386 = vector.shape_cast %385 : vector<1x1x17x3xbf16> to vector<17x3xbf16>
      %387 = vector.extract_strided_slice %382 {offsets = [0, 0], sizes = [16, 3], strides = [1, 1]} : vector<17x3xbf16> to vector<16x3xbf16>
      %388 = vector.extract_strided_slice %386 {offsets = [0, 0], sizes = [16, 3], strides = [1, 1]} : vector<17x3xbf16> to vector<16x3xbf16>
      %389 = vector.extract_strided_slice %382 {offsets = [1, 0], sizes = [16, 3], strides = [1, 1]} : vector<17x3xbf16> to vector<16x3xbf16>
      %390 = vector.extract_strided_slice %386 {offsets = [1, 0], sizes = [16, 3], strides = [1, 1]} : vector<17x3xbf16> to vector<16x3xbf16>
      %c35_i32_249 = arith.constant 35 : i32
      %391 = arith.addi %c35_i32_249, %354 : i32
      %c0_250 = arith.constant 0 : index
      %392 = arith.index_cast %391 : i32 to index
      %c0_251 = arith.constant 0 : index
      %c0_252 = arith.constant 0 : index
      %393 = vector.load %arg1[%c0_250, %392, %c0_251, %c0_252] : memref<1x68x17x3xbf16, #tpu.memory_space<vmem>>, vector<1x1x17x3xbf16>
      %394 = vector.shape_cast %393 : vector<1x1x17x3xbf16> to vector<17x3xbf16>
      %c52_i32_253 = arith.constant 52 : i32
      %395 = arith.addi %c52_i32_253, %354 : i32
      %c0_254 = arith.constant 0 : index
      %396 = arith.index_cast %395 : i32 to index
      %c0_255 = arith.constant 0 : index
      %c0_256 = arith.constant 0 : index
      %397 = vector.load %arg1[%c0_254, %396, %c0_255, %c0_256] : memref<1x68x17x3xbf16, #tpu.memory_space<vmem>>, vector<1x1x17x3xbf16>
      %398 = vector.shape_cast %397 : vector<1x1x17x3xbf16> to vector<17x3xbf16>
      %399 = vector.extract_strided_slice %394 {offsets = [0, 0], sizes = [16, 3], strides = [1, 1]} : vector<17x3xbf16> to vector<16x3xbf16>
      %400 = vector.extract_strided_slice %398 {offsets = [0, 0], sizes = [16, 3], strides = [1, 1]} : vector<17x3xbf16> to vector<16x3xbf16>
      %401 = vector.extract_strided_slice %394 {offsets = [1, 0], sizes = [16, 3], strides = [1, 1]} : vector<17x3xbf16> to vector<16x3xbf16>
      %402 = vector.extract_strided_slice %398 {offsets = [1, 0], sizes = [16, 3], strides = [1, 1]} : vector<17x3xbf16> to vector<16x3xbf16>
      %403 = tpu.concatenate %363, %364, %365, %366, %375, %376, %377, %378, %387, %388, %389, %390, %399, %400, %401, %402 in 1 : vector<16x3xbf16>, vector<16x3xbf16>, vector<16x3xbf16>, vector<16x3xbf16>, vector<16x3xbf16>, vector<16x3xbf16>, vector<16x3xbf16>, vector<16x3xbf16>, vector<16x3xbf16>, vector<16x3xbf16>, vector<16x3xbf16>, vector<16x3xbf16>, vector<16x3xbf16>, vector<16x3xbf16>, vector<16x3xbf16>, vector<16x3xbf16> -> vector<16x48xbf16>
      %404 = tpu.concatenate %53, %103, %153, %203, %253, %303, %353, %403 in 0 : vector<16x48xbf16>, vector<16x48xbf16>, vector<16x48xbf16>, vector<16x48xbf16>, vector<16x48xbf16>, vector<16x48xbf16>, vector<16x48xbf16>, vector<16x48xbf16> -> vector<128x48xbf16>
      %cst = arith.constant dense<0.000000e+00> : vector<128x128xf32>
      %405 = tpu.matmul %404, %0, %cst {dimension_numbers = #tpu.dot_dimension_numbers<[1], [0], [0], [1], [0, 0, 1, 1], [], []>} : vector<128x48xbf16>, vector<48x128xbf16>, vector<128x128xf32> -> vector<128x128xf32>
      %406 = vector.broadcast %1 : vector<1x128xf32> to vector<128x128xf32>
      %407 = arith.addf %405, %406 : vector<128x128xf32>
      %cst_257 = arith.constant 0.000000e+00 : f32
      %408 = vector.broadcast %cst_257 : f32 to vector<128x128xf32>
      %409 = arith.cmpf ogt, %407, %408 : vector<128x128xf32>
      %cst_258 = arith.constant 2.000000e-01 : f32
      %410 = vector.broadcast %cst_258 : f32 to vector<128x128xf32>
      %411 = arith.mulf %410, %407 : vector<128x128xf32>
      %412 = arith.select %409, %407, %411 : vector<128x128xi1>, vector<128x128xf32>
      %413 = arith.truncf %412 : vector<128x128xf32> to vector<128x128xbf16>
      %414 = vector.extract_strided_slice %413 {offsets = [0, 0], sizes = [16, 128], strides = [1, 1]} : vector<128x128xbf16> to vector<16x128xbf16>
      %c0_i32_259 = arith.constant 0 : i32
      %415 = arith.addi %3, %c0_i32_259 : i32
      %c0_260 = arith.constant 0 : index
      %416 = arith.index_cast %415 : i32 to index
      %c0_261 = arith.constant 0 : index
      %c0_262 = arith.constant 0 : index
      %417 = vector.load %arg4[%c0_260, %416, %c0_261, %c0_262] : memref<1x16x16x128xbf16, #tpu.memory_space<vmem>>, vector<1x1x16x128xbf16>
      %418 = vector.shape_cast %417 : vector<1x1x16x128xbf16> to vector<16x128xbf16>
      %419 = vector.shape_cast %414 : vector<16x128xbf16> to vector<1x1x16x128xbf16>
      tpu.vector_store %arg4[%c0_260, %416, %c0_261, %c0_262], %419 {strides = array<i32>} : memref<1x16x16x128xbf16, #tpu.memory_space<vmem>>, vector<1x1x16x128xbf16>,
      %420 = vector.extract_strided_slice %413 {offsets = [16, 0], sizes = [16, 128], strides = [1, 1]} : vector<128x128xbf16> to vector<16x128xbf16>
      %c1_i32_263 = arith.constant 1 : i32
      %421 = arith.addi %3, %c1_i32_263 : i32
      %c0_264 = arith.constant 0 : index
      %422 = arith.index_cast %421 : i32 to index
      %c0_265 = arith.constant 0 : index
      %c0_266 = arith.constant 0 : index
      %423 = vector.load %arg4[%c0_264, %422, %c0_265, %c0_266] : memref<1x16x16x128xbf16, #tpu.memory_space<vmem>>, vector<1x1x16x128xbf16>
      %424 = vector.shape_cast %423 : vector<1x1x16x128xbf16> to vector<16x128xbf16>
      %425 = vector.shape_cast %420 : vector<16x128xbf16> to vector<1x1x16x128xbf16>
      tpu.vector_store %arg4[%c0_264, %422, %c0_265, %c0_266], %425 {strides = array<i32>} : memref<1x16x16x128xbf16, #tpu.memory_space<vmem>>, vector<1x1x16x128xbf16>,
      %426 = vector.extract_strided_slice %413 {offsets = [32, 0], sizes = [16, 128], strides = [1, 1]} : vector<128x128xbf16> to vector<16x128xbf16>
      %c2_i32_267 = arith.constant 2 : i32
      %427 = arith.addi %3, %c2_i32_267 : i32
      %c0_268 = arith.constant 0 : index
      %428 = arith.index_cast %427 : i32 to index
      %c0_269 = arith.constant 0 : index
      %c0_270 = arith.constant 0 : index
      %429 = vector.load %arg4[%c0_268, %428, %c0_269, %c0_270] : memref<1x16x16x128xbf16, #tpu.memory_space<vmem>>, vector<1x1x16x128xbf16>
      %430 = vector.shape_cast %429 : vector<1x1x16x128xbf16> to vector<16x128xbf16>
      %431 = vector.shape_cast %426 : vector<16x128xbf16> to vector<1x1x16x128xbf16>
      tpu.vector_store %arg4[%c0_268, %428, %c0_269, %c0_270], %431 {strides = array<i32>} : memref<1x16x16x128xbf16, #tpu.memory_space<vmem>>, vector<1x1x16x128xbf16>,
      %432 = vector.extract_strided_slice %413 {offsets = [48, 0], sizes = [16, 128], strides = [1, 1]} : vector<128x128xbf16> to vector<16x128xbf16>
      %c3_i32_271 = arith.constant 3 : i32
      %433 = arith.addi %3, %c3_i32_271 : i32
      %c0_272 = arith.constant 0 : index
      %434 = arith.index_cast %433 : i32 to index
      %c0_273 = arith.constant 0 : index
      %c0_274 = arith.constant 0 : index
      %435 = vector.load %arg4[%c0_272, %434, %c0_273, %c0_274] : memref<1x16x16x128xbf16, #tpu.memory_space<vmem>>, vector<1x1x16x128xbf16>
      %436 = vector.shape_cast %435 : vector<1x1x16x128xbf16> to vector<16x128xbf16>
      %437 = vector.shape_cast %432 : vector<16x128xbf16> to vector<1x1x16x128xbf16>
      tpu.vector_store %arg4[%c0_272, %434, %c0_273, %c0_274], %437 {strides = array<i32>} : memref<1x16x16x128xbf16, #tpu.memory_space<vmem>>, vector<1x1x16x128xbf16>,
      %438 = vector.extract_strided_slice %413 {offsets = [64, 0], sizes = [16, 128], strides = [1, 1]} : vector<128x128xbf16> to vector<16x128xbf16>
      %c4_i32_275 = arith.constant 4 : i32
      %439 = arith.addi %3, %c4_i32_275 : i32
      %c0_276 = arith.constant 0 : index
      %440 = arith.index_cast %439 : i32 to index
      %c0_277 = arith.constant 0 : index
      %c0_278 = arith.constant 0 : index
      %441 = vector.load %arg4[%c0_276, %440, %c0_277, %c0_278] : memref<1x16x16x128xbf16, #tpu.memory_space<vmem>>, vector<1x1x16x128xbf16>
      %442 = vector.shape_cast %441 : vector<1x1x16x128xbf16> to vector<16x128xbf16>
      %443 = vector.shape_cast %438 : vector<16x128xbf16> to vector<1x1x16x128xbf16>
      tpu.vector_store %arg4[%c0_276, %440, %c0_277, %c0_278], %443 {strides = array<i32>} : memref<1x16x16x128xbf16, #tpu.memory_space<vmem>>, vector<1x1x16x128xbf16>,
      %444 = vector.extract_strided_slice %413 {offsets = [80, 0], sizes = [16, 128], strides = [1, 1]} : vector<128x128xbf16> to vector<16x128xbf16>
      %c5_i32_279 = arith.constant 5 : i32
      %445 = arith.addi %3, %c5_i32_279 : i32
      %c0_280 = arith.constant 0 : index
      %446 = arith.index_cast %445 : i32 to index
      %c0_281 = arith.constant 0 : index
      %c0_282 = arith.constant 0 : index
      %447 = vector.load %arg4[%c0_280, %446, %c0_281, %c0_282] : memref<1x16x16x128xbf16, #tpu.memory_space<vmem>>, vector<1x1x16x128xbf16>
      %448 = vector.shape_cast %447 : vector<1x1x16x128xbf16> to vector<16x128xbf16>
      %449 = vector.shape_cast %444 : vector<16x128xbf16> to vector<1x1x16x128xbf16>
      tpu.vector_store %arg4[%c0_280, %446, %c0_281, %c0_282], %449 {strides = array<i32>} : memref<1x16x16x128xbf16, #tpu.memory_space<vmem>>, vector<1x1x16x128xbf16>,
      %450 = vector.extract_strided_slice %413 {offsets = [96, 0], sizes = [16, 128], strides = [1, 1]} : vector<128x128xbf16> to vector<16x128xbf16>
      %c6_i32_283 = arith.constant 6 : i32
      %451 = arith.addi %3, %c6_i32_283 : i32
      %c0_284 = arith.constant 0 : index
      %452 = arith.index_cast %451 : i32 to index
      %c0_285 = arith.constant 0 : index
      %c0_286 = arith.constant 0 : index
      %453 = vector.load %arg4[%c0_284, %452, %c0_285, %c0_286] : memref<1x16x16x128xbf16, #tpu.memory_space<vmem>>, vector<1x1x16x128xbf16>
      %454 = vector.shape_cast %453 : vector<1x1x16x128xbf16> to vector<16x128xbf16>
      %455 = vector.shape_cast %450 : vector<16x128xbf16> to vector<1x1x16x128xbf16>
      tpu.vector_store %arg4[%c0_284, %452, %c0_285, %c0_286], %455 {strides = array<i32>} : memref<1x16x16x128xbf16, #tpu.memory_space<vmem>>, vector<1x1x16x128xbf16>,
      %456 = vector.extract_strided_slice %413 {offsets = [112, 0], sizes = [16, 128], strides = [1, 1]} : vector<128x128xbf16> to vector<16x128xbf16>
      %c7_i32_287 = arith.constant 7 : i32
      %457 = arith.addi %3, %c7_i32_287 : i32
      %c0_288 = arith.constant 0 : index
      %458 = arith.index_cast %457 : i32 to index
      %c0_289 = arith.constant 0 : index
      %c0_290 = arith.constant 0 : index
      %459 = vector.load %arg4[%c0_288, %458, %c0_289, %c0_290] : memref<1x16x16x128xbf16, #tpu.memory_space<vmem>>, vector<1x1x16x128xbf16>
      %460 = vector.shape_cast %459 : vector<1x1x16x128xbf16> to vector<16x128xbf16>
      %461 = vector.shape_cast %456 : vector<16x128xbf16> to vector<1x1x16x128xbf16>
      tpu.vector_store %arg4[%c0_288, %458, %c0_289, %c0_290], %461 {strides = array<i32>} : memref<1x16x16x128xbf16, #tpu.memory_space<vmem>>, vector<1x1x16x128xbf16>,
    }
    %c2_i32_3 = arith.constant 2 : i32
    return
  }
  func.func @transform_0(%arg0: i32) -> (i32, i32, i32, i32) {
    %c0_i32 = arith.constant 0 : i32
    %c0_i32_0 = arith.constant 0 : i32
    %c0_i32_1 = arith.constant 0 : i32
    %c0_i32_2 = arith.constant 0 : i32
    return %arg0, %c0_i32, %c0_i32_0, %c0_i32_1 : i32, i32, i32, i32
  }
  func.func @transform_1(%arg0: i32) -> (i32, i32) {
    %c0_i32 = arith.constant 0 : i32
    %c0_i32_0 = arith.constant 0 : i32
    %c0_i32_1 = arith.constant 0 : i32
    return %c0_i32, %c0_i32_0 : i32, i32
  }
  func.func @transform_2(%arg0: i32) -> (i32, i32) {
    %c0_i32 = arith.constant 0 : i32
    %c0_i32_0 = arith.constant 0 : i32
    %c0_i32_1 = arith.constant 0 : i32
    return %c0_i32, %c0_i32_0 : i32, i32
  }
  func.func @transform_3(%arg0: i32) -> (i32, i32, i32, i32) {
    %c0_i32 = arith.constant 0 : i32
    %c0_i32_0 = arith.constant 0 : i32
    %c0_i32_1 = arith.constant 0 : i32
    %c0_i32_2 = arith.constant 0 : i32
    return %arg0, %c0_i32, %c0_i32_0, %c0_i32_1 : i32, i32, i32, i32
  }
}

module attributes {stable_mosaic.version = 11 : i64} {
  func.func @_conv_kernel(%arg0: i32, %arg1: memref<1x36x9x8xbf16, #tpu.memory_space<vmem>>, %arg2: memref<128x128xbf16, #tpu.memory_space<vmem>>, %arg3: memref<1x8x8x128xbf16, #tpu.memory_space<vmem>>, %arg4: memref<8x8x128xf32, #tpu.memory_space<vmem>>) attributes {dimension_semantics = [#tpu.dimension_semantics<parallel>], iteration_bounds = array<i64: 2>, scalar_prefetch = 0 : i64, scratch_operands = 1 : i64, tpu.core_type = #tpu.core_type<tc>, window_params = [{transform_indices = @transform_0, window_bounds = array<i64: 1, 36, 9, 8>}, {pipeline_mode = #tpu.pipeline_mode<synchronous>, transform_indices = @transform_1, window_bounds = array<i64: 128, 128>}, {transform_indices = @transform_2, window_bounds = array<i64: 1, 8, 8, 128>}]} {
    %c0 = arith.constant 0 : index
    %c0_0 = arith.constant 0 : index
    %0 = vector.load %arg2[%c0, %c0_0] : memref<128x128xbf16, #tpu.memory_space<vmem>>, vector<128x128xbf16>
    %cst = arith.constant 0.000000e+00 : f32
    %1 = vector.broadcast %cst : f32 to vector<1x128xf32>
    %c0_i32 = arith.constant 0 : i32
    %c8_i32 = arith.constant 8 : i32
    %2 = arith.muli %c0_i32, %c8_i32 : i32
    %c0_i32_1 = arith.constant 0 : i32
    %3 = arith.addi %2, %c0_i32_1 : i32
    %c0_i32_2 = arith.constant 0 : i32
    %4 = arith.addi %c0_i32_2, %3 : i32
    %c0_3 = arith.constant 0 : index
    %5 = arith.index_cast %4 : i32 to index
    %c0_4 = arith.constant 0 : index
    %c0_5 = arith.constant 0 : index
    %6 = vector.load %arg1[%c0_3, %5, %c0_4, %c0_5] : memref<1x36x9x8xbf16, #tpu.memory_space<vmem>>, vector<1x1x9x8xbf16>
    %7 = vector.shape_cast %6 : vector<1x1x9x8xbf16> to vector<9x8xbf16>
    %c9_i32 = arith.constant 9 : i32
    %8 = arith.addi %c9_i32, %3 : i32
    %c0_6 = arith.constant 0 : index
    %9 = arith.index_cast %8 : i32 to index
    %c0_7 = arith.constant 0 : index
    %c0_8 = arith.constant 0 : index
    %10 = vector.load %arg1[%c0_6, %9, %c0_7, %c0_8] : memref<1x36x9x8xbf16, #tpu.memory_space<vmem>>, vector<1x1x9x8xbf16>
    %11 = vector.shape_cast %10 : vector<1x1x9x8xbf16> to vector<9x8xbf16>
    %12 = vector.extract_strided_slice %7 {offsets = [0, 0], sizes = [8, 8], strides = [1, 1]} : vector<9x8xbf16> to vector<8x8xbf16>
    %13 = vector.extract_strided_slice %11 {offsets = [0, 0], sizes = [8, 8], strides = [1, 1]} : vector<9x8xbf16> to vector<8x8xbf16>
    %14 = vector.extract_strided_slice %7 {offsets = [1, 0], sizes = [8, 8], strides = [1, 1]} : vector<9x8xbf16> to vector<8x8xbf16>
    %15 = vector.extract_strided_slice %11 {offsets = [1, 0], sizes = [8, 8], strides = [1, 1]} : vector<9x8xbf16> to vector<8x8xbf16>
    %c18_i32 = arith.constant 18 : i32
    %16 = arith.addi %c18_i32, %3 : i32
    %c0_9 = arith.constant 0 : index
    %17 = arith.index_cast %16 : i32 to index
    %c0_10 = arith.constant 0 : index
    %c0_11 = arith.constant 0 : index
    %18 = vector.load %arg1[%c0_9, %17, %c0_10, %c0_11] : memref<1x36x9x8xbf16, #tpu.memory_space<vmem>>, vector<1x1x9x8xbf16>
    %19 = vector.shape_cast %18 : vector<1x1x9x8xbf16> to vector<9x8xbf16>
    %c27_i32 = arith.constant 27 : i32
    %20 = arith.addi %c27_i32, %3 : i32
    %c0_12 = arith.constant 0 : index
    %21 = arith.index_cast %20 : i32 to index
    %c0_13 = arith.constant 0 : index
    %c0_14 = arith.constant 0 : index
    %22 = vector.load %arg1[%c0_12, %21, %c0_13, %c0_14] : memref<1x36x9x8xbf16, #tpu.memory_space<vmem>>, vector<1x1x9x8xbf16>
    %23 = vector.shape_cast %22 : vector<1x1x9x8xbf16> to vector<9x8xbf16>
    %24 = vector.extract_strided_slice %19 {offsets = [0, 0], sizes = [8, 8], strides = [1, 1]} : vector<9x8xbf16> to vector<8x8xbf16>
    %25 = vector.extract_strided_slice %23 {offsets = [0, 0], sizes = [8, 8], strides = [1, 1]} : vector<9x8xbf16> to vector<8x8xbf16>
    %26 = vector.extract_strided_slice %19 {offsets = [1, 0], sizes = [8, 8], strides = [1, 1]} : vector<9x8xbf16> to vector<8x8xbf16>
    %27 = vector.extract_strided_slice %23 {offsets = [1, 0], sizes = [8, 8], strides = [1, 1]} : vector<9x8xbf16> to vector<8x8xbf16>
    %c1_i32 = arith.constant 1 : i32
    %28 = arith.addi %c1_i32, %3 : i32
    %c0_15 = arith.constant 0 : index
    %29 = arith.index_cast %28 : i32 to index
    %c0_16 = arith.constant 0 : index
    %c0_17 = arith.constant 0 : index
    %30 = vector.load %arg1[%c0_15, %29, %c0_16, %c0_17] : memref<1x36x9x8xbf16, #tpu.memory_space<vmem>>, vector<1x1x9x8xbf16>
    %31 = vector.shape_cast %30 : vector<1x1x9x8xbf16> to vector<9x8xbf16>
    %c10_i32 = arith.constant 10 : i32
    %32 = arith.addi %c10_i32, %3 : i32
    %c0_18 = arith.constant 0 : index
    %33 = arith.index_cast %32 : i32 to index
    %c0_19 = arith.constant 0 : index
    %c0_20 = arith.constant 0 : index
    %34 = vector.load %arg1[%c0_18, %33, %c0_19, %c0_20] : memref<1x36x9x8xbf16, #tpu.memory_space<vmem>>, vector<1x1x9x8xbf16>
    %35 = vector.shape_cast %34 : vector<1x1x9x8xbf16> to vector<9x8xbf16>
    %36 = vector.extract_strided_slice %31 {offsets = [0, 0], sizes = [8, 8], strides = [1, 1]} : vector<9x8xbf16> to vector<8x8xbf16>
    %37 = vector.extract_strided_slice %35 {offsets = [0, 0], sizes = [8, 8], strides = [1, 1]} : vector<9x8xbf16> to vector<8x8xbf16>
    %38 = vector.extract_strided_slice %31 {offsets = [1, 0], sizes = [8, 8], strides = [1, 1]} : vector<9x8xbf16> to vector<8x8xbf16>
    %39 = vector.extract_strided_slice %35 {offsets = [1, 0], sizes = [8, 8], strides = [1, 1]} : vector<9x8xbf16> to vector<8x8xbf16>
    %c19_i32 = arith.constant 19 : i32
    %40 = arith.addi %c19_i32, %3 : i32
    %c0_21 = arith.constant 0 : index
    %41 = arith.index_cast %40 : i32 to index
    %c0_22 = arith.constant 0 : index
    %c0_23 = arith.constant 0 : index
    %42 = vector.load %arg1[%c0_21, %41, %c0_22, %c0_23] : memref<1x36x9x8xbf16, #tpu.memory_space<vmem>>, vector<1x1x9x8xbf16>
    %43 = vector.shape_cast %42 : vector<1x1x9x8xbf16> to vector<9x8xbf16>
    %c28_i32 = arith.constant 28 : i32
    %44 = arith.addi %c28_i32, %3 : i32
    %c0_24 = arith.constant 0 : index
    %45 = arith.index_cast %44 : i32 to index
    %c0_25 = arith.constant 0 : index
    %c0_26 = arith.constant 0 : index
    %46 = vector.load %arg1[%c0_24, %45, %c0_25, %c0_26] : memref<1x36x9x8xbf16, #tpu.memory_space<vmem>>, vector<1x1x9x8xbf16>
    %47 = vector.shape_cast %46 : vector<1x1x9x8xbf16> to vector<9x8xbf16>
    %48 = vector.extract_strided_slice %43 {offsets = [0, 0], sizes = [8, 8], strides = [1, 1]} : vector<9x8xbf16> to vector<8x8xbf16>
    %49 = vector.extract_strided_slice %47 {offsets = [0, 0], sizes = [8, 8], strides = [1, 1]} : vector<9x8xbf16> to vector<8x8xbf16>
    %50 = vector.extract_strided_slice %43 {offsets = [1, 0], sizes = [8, 8], strides = [1, 1]} : vector<9x8xbf16> to vector<8x8xbf16>
    %51 = vector.extract_strided_slice %47 {offsets = [1, 0], sizes = [8, 8], strides = [1, 1]} : vector<9x8xbf16> to vector<8x8xbf16>
    %52 = tpu.concatenate %12, %13, %14, %15, %24, %25, %26, %27, %36, %37, %38, %39, %48, %49, %50, %51 in 1 : vector<8x8xbf16>, vector<8x8xbf16>, vector<8x8xbf16>, vector<8x8xbf16>, vector<8x8xbf16>, vector<8x8xbf16>, vector<8x8xbf16>, vector<8x8xbf16>, vector<8x8xbf16>, vector<8x8xbf16>, vector<8x8xbf16>, vector<8x8xbf16>, vector<8x8xbf16>, vector<8x8xbf16>, vector<8x8xbf16>, vector<8x8xbf16> -> vector<8x128xbf16>
    %c1_i32_27 = arith.constant 1 : i32
    %53 = arith.addi %2, %c1_i32_27 : i32
    %c0_i32_28 = arith.constant 0 : i32
    %54 = arith.addi %c0_i32_28, %53 : i32
    %c0_29 = arith.constant 0 : index
    %55 = arith.index_cast %54 : i32 to index
    %c0_30 = arith.constant 0 : index
    %c0_31 = arith.constant 0 : index
    %56 = vector.load %arg1[%c0_29, %55, %c0_30, %c0_31] : memref<1x36x9x8xbf16, #tpu.memory_space<vmem>>, vector<1x1x9x8xbf16>
    %57 = vector.shape_cast %56 : vector<1x1x9x8xbf16> to vector<9x8xbf16>
    %c9_i32_32 = arith.constant 9 : i32
    %58 = arith.addi %c9_i32_32, %53 : i32
    %c0_33 = arith.constant 0 : index
    %59 = arith.index_cast %58 : i32 to index
    %c0_34 = arith.constant 0 : index
    %c0_35 = arith.constant 0 : index
    %60 = vector.load %arg1[%c0_33, %59, %c0_34, %c0_35] : memref<1x36x9x8xbf16, #tpu.memory_space<vmem>>, vector<1x1x9x8xbf16>
    %61 = vector.shape_cast %60 : vector<1x1x9x8xbf16> to vector<9x8xbf16>
    %62 = vector.extract_strided_slice %57 {offsets = [0, 0], sizes = [8, 8], strides = [1, 1]} : vector<9x8xbf16> to vector<8x8xbf16>
    %63 = vector.extract_strided_slice %61 {offsets = [0, 0], sizes = [8, 8], strides = [1, 1]} : vector<9x8xbf16> to vector<8x8xbf16>
    %64 = vector.extract_strided_slice %57 {offsets = [1, 0], sizes = [8, 8], strides = [1, 1]} : vector<9x8xbf16> to vector<8x8xbf16>
    %65 = vector.extract_strided_slice %61 {offsets = [1, 0], sizes = [8, 8], strides = [1, 1]} : vector<9x8xbf16> to vector<8x8xbf16>
    %c18_i32_36 = arith.constant 18 : i32
    %66 = arith.addi %c18_i32_36, %53 : i32
    %c0_37 = arith.constant 0 : index
    %67 = arith.index_cast %66 : i32 to index
    %c0_38 = arith.constant 0 : index
    %c0_39 = arith.constant 0 : index
    %68 = vector.load %arg1[%c0_37, %67, %c0_38, %c0_39] : memref<1x36x9x8xbf16, #tpu.memory_space<vmem>>, vector<1x1x9x8xbf16>
    %69 = vector.shape_cast %68 : vector<1x1x9x8xbf16> to vector<9x8xbf16>
    %c27_i32_40 = arith.constant 27 : i32
    %70 = arith.addi %c27_i32_40, %53 : i32
    %c0_41 = arith.constant 0 : index
    %71 = arith.index_cast %70 : i32 to index
    %c0_42 = arith.constant 0 : index
    %c0_43 = arith.constant 0 : index
    %72 = vector.load %arg1[%c0_41, %71, %c0_42, %c0_43] : memref<1x36x9x8xbf16, #tpu.memory_space<vmem>>, vector<1x1x9x8xbf16>
    %73 = vector.shape_cast %72 : vector<1x1x9x8xbf16> to vector<9x8xbf16>
    %74 = vector.extract_strided_slice %69 {offsets = [0, 0], sizes = [8, 8], strides = [1, 1]} : vector<9x8xbf16> to vector<8x8xbf16>
    %75 = vector.extract_strided_slice %73 {offsets = [0, 0], sizes = [8, 8], strides = [1, 1]} : vector<9x8xbf16> to vector<8x8xbf16>
    %76 = vector.extract_strided_slice %69 {offsets = [1, 0], sizes = [8, 8], strides = [1, 1]} : vector<9x8xbf16> to vector<8x8xbf16>
    %77 = vector.extract_strided_slice %73 {offsets = [1, 0], sizes = [8, 8], strides = [1, 1]} : vector<9x8xbf16> to vector<8x8xbf16>
    %c1_i32_44 = arith.constant 1 : i32
    %78 = arith.addi %c1_i32_44, %53 : i32
    %c0_45 = arith.constant 0 : index
    %79 = arith.index_cast %78 : i32 to index
    %c0_46 = arith.constant 0 : index
    %c0_47 = arith.constant 0 : index
    %80 = vector.load %arg1[%c0_45, %79, %c0_46, %c0_47] : memref<1x36x9x8xbf16, #tpu.memory_space<vmem>>, vector<1x1x9x8xbf16>
    %81 = vector.shape_cast %80 : vector<1x1x9x8xbf16> to vector<9x8xbf16>
    %c10_i32_48 = arith.constant 10 : i32
    %82 = arith.addi %c10_i32_48, %53 : i32
    %c0_49 = arith.constant 0 : index
    %83 = arith.index_cast %82 : i32 to index
    %c0_50 = arith.constant 0 : index
    %c0_51 = arith.constant 0 : index
    %84 = vector.load %arg1[%c0_49, %83, %c0_50, %c0_51] : memref<1x36x9x8xbf16, #tpu.memory_space<vmem>>, vector<1x1x9x8xbf16>
    %85 = vector.shape_cast %84 : vector<1x1x9x8xbf16> to vector<9x8xbf16>
    %86 = vector.extract_strided_slice %81 {offsets = [0, 0], sizes = [8, 8], strides = [1, 1]} : vector<9x8xbf16> to vector<8x8xbf16>
    %87 = vector.extract_strided_slice %85 {offsets = [0, 0], sizes = [8, 8], strides = [1, 1]} : vector<9x8xbf16> to vector<8x8xbf16>
    %88 = vector.extract_strided_slice %81 {offsets = [1, 0], sizes = [8, 8], strides = [1, 1]} : vector<9x8xbf16> to vector<8x8xbf16>
    %89 = vector.extract_strided_slice %85 {offsets = [1, 0], sizes = [8, 8], strides = [1, 1]} : vector<9x8xbf16> to vector<8x8xbf16>
    %c19_i32_52 = arith.constant 19 : i32
    %90 = arith.addi %c19_i32_52, %53 : i32
    %c0_53 = arith.constant 0 : index
    %91 = arith.index_cast %90 : i32 to index
    %c0_54 = arith.constant 0 : index
    %c0_55 = arith.constant 0 : index
    %92 = vector.load %arg1[%c0_53, %91, %c0_54, %c0_55] : memref<1x36x9x8xbf16, #tpu.memory_space<vmem>>, vector<1x1x9x8xbf16>
    %93 = vector.shape_cast %92 : vector<1x1x9x8xbf16> to vector<9x8xbf16>
    %c28_i32_56 = arith.constant 28 : i32
    %94 = arith.addi %c28_i32_56, %53 : i32
    %c0_57 = arith.constant 0 : index
    %95 = arith.index_cast %94 : i32 to index
    %c0_58 = arith.constant 0 : index
    %c0_59 = arith.constant 0 : index
    %96 = vector.load %arg1[%c0_57, %95, %c0_58, %c0_59] : memref<1x36x9x8xbf16, #tpu.memory_space<vmem>>, vector<1x1x9x8xbf16>
    %97 = vector.shape_cast %96 : vector<1x1x9x8xbf16> to vector<9x8xbf16>
    %98 = vector.extract_strided_slice %93 {offsets = [0, 0], sizes = [8, 8], strides = [1, 1]} : vector<9x8xbf16> to vector<8x8xbf16>
    %99 = vector.extract_strided_slice %97 {offsets = [0, 0], sizes = [8, 8], strides = [1, 1]} : vector<9x8xbf16> to vector<8x8xbf16>
    %100 = vector.extract_strided_slice %93 {offsets = [1, 0], sizes = [8, 8], strides = [1, 1]} : vector<9x8xbf16> to vector<8x8xbf16>
    %101 = vector.extract_strided_slice %97 {offsets = [1, 0], sizes = [8, 8], strides = [1, 1]} : vector<9x8xbf16> to vector<8x8xbf16>
    %102 = tpu.concatenate %62, %63, %64, %65, %74, %75, %76, %77, %86, %87, %88, %89, %98, %99, %100, %101 in 1 : vector<8x8xbf16>, vector<8x8xbf16>, vector<8x8xbf16>, vector<8x8xbf16>, vector<8x8xbf16>, vector<8x8xbf16>, vector<8x8xbf16>, vector<8x8xbf16>, vector<8x8xbf16>, vector<8x8xbf16>, vector<8x8xbf16>, vector<8x8xbf16>, vector<8x8xbf16>, vector<8x8xbf16>, vector<8x8xbf16>, vector<8x8xbf16> -> vector<8x128xbf16>
    %c2_i32 = arith.constant 2 : i32
    %103 = arith.addi %2, %c2_i32 : i32
    %c0_i32_60 = arith.constant 0 : i32
    %104 = arith.addi %c0_i32_60, %103 : i32
    %c0_61 = arith.constant 0 : index
    %105 = arith.index_cast %104 : i32 to index
    %c0_62 = arith.constant 0 : index
    %c0_63 = arith.constant 0 : index
    %106 = vector.load %arg1[%c0_61, %105, %c0_62, %c0_63] : memref<1x36x9x8xbf16, #tpu.memory_space<vmem>>, vector<1x1x9x8xbf16>
    %107 = vector.shape_cast %106 : vector<1x1x9x8xbf16> to vector<9x8xbf16>
    %c9_i32_64 = arith.constant 9 : i32
    %108 = arith.addi %c9_i32_64, %103 : i32
    %c0_65 = arith.constant 0 : index
    %109 = arith.index_cast %108 : i32 to index
    %c0_66 = arith.constant 0 : index
    %c0_67 = arith.constant 0 : index
    %110 = vector.load %arg1[%c0_65, %109, %c0_66, %c0_67] : memref<1x36x9x8xbf16, #tpu.memory_space<vmem>>, vector<1x1x9x8xbf16>
    %111 = vector.shape_cast %110 : vector<1x1x9x8xbf16> to vector<9x8xbf16>
    %112 = vector.extract_strided_slice %107 {offsets = [0, 0], sizes = [8, 8], strides = [1, 1]} : vector<9x8xbf16> to vector<8x8xbf16>
    %113 = vector.extract_strided_slice %111 {offsets = [0, 0], sizes = [8, 8], strides = [1, 1]} : vector<9x8xbf16> to vector<8x8xbf16>
    %114 = vector.extract_strided_slice %107 {offsets = [1, 0], sizes = [8, 8], strides = [1, 1]} : vector<9x8xbf16> to vector<8x8xbf16>
    %115 = vector.extract_strided_slice %111 {offsets = [1, 0], sizes = [8, 8], strides = [1, 1]} : vector<9x8xbf16> to vector<8x8xbf16>
    %c18_i32_68 = arith.constant 18 : i32
    %116 = arith.addi %c18_i32_68, %103 : i32
    %c0_69 = arith.constant 0 : index
    %117 = arith.index_cast %116 : i32 to index
    %c0_70 = arith.constant 0 : index
    %c0_71 = arith.constant 0 : index
    %118 = vector.load %arg1[%c0_69, %117, %c0_70, %c0_71] : memref<1x36x9x8xbf16, #tpu.memory_space<vmem>>, vector<1x1x9x8xbf16>
    %119 = vector.shape_cast %118 : vector<1x1x9x8xbf16> to vector<9x8xbf16>
    %c27_i32_72 = arith.constant 27 : i32
    %120 = arith.addi %c27_i32_72, %103 : i32
    %c0_73 = arith.constant 0 : index
    %121 = arith.index_cast %120 : i32 to index
    %c0_74 = arith.constant 0 : index
    %c0_75 = arith.constant 0 : index
    %122 = vector.load %arg1[%c0_73, %121, %c0_74, %c0_75] : memref<1x36x9x8xbf16, #tpu.memory_space<vmem>>, vector<1x1x9x8xbf16>
    %123 = vector.shape_cast %122 : vector<1x1x9x8xbf16> to vector<9x8xbf16>
    %124 = vector.extract_strided_slice %119 {offsets = [0, 0], sizes = [8, 8], strides = [1, 1]} : vector<9x8xbf16> to vector<8x8xbf16>
    %125 = vector.extract_strided_slice %123 {offsets = [0, 0], sizes = [8, 8], strides = [1, 1]} : vector<9x8xbf16> to vector<8x8xbf16>
    %126 = vector.extract_strided_slice %119 {offsets = [1, 0], sizes = [8, 8], strides = [1, 1]} : vector<9x8xbf16> to vector<8x8xbf16>
    %127 = vector.extract_strided_slice %123 {offsets = [1, 0], sizes = [8, 8], strides = [1, 1]} : vector<9x8xbf16> to vector<8x8xbf16>
    %c1_i32_76 = arith.constant 1 : i32
    %128 = arith.addi %c1_i32_76, %103 : i32
    %c0_77 = arith.constant 0 : index
    %129 = arith.index_cast %128 : i32 to index
    %c0_78 = arith.constant 0 : index
    %c0_79 = arith.constant 0 : index
    %130 = vector.load %arg1[%c0_77, %129, %c0_78, %c0_79] : memref<1x36x9x8xbf16, #tpu.memory_space<vmem>>, vector<1x1x9x8xbf16>
    %131 = vector.shape_cast %130 : vector<1x1x9x8xbf16> to vector<9x8xbf16>
    %c10_i32_80 = arith.constant 10 : i32
    %132 = arith.addi %c10_i32_80, %103 : i32
    %c0_81 = arith.constant 0 : index
    %133 = arith.index_cast %132 : i32 to index
    %c0_82 = arith.constant 0 : index
    %c0_83 = arith.constant 0 : index
    %134 = vector.load %arg1[%c0_81, %133, %c0_82, %c0_83] : memref<1x36x9x8xbf16, #tpu.memory_space<vmem>>, vector<1x1x9x8xbf16>
    %135 = vector.shape_cast %134 : vector<1x1x9x8xbf16> to vector<9x8xbf16>
    %136 = vector.extract_strided_slice %131 {offsets = [0, 0], sizes = [8, 8], strides = [1, 1]} : vector<9x8xbf16> to vector<8x8xbf16>
    %137 = vector.extract_strided_slice %135 {offsets = [0, 0], sizes = [8, 8], strides = [1, 1]} : vector<9x8xbf16> to vector<8x8xbf16>
    %138 = vector.extract_strided_slice %131 {offsets = [1, 0], sizes = [8, 8], strides = [1, 1]} : vector<9x8xbf16> to vector<8x8xbf16>
    %139 = vector.extract_strided_slice %135 {offsets = [1, 0], sizes = [8, 8], strides = [1, 1]} : vector<9x8xbf16> to vector<8x8xbf16>
    %c19_i32_84 = arith.constant 19 : i32
    %140 = arith.addi %c19_i32_84, %103 : i32
    %c0_85 = arith.constant 0 : index
    %141 = arith.index_cast %140 : i32 to index
    %c0_86 = arith.constant 0 : index
    %c0_87 = arith.constant 0 : index
    %142 = vector.load %arg1[%c0_85, %141, %c0_86, %c0_87] : memref<1x36x9x8xbf16, #tpu.memory_space<vmem>>, vector<1x1x9x8xbf16>
    %143 = vector.shape_cast %142 : vector<1x1x9x8xbf16> to vector<9x8xbf16>
    %c28_i32_88 = arith.constant 28 : i32
    %144 = arith.addi %c28_i32_88, %103 : i32
    %c0_89 = arith.constant 0 : index
    %145 = arith.index_cast %144 : i32 to index
    %c0_90 = arith.constant 0 : index
    %c0_91 = arith.constant 0 : index
    %146 = vector.load %arg1[%c0_89, %145, %c0_90, %c0_91] : memref<1x36x9x8xbf16, #tpu.memory_space<vmem>>, vector<1x1x9x8xbf16>
    %147 = vector.shape_cast %146 : vector<1x1x9x8xbf16> to vector<9x8xbf16>
    %148 = vector.extract_strided_slice %143 {offsets = [0, 0], sizes = [8, 8], strides = [1, 1]} : vector<9x8xbf16> to vector<8x8xbf16>
    %149 = vector.extract_strided_slice %147 {offsets = [0, 0], sizes = [8, 8], strides = [1, 1]} : vector<9x8xbf16> to vector<8x8xbf16>
    %150 = vector.extract_strided_slice %143 {offsets = [1, 0], sizes = [8, 8], strides = [1, 1]} : vector<9x8xbf16> to vector<8x8xbf16>
    %151 = vector.extract_strided_slice %147 {offsets = [1, 0], sizes = [8, 8], strides = [1, 1]} : vector<9x8xbf16> to vector<8x8xbf16>
    %152 = tpu.concatenate %112, %113, %114, %115, %124, %125, %126, %127, %136, %137, %138, %139, %148, %149, %150, %151 in 1 : vector<8x8xbf16>, vector<8x8xbf16>, vector<8x8xbf16>, vector<8x8xbf16>, vector<8x8xbf16>, vector<8x8xbf16>, vector<8x8xbf16>, vector<8x8xbf16>, vector<8x8xbf16>, vector<8x8xbf16>, vector<8x8xbf16>, vector<8x8xbf16>, vector<8x8xbf16>, vector<8x8xbf16>, vector<8x8xbf16>, vector<8x8xbf16> -> vector<8x128xbf16>
    %c3_i32 = arith.constant 3 : i32
    %153 = arith.addi %2, %c3_i32 : i32
    %c0_i32_92 = arith.constant 0 : i32
    %154 = arith.addi %c0_i32_92, %153 : i32
    %c0_93 = arith.constant 0 : index
    %155 = arith.index_cast %154 : i32 to index
    %c0_94 = arith.constant 0 : index
    %c0_95 = arith.constant 0 : index
    %156 = vector.load %arg1[%c0_93, %155, %c0_94, %c0_95] : memref<1x36x9x8xbf16, #tpu.memory_space<vmem>>, vector<1x1x9x8xbf16>
    %157 = vector.shape_cast %156 : vector<1x1x9x8xbf16> to vector<9x8xbf16>
    %c9_i32_96 = arith.constant 9 : i32
    %158 = arith.addi %c9_i32_96, %153 : i32
    %c0_97 = arith.constant 0 : index
    %159 = arith.index_cast %158 : i32 to index
    %c0_98 = arith.constant 0 : index
    %c0_99 = arith.constant 0 : index
    %160 = vector.load %arg1[%c0_97, %159, %c0_98, %c0_99] : memref<1x36x9x8xbf16, #tpu.memory_space<vmem>>, vector<1x1x9x8xbf16>
    %161 = vector.shape_cast %160 : vector<1x1x9x8xbf16> to vector<9x8xbf16>
    %162 = vector.extract_strided_slice %157 {offsets = [0, 0], sizes = [8, 8], strides = [1, 1]} : vector<9x8xbf16> to vector<8x8xbf16>
    %163 = vector.extract_strided_slice %161 {offsets = [0, 0], sizes = [8, 8], strides = [1, 1]} : vector<9x8xbf16> to vector<8x8xbf16>
    %164 = vector.extract_strided_slice %157 {offsets = [1, 0], sizes = [8, 8], strides = [1, 1]} : vector<9x8xbf16> to vector<8x8xbf16>
    %165 = vector.extract_strided_slice %161 {offsets = [1, 0], sizes = [8, 8], strides = [1, 1]} : vector<9x8xbf16> to vector<8x8xbf16>
    %c18_i32_100 = arith.constant 18 : i32
    %166 = arith.addi %c18_i32_100, %153 : i32
    %c0_101 = arith.constant 0 : index
    %167 = arith.index_cast %166 : i32 to index
    %c0_102 = arith.constant 0 : index
    %c0_103 = arith.constant 0 : index
    %168 = vector.load %arg1[%c0_101, %167, %c0_102, %c0_103] : memref<1x36x9x8xbf16, #tpu.memory_space<vmem>>, vector<1x1x9x8xbf16>
    %169 = vector.shape_cast %168 : vector<1x1x9x8xbf16> to vector<9x8xbf16>
    %c27_i32_104 = arith.constant 27 : i32
    %170 = arith.addi %c27_i32_104, %153 : i32
    %c0_105 = arith.constant 0 : index
    %171 = arith.index_cast %170 : i32 to index
    %c0_106 = arith.constant 0 : index
    %c0_107 = arith.constant 0 : index
    %172 = vector.load %arg1[%c0_105, %171, %c0_106, %c0_107] : memref<1x36x9x8xbf16, #tpu.memory_space<vmem>>, vector<1x1x9x8xbf16>
    %173 = vector.shape_cast %172 : vector<1x1x9x8xbf16> to vector<9x8xbf16>
    %174 = vector.extract_strided_slice %169 {offsets = [0, 0], sizes = [8, 8], strides = [1, 1]} : vector<9x8xbf16> to vector<8x8xbf16>
    %175 = vector.extract_strided_slice %173 {offsets = [0, 0], sizes = [8, 8], strides = [1, 1]} : vector<9x8xbf16> to vector<8x8xbf16>
    %176 = vector.extract_strided_slice %169 {offsets = [1, 0], sizes = [8, 8], strides = [1, 1]} : vector<9x8xbf16> to vector<8x8xbf16>
    %177 = vector.extract_strided_slice %173 {offsets = [1, 0], sizes = [8, 8], strides = [1, 1]} : vector<9x8xbf16> to vector<8x8xbf16>
    %c1_i32_108 = arith.constant 1 : i32
    %178 = arith.addi %c1_i32_108, %153 : i32
    %c0_109 = arith.constant 0 : index
    %179 = arith.index_cast %178 : i32 to index
    %c0_110 = arith.constant 0 : index
    %c0_111 = arith.constant 0 : index
    %180 = vector.load %arg1[%c0_109, %179, %c0_110, %c0_111] : memref<1x36x9x8xbf16, #tpu.memory_space<vmem>>, vector<1x1x9x8xbf16>
    %181 = vector.shape_cast %180 : vector<1x1x9x8xbf16> to vector<9x8xbf16>
    %c10_i32_112 = arith.constant 10 : i32
    %182 = arith.addi %c10_i32_112, %153 : i32
    %c0_113 = arith.constant 0 : index
    %183 = arith.index_cast %182 : i32 to index
    %c0_114 = arith.constant 0 : index
    %c0_115 = arith.constant 0 : index
    %184 = vector.load %arg1[%c0_113, %183, %c0_114, %c0_115] : memref<1x36x9x8xbf16, #tpu.memory_space<vmem>>, vector<1x1x9x8xbf16>
    %185 = vector.shape_cast %184 : vector<1x1x9x8xbf16> to vector<9x8xbf16>
    %186 = vector.extract_strided_slice %181 {offsets = [0, 0], sizes = [8, 8], strides = [1, 1]} : vector<9x8xbf16> to vector<8x8xbf16>
    %187 = vector.extract_strided_slice %185 {offsets = [0, 0], sizes = [8, 8], strides = [1, 1]} : vector<9x8xbf16> to vector<8x8xbf16>
    %188 = vector.extract_strided_slice %181 {offsets = [1, 0], sizes = [8, 8], strides = [1, 1]} : vector<9x8xbf16> to vector<8x8xbf16>
    %189 = vector.extract_strided_slice %185 {offsets = [1, 0], sizes = [8, 8], strides = [1, 1]} : vector<9x8xbf16> to vector<8x8xbf16>
    %c19_i32_116 = arith.constant 19 : i32
    %190 = arith.addi %c19_i32_116, %153 : i32
    %c0_117 = arith.constant 0 : index
    %191 = arith.index_cast %190 : i32 to index
    %c0_118 = arith.constant 0 : index
    %c0_119 = arith.constant 0 : index
    %192 = vector.load %arg1[%c0_117, %191, %c0_118, %c0_119] : memref<1x36x9x8xbf16, #tpu.memory_space<vmem>>, vector<1x1x9x8xbf16>
    %193 = vector.shape_cast %192 : vector<1x1x9x8xbf16> to vector<9x8xbf16>
    %c28_i32_120 = arith.constant 28 : i32
    %194 = arith.addi %c28_i32_120, %153 : i32
    %c0_121 = arith.constant 0 : index
    %195 = arith.index_cast %194 : i32 to index
    %c0_122 = arith.constant 0 : index
    %c0_123 = arith.constant 0 : index
    %196 = vector.load %arg1[%c0_121, %195, %c0_122, %c0_123] : memref<1x36x9x8xbf16, #tpu.memory_space<vmem>>, vector<1x1x9x8xbf16>
    %197 = vector.shape_cast %196 : vector<1x1x9x8xbf16> to vector<9x8xbf16>
    %198 = vector.extract_strided_slice %193 {offsets = [0, 0], sizes = [8, 8], strides = [1, 1]} : vector<9x8xbf16> to vector<8x8xbf16>
    %199 = vector.extract_strided_slice %197 {offsets = [0, 0], sizes = [8, 8], strides = [1, 1]} : vector<9x8xbf16> to vector<8x8xbf16>
    %200 = vector.extract_strided_slice %193 {offsets = [1, 0], sizes = [8, 8], strides = [1, 1]} : vector<9x8xbf16> to vector<8x8xbf16>
    %201 = vector.extract_strided_slice %197 {offsets = [1, 0], sizes = [8, 8], strides = [1, 1]} : vector<9x8xbf16> to vector<8x8xbf16>
    %202 = tpu.concatenate %162, %163, %164, %165, %174, %175, %176, %177, %186, %187, %188, %189, %198, %199, %200, %201 in 1 : vector<8x8xbf16>, vector<8x8xbf16>, vector<8x8xbf16>, vector<8x8xbf16>, vector<8x8xbf16>, vector<8x8xbf16>, vector<8x8xbf16>, vector<8x8xbf16>, vector<8x8xbf16>, vector<8x8xbf16>, vector<8x8xbf16>, vector<8x8xbf16>, vector<8x8xbf16>, vector<8x8xbf16>, vector<8x8xbf16>, vector<8x8xbf16> -> vector<8x128xbf16>
    %c4_i32 = arith.constant 4 : i32
    %203 = arith.addi %2, %c4_i32 : i32
    %c0_i32_124 = arith.constant 0 : i32
    %204 = arith.addi %c0_i32_124, %203 : i32
    %c0_125 = arith.constant 0 : index
    %205 = arith.index_cast %204 : i32 to index
    %c0_126 = arith.constant 0 : index
    %c0_127 = arith.constant 0 : index
    %206 = vector.load %arg1[%c0_125, %205, %c0_126, %c0_127] : memref<1x36x9x8xbf16, #tpu.memory_space<vmem>>, vector<1x1x9x8xbf16>
    %207 = vector.shape_cast %206 : vector<1x1x9x8xbf16> to vector<9x8xbf16>
    %c9_i32_128 = arith.constant 9 : i32
    %208 = arith.addi %c9_i32_128, %203 : i32
    %c0_129 = arith.constant 0 : index
    %209 = arith.index_cast %208 : i32 to index
    %c0_130 = arith.constant 0 : index
    %c0_131 = arith.constant 0 : index
    %210 = vector.load %arg1[%c0_129, %209, %c0_130, %c0_131] : memref<1x36x9x8xbf16, #tpu.memory_space<vmem>>, vector<1x1x9x8xbf16>
    %211 = vector.shape_cast %210 : vector<1x1x9x8xbf16> to vector<9x8xbf16>
    %212 = vector.extract_strided_slice %207 {offsets = [0, 0], sizes = [8, 8], strides = [1, 1]} : vector<9x8xbf16> to vector<8x8xbf16>
    %213 = vector.extract_strided_slice %211 {offsets = [0, 0], sizes = [8, 8], strides = [1, 1]} : vector<9x8xbf16> to vector<8x8xbf16>
    %214 = vector.extract_strided_slice %207 {offsets = [1, 0], sizes = [8, 8], strides = [1, 1]} : vector<9x8xbf16> to vector<8x8xbf16>
    %215 = vector.extract_strided_slice %211 {offsets = [1, 0], sizes = [8, 8], strides = [1, 1]} : vector<9x8xbf16> to vector<8x8xbf16>
    %c18_i32_132 = arith.constant 18 : i32
    %216 = arith.addi %c18_i32_132, %203 : i32
    %c0_133 = arith.constant 0 : index
    %217 = arith.index_cast %216 : i32 to index
    %c0_134 = arith.constant 0 : index
    %c0_135 = arith.constant 0 : index
    %218 = vector.load %arg1[%c0_133, %217, %c0_134, %c0_135] : memref<1x36x9x8xbf16, #tpu.memory_space<vmem>>, vector<1x1x9x8xbf16>
    %219 = vector.shape_cast %218 : vector<1x1x9x8xbf16> to vector<9x8xbf16>
    %c27_i32_136 = arith.constant 27 : i32
    %220 = arith.addi %c27_i32_136, %203 : i32
    %c0_137 = arith.constant 0 : index
    %221 = arith.index_cast %220 : i32 to index
    %c0_138 = arith.constant 0 : index
    %c0_139 = arith.constant 0 : index
    %222 = vector.load %arg1[%c0_137, %221, %c0_138, %c0_139] : memref<1x36x9x8xbf16, #tpu.memory_space<vmem>>, vector<1x1x9x8xbf16>
    %223 = vector.shape_cast %222 : vector<1x1x9x8xbf16> to vector<9x8xbf16>
    %224 = vector.extract_strided_slice %219 {offsets = [0, 0], sizes = [8, 8], strides = [1, 1]} : vector<9x8xbf16> to vector<8x8xbf16>
    %225 = vector.extract_strided_slice %223 {offsets = [0, 0], sizes = [8, 8], strides = [1, 1]} : vector<9x8xbf16> to vector<8x8xbf16>
    %226 = vector.extract_strided_slice %219 {offsets = [1, 0], sizes = [8, 8], strides = [1, 1]} : vector<9x8xbf16> to vector<8x8xbf16>
    %227 = vector.extract_strided_slice %223 {offsets = [1, 0], sizes = [8, 8], strides = [1, 1]} : vector<9x8xbf16> to vector<8x8xbf16>
    %c1_i32_140 = arith.constant 1 : i32
    %228 = arith.addi %c1_i32_140, %203 : i32
    %c0_141 = arith.constant 0 : index
    %229 = arith.index_cast %228 : i32 to index
    %c0_142 = arith.constant 0 : index
    %c0_143 = arith.constant 0 : index
    %230 = vector.load %arg1[%c0_141, %229, %c0_142, %c0_143] : memref<1x36x9x8xbf16, #tpu.memory_space<vmem>>, vector<1x1x9x8xbf16>
    %231 = vector.shape_cast %230 : vector<1x1x9x8xbf16> to vector<9x8xbf16>
    %c10_i32_144 = arith.constant 10 : i32
    %232 = arith.addi %c10_i32_144, %203 : i32
    %c0_145 = arith.constant 0 : index
    %233 = arith.index_cast %232 : i32 to index
    %c0_146 = arith.constant 0 : index
    %c0_147 = arith.constant 0 : index
    %234 = vector.load %arg1[%c0_145, %233, %c0_146, %c0_147] : memref<1x36x9x8xbf16, #tpu.memory_space<vmem>>, vector<1x1x9x8xbf16>
    %235 = vector.shape_cast %234 : vector<1x1x9x8xbf16> to vector<9x8xbf16>
    %236 = vector.extract_strided_slice %231 {offsets = [0, 0], sizes = [8, 8], strides = [1, 1]} : vector<9x8xbf16> to vector<8x8xbf16>
    %237 = vector.extract_strided_slice %235 {offsets = [0, 0], sizes = [8, 8], strides = [1, 1]} : vector<9x8xbf16> to vector<8x8xbf16>
    %238 = vector.extract_strided_slice %231 {offsets = [1, 0], sizes = [8, 8], strides = [1, 1]} : vector<9x8xbf16> to vector<8x8xbf16>
    %239 = vector.extract_strided_slice %235 {offsets = [1, 0], sizes = [8, 8], strides = [1, 1]} : vector<9x8xbf16> to vector<8x8xbf16>
    %c19_i32_148 = arith.constant 19 : i32
    %240 = arith.addi %c19_i32_148, %203 : i32
    %c0_149 = arith.constant 0 : index
    %241 = arith.index_cast %240 : i32 to index
    %c0_150 = arith.constant 0 : index
    %c0_151 = arith.constant 0 : index
    %242 = vector.load %arg1[%c0_149, %241, %c0_150, %c0_151] : memref<1x36x9x8xbf16, #tpu.memory_space<vmem>>, vector<1x1x9x8xbf16>
    %243 = vector.shape_cast %242 : vector<1x1x9x8xbf16> to vector<9x8xbf16>
    %c28_i32_152 = arith.constant 28 : i32
    %244 = arith.addi %c28_i32_152, %203 : i32
    %c0_153 = arith.constant 0 : index
    %245 = arith.index_cast %244 : i32 to index
    %c0_154 = arith.constant 0 : index
    %c0_155 = arith.constant 0 : index
    %246 = vector.load %arg1[%c0_153, %245, %c0_154, %c0_155] : memref<1x36x9x8xbf16, #tpu.memory_space<vmem>>, vector<1x1x9x8xbf16>
    %247 = vector.shape_cast %246 : vector<1x1x9x8xbf16> to vector<9x8xbf16>
    %248 = vector.extract_strided_slice %243 {offsets = [0, 0], sizes = [8, 8], strides = [1, 1]} : vector<9x8xbf16> to vector<8x8xbf16>
    %249 = vector.extract_strided_slice %247 {offsets = [0, 0], sizes = [8, 8], strides = [1, 1]} : vector<9x8xbf16> to vector<8x8xbf16>
    %250 = vector.extract_strided_slice %243 {offsets = [1, 0], sizes = [8, 8], strides = [1, 1]} : vector<9x8xbf16> to vector<8x8xbf16>
    %251 = vector.extract_strided_slice %247 {offsets = [1, 0], sizes = [8, 8], strides = [1, 1]} : vector<9x8xbf16> to vector<8x8xbf16>
    %252 = tpu.concatenate %212, %213, %214, %215, %224, %225, %226, %227, %236, %237, %238, %239, %248, %249, %250, %251 in 1 : vector<8x8xbf16>, vector<8x8xbf16>, vector<8x8xbf16>, vector<8x8xbf16>, vector<8x8xbf16>, vector<8x8xbf16>, vector<8x8xbf16>, vector<8x8xbf16>, vector<8x8xbf16>, vector<8x8xbf16>, vector<8x8xbf16>, vector<8x8xbf16>, vector<8x8xbf16>, vector<8x8xbf16>, vector<8x8xbf16>, vector<8x8xbf16> -> vector<8x128xbf16>
    %c5_i32 = arith.constant 5 : i32
    %253 = arith.addi %2, %c5_i32 : i32
    %c0_i32_156 = arith.constant 0 : i32
    %254 = arith.addi %c0_i32_156, %253 : i32
    %c0_157 = arith.constant 0 : index
    %255 = arith.index_cast %254 : i32 to index
    %c0_158 = arith.constant 0 : index
    %c0_159 = arith.constant 0 : index
    %256 = vector.load %arg1[%c0_157, %255, %c0_158, %c0_159] : memref<1x36x9x8xbf16, #tpu.memory_space<vmem>>, vector<1x1x9x8xbf16>
    %257 = vector.shape_cast %256 : vector<1x1x9x8xbf16> to vector<9x8xbf16>
    %c9_i32_160 = arith.constant 9 : i32
    %258 = arith.addi %c9_i32_160, %253 : i32
    %c0_161 = arith.constant 0 : index
    %259 = arith.index_cast %258 : i32 to index
    %c0_162 = arith.constant 0 : index
    %c0_163 = arith.constant 0 : index
    %260 = vector.load %arg1[%c0_161, %259, %c0_162, %c0_163] : memref<1x36x9x8xbf16, #tpu.memory_space<vmem>>, vector<1x1x9x8xbf16>
    %261 = vector.shape_cast %260 : vector<1x1x9x8xbf16> to vector<9x8xbf16>
    %262 = vector.extract_strided_slice %257 {offsets = [0, 0], sizes = [8, 8], strides = [1, 1]} : vector<9x8xbf16> to vector<8x8xbf16>
    %263 = vector.extract_strided_slice %261 {offsets = [0, 0], sizes = [8, 8], strides = [1, 1]} : vector<9x8xbf16> to vector<8x8xbf16>
    %264 = vector.extract_strided_slice %257 {offsets = [1, 0], sizes = [8, 8], strides = [1, 1]} : vector<9x8xbf16> to vector<8x8xbf16>
    %265 = vector.extract_strided_slice %261 {offsets = [1, 0], sizes = [8, 8], strides = [1, 1]} : vector<9x8xbf16> to vector<8x8xbf16>
    %c18_i32_164 = arith.constant 18 : i32
    %266 = arith.addi %c18_i32_164, %253 : i32
    %c0_165 = arith.constant 0 : index
    %267 = arith.index_cast %266 : i32 to index
    %c0_166 = arith.constant 0 : index
    %c0_167 = arith.constant 0 : index
    %268 = vector.load %arg1[%c0_165, %267, %c0_166, %c0_167] : memref<1x36x9x8xbf16, #tpu.memory_space<vmem>>, vector<1x1x9x8xbf16>
    %269 = vector.shape_cast %268 : vector<1x1x9x8xbf16> to vector<9x8xbf16>
    %c27_i32_168 = arith.constant 27 : i32
    %270 = arith.addi %c27_i32_168, %253 : i32
    %c0_169 = arith.constant 0 : index
    %271 = arith.index_cast %270 : i32 to index
    %c0_170 = arith.constant 0 : index
    %c0_171 = arith.constant 0 : index
    %272 = vector.load %arg1[%c0_169, %271, %c0_170, %c0_171] : memref<1x36x9x8xbf16, #tpu.memory_space<vmem>>, vector<1x1x9x8xbf16>
    %273 = vector.shape_cast %272 : vector<1x1x9x8xbf16> to vector<9x8xbf16>
    %274 = vector.extract_strided_slice %269 {offsets = [0, 0], sizes = [8, 8], strides = [1, 1]} : vector<9x8xbf16> to vector<8x8xbf16>
    %275 = vector.extract_strided_slice %273 {offsets = [0, 0], sizes = [8, 8], strides = [1, 1]} : vector<9x8xbf16> to vector<8x8xbf16>
    %276 = vector.extract_strided_slice %269 {offsets = [1, 0], sizes = [8, 8], strides = [1, 1]} : vector<9x8xbf16> to vector<8x8xbf16>
    %277 = vector.extract_strided_slice %273 {offsets = [1, 0], sizes = [8, 8], strides = [1, 1]} : vector<9x8xbf16> to vector<8x8xbf16>
    %c1_i32_172 = arith.constant 1 : i32
    %278 = arith.addi %c1_i32_172, %253 : i32
    %c0_173 = arith.constant 0 : index
    %279 = arith.index_cast %278 : i32 to index
    %c0_174 = arith.constant 0 : index
    %c0_175 = arith.constant 0 : index
    %280 = vector.load %arg1[%c0_173, %279, %c0_174, %c0_175] : memref<1x36x9x8xbf16, #tpu.memory_space<vmem>>, vector<1x1x9x8xbf16>
    %281 = vector.shape_cast %280 : vector<1x1x9x8xbf16> to vector<9x8xbf16>
    %c10_i32_176 = arith.constant 10 : i32
    %282 = arith.addi %c10_i32_176, %253 : i32
    %c0_177 = arith.constant 0 : index
    %283 = arith.index_cast %282 : i32 to index
    %c0_178 = arith.constant 0 : index
    %c0_179 = arith.constant 0 : index
    %284 = vector.load %arg1[%c0_177, %283, %c0_178, %c0_179] : memref<1x36x9x8xbf16, #tpu.memory_space<vmem>>, vector<1x1x9x8xbf16>
    %285 = vector.shape_cast %284 : vector<1x1x9x8xbf16> to vector<9x8xbf16>
    %286 = vector.extract_strided_slice %281 {offsets = [0, 0], sizes = [8, 8], strides = [1, 1]} : vector<9x8xbf16> to vector<8x8xbf16>
    %287 = vector.extract_strided_slice %285 {offsets = [0, 0], sizes = [8, 8], strides = [1, 1]} : vector<9x8xbf16> to vector<8x8xbf16>
    %288 = vector.extract_strided_slice %281 {offsets = [1, 0], sizes = [8, 8], strides = [1, 1]} : vector<9x8xbf16> to vector<8x8xbf16>
    %289 = vector.extract_strided_slice %285 {offsets = [1, 0], sizes = [8, 8], strides = [1, 1]} : vector<9x8xbf16> to vector<8x8xbf16>
    %c19_i32_180 = arith.constant 19 : i32
    %290 = arith.addi %c19_i32_180, %253 : i32
    %c0_181 = arith.constant 0 : index
    %291 = arith.index_cast %290 : i32 to index
    %c0_182 = arith.constant 0 : index
    %c0_183 = arith.constant 0 : index
    %292 = vector.load %arg1[%c0_181, %291, %c0_182, %c0_183] : memref<1x36x9x8xbf16, #tpu.memory_space<vmem>>, vector<1x1x9x8xbf16>
    %293 = vector.shape_cast %292 : vector<1x1x9x8xbf16> to vector<9x8xbf16>
    %c28_i32_184 = arith.constant 28 : i32
    %294 = arith.addi %c28_i32_184, %253 : i32
    %c0_185 = arith.constant 0 : index
    %295 = arith.index_cast %294 : i32 to index
    %c0_186 = arith.constant 0 : index
    %c0_187 = arith.constant 0 : index
    %296 = vector.load %arg1[%c0_185, %295, %c0_186, %c0_187] : memref<1x36x9x8xbf16, #tpu.memory_space<vmem>>, vector<1x1x9x8xbf16>
    %297 = vector.shape_cast %296 : vector<1x1x9x8xbf16> to vector<9x8xbf16>
    %298 = vector.extract_strided_slice %293 {offsets = [0, 0], sizes = [8, 8], strides = [1, 1]} : vector<9x8xbf16> to vector<8x8xbf16>
    %299 = vector.extract_strided_slice %297 {offsets = [0, 0], sizes = [8, 8], strides = [1, 1]} : vector<9x8xbf16> to vector<8x8xbf16>
    %300 = vector.extract_strided_slice %293 {offsets = [1, 0], sizes = [8, 8], strides = [1, 1]} : vector<9x8xbf16> to vector<8x8xbf16>
    %301 = vector.extract_strided_slice %297 {offsets = [1, 0], sizes = [8, 8], strides = [1, 1]} : vector<9x8xbf16> to vector<8x8xbf16>
    %302 = tpu.concatenate %262, %263, %264, %265, %274, %275, %276, %277, %286, %287, %288, %289, %298, %299, %300, %301 in 1 : vector<8x8xbf16>, vector<8x8xbf16>, vector<8x8xbf16>, vector<8x8xbf16>, vector<8x8xbf16>, vector<8x8xbf16>, vector<8x8xbf16>, vector<8x8xbf16>, vector<8x8xbf16>, vector<8x8xbf16>, vector<8x8xbf16>, vector<8x8xbf16>, vector<8x8xbf16>, vector<8x8xbf16>, vector<8x8xbf16>, vector<8x8xbf16> -> vector<8x128xbf16>
    %c6_i32 = arith.constant 6 : i32
    %303 = arith.addi %2, %c6_i32 : i32
    %c0_i32_188 = arith.constant 0 : i32
    %304 = arith.addi %c0_i32_188, %303 : i32
    %c0_189 = arith.constant 0 : index
    %305 = arith.index_cast %304 : i32 to index
    %c0_190 = arith.constant 0 : index
    %c0_191 = arith.constant 0 : index
    %306 = vector.load %arg1[%c0_189, %305, %c0_190, %c0_191] : memref<1x36x9x8xbf16, #tpu.memory_space<vmem>>, vector<1x1x9x8xbf16>
    %307 = vector.shape_cast %306 : vector<1x1x9x8xbf16> to vector<9x8xbf16>
    %c9_i32_192 = arith.constant 9 : i32
    %308 = arith.addi %c9_i32_192, %303 : i32
    %c0_193 = arith.constant 0 : index
    %309 = arith.index_cast %308 : i32 to index
    %c0_194 = arith.constant 0 : index
    %c0_195 = arith.constant 0 : index
    %310 = vector.load %arg1[%c0_193, %309, %c0_194, %c0_195] : memref<1x36x9x8xbf16, #tpu.memory_space<vmem>>, vector<1x1x9x8xbf16>
    %311 = vector.shape_cast %310 : vector<1x1x9x8xbf16> to vector<9x8xbf16>
    %312 = vector.extract_strided_slice %307 {offsets = [0, 0], sizes = [8, 8], strides = [1, 1]} : vector<9x8xbf16> to vector<8x8xbf16>
    %313 = vector.extract_strided_slice %311 {offsets = [0, 0], sizes = [8, 8], strides = [1, 1]} : vector<9x8xbf16> to vector<8x8xbf16>
    %314 = vector.extract_strided_slice %307 {offsets = [1, 0], sizes = [8, 8], strides = [1, 1]} : vector<9x8xbf16> to vector<8x8xbf16>
    %315 = vector.extract_strided_slice %311 {offsets = [1, 0], sizes = [8, 8], strides = [1, 1]} : vector<9x8xbf16> to vector<8x8xbf16>
    %c18_i32_196 = arith.constant 18 : i32
    %316 = arith.addi %c18_i32_196, %303 : i32
    %c0_197 = arith.constant 0 : index
    %317 = arith.index_cast %316 : i32 to index
    %c0_198 = arith.constant 0 : index
    %c0_199 = arith.constant 0 : index
    %318 = vector.load %arg1[%c0_197, %317, %c0_198, %c0_199] : memref<1x36x9x8xbf16, #tpu.memory_space<vmem>>, vector<1x1x9x8xbf16>
    %319 = vector.shape_cast %318 : vector<1x1x9x8xbf16> to vector<9x8xbf16>
    %c27_i32_200 = arith.constant 27 : i32
    %320 = arith.addi %c27_i32_200, %303 : i32
    %c0_201 = arith.constant 0 : index
    %321 = arith.index_cast %320 : i32 to index
    %c0_202 = arith.constant 0 : index
    %c0_203 = arith.constant 0 : index
    %322 = vector.load %arg1[%c0_201, %321, %c0_202, %c0_203] : memref<1x36x9x8xbf16, #tpu.memory_space<vmem>>, vector<1x1x9x8xbf16>
    %323 = vector.shape_cast %322 : vector<1x1x9x8xbf16> to vector<9x8xbf16>
    %324 = vector.extract_strided_slice %319 {offsets = [0, 0], sizes = [8, 8], strides = [1, 1]} : vector<9x8xbf16> to vector<8x8xbf16>
    %325 = vector.extract_strided_slice %323 {offsets = [0, 0], sizes = [8, 8], strides = [1, 1]} : vector<9x8xbf16> to vector<8x8xbf16>
    %326 = vector.extract_strided_slice %319 {offsets = [1, 0], sizes = [8, 8], strides = [1, 1]} : vector<9x8xbf16> to vector<8x8xbf16>
    %327 = vector.extract_strided_slice %323 {offsets = [1, 0], sizes = [8, 8], strides = [1, 1]} : vector<9x8xbf16> to vector<8x8xbf16>
    %c1_i32_204 = arith.constant 1 : i32
    %328 = arith.addi %c1_i32_204, %303 : i32
    %c0_205 = arith.constant 0 : index
    %329 = arith.index_cast %328 : i32 to index
    %c0_206 = arith.constant 0 : index
    %c0_207 = arith.constant 0 : index
    %330 = vector.load %arg1[%c0_205, %329, %c0_206, %c0_207] : memref<1x36x9x8xbf16, #tpu.memory_space<vmem>>, vector<1x1x9x8xbf16>
    %331 = vector.shape_cast %330 : vector<1x1x9x8xbf16> to vector<9x8xbf16>
    %c10_i32_208 = arith.constant 10 : i32
    %332 = arith.addi %c10_i32_208, %303 : i32
    %c0_209 = arith.constant 0 : index
    %333 = arith.index_cast %332 : i32 to index
    %c0_210 = arith.constant 0 : index
    %c0_211 = arith.constant 0 : index
    %334 = vector.load %arg1[%c0_209, %333, %c0_210, %c0_211] : memref<1x36x9x8xbf16, #tpu.memory_space<vmem>>, vector<1x1x9x8xbf16>
    %335 = vector.shape_cast %334 : vector<1x1x9x8xbf16> to vector<9x8xbf16>
    %336 = vector.extract_strided_slice %331 {offsets = [0, 0], sizes = [8, 8], strides = [1, 1]} : vector<9x8xbf16> to vector<8x8xbf16>
    %337 = vector.extract_strided_slice %335 {offsets = [0, 0], sizes = [8, 8], strides = [1, 1]} : vector<9x8xbf16> to vector<8x8xbf16>
    %338 = vector.extract_strided_slice %331 {offsets = [1, 0], sizes = [8, 8], strides = [1, 1]} : vector<9x8xbf16> to vector<8x8xbf16>
    %339 = vector.extract_strided_slice %335 {offsets = [1, 0], sizes = [8, 8], strides = [1, 1]} : vector<9x8xbf16> to vector<8x8xbf16>
    %c19_i32_212 = arith.constant 19 : i32
    %340 = arith.addi %c19_i32_212, %303 : i32
    %c0_213 = arith.constant 0 : index
    %341 = arith.index_cast %340 : i32 to index
    %c0_214 = arith.constant 0 : index
    %c0_215 = arith.constant 0 : index
    %342 = vector.load %arg1[%c0_213, %341, %c0_214, %c0_215] : memref<1x36x9x8xbf16, #tpu.memory_space<vmem>>, vector<1x1x9x8xbf16>
    %343 = vector.shape_cast %342 : vector<1x1x9x8xbf16> to vector<9x8xbf16>
    %c28_i32_216 = arith.constant 28 : i32
    %344 = arith.addi %c28_i32_216, %303 : i32
    %c0_217 = arith.constant 0 : index
    %345 = arith.index_cast %344 : i32 to index
    %c0_218 = arith.constant 0 : index
    %c0_219 = arith.constant 0 : index
    %346 = vector.load %arg1[%c0_217, %345, %c0_218, %c0_219] : memref<1x36x9x8xbf16, #tpu.memory_space<vmem>>, vector<1x1x9x8xbf16>
    %347 = vector.shape_cast %346 : vector<1x1x9x8xbf16> to vector<9x8xbf16>
    %348 = vector.extract_strided_slice %343 {offsets = [0, 0], sizes = [8, 8], strides = [1, 1]} : vector<9x8xbf16> to vector<8x8xbf16>
    %349 = vector.extract_strided_slice %347 {offsets = [0, 0], sizes = [8, 8], strides = [1, 1]} : vector<9x8xbf16> to vector<8x8xbf16>
    %350 = vector.extract_strided_slice %343 {offsets = [1, 0], sizes = [8, 8], strides = [1, 1]} : vector<9x8xbf16> to vector<8x8xbf16>
    %351 = vector.extract_strided_slice %347 {offsets = [1, 0], sizes = [8, 8], strides = [1, 1]} : vector<9x8xbf16> to vector<8x8xbf16>
    %352 = tpu.concatenate %312, %313, %314, %315, %324, %325, %326, %327, %336, %337, %338, %339, %348, %349, %350, %351 in 1 : vector<8x8xbf16>, vector<8x8xbf16>, vector<8x8xbf16>, vector<8x8xbf16>, vector<8x8xbf16>, vector<8x8xbf16>, vector<8x8xbf16>, vector<8x8xbf16>, vector<8x8xbf16>, vector<8x8xbf16>, vector<8x8xbf16>, vector<8x8xbf16>, vector<8x8xbf16>, vector<8x8xbf16>, vector<8x8xbf16>, vector<8x8xbf16> -> vector<8x128xbf16>
    %c7_i32 = arith.constant 7 : i32
    %353 = arith.addi %2, %c7_i32 : i32
    %c0_i32_220 = arith.constant 0 : i32
    %354 = arith.addi %c0_i32_220, %353 : i32
    %c0_221 = arith.constant 0 : index
    %355 = arith.index_cast %354 : i32 to index
    %c0_222 = arith.constant 0 : index
    %c0_223 = arith.constant 0 : index
    %356 = vector.load %arg1[%c0_221, %355, %c0_222, %c0_223] : memref<1x36x9x8xbf16, #tpu.memory_space<vmem>>, vector<1x1x9x8xbf16>
    %357 = vector.shape_cast %356 : vector<1x1x9x8xbf16> to vector<9x8xbf16>
    %c9_i32_224 = arith.constant 9 : i32
    %358 = arith.addi %c9_i32_224, %353 : i32
    %c0_225 = arith.constant 0 : index
    %359 = arith.index_cast %358 : i32 to index
    %c0_226 = arith.constant 0 : index
    %c0_227 = arith.constant 0 : index
    %360 = vector.load %arg1[%c0_225, %359, %c0_226, %c0_227] : memref<1x36x9x8xbf16, #tpu.memory_space<vmem>>, vector<1x1x9x8xbf16>
    %361 = vector.shape_cast %360 : vector<1x1x9x8xbf16> to vector<9x8xbf16>
    %362 = vector.extract_strided_slice %357 {offsets = [0, 0], sizes = [8, 8], strides = [1, 1]} : vector<9x8xbf16> to vector<8x8xbf16>
    %363 = vector.extract_strided_slice %361 {offsets = [0, 0], sizes = [8, 8], strides = [1, 1]} : vector<9x8xbf16> to vector<8x8xbf16>
    %364 = vector.extract_strided_slice %357 {offsets = [1, 0], sizes = [8, 8], strides = [1, 1]} : vector<9x8xbf16> to vector<8x8xbf16>
    %365 = vector.extract_strided_slice %361 {offsets = [1, 0], sizes = [8, 8], strides = [1, 1]} : vector<9x8xbf16> to vector<8x8xbf16>
    %c18_i32_228 = arith.constant 18 : i32
    %366 = arith.addi %c18_i32_228, %353 : i32
    %c0_229 = arith.constant 0 : index
    %367 = arith.index_cast %366 : i32 to index
    %c0_230 = arith.constant 0 : index
    %c0_231 = arith.constant 0 : index
    %368 = vector.load %arg1[%c0_229, %367, %c0_230, %c0_231] : memref<1x36x9x8xbf16, #tpu.memory_space<vmem>>, vector<1x1x9x8xbf16>
    %369 = vector.shape_cast %368 : vector<1x1x9x8xbf16> to vector<9x8xbf16>
    %c27_i32_232 = arith.constant 27 : i32
    %370 = arith.addi %c27_i32_232, %353 : i32
    %c0_233 = arith.constant 0 : index
    %371 = arith.index_cast %370 : i32 to index
    %c0_234 = arith.constant 0 : index
    %c0_235 = arith.constant 0 : index
    %372 = vector.load %arg1[%c0_233, %371, %c0_234, %c0_235] : memref<1x36x9x8xbf16, #tpu.memory_space<vmem>>, vector<1x1x9x8xbf16>
    %373 = vector.shape_cast %372 : vector<1x1x9x8xbf16> to vector<9x8xbf16>
    %374 = vector.extract_strided_slice %369 {offsets = [0, 0], sizes = [8, 8], strides = [1, 1]} : vector<9x8xbf16> to vector<8x8xbf16>
    %375 = vector.extract_strided_slice %373 {offsets = [0, 0], sizes = [8, 8], strides = [1, 1]} : vector<9x8xbf16> to vector<8x8xbf16>
    %376 = vector.extract_strided_slice %369 {offsets = [1, 0], sizes = [8, 8], strides = [1, 1]} : vector<9x8xbf16> to vector<8x8xbf16>
    %377 = vector.extract_strided_slice %373 {offsets = [1, 0], sizes = [8, 8], strides = [1, 1]} : vector<9x8xbf16> to vector<8x8xbf16>
    %c1_i32_236 = arith.constant 1 : i32
    %378 = arith.addi %c1_i32_236, %353 : i32
    %c0_237 = arith.constant 0 : index
    %379 = arith.index_cast %378 : i32 to index
    %c0_238 = arith.constant 0 : index
    %c0_239 = arith.constant 0 : index
    %380 = vector.load %arg1[%c0_237, %379, %c0_238, %c0_239] : memref<1x36x9x8xbf16, #tpu.memory_space<vmem>>, vector<1x1x9x8xbf16>
    %381 = vector.shape_cast %380 : vector<1x1x9x8xbf16> to vector<9x8xbf16>
    %c10_i32_240 = arith.constant 10 : i32
    %382 = arith.addi %c10_i32_240, %353 : i32
    %c0_241 = arith.constant 0 : index
    %383 = arith.index_cast %382 : i32 to index
    %c0_242 = arith.constant 0 : index
    %c0_243 = arith.constant 0 : index
    %384 = vector.load %arg1[%c0_241, %383, %c0_242, %c0_243] : memref<1x36x9x8xbf16, #tpu.memory_space<vmem>>, vector<1x1x9x8xbf16>
    %385 = vector.shape_cast %384 : vector<1x1x9x8xbf16> to vector<9x8xbf16>
    %386 = vector.extract_strided_slice %381 {offsets = [0, 0], sizes = [8, 8], strides = [1, 1]} : vector<9x8xbf16> to vector<8x8xbf16>
    %387 = vector.extract_strided_slice %385 {offsets = [0, 0], sizes = [8, 8], strides = [1, 1]} : vector<9x8xbf16> to vector<8x8xbf16>
    %388 = vector.extract_strided_slice %381 {offsets = [1, 0], sizes = [8, 8], strides = [1, 1]} : vector<9x8xbf16> to vector<8x8xbf16>
    %389 = vector.extract_strided_slice %385 {offsets = [1, 0], sizes = [8, 8], strides = [1, 1]} : vector<9x8xbf16> to vector<8x8xbf16>
    %c19_i32_244 = arith.constant 19 : i32
    %390 = arith.addi %c19_i32_244, %353 : i32
    %c0_245 = arith.constant 0 : index
    %391 = arith.index_cast %390 : i32 to index
    %c0_246 = arith.constant 0 : index
    %c0_247 = arith.constant 0 : index
    %392 = vector.load %arg1[%c0_245, %391, %c0_246, %c0_247] : memref<1x36x9x8xbf16, #tpu.memory_space<vmem>>, vector<1x1x9x8xbf16>
    %393 = vector.shape_cast %392 : vector<1x1x9x8xbf16> to vector<9x8xbf16>
    %c28_i32_248 = arith.constant 28 : i32
    %394 = arith.addi %c28_i32_248, %353 : i32
    %c0_249 = arith.constant 0 : index
    %395 = arith.index_cast %394 : i32 to index
    %c0_250 = arith.constant 0 : index
    %c0_251 = arith.constant 0 : index
    %396 = vector.load %arg1[%c0_249, %395, %c0_250, %c0_251] : memref<1x36x9x8xbf16, #tpu.memory_space<vmem>>, vector<1x1x9x8xbf16>
    %397 = vector.shape_cast %396 : vector<1x1x9x8xbf16> to vector<9x8xbf16>
    %398 = vector.extract_strided_slice %393 {offsets = [0, 0], sizes = [8, 8], strides = [1, 1]} : vector<9x8xbf16> to vector<8x8xbf16>
    %399 = vector.extract_strided_slice %397 {offsets = [0, 0], sizes = [8, 8], strides = [1, 1]} : vector<9x8xbf16> to vector<8x8xbf16>
    %400 = vector.extract_strided_slice %393 {offsets = [1, 0], sizes = [8, 8], strides = [1, 1]} : vector<9x8xbf16> to vector<8x8xbf16>
    %401 = vector.extract_strided_slice %397 {offsets = [1, 0], sizes = [8, 8], strides = [1, 1]} : vector<9x8xbf16> to vector<8x8xbf16>
    %402 = tpu.concatenate %362, %363, %364, %365, %374, %375, %376, %377, %386, %387, %388, %389, %398, %399, %400, %401 in 1 : vector<8x8xbf16>, vector<8x8xbf16>, vector<8x8xbf16>, vector<8x8xbf16>, vector<8x8xbf16>, vector<8x8xbf16>, vector<8x8xbf16>, vector<8x8xbf16>, vector<8x8xbf16>, vector<8x8xbf16>, vector<8x8xbf16>, vector<8x8xbf16>, vector<8x8xbf16>, vector<8x8xbf16>, vector<8x8xbf16>, vector<8x8xbf16> -> vector<8x128xbf16>
    %403 = tpu.concatenate %52, %102, %152, %202, %252, %302, %352, %402 in 0 : vector<8x128xbf16>, vector<8x128xbf16>, vector<8x128xbf16>, vector<8x128xbf16>, vector<8x128xbf16>, vector<8x128xbf16>, vector<8x128xbf16>, vector<8x128xbf16> -> vector<64x128xbf16>
    %cst_252 = arith.constant dense<0.000000e+00> : vector<64x128xf32>
    %404 = tpu.matmul %403, %0, %cst_252 {dimension_numbers = #tpu.dot_dimension_numbers<[1], [0], [0], [1], [0, 0, 1, 1], [], []>} : vector<64x128xbf16>, vector<128x128xbf16>, vector<64x128xf32> -> vector<64x128xf32>
    %405 = vector.extract_strided_slice %404 {offsets = [0, 0], sizes = [8, 128], strides = [1, 1]} : vector<64x128xf32> to vector<8x128xf32>
    %c0_i32_253 = arith.constant 0 : i32
    %406 = arith.addi %2, %c0_i32_253 : i32
    %407 = arith.index_cast %406 : i32 to index
    %c0_254 = arith.constant 0 : index
    %c0_255 = arith.constant 0 : index
    %408 = vector.load %arg4[%407, %c0_254, %c0_255] : memref<8x8x128xf32, #tpu.memory_space<vmem>>, vector<1x8x128xf32>
    %409 = vector.shape_cast %408 : vector<1x8x128xf32> to vector<8x128xf32>
    %410 = vector.shape_cast %405 : vector<8x128xf32> to vector<1x8x128xf32>
    tpu.vector_store %arg4[%407, %c0_254, %c0_255], %410 {strides = array<i32>} : memref<8x8x128xf32, #tpu.memory_space<vmem>>, vector<1x8x128xf32>,
    %411 = vector.extract_strided_slice %404 {offsets = [8, 0], sizes = [8, 128], strides = [1, 1]} : vector<64x128xf32> to vector<8x128xf32>
    %c1_i32_256 = arith.constant 1 : i32
    %412 = arith.addi %2, %c1_i32_256 : i32
    %413 = arith.index_cast %412 : i32 to index
    %c0_257 = arith.constant 0 : index
    %c0_258 = arith.constant 0 : index
    %414 = vector.load %arg4[%413, %c0_257, %c0_258] : memref<8x8x128xf32, #tpu.memory_space<vmem>>, vector<1x8x128xf32>
    %415 = vector.shape_cast %414 : vector<1x8x128xf32> to vector<8x128xf32>
    %416 = vector.shape_cast %411 : vector<8x128xf32> to vector<1x8x128xf32>
    tpu.vector_store %arg4[%413, %c0_257, %c0_258], %416 {strides = array<i32>} : memref<8x8x128xf32, #tpu.memory_space<vmem>>, vector<1x8x128xf32>,
    %417 = vector.extract_strided_slice %404 {offsets = [16, 0], sizes = [8, 128], strides = [1, 1]} : vector<64x128xf32> to vector<8x128xf32>
    %c2_i32_259 = arith.constant 2 : i32
    %418 = arith.addi %2, %c2_i32_259 : i32
    %419 = arith.index_cast %418 : i32 to index
    %c0_260 = arith.constant 0 : index
    %c0_261 = arith.constant 0 : index
    %420 = vector.load %arg4[%419, %c0_260, %c0_261] : memref<8x8x128xf32, #tpu.memory_space<vmem>>, vector<1x8x128xf32>
    %421 = vector.shape_cast %420 : vector<1x8x128xf32> to vector<8x128xf32>
    %422 = vector.shape_cast %417 : vector<8x128xf32> to vector<1x8x128xf32>
    tpu.vector_store %arg4[%419, %c0_260, %c0_261], %422 {strides = array<i32>} : memref<8x8x128xf32, #tpu.memory_space<vmem>>, vector<1x8x128xf32>,
    %423 = vector.extract_strided_slice %404 {offsets = [24, 0], sizes = [8, 128], strides = [1, 1]} : vector<64x128xf32> to vector<8x128xf32>
    %c3_i32_262 = arith.constant 3 : i32
    %424 = arith.addi %2, %c3_i32_262 : i32
    %425 = arith.index_cast %424 : i32 to index
    %c0_263 = arith.constant 0 : index
    %c0_264 = arith.constant 0 : index
    %426 = vector.load %arg4[%425, %c0_263, %c0_264] : memref<8x8x128xf32, #tpu.memory_space<vmem>>, vector<1x8x128xf32>
    %427 = vector.shape_cast %426 : vector<1x8x128xf32> to vector<8x128xf32>
    %428 = vector.shape_cast %423 : vector<8x128xf32> to vector<1x8x128xf32>
    tpu.vector_store %arg4[%425, %c0_263, %c0_264], %428 {strides = array<i32>} : memref<8x8x128xf32, #tpu.memory_space<vmem>>, vector<1x8x128xf32>,
    %429 = vector.extract_strided_slice %404 {offsets = [32, 0], sizes = [8, 128], strides = [1, 1]} : vector<64x128xf32> to vector<8x128xf32>
    %c4_i32_265 = arith.constant 4 : i32
    %430 = arith.addi %2, %c4_i32_265 : i32
    %431 = arith.index_cast %430 : i32 to index
    %c0_266 = arith.constant 0 : index
    %c0_267 = arith.constant 0 : index
    %432 = vector.load %arg4[%431, %c0_266, %c0_267] : memref<8x8x128xf32, #tpu.memory_space<vmem>>, vector<1x8x128xf32>
    %433 = vector.shape_cast %432 : vector<1x8x128xf32> to vector<8x128xf32>
    %434 = vector.shape_cast %429 : vector<8x128xf32> to vector<1x8x128xf32>
    tpu.vector_store %arg4[%431, %c0_266, %c0_267], %434 {strides = array<i32>} : memref<8x8x128xf32, #tpu.memory_space<vmem>>, vector<1x8x128xf32>,
    %435 = vector.extract_strided_slice %404 {offsets = [40, 0], sizes = [8, 128], strides = [1, 1]} : vector<64x128xf32> to vector<8x128xf32>
    %c5_i32_268 = arith.constant 5 : i32
    %436 = arith.addi %2, %c5_i32_268 : i32
    %437 = arith.index_cast %436 : i32 to index
    %c0_269 = arith.constant 0 : index
    %c0_270 = arith.constant 0 : index
    %438 = vector.load %arg4[%437, %c0_269, %c0_270] : memref<8x8x128xf32, #tpu.memory_space<vmem>>, vector<1x8x128xf32>
    %439 = vector.shape_cast %438 : vector<1x8x128xf32> to vector<8x128xf32>
    %440 = vector.shape_cast %435 : vector<8x128xf32> to vector<1x8x128xf32>
    tpu.vector_store %arg4[%437, %c0_269, %c0_270], %440 {strides = array<i32>} : memref<8x8x128xf32, #tpu.memory_space<vmem>>, vector<1x8x128xf32>,
    %441 = vector.extract_strided_slice %404 {offsets = [48, 0], sizes = [8, 128], strides = [1, 1]} : vector<64x128xf32> to vector<8x128xf32>
    %c6_i32_271 = arith.constant 6 : i32
    %442 = arith.addi %2, %c6_i32_271 : i32
    %443 = arith.index_cast %442 : i32 to index
    %c0_272 = arith.constant 0 : index
    %c0_273 = arith.constant 0 : index
    %444 = vector.load %arg4[%443, %c0_272, %c0_273] : memref<8x8x128xf32, #tpu.memory_space<vmem>>, vector<1x8x128xf32>
    %445 = vector.shape_cast %444 : vector<1x8x128xf32> to vector<8x128xf32>
    %446 = vector.shape_cast %441 : vector<8x128xf32> to vector<1x8x128xf32>
    tpu.vector_store %arg4[%443, %c0_272, %c0_273], %446 {strides = array<i32>} : memref<8x8x128xf32, #tpu.memory_space<vmem>>, vector<1x8x128xf32>,
    %447 = vector.extract_strided_slice %404 {offsets = [56, 0], sizes = [8, 128], strides = [1, 1]} : vector<64x128xf32> to vector<8x128xf32>
    %c7_i32_274 = arith.constant 7 : i32
    %448 = arith.addi %2, %c7_i32_274 : i32
    %449 = arith.index_cast %448 : i32 to index
    %c0_275 = arith.constant 0 : index
    %c0_276 = arith.constant 0 : index
    %450 = vector.load %arg4[%449, %c0_275, %c0_276] : memref<8x8x128xf32, #tpu.memory_space<vmem>>, vector<1x8x128xf32>
    %451 = vector.shape_cast %450 : vector<1x8x128xf32> to vector<8x128xf32>
    %452 = vector.shape_cast %447 : vector<8x128xf32> to vector<1x8x128xf32>
    tpu.vector_store %arg4[%449, %c0_275, %c0_276], %452 {strides = array<i32>} : memref<8x8x128xf32, #tpu.memory_space<vmem>>, vector<1x8x128xf32>,
    %cst_277 = arith.constant dense<0.000000e+00> : vector<128xf32>
    %453 = vector.multi_reduction <add>, %404, %cst_277 [0] : vector<64x128xf32> to vector<128xf32>
    %454 = vector.shape_cast %453 : vector<128xf32> to vector<1x128xf32>
    %455 = arith.addf %1, %454 : vector<1x128xf32>
    %456 = arith.mulf %404, %404 : vector<64x128xf32>
    %cst_278 = arith.constant dense<0.000000e+00> : vector<128xf32>
    %457 = vector.multi_reduction <add>, %456, %cst_278 [0] : vector<64x128xf32> to vector<128xf32>
    %458 = vector.shape_cast %457 : vector<128xf32> to vector<1x128xf32>
    %459 = arith.addf %1, %458 : vector<1x128xf32>
    %c1_i32_279 = arith.constant 1 : i32
    %cst_280 = arith.constant 1.562500e-02 : f32
    %460 = vector.broadcast %cst_280 : f32 to vector<1x128xf32>
    %461 = arith.mulf %455, %460 : vector<1x128xf32>
    %cst_281 = arith.constant 1.562500e-02 : f32
    %462 = vector.broadcast %cst_281 : f32 to vector<1x128xf32>
    %463 = arith.mulf %459, %462 : vector<1x128xf32>
    %464 = arith.mulf %461, %461 : vector<1x128xf32>
    %465 = arith.subf %463, %464 : vector<1x128xf32>
    %cst_282 = arith.constant 0.000000e+00 : f32
    %466 = vector.broadcast %cst_282 : f32 to vector<1x128xf32>
    %467 = arith.maximumf %465, %466 : vector<1x128xf32>
    %cst_283 = arith.constant 9.99999974E-6 : f32
    %468 = vector.broadcast %cst_283 : f32 to vector<1x128xf32>
    %469 = arith.addf %467, %468 : vector<1x128xf32>
    %470 = math.rsqrt %469 : vector<1x128xf32>
    %c0_i32_284 = arith.constant 0 : i32
    %c8_i32_285 = arith.constant 8 : i32
    %471 = arith.addi %c0_i32_284, %c8_i32_285 : i32
    %c1_i32_286 = arith.constant 1 : i32
    scf.for %arg5 = %c0_i32_284 to %471 step %c1_i32_286  : i32 {
      %472 = arith.index_cast %arg5 : i32 to index
      %c0_288 = arith.constant 0 : index
      %c0_289 = arith.constant 0 : index
      %473 = vector.load %arg4[%472, %c0_288, %c0_289] : memref<8x8x128xf32, #tpu.memory_space<vmem>>, vector<1x8x128xf32>
      %474 = vector.shape_cast %473 : vector<1x8x128xf32> to vector<8x128xf32>
      %475 = vector.broadcast %461 : vector<1x128xf32> to vector<8x128xf32>
      %476 = arith.subf %474, %475 : vector<8x128xf32>
      %477 = vector.broadcast %470 : vector<1x128xf32> to vector<8x128xf32>
      %478 = arith.mulf %476, %477 : vector<8x128xf32>
      %cst_290 = arith.constant 0.000000e+00 : f32
      %479 = vector.broadcast %cst_290 : f32 to vector<8x128xf32>
      %480 = arith.cmpf ogt, %478, %479 : vector<8x128xf32>
      %cst_291 = arith.constant 2.000000e-01 : f32
      %481 = vector.broadcast %cst_291 : f32 to vector<8x128xf32>
      %482 = arith.mulf %481, %478 : vector<8x128xf32>
      %483 = arith.select %480, %478, %482 : vector<8x128xi1>, vector<8x128xf32>
      %484 = arith.truncf %483 : vector<8x128xf32> to vector<8x128xbf16>
      %c0_292 = arith.constant 0 : index
      %485 = arith.index_cast %arg5 : i32 to index
      %c0_293 = arith.constant 0 : index
      %c0_294 = arith.constant 0 : index
      %486 = vector.load %arg3[%c0_292, %485, %c0_293, %c0_294] : memref<1x8x8x128xbf16, #tpu.memory_space<vmem>>, vector<1x1x8x128xbf16>
      %487 = vector.shape_cast %486 : vector<1x1x8x128xbf16> to vector<8x128xbf16>
      %488 = vector.shape_cast %484 : vector<8x128xbf16> to vector<1x1x8x128xbf16>
      tpu.vector_store %arg3[%c0_292, %485, %c0_293, %c0_294], %488 {strides = array<i32>} : memref<1x8x8x128xbf16, #tpu.memory_space<vmem>>, vector<1x1x8x128xbf16>,
    }
    %c8_i32_287 = arith.constant 8 : i32
    return
  }
  func.func @transform_0(%arg0: i32) -> (i32, i32, i32, i32) {
    %c0_i32 = arith.constant 0 : i32
    %c0_i32_0 = arith.constant 0 : i32
    %c0_i32_1 = arith.constant 0 : i32
    %c0_i32_2 = arith.constant 0 : i32
    return %arg0, %c0_i32, %c0_i32_0, %c0_i32_1 : i32, i32, i32, i32
  }
  func.func @transform_1(%arg0: i32) -> (i32, i32) {
    %c0_i32 = arith.constant 0 : i32
    %c0_i32_0 = arith.constant 0 : i32
    %c0_i32_1 = arith.constant 0 : i32
    return %c0_i32, %c0_i32_0 : i32, i32
  }
  func.func @transform_2(%arg0: i32) -> (i32, i32, i32, i32) {
    %c0_i32 = arith.constant 0 : i32
    %c0_i32_0 = arith.constant 0 : i32
    %c0_i32_1 = arith.constant 0 : i32
    %c0_i32_2 = arith.constant 0 : i32
    return %arg0, %c0_i32, %c0_i32_0, %c0_i32_1 : i32, i32, i32, i32
  }
}

module attributes {stable_mosaic.version = 11 : i64} {
  func.func @_conv_kernel(%arg0: i32, %arg1: memref<1x20x5x16xbf16, #tpu.memory_space<vmem>>, %arg2: memref<256x128xbf16, #tpu.memory_space<vmem>>, %arg3: memref<1x4x4x128xbf16, #tpu.memory_space<vmem>>, %arg4: memref<4x4x128xf32, #tpu.memory_space<vmem>>) attributes {dimension_semantics = [#tpu.dimension_semantics<parallel>], iteration_bounds = array<i64: 2>, scalar_prefetch = 0 : i64, scratch_operands = 1 : i64, tpu.core_type = #tpu.core_type<tc>, window_params = [{transform_indices = @transform_0, window_bounds = array<i64: 1, 20, 5, 16>}, {pipeline_mode = #tpu.pipeline_mode<synchronous>, transform_indices = @transform_1, window_bounds = array<i64: 256, 128>}, {transform_indices = @transform_2, window_bounds = array<i64: 1, 4, 4, 128>}]} {
    %c0 = arith.constant 0 : index
    %c0_0 = arith.constant 0 : index
    %0 = vector.load %arg2[%c0, %c0_0] : memref<256x128xbf16, #tpu.memory_space<vmem>>, vector<256x128xbf16>
    %cst = arith.constant 0.000000e+00 : f32
    %1 = vector.broadcast %cst : f32 to vector<1x128xf32>
    %c0_i32 = arith.constant 0 : i32
    %c4_i32 = arith.constant 4 : i32
    %2 = arith.muli %c0_i32, %c4_i32 : i32
    %c0_i32_1 = arith.constant 0 : i32
    %3 = arith.addi %2, %c0_i32_1 : i32
    %c0_i32_2 = arith.constant 0 : i32
    %4 = arith.addi %c0_i32_2, %3 : i32
    %c0_3 = arith.constant 0 : index
    %5 = arith.index_cast %4 : i32 to index
    %c0_4 = arith.constant 0 : index
    %c0_5 = arith.constant 0 : index
    %6 = vector.load %arg1[%c0_3, %5, %c0_4, %c0_5] : memref<1x20x5x16xbf16, #tpu.memory_space<vmem>>, vector<1x1x5x16xbf16>
    %7 = vector.shape_cast %6 : vector<1x1x5x16xbf16> to vector<5x16xbf16>
    %c5_i32 = arith.constant 5 : i32
    %8 = arith.addi %c5_i32, %3 : i32
    %c0_6 = arith.constant 0 : index
    %9 = arith.index_cast %8 : i32 to index
    %c0_7 = arith.constant 0 : index
    %c0_8 = arith.constant 0 : index
    %10 = vector.load %arg1[%c0_6, %9, %c0_7, %c0_8] : memref<1x20x5x16xbf16, #tpu.memory_space<vmem>>, vector<1x1x5x16xbf16>
    %11 = vector.shape_cast %10 : vector<1x1x5x16xbf16> to vector<5x16xbf16>
    %12 = vector.extract_strided_slice %7 {offsets = [0, 0], sizes = [4, 16], strides = [1, 1]} : vector<5x16xbf16> to vector<4x16xbf16>
    %13 = vector.extract_strided_slice %11 {offsets = [0, 0], sizes = [4, 16], strides = [1, 1]} : vector<5x16xbf16> to vector<4x16xbf16>
    %14 = vector.extract_strided_slice %7 {offsets = [1, 0], sizes = [4, 16], strides = [1, 1]} : vector<5x16xbf16> to vector<4x16xbf16>
    %15 = vector.extract_strided_slice %11 {offsets = [1, 0], sizes = [4, 16], strides = [1, 1]} : vector<5x16xbf16> to vector<4x16xbf16>
    %c10_i32 = arith.constant 10 : i32
    %16 = arith.addi %c10_i32, %3 : i32
    %c0_9 = arith.constant 0 : index
    %17 = arith.index_cast %16 : i32 to index
    %c0_10 = arith.constant 0 : index
    %c0_11 = arith.constant 0 : index
    %18 = vector.load %arg1[%c0_9, %17, %c0_10, %c0_11] : memref<1x20x5x16xbf16, #tpu.memory_space<vmem>>, vector<1x1x5x16xbf16>
    %19 = vector.shape_cast %18 : vector<1x1x5x16xbf16> to vector<5x16xbf16>
    %c15_i32 = arith.constant 15 : i32
    %20 = arith.addi %c15_i32, %3 : i32
    %c0_12 = arith.constant 0 : index
    %21 = arith.index_cast %20 : i32 to index
    %c0_13 = arith.constant 0 : index
    %c0_14 = arith.constant 0 : index
    %22 = vector.load %arg1[%c0_12, %21, %c0_13, %c0_14] : memref<1x20x5x16xbf16, #tpu.memory_space<vmem>>, vector<1x1x5x16xbf16>
    %23 = vector.shape_cast %22 : vector<1x1x5x16xbf16> to vector<5x16xbf16>
    %24 = vector.extract_strided_slice %19 {offsets = [0, 0], sizes = [4, 16], strides = [1, 1]} : vector<5x16xbf16> to vector<4x16xbf16>
    %25 = vector.extract_strided_slice %23 {offsets = [0, 0], sizes = [4, 16], strides = [1, 1]} : vector<5x16xbf16> to vector<4x16xbf16>
    %26 = vector.extract_strided_slice %19 {offsets = [1, 0], sizes = [4, 16], strides = [1, 1]} : vector<5x16xbf16> to vector<4x16xbf16>
    %27 = vector.extract_strided_slice %23 {offsets = [1, 0], sizes = [4, 16], strides = [1, 1]} : vector<5x16xbf16> to vector<4x16xbf16>
    %c1_i32 = arith.constant 1 : i32
    %28 = arith.addi %c1_i32, %3 : i32
    %c0_15 = arith.constant 0 : index
    %29 = arith.index_cast %28 : i32 to index
    %c0_16 = arith.constant 0 : index
    %c0_17 = arith.constant 0 : index
    %30 = vector.load %arg1[%c0_15, %29, %c0_16, %c0_17] : memref<1x20x5x16xbf16, #tpu.memory_space<vmem>>, vector<1x1x5x16xbf16>
    %31 = vector.shape_cast %30 : vector<1x1x5x16xbf16> to vector<5x16xbf16>
    %c6_i32 = arith.constant 6 : i32
    %32 = arith.addi %c6_i32, %3 : i32
    %c0_18 = arith.constant 0 : index
    %33 = arith.index_cast %32 : i32 to index
    %c0_19 = arith.constant 0 : index
    %c0_20 = arith.constant 0 : index
    %34 = vector.load %arg1[%c0_18, %33, %c0_19, %c0_20] : memref<1x20x5x16xbf16, #tpu.memory_space<vmem>>, vector<1x1x5x16xbf16>
    %35 = vector.shape_cast %34 : vector<1x1x5x16xbf16> to vector<5x16xbf16>
    %36 = vector.extract_strided_slice %31 {offsets = [0, 0], sizes = [4, 16], strides = [1, 1]} : vector<5x16xbf16> to vector<4x16xbf16>
    %37 = vector.extract_strided_slice %35 {offsets = [0, 0], sizes = [4, 16], strides = [1, 1]} : vector<5x16xbf16> to vector<4x16xbf16>
    %38 = vector.extract_strided_slice %31 {offsets = [1, 0], sizes = [4, 16], strides = [1, 1]} : vector<5x16xbf16> to vector<4x16xbf16>
    %39 = vector.extract_strided_slice %35 {offsets = [1, 0], sizes = [4, 16], strides = [1, 1]} : vector<5x16xbf16> to vector<4x16xbf16>
    %c11_i32 = arith.constant 11 : i32
    %40 = arith.addi %c11_i32, %3 : i32
    %c0_21 = arith.constant 0 : index
    %41 = arith.index_cast %40 : i32 to index
    %c0_22 = arith.constant 0 : index
    %c0_23 = arith.constant 0 : index
    %42 = vector.load %arg1[%c0_21, %41, %c0_22, %c0_23] : memref<1x20x5x16xbf16, #tpu.memory_space<vmem>>, vector<1x1x5x16xbf16>
    %43 = vector.shape_cast %42 : vector<1x1x5x16xbf16> to vector<5x16xbf16>
    %c16_i32 = arith.constant 16 : i32
    %44 = arith.addi %c16_i32, %3 : i32
    %c0_24 = arith.constant 0 : index
    %45 = arith.index_cast %44 : i32 to index
    %c0_25 = arith.constant 0 : index
    %c0_26 = arith.constant 0 : index
    %46 = vector.load %arg1[%c0_24, %45, %c0_25, %c0_26] : memref<1x20x5x16xbf16, #tpu.memory_space<vmem>>, vector<1x1x5x16xbf16>
    %47 = vector.shape_cast %46 : vector<1x1x5x16xbf16> to vector<5x16xbf16>
    %48 = vector.extract_strided_slice %43 {offsets = [0, 0], sizes = [4, 16], strides = [1, 1]} : vector<5x16xbf16> to vector<4x16xbf16>
    %49 = vector.extract_strided_slice %47 {offsets = [0, 0], sizes = [4, 16], strides = [1, 1]} : vector<5x16xbf16> to vector<4x16xbf16>
    %50 = vector.extract_strided_slice %43 {offsets = [1, 0], sizes = [4, 16], strides = [1, 1]} : vector<5x16xbf16> to vector<4x16xbf16>
    %51 = vector.extract_strided_slice %47 {offsets = [1, 0], sizes = [4, 16], strides = [1, 1]} : vector<5x16xbf16> to vector<4x16xbf16>
    %52 = tpu.concatenate %12, %13, %14, %15, %24, %25, %26, %27, %36, %37, %38, %39, %48, %49, %50, %51 in 1 : vector<4x16xbf16>, vector<4x16xbf16>, vector<4x16xbf16>, vector<4x16xbf16>, vector<4x16xbf16>, vector<4x16xbf16>, vector<4x16xbf16>, vector<4x16xbf16>, vector<4x16xbf16>, vector<4x16xbf16>, vector<4x16xbf16>, vector<4x16xbf16>, vector<4x16xbf16>, vector<4x16xbf16>, vector<4x16xbf16>, vector<4x16xbf16> -> vector<4x256xbf16>
    %c1_i32_27 = arith.constant 1 : i32
    %53 = arith.addi %2, %c1_i32_27 : i32
    %c0_i32_28 = arith.constant 0 : i32
    %54 = arith.addi %c0_i32_28, %53 : i32
    %c0_29 = arith.constant 0 : index
    %55 = arith.index_cast %54 : i32 to index
    %c0_30 = arith.constant 0 : index
    %c0_31 = arith.constant 0 : index
    %56 = vector.load %arg1[%c0_29, %55, %c0_30, %c0_31] : memref<1x20x5x16xbf16, #tpu.memory_space<vmem>>, vector<1x1x5x16xbf16>
    %57 = vector.shape_cast %56 : vector<1x1x5x16xbf16> to vector<5x16xbf16>
    %c5_i32_32 = arith.constant 5 : i32
    %58 = arith.addi %c5_i32_32, %53 : i32
    %c0_33 = arith.constant 0 : index
    %59 = arith.index_cast %58 : i32 to index
    %c0_34 = arith.constant 0 : index
    %c0_35 = arith.constant 0 : index
    %60 = vector.load %arg1[%c0_33, %59, %c0_34, %c0_35] : memref<1x20x5x16xbf16, #tpu.memory_space<vmem>>, vector<1x1x5x16xbf16>
    %61 = vector.shape_cast %60 : vector<1x1x5x16xbf16> to vector<5x16xbf16>
    %62 = vector.extract_strided_slice %57 {offsets = [0, 0], sizes = [4, 16], strides = [1, 1]} : vector<5x16xbf16> to vector<4x16xbf16>
    %63 = vector.extract_strided_slice %61 {offsets = [0, 0], sizes = [4, 16], strides = [1, 1]} : vector<5x16xbf16> to vector<4x16xbf16>
    %64 = vector.extract_strided_slice %57 {offsets = [1, 0], sizes = [4, 16], strides = [1, 1]} : vector<5x16xbf16> to vector<4x16xbf16>
    %65 = vector.extract_strided_slice %61 {offsets = [1, 0], sizes = [4, 16], strides = [1, 1]} : vector<5x16xbf16> to vector<4x16xbf16>
    %c10_i32_36 = arith.constant 10 : i32
    %66 = arith.addi %c10_i32_36, %53 : i32
    %c0_37 = arith.constant 0 : index
    %67 = arith.index_cast %66 : i32 to index
    %c0_38 = arith.constant 0 : index
    %c0_39 = arith.constant 0 : index
    %68 = vector.load %arg1[%c0_37, %67, %c0_38, %c0_39] : memref<1x20x5x16xbf16, #tpu.memory_space<vmem>>, vector<1x1x5x16xbf16>
    %69 = vector.shape_cast %68 : vector<1x1x5x16xbf16> to vector<5x16xbf16>
    %c15_i32_40 = arith.constant 15 : i32
    %70 = arith.addi %c15_i32_40, %53 : i32
    %c0_41 = arith.constant 0 : index
    %71 = arith.index_cast %70 : i32 to index
    %c0_42 = arith.constant 0 : index
    %c0_43 = arith.constant 0 : index
    %72 = vector.load %arg1[%c0_41, %71, %c0_42, %c0_43] : memref<1x20x5x16xbf16, #tpu.memory_space<vmem>>, vector<1x1x5x16xbf16>
    %73 = vector.shape_cast %72 : vector<1x1x5x16xbf16> to vector<5x16xbf16>
    %74 = vector.extract_strided_slice %69 {offsets = [0, 0], sizes = [4, 16], strides = [1, 1]} : vector<5x16xbf16> to vector<4x16xbf16>
    %75 = vector.extract_strided_slice %73 {offsets = [0, 0], sizes = [4, 16], strides = [1, 1]} : vector<5x16xbf16> to vector<4x16xbf16>
    %76 = vector.extract_strided_slice %69 {offsets = [1, 0], sizes = [4, 16], strides = [1, 1]} : vector<5x16xbf16> to vector<4x16xbf16>
    %77 = vector.extract_strided_slice %73 {offsets = [1, 0], sizes = [4, 16], strides = [1, 1]} : vector<5x16xbf16> to vector<4x16xbf16>
    %c1_i32_44 = arith.constant 1 : i32
    %78 = arith.addi %c1_i32_44, %53 : i32
    %c0_45 = arith.constant 0 : index
    %79 = arith.index_cast %78 : i32 to index
    %c0_46 = arith.constant 0 : index
    %c0_47 = arith.constant 0 : index
    %80 = vector.load %arg1[%c0_45, %79, %c0_46, %c0_47] : memref<1x20x5x16xbf16, #tpu.memory_space<vmem>>, vector<1x1x5x16xbf16>
    %81 = vector.shape_cast %80 : vector<1x1x5x16xbf16> to vector<5x16xbf16>
    %c6_i32_48 = arith.constant 6 : i32
    %82 = arith.addi %c6_i32_48, %53 : i32
    %c0_49 = arith.constant 0 : index
    %83 = arith.index_cast %82 : i32 to index
    %c0_50 = arith.constant 0 : index
    %c0_51 = arith.constant 0 : index
    %84 = vector.load %arg1[%c0_49, %83, %c0_50, %c0_51] : memref<1x20x5x16xbf16, #tpu.memory_space<vmem>>, vector<1x1x5x16xbf16>
    %85 = vector.shape_cast %84 : vector<1x1x5x16xbf16> to vector<5x16xbf16>
    %86 = vector.extract_strided_slice %81 {offsets = [0, 0], sizes = [4, 16], strides = [1, 1]} : vector<5x16xbf16> to vector<4x16xbf16>
    %87 = vector.extract_strided_slice %85 {offsets = [0, 0], sizes = [4, 16], strides = [1, 1]} : vector<5x16xbf16> to vector<4x16xbf16>
    %88 = vector.extract_strided_slice %81 {offsets = [1, 0], sizes = [4, 16], strides = [1, 1]} : vector<5x16xbf16> to vector<4x16xbf16>
    %89 = vector.extract_strided_slice %85 {offsets = [1, 0], sizes = [4, 16], strides = [1, 1]} : vector<5x16xbf16> to vector<4x16xbf16>
    %c11_i32_52 = arith.constant 11 : i32
    %90 = arith.addi %c11_i32_52, %53 : i32
    %c0_53 = arith.constant 0 : index
    %91 = arith.index_cast %90 : i32 to index
    %c0_54 = arith.constant 0 : index
    %c0_55 = arith.constant 0 : index
    %92 = vector.load %arg1[%c0_53, %91, %c0_54, %c0_55] : memref<1x20x5x16xbf16, #tpu.memory_space<vmem>>, vector<1x1x5x16xbf16>
    %93 = vector.shape_cast %92 : vector<1x1x5x16xbf16> to vector<5x16xbf16>
    %c16_i32_56 = arith.constant 16 : i32
    %94 = arith.addi %c16_i32_56, %53 : i32
    %c0_57 = arith.constant 0 : index
    %95 = arith.index_cast %94 : i32 to index
    %c0_58 = arith.constant 0 : index
    %c0_59 = arith.constant 0 : index
    %96 = vector.load %arg1[%c0_57, %95, %c0_58, %c0_59] : memref<1x20x5x16xbf16, #tpu.memory_space<vmem>>, vector<1x1x5x16xbf16>
    %97 = vector.shape_cast %96 : vector<1x1x5x16xbf16> to vector<5x16xbf16>
    %98 = vector.extract_strided_slice %93 {offsets = [0, 0], sizes = [4, 16], strides = [1, 1]} : vector<5x16xbf16> to vector<4x16xbf16>
    %99 = vector.extract_strided_slice %97 {offsets = [0, 0], sizes = [4, 16], strides = [1, 1]} : vector<5x16xbf16> to vector<4x16xbf16>
    %100 = vector.extract_strided_slice %93 {offsets = [1, 0], sizes = [4, 16], strides = [1, 1]} : vector<5x16xbf16> to vector<4x16xbf16>
    %101 = vector.extract_strided_slice %97 {offsets = [1, 0], sizes = [4, 16], strides = [1, 1]} : vector<5x16xbf16> to vector<4x16xbf16>
    %102 = tpu.concatenate %62, %63, %64, %65, %74, %75, %76, %77, %86, %87, %88, %89, %98, %99, %100, %101 in 1 : vector<4x16xbf16>, vector<4x16xbf16>, vector<4x16xbf16>, vector<4x16xbf16>, vector<4x16xbf16>, vector<4x16xbf16>, vector<4x16xbf16>, vector<4x16xbf16>, vector<4x16xbf16>, vector<4x16xbf16>, vector<4x16xbf16>, vector<4x16xbf16>, vector<4x16xbf16>, vector<4x16xbf16>, vector<4x16xbf16>, vector<4x16xbf16> -> vector<4x256xbf16>
    %c2_i32 = arith.constant 2 : i32
    %103 = arith.addi %2, %c2_i32 : i32
    %c0_i32_60 = arith.constant 0 : i32
    %104 = arith.addi %c0_i32_60, %103 : i32
    %c0_61 = arith.constant 0 : index
    %105 = arith.index_cast %104 : i32 to index
    %c0_62 = arith.constant 0 : index
    %c0_63 = arith.constant 0 : index
    %106 = vector.load %arg1[%c0_61, %105, %c0_62, %c0_63] : memref<1x20x5x16xbf16, #tpu.memory_space<vmem>>, vector<1x1x5x16xbf16>
    %107 = vector.shape_cast %106 : vector<1x1x5x16xbf16> to vector<5x16xbf16>
    %c5_i32_64 = arith.constant 5 : i32
    %108 = arith.addi %c5_i32_64, %103 : i32
    %c0_65 = arith.constant 0 : index
    %109 = arith.index_cast %108 : i32 to index
    %c0_66 = arith.constant 0 : index
    %c0_67 = arith.constant 0 : index
    %110 = vector.load %arg1[%c0_65, %109, %c0_66, %c0_67] : memref<1x20x5x16xbf16, #tpu.memory_space<vmem>>, vector<1x1x5x16xbf16>
    %111 = vector.shape_cast %110 : vector<1x1x5x16xbf16> to vector<5x16xbf16>
    %112 = vector.extract_strided_slice %107 {offsets = [0, 0], sizes = [4, 16], strides = [1, 1]} : vector<5x16xbf16> to vector<4x16xbf16>
    %113 = vector.extract_strided_slice %111 {offsets = [0, 0], sizes = [4, 16], strides = [1, 1]} : vector<5x16xbf16> to vector<4x16xbf16>
    %114 = vector.extract_strided_slice %107 {offsets = [1, 0], sizes = [4, 16], strides = [1, 1]} : vector<5x16xbf16> to vector<4x16xbf16>
    %115 = vector.extract_strided_slice %111 {offsets = [1, 0], sizes = [4, 16], strides = [1, 1]} : vector<5x16xbf16> to vector<4x16xbf16>
    %c10_i32_68 = arith.constant 10 : i32
    %116 = arith.addi %c10_i32_68, %103 : i32
    %c0_69 = arith.constant 0 : index
    %117 = arith.index_cast %116 : i32 to index
    %c0_70 = arith.constant 0 : index
    %c0_71 = arith.constant 0 : index
    %118 = vector.load %arg1[%c0_69, %117, %c0_70, %c0_71] : memref<1x20x5x16xbf16, #tpu.memory_space<vmem>>, vector<1x1x5x16xbf16>
    %119 = vector.shape_cast %118 : vector<1x1x5x16xbf16> to vector<5x16xbf16>
    %c15_i32_72 = arith.constant 15 : i32
    %120 = arith.addi %c15_i32_72, %103 : i32
    %c0_73 = arith.constant 0 : index
    %121 = arith.index_cast %120 : i32 to index
    %c0_74 = arith.constant 0 : index
    %c0_75 = arith.constant 0 : index
    %122 = vector.load %arg1[%c0_73, %121, %c0_74, %c0_75] : memref<1x20x5x16xbf16, #tpu.memory_space<vmem>>, vector<1x1x5x16xbf16>
    %123 = vector.shape_cast %122 : vector<1x1x5x16xbf16> to vector<5x16xbf16>
    %124 = vector.extract_strided_slice %119 {offsets = [0, 0], sizes = [4, 16], strides = [1, 1]} : vector<5x16xbf16> to vector<4x16xbf16>
    %125 = vector.extract_strided_slice %123 {offsets = [0, 0], sizes = [4, 16], strides = [1, 1]} : vector<5x16xbf16> to vector<4x16xbf16>
    %126 = vector.extract_strided_slice %119 {offsets = [1, 0], sizes = [4, 16], strides = [1, 1]} : vector<5x16xbf16> to vector<4x16xbf16>
    %127 = vector.extract_strided_slice %123 {offsets = [1, 0], sizes = [4, 16], strides = [1, 1]} : vector<5x16xbf16> to vector<4x16xbf16>
    %c1_i32_76 = arith.constant 1 : i32
    %128 = arith.addi %c1_i32_76, %103 : i32
    %c0_77 = arith.constant 0 : index
    %129 = arith.index_cast %128 : i32 to index
    %c0_78 = arith.constant 0 : index
    %c0_79 = arith.constant 0 : index
    %130 = vector.load %arg1[%c0_77, %129, %c0_78, %c0_79] : memref<1x20x5x16xbf16, #tpu.memory_space<vmem>>, vector<1x1x5x16xbf16>
    %131 = vector.shape_cast %130 : vector<1x1x5x16xbf16> to vector<5x16xbf16>
    %c6_i32_80 = arith.constant 6 : i32
    %132 = arith.addi %c6_i32_80, %103 : i32
    %c0_81 = arith.constant 0 : index
    %133 = arith.index_cast %132 : i32 to index
    %c0_82 = arith.constant 0 : index
    %c0_83 = arith.constant 0 : index
    %134 = vector.load %arg1[%c0_81, %133, %c0_82, %c0_83] : memref<1x20x5x16xbf16, #tpu.memory_space<vmem>>, vector<1x1x5x16xbf16>
    %135 = vector.shape_cast %134 : vector<1x1x5x16xbf16> to vector<5x16xbf16>
    %136 = vector.extract_strided_slice %131 {offsets = [0, 0], sizes = [4, 16], strides = [1, 1]} : vector<5x16xbf16> to vector<4x16xbf16>
    %137 = vector.extract_strided_slice %135 {offsets = [0, 0], sizes = [4, 16], strides = [1, 1]} : vector<5x16xbf16> to vector<4x16xbf16>
    %138 = vector.extract_strided_slice %131 {offsets = [1, 0], sizes = [4, 16], strides = [1, 1]} : vector<5x16xbf16> to vector<4x16xbf16>
    %139 = vector.extract_strided_slice %135 {offsets = [1, 0], sizes = [4, 16], strides = [1, 1]} : vector<5x16xbf16> to vector<4x16xbf16>
    %c11_i32_84 = arith.constant 11 : i32
    %140 = arith.addi %c11_i32_84, %103 : i32
    %c0_85 = arith.constant 0 : index
    %141 = arith.index_cast %140 : i32 to index
    %c0_86 = arith.constant 0 : index
    %c0_87 = arith.constant 0 : index
    %142 = vector.load %arg1[%c0_85, %141, %c0_86, %c0_87] : memref<1x20x5x16xbf16, #tpu.memory_space<vmem>>, vector<1x1x5x16xbf16>
    %143 = vector.shape_cast %142 : vector<1x1x5x16xbf16> to vector<5x16xbf16>
    %c16_i32_88 = arith.constant 16 : i32
    %144 = arith.addi %c16_i32_88, %103 : i32
    %c0_89 = arith.constant 0 : index
    %145 = arith.index_cast %144 : i32 to index
    %c0_90 = arith.constant 0 : index
    %c0_91 = arith.constant 0 : index
    %146 = vector.load %arg1[%c0_89, %145, %c0_90, %c0_91] : memref<1x20x5x16xbf16, #tpu.memory_space<vmem>>, vector<1x1x5x16xbf16>
    %147 = vector.shape_cast %146 : vector<1x1x5x16xbf16> to vector<5x16xbf16>
    %148 = vector.extract_strided_slice %143 {offsets = [0, 0], sizes = [4, 16], strides = [1, 1]} : vector<5x16xbf16> to vector<4x16xbf16>
    %149 = vector.extract_strided_slice %147 {offsets = [0, 0], sizes = [4, 16], strides = [1, 1]} : vector<5x16xbf16> to vector<4x16xbf16>
    %150 = vector.extract_strided_slice %143 {offsets = [1, 0], sizes = [4, 16], strides = [1, 1]} : vector<5x16xbf16> to vector<4x16xbf16>
    %151 = vector.extract_strided_slice %147 {offsets = [1, 0], sizes = [4, 16], strides = [1, 1]} : vector<5x16xbf16> to vector<4x16xbf16>
    %152 = tpu.concatenate %112, %113, %114, %115, %124, %125, %126, %127, %136, %137, %138, %139, %148, %149, %150, %151 in 1 : vector<4x16xbf16>, vector<4x16xbf16>, vector<4x16xbf16>, vector<4x16xbf16>, vector<4x16xbf16>, vector<4x16xbf16>, vector<4x16xbf16>, vector<4x16xbf16>, vector<4x16xbf16>, vector<4x16xbf16>, vector<4x16xbf16>, vector<4x16xbf16>, vector<4x16xbf16>, vector<4x16xbf16>, vector<4x16xbf16>, vector<4x16xbf16> -> vector<4x256xbf16>
    %c3_i32 = arith.constant 3 : i32
    %153 = arith.addi %2, %c3_i32 : i32
    %c0_i32_92 = arith.constant 0 : i32
    %154 = arith.addi %c0_i32_92, %153 : i32
    %c0_93 = arith.constant 0 : index
    %155 = arith.index_cast %154 : i32 to index
    %c0_94 = arith.constant 0 : index
    %c0_95 = arith.constant 0 : index
    %156 = vector.load %arg1[%c0_93, %155, %c0_94, %c0_95] : memref<1x20x5x16xbf16, #tpu.memory_space<vmem>>, vector<1x1x5x16xbf16>
    %157 = vector.shape_cast %156 : vector<1x1x5x16xbf16> to vector<5x16xbf16>
    %c5_i32_96 = arith.constant 5 : i32
    %158 = arith.addi %c5_i32_96, %153 : i32
    %c0_97 = arith.constant 0 : index
    %159 = arith.index_cast %158 : i32 to index
    %c0_98 = arith.constant 0 : index
    %c0_99 = arith.constant 0 : index
    %160 = vector.load %arg1[%c0_97, %159, %c0_98, %c0_99] : memref<1x20x5x16xbf16, #tpu.memory_space<vmem>>, vector<1x1x5x16xbf16>
    %161 = vector.shape_cast %160 : vector<1x1x5x16xbf16> to vector<5x16xbf16>
    %162 = vector.extract_strided_slice %157 {offsets = [0, 0], sizes = [4, 16], strides = [1, 1]} : vector<5x16xbf16> to vector<4x16xbf16>
    %163 = vector.extract_strided_slice %161 {offsets = [0, 0], sizes = [4, 16], strides = [1, 1]} : vector<5x16xbf16> to vector<4x16xbf16>
    %164 = vector.extract_strided_slice %157 {offsets = [1, 0], sizes = [4, 16], strides = [1, 1]} : vector<5x16xbf16> to vector<4x16xbf16>
    %165 = vector.extract_strided_slice %161 {offsets = [1, 0], sizes = [4, 16], strides = [1, 1]} : vector<5x16xbf16> to vector<4x16xbf16>
    %c10_i32_100 = arith.constant 10 : i32
    %166 = arith.addi %c10_i32_100, %153 : i32
    %c0_101 = arith.constant 0 : index
    %167 = arith.index_cast %166 : i32 to index
    %c0_102 = arith.constant 0 : index
    %c0_103 = arith.constant 0 : index
    %168 = vector.load %arg1[%c0_101, %167, %c0_102, %c0_103] : memref<1x20x5x16xbf16, #tpu.memory_space<vmem>>, vector<1x1x5x16xbf16>
    %169 = vector.shape_cast %168 : vector<1x1x5x16xbf16> to vector<5x16xbf16>
    %c15_i32_104 = arith.constant 15 : i32
    %170 = arith.addi %c15_i32_104, %153 : i32
    %c0_105 = arith.constant 0 : index
    %171 = arith.index_cast %170 : i32 to index
    %c0_106 = arith.constant 0 : index
    %c0_107 = arith.constant 0 : index
    %172 = vector.load %arg1[%c0_105, %171, %c0_106, %c0_107] : memref<1x20x5x16xbf16, #tpu.memory_space<vmem>>, vector<1x1x5x16xbf16>
    %173 = vector.shape_cast %172 : vector<1x1x5x16xbf16> to vector<5x16xbf16>
    %174 = vector.extract_strided_slice %169 {offsets = [0, 0], sizes = [4, 16], strides = [1, 1]} : vector<5x16xbf16> to vector<4x16xbf16>
    %175 = vector.extract_strided_slice %173 {offsets = [0, 0], sizes = [4, 16], strides = [1, 1]} : vector<5x16xbf16> to vector<4x16xbf16>
    %176 = vector.extract_strided_slice %169 {offsets = [1, 0], sizes = [4, 16], strides = [1, 1]} : vector<5x16xbf16> to vector<4x16xbf16>
    %177 = vector.extract_strided_slice %173 {offsets = [1, 0], sizes = [4, 16], strides = [1, 1]} : vector<5x16xbf16> to vector<4x16xbf16>
    %c1_i32_108 = arith.constant 1 : i32
    %178 = arith.addi %c1_i32_108, %153 : i32
    %c0_109 = arith.constant 0 : index
    %179 = arith.index_cast %178 : i32 to index
    %c0_110 = arith.constant 0 : index
    %c0_111 = arith.constant 0 : index
    %180 = vector.load %arg1[%c0_109, %179, %c0_110, %c0_111] : memref<1x20x5x16xbf16, #tpu.memory_space<vmem>>, vector<1x1x5x16xbf16>
    %181 = vector.shape_cast %180 : vector<1x1x5x16xbf16> to vector<5x16xbf16>
    %c6_i32_112 = arith.constant 6 : i32
    %182 = arith.addi %c6_i32_112, %153 : i32
    %c0_113 = arith.constant 0 : index
    %183 = arith.index_cast %182 : i32 to index
    %c0_114 = arith.constant 0 : index
    %c0_115 = arith.constant 0 : index
    %184 = vector.load %arg1[%c0_113, %183, %c0_114, %c0_115] : memref<1x20x5x16xbf16, #tpu.memory_space<vmem>>, vector<1x1x5x16xbf16>
    %185 = vector.shape_cast %184 : vector<1x1x5x16xbf16> to vector<5x16xbf16>
    %186 = vector.extract_strided_slice %181 {offsets = [0, 0], sizes = [4, 16], strides = [1, 1]} : vector<5x16xbf16> to vector<4x16xbf16>
    %187 = vector.extract_strided_slice %185 {offsets = [0, 0], sizes = [4, 16], strides = [1, 1]} : vector<5x16xbf16> to vector<4x16xbf16>
    %188 = vector.extract_strided_slice %181 {offsets = [1, 0], sizes = [4, 16], strides = [1, 1]} : vector<5x16xbf16> to vector<4x16xbf16>
    %189 = vector.extract_strided_slice %185 {offsets = [1, 0], sizes = [4, 16], strides = [1, 1]} : vector<5x16xbf16> to vector<4x16xbf16>
    %c11_i32_116 = arith.constant 11 : i32
    %190 = arith.addi %c11_i32_116, %153 : i32
    %c0_117 = arith.constant 0 : index
    %191 = arith.index_cast %190 : i32 to index
    %c0_118 = arith.constant 0 : index
    %c0_119 = arith.constant 0 : index
    %192 = vector.load %arg1[%c0_117, %191, %c0_118, %c0_119] : memref<1x20x5x16xbf16, #tpu.memory_space<vmem>>, vector<1x1x5x16xbf16>
    %193 = vector.shape_cast %192 : vector<1x1x5x16xbf16> to vector<5x16xbf16>
    %c16_i32_120 = arith.constant 16 : i32
    %194 = arith.addi %c16_i32_120, %153 : i32
    %c0_121 = arith.constant 0 : index
    %195 = arith.index_cast %194 : i32 to index
    %c0_122 = arith.constant 0 : index
    %c0_123 = arith.constant 0 : index
    %196 = vector.load %arg1[%c0_121, %195, %c0_122, %c0_123] : memref<1x20x5x16xbf16, #tpu.memory_space<vmem>>, vector<1x1x5x16xbf16>
    %197 = vector.shape_cast %196 : vector<1x1x5x16xbf16> to vector<5x16xbf16>
    %198 = vector.extract_strided_slice %193 {offsets = [0, 0], sizes = [4, 16], strides = [1, 1]} : vector<5x16xbf16> to vector<4x16xbf16>
    %199 = vector.extract_strided_slice %197 {offsets = [0, 0], sizes = [4, 16], strides = [1, 1]} : vector<5x16xbf16> to vector<4x16xbf16>
    %200 = vector.extract_strided_slice %193 {offsets = [1, 0], sizes = [4, 16], strides = [1, 1]} : vector<5x16xbf16> to vector<4x16xbf16>
    %201 = vector.extract_strided_slice %197 {offsets = [1, 0], sizes = [4, 16], strides = [1, 1]} : vector<5x16xbf16> to vector<4x16xbf16>
    %202 = tpu.concatenate %162, %163, %164, %165, %174, %175, %176, %177, %186, %187, %188, %189, %198, %199, %200, %201 in 1 : vector<4x16xbf16>, vector<4x16xbf16>, vector<4x16xbf16>, vector<4x16xbf16>, vector<4x16xbf16>, vector<4x16xbf16>, vector<4x16xbf16>, vector<4x16xbf16>, vector<4x16xbf16>, vector<4x16xbf16>, vector<4x16xbf16>, vector<4x16xbf16>, vector<4x16xbf16>, vector<4x16xbf16>, vector<4x16xbf16>, vector<4x16xbf16> -> vector<4x256xbf16>
    %203 = tpu.concatenate %52, %102, %152, %202 in 0 : vector<4x256xbf16>, vector<4x256xbf16>, vector<4x256xbf16>, vector<4x256xbf16> -> vector<16x256xbf16>
    %cst_124 = arith.constant dense<0.000000e+00> : vector<16x128xf32>
    %204 = tpu.matmul %203, %0, %cst_124 {dimension_numbers = #tpu.dot_dimension_numbers<[1], [0], [0], [1], [0, 0, 1, 1], [], []>} : vector<16x256xbf16>, vector<256x128xbf16>, vector<16x128xf32> -> vector<16x128xf32>
    %205 = vector.extract_strided_slice %204 {offsets = [0, 0], sizes = [4, 128], strides = [1, 1]} : vector<16x128xf32> to vector<4x128xf32>
    %c0_i32_125 = arith.constant 0 : i32
    %206 = arith.addi %2, %c0_i32_125 : i32
    %207 = arith.index_cast %206 : i32 to index
    %c0_126 = arith.constant 0 : index
    %c0_127 = arith.constant 0 : index
    %208 = vector.load %arg4[%207, %c0_126, %c0_127] : memref<4x4x128xf32, #tpu.memory_space<vmem>>, vector<1x4x128xf32>
    %209 = vector.shape_cast %208 : vector<1x4x128xf32> to vector<4x128xf32>
    %210 = vector.shape_cast %205 : vector<4x128xf32> to vector<1x4x128xf32>
    tpu.vector_store %arg4[%207, %c0_126, %c0_127], %210 {strides = array<i32>} : memref<4x4x128xf32, #tpu.memory_space<vmem>>, vector<1x4x128xf32>,
    %211 = vector.extract_strided_slice %204 {offsets = [4, 0], sizes = [4, 128], strides = [1, 1]} : vector<16x128xf32> to vector<4x128xf32>
    %c1_i32_128 = arith.constant 1 : i32
    %212 = arith.addi %2, %c1_i32_128 : i32
    %213 = arith.index_cast %212 : i32 to index
    %c0_129 = arith.constant 0 : index
    %c0_130 = arith.constant 0 : index
    %214 = vector.load %arg4[%213, %c0_129, %c0_130] : memref<4x4x128xf32, #tpu.memory_space<vmem>>, vector<1x4x128xf32>
    %215 = vector.shape_cast %214 : vector<1x4x128xf32> to vector<4x128xf32>
    %216 = vector.shape_cast %211 : vector<4x128xf32> to vector<1x4x128xf32>
    tpu.vector_store %arg4[%213, %c0_129, %c0_130], %216 {strides = array<i32>} : memref<4x4x128xf32, #tpu.memory_space<vmem>>, vector<1x4x128xf32>,
    %217 = vector.extract_strided_slice %204 {offsets = [8, 0], sizes = [4, 128], strides = [1, 1]} : vector<16x128xf32> to vector<4x128xf32>
    %c2_i32_131 = arith.constant 2 : i32
    %218 = arith.addi %2, %c2_i32_131 : i32
    %219 = arith.index_cast %218 : i32 to index
    %c0_132 = arith.constant 0 : index
    %c0_133 = arith.constant 0 : index
    %220 = vector.load %arg4[%219, %c0_132, %c0_133] : memref<4x4x128xf32, #tpu.memory_space<vmem>>, vector<1x4x128xf32>
    %221 = vector.shape_cast %220 : vector<1x4x128xf32> to vector<4x128xf32>
    %222 = vector.shape_cast %217 : vector<4x128xf32> to vector<1x4x128xf32>
    tpu.vector_store %arg4[%219, %c0_132, %c0_133], %222 {strides = array<i32>} : memref<4x4x128xf32, #tpu.memory_space<vmem>>, vector<1x4x128xf32>,
    %223 = vector.extract_strided_slice %204 {offsets = [12, 0], sizes = [4, 128], strides = [1, 1]} : vector<16x128xf32> to vector<4x128xf32>
    %c3_i32_134 = arith.constant 3 : i32
    %224 = arith.addi %2, %c3_i32_134 : i32
    %225 = arith.index_cast %224 : i32 to index
    %c0_135 = arith.constant 0 : index
    %c0_136 = arith.constant 0 : index
    %226 = vector.load %arg4[%225, %c0_135, %c0_136] : memref<4x4x128xf32, #tpu.memory_space<vmem>>, vector<1x4x128xf32>
    %227 = vector.shape_cast %226 : vector<1x4x128xf32> to vector<4x128xf32>
    %228 = vector.shape_cast %223 : vector<4x128xf32> to vector<1x4x128xf32>
    tpu.vector_store %arg4[%225, %c0_135, %c0_136], %228 {strides = array<i32>} : memref<4x4x128xf32, #tpu.memory_space<vmem>>, vector<1x4x128xf32>,
    %cst_137 = arith.constant dense<0.000000e+00> : vector<128xf32>
    %229 = vector.multi_reduction <add>, %204, %cst_137 [0] : vector<16x128xf32> to vector<128xf32>
    %230 = vector.shape_cast %229 : vector<128xf32> to vector<1x128xf32>
    %231 = arith.addf %1, %230 : vector<1x128xf32>
    %232 = arith.mulf %204, %204 : vector<16x128xf32>
    %cst_138 = arith.constant dense<0.000000e+00> : vector<128xf32>
    %233 = vector.multi_reduction <add>, %232, %cst_138 [0] : vector<16x128xf32> to vector<128xf32>
    %234 = vector.shape_cast %233 : vector<128xf32> to vector<1x128xf32>
    %235 = arith.addf %1, %234 : vector<1x128xf32>
    %c1_i32_139 = arith.constant 1 : i32
    %cst_140 = arith.constant 6.250000e-02 : f32
    %236 = vector.broadcast %cst_140 : f32 to vector<1x128xf32>
    %237 = arith.mulf %231, %236 : vector<1x128xf32>
    %cst_141 = arith.constant 6.250000e-02 : f32
    %238 = vector.broadcast %cst_141 : f32 to vector<1x128xf32>
    %239 = arith.mulf %235, %238 : vector<1x128xf32>
    %240 = arith.mulf %237, %237 : vector<1x128xf32>
    %241 = arith.subf %239, %240 : vector<1x128xf32>
    %cst_142 = arith.constant 0.000000e+00 : f32
    %242 = vector.broadcast %cst_142 : f32 to vector<1x128xf32>
    %243 = arith.maximumf %241, %242 : vector<1x128xf32>
    %cst_143 = arith.constant 9.99999974E-6 : f32
    %244 = vector.broadcast %cst_143 : f32 to vector<1x128xf32>
    %245 = arith.addf %243, %244 : vector<1x128xf32>
    %246 = math.rsqrt %245 : vector<1x128xf32>
    %c0_i32_144 = arith.constant 0 : i32
    %c4_i32_145 = arith.constant 4 : i32
    %247 = arith.addi %c0_i32_144, %c4_i32_145 : i32
    %c1_i32_146 = arith.constant 1 : i32
    scf.for %arg5 = %c0_i32_144 to %247 step %c1_i32_146  : i32 {
      %248 = arith.index_cast %arg5 : i32 to index
      %c0_148 = arith.constant 0 : index
      %c0_149 = arith.constant 0 : index
      %249 = vector.load %arg4[%248, %c0_148, %c0_149] : memref<4x4x128xf32, #tpu.memory_space<vmem>>, vector<1x4x128xf32>
      %250 = vector.shape_cast %249 : vector<1x4x128xf32> to vector<4x128xf32>
      %251 = vector.broadcast %237 : vector<1x128xf32> to vector<4x128xf32>
      %252 = arith.subf %250, %251 : vector<4x128xf32>
      %253 = vector.broadcast %246 : vector<1x128xf32> to vector<4x128xf32>
      %254 = arith.mulf %252, %253 : vector<4x128xf32>
      %cst_150 = arith.constant 0.000000e+00 : f32
      %255 = vector.broadcast %cst_150 : f32 to vector<4x128xf32>
      %256 = arith.cmpf ogt, %254, %255 : vector<4x128xf32>
      %cst_151 = arith.constant 2.000000e-01 : f32
      %257 = vector.broadcast %cst_151 : f32 to vector<4x128xf32>
      %258 = arith.mulf %257, %254 : vector<4x128xf32>
      %259 = arith.select %256, %254, %258 : vector<4x128xi1>, vector<4x128xf32>
      %260 = arith.truncf %259 : vector<4x128xf32> to vector<4x128xbf16>
      %c0_152 = arith.constant 0 : index
      %261 = arith.index_cast %arg5 : i32 to index
      %c0_153 = arith.constant 0 : index
      %c0_154 = arith.constant 0 : index
      %262 = vector.load %arg3[%c0_152, %261, %c0_153, %c0_154] : memref<1x4x4x128xbf16, #tpu.memory_space<vmem>>, vector<1x1x4x128xbf16>
      %263 = vector.shape_cast %262 : vector<1x1x4x128xbf16> to vector<4x128xbf16>
      %264 = vector.shape_cast %260 : vector<4x128xbf16> to vector<1x1x4x128xbf16>
      tpu.vector_store %arg3[%c0_152, %261, %c0_153, %c0_154], %264 {strides = array<i32>} : memref<1x4x4x128xbf16, #tpu.memory_space<vmem>>, vector<1x1x4x128xbf16>,
    }
    %c4_i32_147 = arith.constant 4 : i32
    return
  }
  func.func @transform_0(%arg0: i32) -> (i32, i32, i32, i32) {
    %c0_i32 = arith.constant 0 : i32
    %c0_i32_0 = arith.constant 0 : i32
    %c0_i32_1 = arith.constant 0 : i32
    %c0_i32_2 = arith.constant 0 : i32
    return %arg0, %c0_i32, %c0_i32_0, %c0_i32_1 : i32, i32, i32, i32
  }
  func.func @transform_1(%arg0: i32) -> (i32, i32) {
    %c0_i32 = arith.constant 0 : i32
    %c0_i32_0 = arith.constant 0 : i32
    %c0_i32_1 = arith.constant 0 : i32
    return %c0_i32, %c0_i32_0 : i32, i32
  }
  func.func @transform_2(%arg0: i32) -> (i32, i32, i32, i32) {
    %c0_i32 = arith.constant 0 : i32
    %c0_i32_0 = arith.constant 0 : i32
    %c0_i32_1 = arith.constant 0 : i32
    %c0_i32_2 = arith.constant 0 : i32
    return %arg0, %c0_i32, %c0_i32_0, %c0_i32_1 : i32, i32, i32, i32
  }
}

module attributes {stable_mosaic.version = 11 : i64} {
  func.func @_conv_kernel(%arg0: i32, %arg1: memref<1x6x6x32xbf16, #tpu.memory_space<vmem>>, %arg2: memref<512x128xbf16, #tpu.memory_space<vmem>>, %arg3: memref<1x3x3x128xbf16, #tpu.memory_space<vmem>>, %arg4: memref<3x3x128xf32, #tpu.memory_space<vmem>>) attributes {dimension_semantics = [#tpu.dimension_semantics<parallel>], iteration_bounds = array<i64: 2>, scalar_prefetch = 0 : i64, scratch_operands = 1 : i64, tpu.core_type = #tpu.core_type<tc>, window_params = [{transform_indices = @transform_0, window_bounds = array<i64: 1, 6, 6, 32>}, {pipeline_mode = #tpu.pipeline_mode<synchronous>, transform_indices = @transform_1, window_bounds = array<i64: 512, 128>}, {transform_indices = @transform_2, window_bounds = array<i64: 1, 3, 3, 128>}]} {
    %c0 = arith.constant 0 : index
    %c0_0 = arith.constant 0 : index
    %0 = vector.load %arg2[%c0, %c0_0] : memref<512x128xbf16, #tpu.memory_space<vmem>>, vector<512x128xbf16>
    %cst = arith.constant 0.000000e+00 : f32
    %1 = vector.broadcast %cst : f32 to vector<1x128xf32>
    %c0_i32 = arith.constant 0 : i32
    %c3_i32 = arith.constant 3 : i32
    %2 = arith.muli %c0_i32, %c3_i32 : i32
    %c0_i32_1 = arith.constant 0 : i32
    %3 = arith.addi %2, %c0_i32_1 : i32
    %c0_i32_2 = arith.constant 0 : i32
    %4 = arith.addi %c0_i32_2, %3 : i32
    %c0_3 = arith.constant 0 : index
    %5 = arith.index_cast %4 : i32 to index
    %c0_4 = arith.constant 0 : index
    %c0_5 = arith.constant 0 : index
    %6 = vector.load %arg1[%c0_3, %5, %c0_4, %c0_5] : memref<1x6x6x32xbf16, #tpu.memory_space<vmem>>, vector<1x1x6x32xbf16>
    %7 = vector.shape_cast %6 : vector<1x1x6x32xbf16> to vector<6x32xbf16>
    %8 = vector.extract_strided_slice %7 {offsets = [0, 0], sizes = [3, 32], strides = [1, 1]} : vector<6x32xbf16> to vector<3x32xbf16>
    %9 = vector.extract_strided_slice %7 {offsets = [1, 0], sizes = [3, 32], strides = [1, 1]} : vector<6x32xbf16> to vector<3x32xbf16>
    %10 = vector.extract_strided_slice %7 {offsets = [2, 0], sizes = [3, 32], strides = [1, 1]} : vector<6x32xbf16> to vector<3x32xbf16>
    %11 = vector.extract_strided_slice %7 {offsets = [3, 0], sizes = [3, 32], strides = [1, 1]} : vector<6x32xbf16> to vector<3x32xbf16>
    %c1_i32 = arith.constant 1 : i32
    %12 = arith.addi %c1_i32, %3 : i32
    %c0_6 = arith.constant 0 : index
    %13 = arith.index_cast %12 : i32 to index
    %c0_7 = arith.constant 0 : index
    %c0_8 = arith.constant 0 : index
    %14 = vector.load %arg1[%c0_6, %13, %c0_7, %c0_8] : memref<1x6x6x32xbf16, #tpu.memory_space<vmem>>, vector<1x1x6x32xbf16>
    %15 = vector.shape_cast %14 : vector<1x1x6x32xbf16> to vector<6x32xbf16>
    %16 = vector.extract_strided_slice %15 {offsets = [0, 0], sizes = [3, 32], strides = [1, 1]} : vector<6x32xbf16> to vector<3x32xbf16>
    %17 = vector.extract_strided_slice %15 {offsets = [1, 0], sizes = [3, 32], strides = [1, 1]} : vector<6x32xbf16> to vector<3x32xbf16>
    %18 = vector.extract_strided_slice %15 {offsets = [2, 0], sizes = [3, 32], strides = [1, 1]} : vector<6x32xbf16> to vector<3x32xbf16>
    %19 = vector.extract_strided_slice %15 {offsets = [3, 0], sizes = [3, 32], strides = [1, 1]} : vector<6x32xbf16> to vector<3x32xbf16>
    %c2_i32 = arith.constant 2 : i32
    %20 = arith.addi %c2_i32, %3 : i32
    %c0_9 = arith.constant 0 : index
    %21 = arith.index_cast %20 : i32 to index
    %c0_10 = arith.constant 0 : index
    %c0_11 = arith.constant 0 : index
    %22 = vector.load %arg1[%c0_9, %21, %c0_10, %c0_11] : memref<1x6x6x32xbf16, #tpu.memory_space<vmem>>, vector<1x1x6x32xbf16>
    %23 = vector.shape_cast %22 : vector<1x1x6x32xbf16> to vector<6x32xbf16>
    %24 = vector.extract_strided_slice %23 {offsets = [0, 0], sizes = [3, 32], strides = [1, 1]} : vector<6x32xbf16> to vector<3x32xbf16>
    %25 = vector.extract_strided_slice %23 {offsets = [1, 0], sizes = [3, 32], strides = [1, 1]} : vector<6x32xbf16> to vector<3x32xbf16>
    %26 = vector.extract_strided_slice %23 {offsets = [2, 0], sizes = [3, 32], strides = [1, 1]} : vector<6x32xbf16> to vector<3x32xbf16>
    %27 = vector.extract_strided_slice %23 {offsets = [3, 0], sizes = [3, 32], strides = [1, 1]} : vector<6x32xbf16> to vector<3x32xbf16>
    %c3_i32_12 = arith.constant 3 : i32
    %28 = arith.addi %c3_i32_12, %3 : i32
    %c0_13 = arith.constant 0 : index
    %29 = arith.index_cast %28 : i32 to index
    %c0_14 = arith.constant 0 : index
    %c0_15 = arith.constant 0 : index
    %30 = vector.load %arg1[%c0_13, %29, %c0_14, %c0_15] : memref<1x6x6x32xbf16, #tpu.memory_space<vmem>>, vector<1x1x6x32xbf16>
    %31 = vector.shape_cast %30 : vector<1x1x6x32xbf16> to vector<6x32xbf16>
    %32 = vector.extract_strided_slice %31 {offsets = [0, 0], sizes = [3, 32], strides = [1, 1]} : vector<6x32xbf16> to vector<3x32xbf16>
    %33 = vector.extract_strided_slice %31 {offsets = [1, 0], sizes = [3, 32], strides = [1, 1]} : vector<6x32xbf16> to vector<3x32xbf16>
    %34 = vector.extract_strided_slice %31 {offsets = [2, 0], sizes = [3, 32], strides = [1, 1]} : vector<6x32xbf16> to vector<3x32xbf16>
    %35 = vector.extract_strided_slice %31 {offsets = [3, 0], sizes = [3, 32], strides = [1, 1]} : vector<6x32xbf16> to vector<3x32xbf16>
    %36 = tpu.concatenate %8, %9, %10, %11, %16, %17, %18, %19, %24, %25, %26, %27, %32, %33, %34, %35 in 1 : vector<3x32xbf16>, vector<3x32xbf16>, vector<3x32xbf16>, vector<3x32xbf16>, vector<3x32xbf16>, vector<3x32xbf16>, vector<3x32xbf16>, vector<3x32xbf16>, vector<3x32xbf16>, vector<3x32xbf16>, vector<3x32xbf16>, vector<3x32xbf16>, vector<3x32xbf16>, vector<3x32xbf16>, vector<3x32xbf16>, vector<3x32xbf16> -> vector<3x512xbf16>
    %c1_i32_16 = arith.constant 1 : i32
    %37 = arith.addi %2, %c1_i32_16 : i32
    %c0_i32_17 = arith.constant 0 : i32
    %38 = arith.addi %c0_i32_17, %37 : i32
    %c0_18 = arith.constant 0 : index
    %39 = arith.index_cast %38 : i32 to index
    %c0_19 = arith.constant 0 : index
    %c0_20 = arith.constant 0 : index
    %40 = vector.load %arg1[%c0_18, %39, %c0_19, %c0_20] : memref<1x6x6x32xbf16, #tpu.memory_space<vmem>>, vector<1x1x6x32xbf16>
    %41 = vector.shape_cast %40 : vector<1x1x6x32xbf16> to vector<6x32xbf16>
    %42 = vector.extract_strided_slice %41 {offsets = [0, 0], sizes = [3, 32], strides = [1, 1]} : vector<6x32xbf16> to vector<3x32xbf16>
    %43 = vector.extract_strided_slice %41 {offsets = [1, 0], sizes = [3, 32], strides = [1, 1]} : vector<6x32xbf16> to vector<3x32xbf16>
    %44 = vector.extract_strided_slice %41 {offsets = [2, 0], sizes = [3, 32], strides = [1, 1]} : vector<6x32xbf16> to vector<3x32xbf16>
    %45 = vector.extract_strided_slice %41 {offsets = [3, 0], sizes = [3, 32], strides = [1, 1]} : vector<6x32xbf16> to vector<3x32xbf16>
    %c1_i32_21 = arith.constant 1 : i32
    %46 = arith.addi %c1_i32_21, %37 : i32
    %c0_22 = arith.constant 0 : index
    %47 = arith.index_cast %46 : i32 to index
    %c0_23 = arith.constant 0 : index
    %c0_24 = arith.constant 0 : index
    %48 = vector.load %arg1[%c0_22, %47, %c0_23, %c0_24] : memref<1x6x6x32xbf16, #tpu.memory_space<vmem>>, vector<1x1x6x32xbf16>
    %49 = vector.shape_cast %48 : vector<1x1x6x32xbf16> to vector<6x32xbf16>
    %50 = vector.extract_strided_slice %49 {offsets = [0, 0], sizes = [3, 32], strides = [1, 1]} : vector<6x32xbf16> to vector<3x32xbf16>
    %51 = vector.extract_strided_slice %49 {offsets = [1, 0], sizes = [3, 32], strides = [1, 1]} : vector<6x32xbf16> to vector<3x32xbf16>
    %52 = vector.extract_strided_slice %49 {offsets = [2, 0], sizes = [3, 32], strides = [1, 1]} : vector<6x32xbf16> to vector<3x32xbf16>
    %53 = vector.extract_strided_slice %49 {offsets = [3, 0], sizes = [3, 32], strides = [1, 1]} : vector<6x32xbf16> to vector<3x32xbf16>
    %c2_i32_25 = arith.constant 2 : i32
    %54 = arith.addi %c2_i32_25, %37 : i32
    %c0_26 = arith.constant 0 : index
    %55 = arith.index_cast %54 : i32 to index
    %c0_27 = arith.constant 0 : index
    %c0_28 = arith.constant 0 : index
    %56 = vector.load %arg1[%c0_26, %55, %c0_27, %c0_28] : memref<1x6x6x32xbf16, #tpu.memory_space<vmem>>, vector<1x1x6x32xbf16>
    %57 = vector.shape_cast %56 : vector<1x1x6x32xbf16> to vector<6x32xbf16>
    %58 = vector.extract_strided_slice %57 {offsets = [0, 0], sizes = [3, 32], strides = [1, 1]} : vector<6x32xbf16> to vector<3x32xbf16>
    %59 = vector.extract_strided_slice %57 {offsets = [1, 0], sizes = [3, 32], strides = [1, 1]} : vector<6x32xbf16> to vector<3x32xbf16>
    %60 = vector.extract_strided_slice %57 {offsets = [2, 0], sizes = [3, 32], strides = [1, 1]} : vector<6x32xbf16> to vector<3x32xbf16>
    %61 = vector.extract_strided_slice %57 {offsets = [3, 0], sizes = [3, 32], strides = [1, 1]} : vector<6x32xbf16> to vector<3x32xbf16>
    %c3_i32_29 = arith.constant 3 : i32
    %62 = arith.addi %c3_i32_29, %37 : i32
    %c0_30 = arith.constant 0 : index
    %63 = arith.index_cast %62 : i32 to index
    %c0_31 = arith.constant 0 : index
    %c0_32 = arith.constant 0 : index
    %64 = vector.load %arg1[%c0_30, %63, %c0_31, %c0_32] : memref<1x6x6x32xbf16, #tpu.memory_space<vmem>>, vector<1x1x6x32xbf16>
    %65 = vector.shape_cast %64 : vector<1x1x6x32xbf16> to vector<6x32xbf16>
    %66 = vector.extract_strided_slice %65 {offsets = [0, 0], sizes = [3, 32], strides = [1, 1]} : vector<6x32xbf16> to vector<3x32xbf16>
    %67 = vector.extract_strided_slice %65 {offsets = [1, 0], sizes = [3, 32], strides = [1, 1]} : vector<6x32xbf16> to vector<3x32xbf16>
    %68 = vector.extract_strided_slice %65 {offsets = [2, 0], sizes = [3, 32], strides = [1, 1]} : vector<6x32xbf16> to vector<3x32xbf16>
    %69 = vector.extract_strided_slice %65 {offsets = [3, 0], sizes = [3, 32], strides = [1, 1]} : vector<6x32xbf16> to vector<3x32xbf16>
    %70 = tpu.concatenate %42, %43, %44, %45, %50, %51, %52, %53, %58, %59, %60, %61, %66, %67, %68, %69 in 1 : vector<3x32xbf16>, vector<3x32xbf16>, vector<3x32xbf16>, vector<3x32xbf16>, vector<3x32xbf16>, vector<3x32xbf16>, vector<3x32xbf16>, vector<3x32xbf16>, vector<3x32xbf16>, vector<3x32xbf16>, vector<3x32xbf16>, vector<3x32xbf16>, vector<3x32xbf16>, vector<3x32xbf16>, vector<3x32xbf16>, vector<3x32xbf16> -> vector<3x512xbf16>
    %c2_i32_33 = arith.constant 2 : i32
    %71 = arith.addi %2, %c2_i32_33 : i32
    %c0_i32_34 = arith.constant 0 : i32
    %72 = arith.addi %c0_i32_34, %71 : i32
    %c0_35 = arith.constant 0 : index
    %73 = arith.index_cast %72 : i32 to index
    %c0_36 = arith.constant 0 : index
    %c0_37 = arith.constant 0 : index
    %74 = vector.load %arg1[%c0_35, %73, %c0_36, %c0_37] : memref<1x6x6x32xbf16, #tpu.memory_space<vmem>>, vector<1x1x6x32xbf16>
    %75 = vector.shape_cast %74 : vector<1x1x6x32xbf16> to vector<6x32xbf16>
    %76 = vector.extract_strided_slice %75 {offsets = [0, 0], sizes = [3, 32], strides = [1, 1]} : vector<6x32xbf16> to vector<3x32xbf16>
    %77 = vector.extract_strided_slice %75 {offsets = [1, 0], sizes = [3, 32], strides = [1, 1]} : vector<6x32xbf16> to vector<3x32xbf16>
    %78 = vector.extract_strided_slice %75 {offsets = [2, 0], sizes = [3, 32], strides = [1, 1]} : vector<6x32xbf16> to vector<3x32xbf16>
    %79 = vector.extract_strided_slice %75 {offsets = [3, 0], sizes = [3, 32], strides = [1, 1]} : vector<6x32xbf16> to vector<3x32xbf16>
    %c1_i32_38 = arith.constant 1 : i32
    %80 = arith.addi %c1_i32_38, %71 : i32
    %c0_39 = arith.constant 0 : index
    %81 = arith.index_cast %80 : i32 to index
    %c0_40 = arith.constant 0 : index
    %c0_41 = arith.constant 0 : index
    %82 = vector.load %arg1[%c0_39, %81, %c0_40, %c0_41] : memref<1x6x6x32xbf16, #tpu.memory_space<vmem>>, vector<1x1x6x32xbf16>
    %83 = vector.shape_cast %82 : vector<1x1x6x32xbf16> to vector<6x32xbf16>
    %84 = vector.extract_strided_slice %83 {offsets = [0, 0], sizes = [3, 32], strides = [1, 1]} : vector<6x32xbf16> to vector<3x32xbf16>
    %85 = vector.extract_strided_slice %83 {offsets = [1, 0], sizes = [3, 32], strides = [1, 1]} : vector<6x32xbf16> to vector<3x32xbf16>
    %86 = vector.extract_strided_slice %83 {offsets = [2, 0], sizes = [3, 32], strides = [1, 1]} : vector<6x32xbf16> to vector<3x32xbf16>
    %87 = vector.extract_strided_slice %83 {offsets = [3, 0], sizes = [3, 32], strides = [1, 1]} : vector<6x32xbf16> to vector<3x32xbf16>
    %c2_i32_42 = arith.constant 2 : i32
    %88 = arith.addi %c2_i32_42, %71 : i32
    %c0_43 = arith.constant 0 : index
    %89 = arith.index_cast %88 : i32 to index
    %c0_44 = arith.constant 0 : index
    %c0_45 = arith.constant 0 : index
    %90 = vector.load %arg1[%c0_43, %89, %c0_44, %c0_45] : memref<1x6x6x32xbf16, #tpu.memory_space<vmem>>, vector<1x1x6x32xbf16>
    %91 = vector.shape_cast %90 : vector<1x1x6x32xbf16> to vector<6x32xbf16>
    %92 = vector.extract_strided_slice %91 {offsets = [0, 0], sizes = [3, 32], strides = [1, 1]} : vector<6x32xbf16> to vector<3x32xbf16>
    %93 = vector.extract_strided_slice %91 {offsets = [1, 0], sizes = [3, 32], strides = [1, 1]} : vector<6x32xbf16> to vector<3x32xbf16>
    %94 = vector.extract_strided_slice %91 {offsets = [2, 0], sizes = [3, 32], strides = [1, 1]} : vector<6x32xbf16> to vector<3x32xbf16>
    %95 = vector.extract_strided_slice %91 {offsets = [3, 0], sizes = [3, 32], strides = [1, 1]} : vector<6x32xbf16> to vector<3x32xbf16>
    %c3_i32_46 = arith.constant 3 : i32
    %96 = arith.addi %c3_i32_46, %71 : i32
    %c0_47 = arith.constant 0 : index
    %97 = arith.index_cast %96 : i32 to index
    %c0_48 = arith.constant 0 : index
    %c0_49 = arith.constant 0 : index
    %98 = vector.load %arg1[%c0_47, %97, %c0_48, %c0_49] : memref<1x6x6x32xbf16, #tpu.memory_space<vmem>>, vector<1x1x6x32xbf16>
    %99 = vector.shape_cast %98 : vector<1x1x6x32xbf16> to vector<6x32xbf16>
    %100 = vector.extract_strided_slice %99 {offsets = [0, 0], sizes = [3, 32], strides = [1, 1]} : vector<6x32xbf16> to vector<3x32xbf16>
    %101 = vector.extract_strided_slice %99 {offsets = [1, 0], sizes = [3, 32], strides = [1, 1]} : vector<6x32xbf16> to vector<3x32xbf16>
    %102 = vector.extract_strided_slice %99 {offsets = [2, 0], sizes = [3, 32], strides = [1, 1]} : vector<6x32xbf16> to vector<3x32xbf16>
    %103 = vector.extract_strided_slice %99 {offsets = [3, 0], sizes = [3, 32], strides = [1, 1]} : vector<6x32xbf16> to vector<3x32xbf16>
    %104 = tpu.concatenate %76, %77, %78, %79, %84, %85, %86, %87, %92, %93, %94, %95, %100, %101, %102, %103 in 1 : vector<3x32xbf16>, vector<3x32xbf16>, vector<3x32xbf16>, vector<3x32xbf16>, vector<3x32xbf16>, vector<3x32xbf16>, vector<3x32xbf16>, vector<3x32xbf16>, vector<3x32xbf16>, vector<3x32xbf16>, vector<3x32xbf16>, vector<3x32xbf16>, vector<3x32xbf16>, vector<3x32xbf16>, vector<3x32xbf16>, vector<3x32xbf16> -> vector<3x512xbf16>
    %105 = tpu.concatenate %36, %70, %104 in 0 : vector<3x512xbf16>, vector<3x512xbf16>, vector<3x512xbf16> -> vector<9x512xbf16>
    %cst_50 = arith.constant dense<0.000000e+00> : vector<9x128xf32>
    %106 = tpu.matmul %105, %0, %cst_50 {dimension_numbers = #tpu.dot_dimension_numbers<[1], [0], [0], [1], [0, 0, 1, 1], [], []>} : vector<9x512xbf16>, vector<512x128xbf16>, vector<9x128xf32> -> vector<9x128xf32>
    %107 = vector.extract_strided_slice %106 {offsets = [0, 0], sizes = [3, 128], strides = [1, 1]} : vector<9x128xf32> to vector<3x128xf32>
    %c0_i32_51 = arith.constant 0 : i32
    %108 = arith.addi %2, %c0_i32_51 : i32
    %109 = arith.index_cast %108 : i32 to index
    %c0_52 = arith.constant 0 : index
    %c0_53 = arith.constant 0 : index
    %110 = vector.load %arg4[%109, %c0_52, %c0_53] : memref<3x3x128xf32, #tpu.memory_space<vmem>>, vector<1x3x128xf32>
    %111 = vector.shape_cast %110 : vector<1x3x128xf32> to vector<3x128xf32>
    %112 = vector.shape_cast %107 : vector<3x128xf32> to vector<1x3x128xf32>
    tpu.vector_store %arg4[%109, %c0_52, %c0_53], %112 {strides = array<i32>} : memref<3x3x128xf32, #tpu.memory_space<vmem>>, vector<1x3x128xf32>,
    %113 = vector.extract_strided_slice %106 {offsets = [3, 0], sizes = [3, 128], strides = [1, 1]} : vector<9x128xf32> to vector<3x128xf32>
    %c1_i32_54 = arith.constant 1 : i32
    %114 = arith.addi %2, %c1_i32_54 : i32
    %115 = arith.index_cast %114 : i32 to index
    %c0_55 = arith.constant 0 : index
    %c0_56 = arith.constant 0 : index
    %116 = vector.load %arg4[%115, %c0_55, %c0_56] : memref<3x3x128xf32, #tpu.memory_space<vmem>>, vector<1x3x128xf32>
    %117 = vector.shape_cast %116 : vector<1x3x128xf32> to vector<3x128xf32>
    %118 = vector.shape_cast %113 : vector<3x128xf32> to vector<1x3x128xf32>
    tpu.vector_store %arg4[%115, %c0_55, %c0_56], %118 {strides = array<i32>} : memref<3x3x128xf32, #tpu.memory_space<vmem>>, vector<1x3x128xf32>,
    %119 = vector.extract_strided_slice %106 {offsets = [6, 0], sizes = [3, 128], strides = [1, 1]} : vector<9x128xf32> to vector<3x128xf32>
    %c2_i32_57 = arith.constant 2 : i32
    %120 = arith.addi %2, %c2_i32_57 : i32
    %121 = arith.index_cast %120 : i32 to index
    %c0_58 = arith.constant 0 : index
    %c0_59 = arith.constant 0 : index
    %122 = vector.load %arg4[%121, %c0_58, %c0_59] : memref<3x3x128xf32, #tpu.memory_space<vmem>>, vector<1x3x128xf32>
    %123 = vector.shape_cast %122 : vector<1x3x128xf32> to vector<3x128xf32>
    %124 = vector.shape_cast %119 : vector<3x128xf32> to vector<1x3x128xf32>
    tpu.vector_store %arg4[%121, %c0_58, %c0_59], %124 {strides = array<i32>} : memref<3x3x128xf32, #tpu.memory_space<vmem>>, vector<1x3x128xf32>,
    %cst_60 = arith.constant dense<0.000000e+00> : vector<128xf32>
    %125 = vector.multi_reduction <add>, %106, %cst_60 [0] : vector<9x128xf32> to vector<128xf32>
    %126 = vector.shape_cast %125 : vector<128xf32> to vector<1x128xf32>
    %127 = arith.addf %1, %126 : vector<1x128xf32>
    %128 = arith.mulf %106, %106 : vector<9x128xf32>
    %cst_61 = arith.constant dense<0.000000e+00> : vector<128xf32>
    %129 = vector.multi_reduction <add>, %128, %cst_61 [0] : vector<9x128xf32> to vector<128xf32>
    %130 = vector.shape_cast %129 : vector<128xf32> to vector<1x128xf32>
    %131 = arith.addf %1, %130 : vector<1x128xf32>
    %c1_i32_62 = arith.constant 1 : i32
    %cst_63 = arith.constant 0.111111112 : f32
    %132 = vector.broadcast %cst_63 : f32 to vector<1x128xf32>
    %133 = arith.mulf %127, %132 : vector<1x128xf32>
    %cst_64 = arith.constant 0.111111112 : f32
    %134 = vector.broadcast %cst_64 : f32 to vector<1x128xf32>
    %135 = arith.mulf %131, %134 : vector<1x128xf32>
    %136 = arith.mulf %133, %133 : vector<1x128xf32>
    %137 = arith.subf %135, %136 : vector<1x128xf32>
    %cst_65 = arith.constant 0.000000e+00 : f32
    %138 = vector.broadcast %cst_65 : f32 to vector<1x128xf32>
    %139 = arith.maximumf %137, %138 : vector<1x128xf32>
    %cst_66 = arith.constant 9.99999974E-6 : f32
    %140 = vector.broadcast %cst_66 : f32 to vector<1x128xf32>
    %141 = arith.addf %139, %140 : vector<1x128xf32>
    %142 = math.rsqrt %141 : vector<1x128xf32>
    %c0_i32_67 = arith.constant 0 : i32
    %c3_i32_68 = arith.constant 3 : i32
    %143 = arith.addi %c0_i32_67, %c3_i32_68 : i32
    %c1_i32_69 = arith.constant 1 : i32
    scf.for %arg5 = %c0_i32_67 to %143 step %c1_i32_69  : i32 {
      %144 = arith.index_cast %arg5 : i32 to index
      %c0_71 = arith.constant 0 : index
      %c0_72 = arith.constant 0 : index
      %145 = vector.load %arg4[%144, %c0_71, %c0_72] : memref<3x3x128xf32, #tpu.memory_space<vmem>>, vector<1x3x128xf32>
      %146 = vector.shape_cast %145 : vector<1x3x128xf32> to vector<3x128xf32>
      %147 = vector.broadcast %133 : vector<1x128xf32> to vector<3x128xf32>
      %148 = arith.subf %146, %147 : vector<3x128xf32>
      %149 = vector.broadcast %142 : vector<1x128xf32> to vector<3x128xf32>
      %150 = arith.mulf %148, %149 : vector<3x128xf32>
      %cst_73 = arith.constant 0.000000e+00 : f32
      %151 = vector.broadcast %cst_73 : f32 to vector<3x128xf32>
      %152 = arith.cmpf ogt, %150, %151 : vector<3x128xf32>
      %cst_74 = arith.constant 2.000000e-01 : f32
      %153 = vector.broadcast %cst_74 : f32 to vector<3x128xf32>
      %154 = arith.mulf %153, %150 : vector<3x128xf32>
      %155 = arith.select %152, %150, %154 : vector<3x128xi1>, vector<3x128xf32>
      %156 = arith.truncf %155 : vector<3x128xf32> to vector<3x128xbf16>
      %c0_75 = arith.constant 0 : index
      %157 = arith.index_cast %arg5 : i32 to index
      %c0_76 = arith.constant 0 : index
      %c0_77 = arith.constant 0 : index
      %158 = vector.load %arg3[%c0_75, %157, %c0_76, %c0_77] : memref<1x3x3x128xbf16, #tpu.memory_space<vmem>>, vector<1x1x3x128xbf16>
      %159 = vector.shape_cast %158 : vector<1x1x3x128xbf16> to vector<3x128xbf16>
      %160 = vector.shape_cast %156 : vector<3x128xbf16> to vector<1x1x3x128xbf16>
      tpu.vector_store %arg3[%c0_75, %157, %c0_76, %c0_77], %160 {strides = array<i32>} : memref<1x3x3x128xbf16, #tpu.memory_space<vmem>>, vector<1x1x3x128xbf16>,
    }
    %c3_i32_70 = arith.constant 3 : i32
    return
  }
  func.func @transform_0(%arg0: i32) -> (i32, i32, i32, i32) {
    %c0_i32 = arith.constant 0 : i32
    %c0_i32_0 = arith.constant 0 : i32
    %c0_i32_1 = arith.constant 0 : i32
    %c0_i32_2 = arith.constant 0 : i32
    return %arg0, %c0_i32, %c0_i32_0, %c0_i32_1 : i32, i32, i32, i32
  }
  func.func @transform_1(%arg0: i32) -> (i32, i32) {
    %c0_i32 = arith.constant 0 : i32
    %c0_i32_0 = arith.constant 0 : i32
    %c0_i32_1 = arith.constant 0 : i32
    return %c0_i32, %c0_i32_0 : i32, i32
  }
  func.func @transform_2(%arg0: i32) -> (i32, i32, i32, i32) {
    %c0_i32 = arith.constant 0 : i32
    %c0_i32_0 = arith.constant 0 : i32
    %c0_i32_1 = arith.constant 0 : i32
    %c0_i32_2 = arith.constant 0 : i32
    return %arg0, %c0_i32, %c0_i32_0, %c0_i32_1 : i32, i32, i32, i32
  }
}

module attributes {stable_mosaic.version = 11 : i64} {
  func.func @_conv_kernel(%arg0: i32, %arg1: memref<1x5x5x64xbf16, #tpu.memory_space<vmem>>, %arg2: memref<1024x128xbf16, #tpu.memory_space<vmem>>, %arg3: memref<1x128xf32, #tpu.memory_space<vmem>>, %arg4: memref<1x2x2x128xf32, #tpu.memory_space<vmem>>) attributes {dimension_semantics = [#tpu.dimension_semantics<parallel>], iteration_bounds = array<i64: 2>, scalar_prefetch = 0 : i64, scratch_operands = 0 : i64, tpu.core_type = #tpu.core_type<tc>, window_params = [{transform_indices = @transform_0, window_bounds = array<i64: 1, 5, 5, 64>}, {pipeline_mode = #tpu.pipeline_mode<synchronous>, transform_indices = @transform_1, window_bounds = array<i64: 1024, 128>}, {pipeline_mode = #tpu.pipeline_mode<synchronous>, transform_indices = @transform_2, window_bounds = array<i64: 1, 128>}, {transform_indices = @transform_3, window_bounds = array<i64: 1, 2, 2, 128>}]} {
    %c0 = arith.constant 0 : index
    %c0_0 = arith.constant 0 : index
    %0 = vector.load %arg2[%c0, %c0_0] : memref<1024x128xbf16, #tpu.memory_space<vmem>>, vector<1024x128xbf16>
    %c0_1 = arith.constant 0 : index
    %c0_2 = arith.constant 0 : index
    %1 = vector.load %arg3[%c0_1, %c0_2] : memref<1x128xf32, #tpu.memory_space<vmem>>, vector<1x128xf32>
    %c0_i32 = arith.constant 0 : i32
    %c2_i32 = arith.constant 2 : i32
    %2 = arith.muli %c0_i32, %c2_i32 : i32
    %c0_i32_3 = arith.constant 0 : i32
    %3 = arith.addi %2, %c0_i32_3 : i32
    %c0_i32_4 = arith.constant 0 : i32
    %4 = arith.addi %c0_i32_4, %3 : i32
    %c0_5 = arith.constant 0 : index
    %5 = arith.index_cast %4 : i32 to index
    %c0_6 = arith.constant 0 : index
    %c0_7 = arith.constant 0 : index
    %6 = vector.load %arg1[%c0_5, %5, %c0_6, %c0_7] : memref<1x5x5x64xbf16, #tpu.memory_space<vmem>>, vector<1x1x5x64xbf16>
    %7 = vector.shape_cast %6 : vector<1x1x5x64xbf16> to vector<5x64xbf16>
    %8 = vector.extract_strided_slice %7 {offsets = [0, 0], sizes = [2, 64], strides = [1, 1]} : vector<5x64xbf16> to vector<2x64xbf16>
    %9 = vector.extract_strided_slice %7 {offsets = [1, 0], sizes = [2, 64], strides = [1, 1]} : vector<5x64xbf16> to vector<2x64xbf16>
    %10 = vector.extract_strided_slice %7 {offsets = [2, 0], sizes = [2, 64], strides = [1, 1]} : vector<5x64xbf16> to vector<2x64xbf16>
    %11 = vector.extract_strided_slice %7 {offsets = [3, 0], sizes = [2, 64], strides = [1, 1]} : vector<5x64xbf16> to vector<2x64xbf16>
    %c1_i32 = arith.constant 1 : i32
    %12 = arith.addi %c1_i32, %3 : i32
    %c0_8 = arith.constant 0 : index
    %13 = arith.index_cast %12 : i32 to index
    %c0_9 = arith.constant 0 : index
    %c0_10 = arith.constant 0 : index
    %14 = vector.load %arg1[%c0_8, %13, %c0_9, %c0_10] : memref<1x5x5x64xbf16, #tpu.memory_space<vmem>>, vector<1x1x5x64xbf16>
    %15 = vector.shape_cast %14 : vector<1x1x5x64xbf16> to vector<5x64xbf16>
    %16 = vector.extract_strided_slice %15 {offsets = [0, 0], sizes = [2, 64], strides = [1, 1]} : vector<5x64xbf16> to vector<2x64xbf16>
    %17 = vector.extract_strided_slice %15 {offsets = [1, 0], sizes = [2, 64], strides = [1, 1]} : vector<5x64xbf16> to vector<2x64xbf16>
    %18 = vector.extract_strided_slice %15 {offsets = [2, 0], sizes = [2, 64], strides = [1, 1]} : vector<5x64xbf16> to vector<2x64xbf16>
    %19 = vector.extract_strided_slice %15 {offsets = [3, 0], sizes = [2, 64], strides = [1, 1]} : vector<5x64xbf16> to vector<2x64xbf16>
    %c2_i32_11 = arith.constant 2 : i32
    %20 = arith.addi %c2_i32_11, %3 : i32
    %c0_12 = arith.constant 0 : index
    %21 = arith.index_cast %20 : i32 to index
    %c0_13 = arith.constant 0 : index
    %c0_14 = arith.constant 0 : index
    %22 = vector.load %arg1[%c0_12, %21, %c0_13, %c0_14] : memref<1x5x5x64xbf16, #tpu.memory_space<vmem>>, vector<1x1x5x64xbf16>
    %23 = vector.shape_cast %22 : vector<1x1x5x64xbf16> to vector<5x64xbf16>
    %24 = vector.extract_strided_slice %23 {offsets = [0, 0], sizes = [2, 64], strides = [1, 1]} : vector<5x64xbf16> to vector<2x64xbf16>
    %25 = vector.extract_strided_slice %23 {offsets = [1, 0], sizes = [2, 64], strides = [1, 1]} : vector<5x64xbf16> to vector<2x64xbf16>
    %26 = vector.extract_strided_slice %23 {offsets = [2, 0], sizes = [2, 64], strides = [1, 1]} : vector<5x64xbf16> to vector<2x64xbf16>
    %27 = vector.extract_strided_slice %23 {offsets = [3, 0], sizes = [2, 64], strides = [1, 1]} : vector<5x64xbf16> to vector<2x64xbf16>
    %c3_i32 = arith.constant 3 : i32
    %28 = arith.addi %c3_i32, %3 : i32
    %c0_15 = arith.constant 0 : index
    %29 = arith.index_cast %28 : i32 to index
    %c0_16 = arith.constant 0 : index
    %c0_17 = arith.constant 0 : index
    %30 = vector.load %arg1[%c0_15, %29, %c0_16, %c0_17] : memref<1x5x5x64xbf16, #tpu.memory_space<vmem>>, vector<1x1x5x64xbf16>
    %31 = vector.shape_cast %30 : vector<1x1x5x64xbf16> to vector<5x64xbf16>
    %32 = vector.extract_strided_slice %31 {offsets = [0, 0], sizes = [2, 64], strides = [1, 1]} : vector<5x64xbf16> to vector<2x64xbf16>
    %33 = vector.extract_strided_slice %31 {offsets = [1, 0], sizes = [2, 64], strides = [1, 1]} : vector<5x64xbf16> to vector<2x64xbf16>
    %34 = vector.extract_strided_slice %31 {offsets = [2, 0], sizes = [2, 64], strides = [1, 1]} : vector<5x64xbf16> to vector<2x64xbf16>
    %35 = vector.extract_strided_slice %31 {offsets = [3, 0], sizes = [2, 64], strides = [1, 1]} : vector<5x64xbf16> to vector<2x64xbf16>
    %36 = tpu.concatenate %8, %9, %10, %11, %16, %17, %18, %19, %24, %25, %26, %27, %32, %33, %34, %35 in 1 : vector<2x64xbf16>, vector<2x64xbf16>, vector<2x64xbf16>, vector<2x64xbf16>, vector<2x64xbf16>, vector<2x64xbf16>, vector<2x64xbf16>, vector<2x64xbf16>, vector<2x64xbf16>, vector<2x64xbf16>, vector<2x64xbf16>, vector<2x64xbf16>, vector<2x64xbf16>, vector<2x64xbf16>, vector<2x64xbf16>, vector<2x64xbf16> -> vector<2x1024xbf16>
    %c1_i32_18 = arith.constant 1 : i32
    %37 = arith.addi %2, %c1_i32_18 : i32
    %c0_i32_19 = arith.constant 0 : i32
    %38 = arith.addi %c0_i32_19, %37 : i32
    %c0_20 = arith.constant 0 : index
    %39 = arith.index_cast %38 : i32 to index
    %c0_21 = arith.constant 0 : index
    %c0_22 = arith.constant 0 : index
    %40 = vector.load %arg1[%c0_20, %39, %c0_21, %c0_22] : memref<1x5x5x64xbf16, #tpu.memory_space<vmem>>, vector<1x1x5x64xbf16>
    %41 = vector.shape_cast %40 : vector<1x1x5x64xbf16> to vector<5x64xbf16>
    %42 = vector.extract_strided_slice %41 {offsets = [0, 0], sizes = [2, 64], strides = [1, 1]} : vector<5x64xbf16> to vector<2x64xbf16>
    %43 = vector.extract_strided_slice %41 {offsets = [1, 0], sizes = [2, 64], strides = [1, 1]} : vector<5x64xbf16> to vector<2x64xbf16>
    %44 = vector.extract_strided_slice %41 {offsets = [2, 0], sizes = [2, 64], strides = [1, 1]} : vector<5x64xbf16> to vector<2x64xbf16>
    %45 = vector.extract_strided_slice %41 {offsets = [3, 0], sizes = [2, 64], strides = [1, 1]} : vector<5x64xbf16> to vector<2x64xbf16>
    %c1_i32_23 = arith.constant 1 : i32
    %46 = arith.addi %c1_i32_23, %37 : i32
    %c0_24 = arith.constant 0 : index
    %47 = arith.index_cast %46 : i32 to index
    %c0_25 = arith.constant 0 : index
    %c0_26 = arith.constant 0 : index
    %48 = vector.load %arg1[%c0_24, %47, %c0_25, %c0_26] : memref<1x5x5x64xbf16, #tpu.memory_space<vmem>>, vector<1x1x5x64xbf16>
    %49 = vector.shape_cast %48 : vector<1x1x5x64xbf16> to vector<5x64xbf16>
    %50 = vector.extract_strided_slice %49 {offsets = [0, 0], sizes = [2, 64], strides = [1, 1]} : vector<5x64xbf16> to vector<2x64xbf16>
    %51 = vector.extract_strided_slice %49 {offsets = [1, 0], sizes = [2, 64], strides = [1, 1]} : vector<5x64xbf16> to vector<2x64xbf16>
    %52 = vector.extract_strided_slice %49 {offsets = [2, 0], sizes = [2, 64], strides = [1, 1]} : vector<5x64xbf16> to vector<2x64xbf16>
    %53 = vector.extract_strided_slice %49 {offsets = [3, 0], sizes = [2, 64], strides = [1, 1]} : vector<5x64xbf16> to vector<2x64xbf16>
    %c2_i32_27 = arith.constant 2 : i32
    %54 = arith.addi %c2_i32_27, %37 : i32
    %c0_28 = arith.constant 0 : index
    %55 = arith.index_cast %54 : i32 to index
    %c0_29 = arith.constant 0 : index
    %c0_30 = arith.constant 0 : index
    %56 = vector.load %arg1[%c0_28, %55, %c0_29, %c0_30] : memref<1x5x5x64xbf16, #tpu.memory_space<vmem>>, vector<1x1x5x64xbf16>
    %57 = vector.shape_cast %56 : vector<1x1x5x64xbf16> to vector<5x64xbf16>
    %58 = vector.extract_strided_slice %57 {offsets = [0, 0], sizes = [2, 64], strides = [1, 1]} : vector<5x64xbf16> to vector<2x64xbf16>
    %59 = vector.extract_strided_slice %57 {offsets = [1, 0], sizes = [2, 64], strides = [1, 1]} : vector<5x64xbf16> to vector<2x64xbf16>
    %60 = vector.extract_strided_slice %57 {offsets = [2, 0], sizes = [2, 64], strides = [1, 1]} : vector<5x64xbf16> to vector<2x64xbf16>
    %61 = vector.extract_strided_slice %57 {offsets = [3, 0], sizes = [2, 64], strides = [1, 1]} : vector<5x64xbf16> to vector<2x64xbf16>
    %c3_i32_31 = arith.constant 3 : i32
    %62 = arith.addi %c3_i32_31, %37 : i32
    %c0_32 = arith.constant 0 : index
    %63 = arith.index_cast %62 : i32 to index
    %c0_33 = arith.constant 0 : index
    %c0_34 = arith.constant 0 : index
    %64 = vector.load %arg1[%c0_32, %63, %c0_33, %c0_34] : memref<1x5x5x64xbf16, #tpu.memory_space<vmem>>, vector<1x1x5x64xbf16>
    %65 = vector.shape_cast %64 : vector<1x1x5x64xbf16> to vector<5x64xbf16>
    %66 = vector.extract_strided_slice %65 {offsets = [0, 0], sizes = [2, 64], strides = [1, 1]} : vector<5x64xbf16> to vector<2x64xbf16>
    %67 = vector.extract_strided_slice %65 {offsets = [1, 0], sizes = [2, 64], strides = [1, 1]} : vector<5x64xbf16> to vector<2x64xbf16>
    %68 = vector.extract_strided_slice %65 {offsets = [2, 0], sizes = [2, 64], strides = [1, 1]} : vector<5x64xbf16> to vector<2x64xbf16>
    %69 = vector.extract_strided_slice %65 {offsets = [3, 0], sizes = [2, 64], strides = [1, 1]} : vector<5x64xbf16> to vector<2x64xbf16>
    %70 = tpu.concatenate %42, %43, %44, %45, %50, %51, %52, %53, %58, %59, %60, %61, %66, %67, %68, %69 in 1 : vector<2x64xbf16>, vector<2x64xbf16>, vector<2x64xbf16>, vector<2x64xbf16>, vector<2x64xbf16>, vector<2x64xbf16>, vector<2x64xbf16>, vector<2x64xbf16>, vector<2x64xbf16>, vector<2x64xbf16>, vector<2x64xbf16>, vector<2x64xbf16>, vector<2x64xbf16>, vector<2x64xbf16>, vector<2x64xbf16>, vector<2x64xbf16> -> vector<2x1024xbf16>
    %71 = tpu.concatenate %36, %70 in 0 : vector<2x1024xbf16>, vector<2x1024xbf16> -> vector<4x1024xbf16>
    %cst = arith.constant dense<0.000000e+00> : vector<4x128xf32>
    %72 = tpu.matmul %71, %0, %cst {dimension_numbers = #tpu.dot_dimension_numbers<[1], [0], [0], [1], [0, 0, 1, 1], [], []>} : vector<4x1024xbf16>, vector<1024x128xbf16>, vector<4x128xf32> -> vector<4x128xf32>
    %73 = vector.broadcast %1 : vector<1x128xf32> to vector<4x128xf32>
    %74 = arith.addf %72, %73 : vector<4x128xf32>
    %75 = vector.extract_strided_slice %74 {offsets = [0, 0], sizes = [2, 128], strides = [1, 1]} : vector<4x128xf32> to vector<2x128xf32>
    %c0_i32_35 = arith.constant 0 : i32
    %76 = arith.addi %2, %c0_i32_35 : i32
    %c0_36 = arith.constant 0 : index
    %77 = arith.index_cast %76 : i32 to index
    %c0_37 = arith.constant 0 : index
    %c0_38 = arith.constant 0 : index
    %78 = vector.load %arg4[%c0_36, %77, %c0_37, %c0_38] : memref<1x2x2x128xf32, #tpu.memory_space<vmem>>, vector<1x1x2x128xf32>
    %79 = vector.shape_cast %78 : vector<1x1x2x128xf32> to vector<2x128xf32>
    %80 = vector.shape_cast %75 : vector<2x128xf32> to vector<1x1x2x128xf32>
    tpu.vector_store %arg4[%c0_36, %77, %c0_37, %c0_38], %80 {strides = array<i32>} : memref<1x2x2x128xf32, #tpu.memory_space<vmem>>, vector<1x1x2x128xf32>,
    %81 = vector.extract_strided_slice %74 {offsets = [2, 0], sizes = [2, 128], strides = [1, 1]} : vector<4x128xf32> to vector<2x128xf32>
    %c1_i32_39 = arith.constant 1 : i32
    %82 = arith.addi %2, %c1_i32_39 : i32
    %c0_40 = arith.constant 0 : index
    %83 = arith.index_cast %82 : i32 to index
    %c0_41 = arith.constant 0 : index
    %c0_42 = arith.constant 0 : index
    %84 = vector.load %arg4[%c0_40, %83, %c0_41, %c0_42] : memref<1x2x2x128xf32, #tpu.memory_space<vmem>>, vector<1x1x2x128xf32>
    %85 = vector.shape_cast %84 : vector<1x1x2x128xf32> to vector<2x128xf32>
    %86 = vector.shape_cast %81 : vector<2x128xf32> to vector<1x1x2x128xf32>
    tpu.vector_store %arg4[%c0_40, %83, %c0_41, %c0_42], %86 {strides = array<i32>} : memref<1x2x2x128xf32, #tpu.memory_space<vmem>>, vector<1x1x2x128xf32>,
    %c1_i32_43 = arith.constant 1 : i32
    return
  }
  func.func @transform_0(%arg0: i32) -> (i32, i32, i32, i32) {
    %c0_i32 = arith.constant 0 : i32
    %c0_i32_0 = arith.constant 0 : i32
    %c0_i32_1 = arith.constant 0 : i32
    %c0_i32_2 = arith.constant 0 : i32
    return %arg0, %c0_i32, %c0_i32_0, %c0_i32_1 : i32, i32, i32, i32
  }
  func.func @transform_1(%arg0: i32) -> (i32, i32) {
    %c0_i32 = arith.constant 0 : i32
    %c0_i32_0 = arith.constant 0 : i32
    %c0_i32_1 = arith.constant 0 : i32
    return %c0_i32, %c0_i32_0 : i32, i32
  }
  func.func @transform_2(%arg0: i32) -> (i32, i32) {
    %c0_i32 = arith.constant 0 : i32
    %c0_i32_0 = arith.constant 0 : i32
    %c0_i32_1 = arith.constant 0 : i32
    return %c0_i32, %c0_i32_0 : i32, i32
  }
  func.func @transform_3(%arg0: i32) -> (i32, i32, i32, i32) {
    %c0_i32 = arith.constant 0 : i32
    %c0_i32_0 = arith.constant 0 : i32
    %c0_i32_1 = arith.constant 0 : i32
    %c0_i32_2 = arith.constant 0 : i32
    return %arg0, %c0_i32, %c0_i32_0, %c0_i32_1 : i32, i32, i32, i32
  }
}

</mosaic_0001>

<llo_original>
// kernel: discriminator_forward.5
$region0: #{discriminator_forward.5}
  #allocation0 [shape = 'u32[]', space=smem, size = 0x4, offset = 0x4, fixed_abs, tag = 'smem constant byte address 0x4 - core index']
  #allocation1 [shape = 'u32[144,128]{1,0:T(1,128)}', space=vmem, size = 0x12000, scoped, tag = 'internal scratch']
  %s0 = inlined_call_operand.vmem [shape: bf16[2,68,17,3], index: 0, kind: input, shape index: {}]
  %s1 = inlined_call_operand.vmem [shape: bf16[48,128], index: 1, kind: input, shape index: {}]
  %s2 = inlined_call_operand.vmem [shape: f32[1,128], index: 2, kind: input, shape index: {}]
  %s3 = inlined_call_operand.vmem [shape: bf16[2,16,16,128], index: 3, kind: output, shape index: {}]
  %s4 = sld [smem:[#allocation0]]
  $region52: #{discriminator_forward.5} parent=0
    _
  %s6 = ssub.s32 1, %s4
  %s7 = scalar_select 0, %s6, %s4
  loop: start=0, step=1, limit=4
  $region2: #{discriminator_forward.5} parent=0 // loop_pre_header
    _
  $region3: #{discriminator_forward.5} parent=0 // loop_header
    %s9 = sphi 0, %s13
    %p10 = scmp.ge.s32.totalorder %s9, 4
    %s19 = sphi 0, %s21
    %s22 = sphi 0, %s19
    %s23 = sphi 0, %s22
    %s39 = sphi 0, %s23
    %s43 = sphi 0, %s43
    %s45 = sphi 0, %s43
    %s46 = sphi 0, %s45
    %s60 = sphi 0, %s46
    %s64 = sphi 0, %s64
    %s66 = sphi 0, %s64
    %s67 = sphi 0, %s66
    %s81 = sphi 0, %s67
    %s87 = sphi 0, %s89
    %s90 = sphi 0, %s87
    %s91 = sphi 0, %s90
    %s107 = sphi 0, %s91
  $region4: #{discriminator_forward.5} parent=0 // loop_header_branch
    %12 = sbr.rel (%p10) target = $region8
  $region5: #{discriminator_forward.5} parent=0 // loop_body
    %s14 = ssub.s32 %s9, 1
    %s15 = ssub.s32 %s9, 2
    %s16 = sadd.s32 %s9, 1
    %s17 = ssub.s32 %s9, %s16
    %p18 = scmp.eq.s32.totalorder %s17, 0
    %s20 = sadd.s32 %s19, 1
    %s21 = scalar_select %p18, %s19, %s20
    %p24 = pneg %p18
    %p25 = scmp.eq.s32.totalorder %s9, 1
    %p26 = por %p24, %p25
    %p27 = scmp.ne.s32.totalorder %s19, %s22
    %p28 = scmp.eq.s32.totalorder %s9, 0
    %p29 = por %p27, %p28
    %p30 = scmp.ne.s32.totalorder %s19, %s22
    %p31 = scmp.eq.s32.totalorder %s14, 1
    %p32 = por %p30, %p31
    %p33 = scmp.ne.s32.totalorder %s22, %s23
    %p34 = scmp.eq.s32.totalorder %s14, 0
    %p35 = por %p33, %p34
    %p36 = scmp.ne.s32.totalorder %s22, %s23
    %p37 = scmp.eq.s32.totalorder %s15, 1
    %p38 = por %p36, %p37
    %p40 = scmp.ne.s32.totalorder %s23, %s39
    %p41 = scmp.eq.s32.totalorder %s15, 0
    %p42 = por %p40, %p41
    %s44 = sadd.s32 %s43, 1
    %p47 = scmp.eq.s32.totalorder %s9, 1
    %p48 = scmp.ne.s32.totalorder %s43, %s45
    %p49 = scmp.eq.s32.totalorder %s9, 0
    %p50 = por %p48, %p49
    %p51 = scmp.ne.s32.totalorder %s43, %s45
    %p52 = scmp.eq.s32.totalorder %s14, 1
    %p53 = por %p51, %p52
    %p54 = scmp.ne.s32.totalorder %s45, %s46
    %p55 = scmp.eq.s32.totalorder %s14, 0
    %p56 = por %p54, %p55
    %p57 = scmp.ne.s32.totalorder %s45, %s46
    %p58 = scmp.eq.s32.totalorder %s15, 1
    %p59 = por %p57, %p58
    %p61 = scmp.ne.s32.totalorder %s46, %s60
    %p62 = scmp.eq.s32.totalorder %s15, 0
    %p63 = por %p61, %p62
    %s65 = sadd.s32 %s64, 1
    %p68 = scmp.eq.s32.totalorder %s9, 1
    %p69 = scmp.ne.s32.totalorder %s64, %s66
    %p70 = scmp.eq.s32.totalorder %s9, 0
    %p71 = por %p69, %p70
    %p72 = scmp.ne.s32.totalorder %s64, %s66
    %p73 = scmp.eq.s32.totalorder %s14, 1
    %p74 = por %p72, %p73
    %p75 = scmp.ne.s32.totalorder %s66, %s67
    %p76 = scmp.eq.s32.totalorder %s14, 0
    %p77 = por %p75, %p76
    %p78 = scmp.ne.s32.totalorder %s66, %s67
    %p79 = scmp.eq.s32.totalorder %s15, 1
    %p80 = por %p78, %p79
    %p82 = scmp.ne.s32.totalorder %s67, %s81
    %p83 = scmp.eq.s32.totalorder %s15, 0
    %p84 = por %p82, %p83
    %s85 = ssub.s32 %s9, %s16
    %p86 = scmp.eq.s32.totalorder %s85, 0
    %s88 = sadd.s32 %s87, 1
    %s89 = scalar_select %p86, %s87, %s88
    %p92 = pneg %p86
    %p93 = scmp.eq.s32.totalorder %s9, 1
    %p94 = por %p92, %p93
    %p95 = scmp.ne.s32.totalorder %s87, %s90
    %p96 = scmp.eq.s32.totalorder %s9, 0
    %p97 = por %p95, %p96
    %p98 = scmp.ne.s32.totalorder %s87, %s90
    %p99 = scmp.eq.s32.totalorder %s14, 1
    %p100 = por %p98, %p99
    %p101 = scmp.ne.s32.totalorder %s90, %s91
    %p102 = scmp.eq.s32.totalorder %s14, 0
    %p103 = por %p101, %p102
    %p104 = scmp.ne.s32.totalorder %s90, %s91
    %p105 = scmp.eq.s32.totalorder %s15, 1
    %p106 = por %p104, %p105
    %p108 = scmp.ne.s32.totalorder %s91, %s107
    %p109 = scmp.eq.s32.totalorder %s15, 0
    %p110 = por %p108, %p109
    %p111 = scmp.le.s32.totalorder 1, %s9
    %p112 = scmp.lt.s32.totalorder %s9, 3
    %p113 = pnand %p111, %p112
    %p114 = pneg %p113
    // Predicated region
    $region9: #{discriminator_forward.5} parent=5 // pred_check
      _
    $region10: #{discriminator_forward.5} parent=5 // pred_check_branch
      %116 = sbr.rel (%p113) target = $region12
    $region11: #{discriminator_forward.5} parent=5 // pred_region
      %s117 = ssub.s32 %s9, 1
      // Predicated region
      $region13: #{discriminator_forward.5} parent=11 // pred_check
        %p118 = pneg %p56
      $region14: #{discriminator_forward.5} parent=11 // pred_check_branch
        %120 = sbr.rel (%p118) target = $region16
      $region15: #{discriminator_forward.5} parent=11 // pred_region
        _
      $region16: #{discriminator_forward.5} parent=11 // pred_fallthru
        _
      // Predicated region
      $region17: #{discriminator_forward.5} parent=11 // pred_check
        %p121 = pneg %p77
      $region18: #{discriminator_forward.5} parent=11 // pred_check_branch
        %123 = sbr.rel (%p121) target = $region20
      $region19: #{discriminator_forward.5} parent=11 // pred_region
        _
      $region20: #{discriminator_forward.5} parent=11 // pred_fallthru
        _
    $region12: #{discriminator_forward.5} parent=5 // pred_fallthru
      _
    %p124 = scmp.lt.s32.totalorder %s9, 2
    // Predicated region
    $region21: #{discriminator_forward.5} parent=5 // pred_check
      %p125 = pneg %p124
    $region22: #{discriminator_forward.5} parent=5 // pred_check_branch
      %127 = sbr.rel (%p125) target = $region24
    $region23: #{discriminator_forward.5} parent=5 // pred_region
      // Predicated region
      $region25: #{discriminator_forward.5} parent=23 // pred_check
        %p128 = pneg %p29
      $region26: #{discriminator_forward.5} parent=23 // pred_check_branch
        %130 = sbr.rel (%p128) target = $region28
      $region27: #{discriminator_forward.5} parent=23 // pred_region
        %p131 = scmp.lt.s32.totalorder %s9, 1
        %s132 = scalar_select %p131, %s9, 1
        %s133 = smul.addr %s132, 204
        %s134 = smul.addr %s133, 4
        %s135 = scalar_lea.vmem %s0, %s134
      $region28: #{discriminator_forward.5} parent=23 // pred_fallthru
        _
    $region24: #{discriminator_forward.5} parent=5 // pred_fallthru
      _
    %p136 = scmp.le.s32.totalorder 1, %s9
    %p137 = scmp.lt.s32.totalorder %s9, 3
    %p138 = pnand %p136, %p137
    %p139 = pneg %p138
    // Predicated region
    $region29: #{discriminator_forward.5} parent=5 // pred_check
      _
    $region30: #{discriminator_forward.5} parent=5 // pred_check_branch
      %141 = sbr.rel (%p138) target = $region32
    $region31: #{discriminator_forward.5} parent=5 // pred_region
      %s142 = ssub.s32 %s9, 1
      %p143 = scmp.lt.s32.totalorder %s14, 1
      %s144 = scalar_select %p143, %s14, 1
      %s145 = smul.addr %s144, 204
      %s146 = smul.addr %s145, 4
      %s147 = scalar_lea.vmem %s0, %s146
      %p148 = pneg %p35
      %p149 = pneg %p32
      %p150 = pneg %p56
      %p151 = pneg %p53
      %p152 = pneg %p77
      %p153 = pneg %p74
      %p154 = pneg %p103
      %p155 = pneg %p100
      %p156 = scmp.lt.s32.totalorder %s14, 1
      %s157 = scalar_select %p156, %s14, 1
      %s158 = smul.addr %s157, 32
      %s159 = smul.addr %s158, 4
      %s160 = scalar_lea.vmem %s3, %s159
      %p161 = scmp.lt.s32.totalorder %s14, 1
      %s162 = scalar_select %p161, %s14, 1
      %s163 = smul.addr %s162, 204
      %s164 = smul.addr %s163, 4
      %s165 = scalar_lea.vmem %s0, %s164
      %p166 = scmp.lt.s32.totalorder %s14, 1
      %s167 = scalar_select %p166, %s14, 1
      %s168 = smul.addr %s167, 32
      %s169 = smul.addr %s168, 4
      %s170 = scalar_lea.vmem %s3, %s169
      %v172 = vld [vmem:[%s1] sm:$0xf]
      %v173 = vld [vmem:[%s1 + $0x4] sm:$0xf]
      %v174 = vld [vmem:[%s1 + $0x8] sm:$0xf]
      %v175 = vld [vmem:[%s1 + $0xc] sm:$0xf]
      %v176 = vld [vmem:[%s1 + $0x10] sm:$0xf]
      %v177 = vld [vmem:[%s1 + $0x14] sm:$0xf]
      %v178 = vld [vmem:[%s2] sm:$0x1]
      loop: start=0, step=1, limit=2
      $region33: #{discriminator_forward.5} parent=31 // loop_pre_header
        _
      $region34: #{discriminator_forward.5} parent=31 // loop_header
        %s180 = sphi 0, %s184
        %p181 = scmp.ge.s32.totalorder %s180, 2
      $region35: #{discriminator_forward.5} parent=31 // loop_header_branch
        %183 = sbr.rel (%p181) target = $region39
      $region36: #{discriminator_forward.5} parent=31 // loop_body
        %s185 = smul.u32 %s180, 8
        %s186 = smul.u32 %s185, 3
        %s187 = smul.addr %s186, 4
        %s188 = scalar_lea.vmem %s165, %s187
        %v189 = vld [vmem:[%s188] sm:$0xf]
        %v190 = vld [vmem:[%s188 + $0x4] sm:$0xf]
        %v191 = vld [vmem:[%s188 + $0x8] sm:$0x1]
        %s192 = sadd.s32 %s185, 17
        %s193 = smul.u32 %s192, 3
        %s194 = smul.addr %s193, 4
        %s195 = scalar_lea.vmem %s165, %s194
        %v196 = vld [vmem:[%s195] sm:$0xf]
        %v197 = vld [vmem:[%s195 + $0x4] sm:$0xf]
        %v198 = vld [vmem:[%s195 + $0x8] sm:$0x1]
        %s199 = sadd.s32 %s185, 34
        %s200 = smul.u32 %s199, 3
        %s201 = smul.addr %s200, 4
        %s202 = scalar_lea.vmem %s165, %s201
        %v203 = vld [vmem:[%s202] sm:$0xf]
        %v204 = vld [vmem:[%s202 + $0x4] sm:$0xf]
        %v205 = vld [vmem:[%s202 + $0x8] sm:$0x1]
        %s206 = sadd.s32 %s185, 51
        %s207 = smul.u32 %s206, 3
        %s208 = smul.addr %s207, 4
        %s209 = scalar_lea.vmem %s165, %s208
        %v210 = vld [vmem:[%s209] sm:$0xf]
        %v211 = vld [vmem:[%s209 + $0x4] sm:$0xf]
        %v212 = vld [vmem:[%s209 + $0x8] sm:$0x1]
        %s213 = sadd.s32 %s185, 1
        %s214 = smul.u32 %s213, 3
        %s215 = smul.addr %s214, 4
        %s216 = scalar_lea.vmem %s165, %s215
        %v217 = vld [vmem:[%s216] sm:$0xf]
        %v218 = vld [vmem:[%s216 + $0x4] sm:$0xf]
        %v219 = vld [vmem:[%s216 + $0x8] sm:$0x1]
        %s220 = sadd.s32 %s185, 18
        %s221 = smul.u32 %s220, 3
        %s222 = smul.addr %s221, 4
        %s223 = scalar_lea.vmem %s165, %s222
        %v224 = vld [vmem:[%s223] sm:$0xf]
        %v225 = vld [vmem:[%s223 + $0x4] sm:$0xf]
        %v226 = vld [vmem:[%s223 + $0x8] sm:$0x1]
        %s227 = sadd.s32 %s185, 35
        %s228 = smul.u32 %s227, 3
        %s229 = smul.addr %s228, 4
        %s230 = scalar_lea.vmem %s165, %s229
        %v231 = vld [vmem:[%s230] sm:$0xf]
        %v232 = vld [vmem:[%s230 + $0x4] sm:$0xf]
        %v233 = vld [vmem:[%s230 + $0x8] sm:$0x1]
        %s234 = sadd.s32 %s185, 52
        %s235 = smul.u32 %s234, 3
        %s236 = smul.addr %s235, 4
        %s237 = scalar_lea.vmem %s165, %s236
        %v238 = vld [vmem:[%s237] sm:$0xf]
        %v239 = vld [vmem:[%s237 + $0x4] sm:$0xf]
        %v240 = vld [vmem:[%s237 + $0x8] sm:$0x1]
        %v243 = vunpack.c.l.b16 %v189
        %v244 = vunpack.c.l.b16 %v190
        %v245 = vpack.c.b16 %v244, %v243
        %v248 = vunpack.c.l.b16 %v196
        %v249 = vunpack.c.l.b16 %v197
        %v250 = vpack.c.b16 %v249, %v248
        %251 = vrot.lane.b32.xlu0 %v250, 3
        %v252 = vpop.permute.xlu0 %251
        %v254 = vunpack.c.l.b16 %v191
        %v255 = vpack.c.b16 %v254, %v254
        %vm256 = vsmask.f32 7424
        %v258 = vshrl.u32 %v245, 16
        %v260 = vshll.u32 %v245, 16
        %v262 = vrot.slane %v260, 1
        %v263 = vor.u32 %v258, %v262
        %v265 = vshll.u32 %v255, 16
        %v267 = vrot.slane %v265, 1
        %v268 = vsel %vm256, %v263, %v267
        %269 = vrot.lane.b32.xlu0 %v268, 6
        %v270 = vpop.permute.xlu0 %269
        %v272 = vunpack.c.l.b16 %v198
        %v273 = vpack.c.b16 %v272, %v272
        %v275 = vshrl.u32 %v250, 16
        %v277 = vshll.u32 %v250, 16
        %v279 = vrot.slane %v277, 1
        %v280 = vor.u32 %v275, %v279
        %v282 = vshll.u32 %v273, 16
        %v284 = vrot.slane %v282, 1
        %v285 = vsel %vm256, %v280, %v284
        %286 = vrot.lane.b32.xlu0 %v285, 9
        %v287 = vpop.permute.xlu0 %286
        %v290 = vunpack.c.l.b16 %v203
        %v291 = vunpack.c.l.b16 %v204
        %v292 = vpack.c.b16 %v291, %v290
        %293 = vrot.lane.b32.xlu0 %v292, 12
        %v294 = vpop.permute.xlu0 %293
        %v297 = vunpack.c.l.b16 %v210
        %v298 = vunpack.c.l.b16 %v211
        %v299 = vpack.c.b16 %v298, %v297
        %300 = vrot.lane.b32.xlu0 %v299, 15
        %v301 = vpop.permute.xlu0 %300
        %v303 = vunpack.c.l.b16 %v205
        %v304 = vpack.c.b16 %v303, %v303
        %v306 = vshrl.u32 %v292, 16
        %v308 = vshll.u32 %v292, 16
        %v310 = vrot.slane %v308, 1
        %v311 = vor.u32 %v306, %v310
        %v313 = vshll.u32 %v304, 16
        %v315 = vrot.slane %v313, 1
        %v316 = vsel %vm256, %v311, %v315
        %317 = vrot.lane.b32.xlu0 %v316, 18
        %v318 = vpop.permute.xlu0 %317
        %v320 = vunpack.c.l.b16 %v212
        %v321 = vpack.c.b16 %v320, %v320
        %v323 = vshrl.u32 %v299, 16
        %v325 = vshll.u32 %v299, 16
        %v327 = vrot.slane %v325, 1
        %v328 = vor.u32 %v323, %v327
        %v330 = vshll.u32 %v321, 16
        %v332 = vrot.slane %v330, 1
        %v333 = vsel %vm256, %v328, %v332
        %334 = vrot.lane.b32.xlu0 %v333, 21
        %v335 = vpop.permute.xlu0 %334
        %v338 = vunpack.c.l.b16 %v217
        %v339 = vunpack.c.l.b16 %v218
        %v340 = vpack.c.b16 %v339, %v338
        %341 = vrot.lane.b32.xlu0 %v340, 24
        %v342 = vpop.permute.xlu0 %341
        %v345 = vunpack.c.l.b16 %v224
        %v346 = vunpack.c.l.b16 %v225
        %v347 = vpack.c.b16 %v346, %v345
        %348 = vrot.lane.b32.xlu0 %v347, 27
        %v349 = vpop.permute.xlu0 %348
        %v351 = vunpack.c.l.b16 %v219
        %v352 = vpack.c.b16 %v351, %v351
        %v354 = vshrl.u32 %v340, 16
        %v356 = vshll.u32 %v340, 16
        %v358 = vrot.slane %v356, 1
        %v359 = vor.u32 %v354, %v358
        %v361 = vshll.u32 %v352, 16
        %v363 = vrot.slane %v361, 1
        %v364 = vsel %vm256, %v359, %v363
        %365 = vrot.lane.b32.xlu0 %v364, 30
        %v366 = vpop.permute.xlu0 %365
        %v368 = vunpack.c.l.b16 %v226
        %v369 = vpack.c.b16 %v368, %v368
        %v371 = vshrl.u32 %v347, 16
        %v373 = vshll.u32 %v347, 16
        %v375 = vrot.slane %v373, 1
        %v376 = vor.u32 %v371, %v375
        %v378 = vshll.u32 %v369, 16
        %v380 = vrot.slane %v378, 1
        %v381 = vsel %vm256, %v376, %v380
        %382 = vrot.lane.b32.xlu0 %v381, 33
        %v383 = vpop.permute.xlu0 %382
        %v386 = vunpack.c.l.b16 %v231
        %v387 = vunpack.c.l.b16 %v232
        %v388 = vpack.c.b16 %v387, %v386
        %389 = vrot.lane.b32.xlu0 %v388, 36
        %v390 = vpop.permute.xlu0 %389
        %v393 = vunpack.c.l.b16 %v238
        %v394 = vunpack.c.l.b16 %v239
        %v395 = vpack.c.b16 %v394, %v393
        %396 = vrot.lane.b32.xlu0 %v395, 39
        %v397 = vpop.permute.xlu0 %396
        %v399 = vunpack.c.l.b16 %v233
        %v400 = vpack.c.b16 %v399, %v399
        %v402 = vshrl.u32 %v388, 16
        %v404 = vshll.u32 %v388, 16
        %v406 = vrot.slane %v404, 1
        %v407 = vor.u32 %v402, %v406
        %v409 = vshll.u32 %v400, 16
        %v411 = vrot.slane %v409, 1
        %v412 = vsel %vm256, %v407, %v411
        %413 = vrot.lane.b32.xlu0 %v412, 42
        %v414 = vpop.permute.xlu0 %413
        %v416 = vunpack.c.l.b16 %v240
        %v417 = vpack.c.b16 %v416, %v416
        %v419 = vshrl.u32 %v395, 16
        %v421 = vshll.u32 %v395, 16
        %v423 = vrot.slane %v421, 1
        %v424 = vor.u32 %v419, %v423
        %v426 = vshll.u32 %v417, 16
        %v428 = vrot.slane %v426, 1
        %v429 = vsel %vm256, %v424, %v428
        %430 = vrot.lane.b32.xlu0 %v429, 45
        %v431 = vpop.permute.xlu0 %430
        %vm432 = vcmask 23552
        %v434 = vsel %vm432, %v245, %v252
        %vm435 = vcmask 48128
        %v437 = vsel %vm435, %v434, %v270
        %vm438 = vcmask 72704
        %v440 = vsel %vm438, %v437, %v287
        %vm441 = vcmask 97280
        %v443 = vsel %vm441, %v440, %v294
        %vm444 = vcmask 121856
        %v446 = vsel %vm444, %v443, %v301
        %vm447 = vcmask 146432
        %v449 = vsel %vm447, %v446, %v318
        %vm450 = vcmask 171008
        %v452 = vsel %vm450, %v449, %v335
        %vm453 = vcmask 195584
        %v455 = vsel %vm453, %v452, %v342
        %vm456 = vcmask 220160
        %v458 = vsel %vm456, %v455, %v349
        %vm459 = vcmask 244736
        %v461 = vsel %vm459, %v458, %v366
        %vm462 = vcmask 269312
        %v464 = vsel %vm462, %v461, %v383
        %vm465 = vcmask 293888
        %v467 = vsel %vm465, %v464, %v390
        %vm468 = vcmask 318464
        %v470 = vsel %vm468, %v467, %v397
        %vm471 = vcmask 343040
        %v473 = vsel %vm471, %v470, %v414
        %vm474 = vcmask 367616
        %v476 = vsel %vm474, %v473, %v431
        %s477 = sadd.s32 %s185, 2
        %s478 = smul.u32 %s477, 3
        %s479 = smul.addr %s478, 4
        %s480 = scalar_lea.vmem %s165, %s479
        %v481 = vld [vmem:[%s480] sm:$0xf]
        %v482 = vld [vmem:[%s480 + $0x4] sm:$0xf]
        %v483 = vld [vmem:[%s480 + $0x8] sm:$0x1]
        %s484 = sadd.s32 %s185, 19
        %s485 = smul.u32 %s484, 3
        %s486 = smul.addr %s485, 4
        %s487 = scalar_lea.vmem %s165, %s486
        %v488 = vld [vmem:[%s487] sm:$0xf]
        %v489 = vld [vmem:[%s487 + $0x4] sm:$0xf]
        %v490 = vld [vmem:[%s487 + $0x8] sm:$0x1]
        %s491 = sadd.s32 %s185, 36
        %s492 = smul.u32 %s491, 3
        %s493 = smul.addr %s492, 4
        %s494 = scalar_lea.vmem %s165, %s493
        %v495 = vld [vmem:[%s494] sm:$0xf]
        %v496 = vld [vmem:[%s494 + $0x4] sm:$0xf]
        %v497 = vld [vmem:[%s494 + $0x8] sm:$0x1]
        %s498 = sadd.s32 %s185, 53
        %s499 = smul.u32 %s498, 3
        %s500 = smul.addr %s499, 4
        %s501 = scalar_lea.vmem %s165, %s500
        %v502 = vld [vmem:[%s501] sm:$0xf]
        %v503 = vld [vmem:[%s501 + $0x4] sm:$0xf]
        %v504 = vld [vmem:[%s501 + $0x8] sm:$0x1]
        %505 = vrot.lane.b32.xlu0 %v347, 3
        %v506 = vpop.permute.xlu0 %505
        %507 = vrot.lane.b32.xlu0 %v364, 6
        %v508 = vpop.permute.xlu0 %507
        %509 = vrot.lane.b32.xlu0 %v381, 9
        %v510 = vpop.permute.xlu0 %509
        %511 = vrot.lane.b32.xlu0 %v388, 12
        %v512 = vpop.permute.xlu0 %511
        %513 = vrot.lane.b32.xlu0 %v395, 15
        %v514 = vpop.permute.xlu0 %513
        %515 = vrot.lane.b32.xlu0 %v412, 18
        %v516 = vpop.permute.xlu0 %515
        %517 = vrot.lane.b32.xlu0 %v429, 21
        %v518 = vpop.permute.xlu0 %517
        %v521 = vunpack.c.l.b16 %v481
        %v522 = vunpack.c.l.b16 %v482
        %v523 = vpack.c.b16 %v522, %v521
        %524 = vrot.lane.b32.xlu0 %v523, 24
        %v525 = vpop.permute.xlu0 %524
        %v528 = vunpack.c.l.b16 %v488
        %v529 = vunpack.c.l.b16 %v489
        %v530 = vpack.c.b16 %v529, %v528
        %531 = vrot.lane.b32.xlu0 %v530, 27
        %v532 = vpop.permute.xlu0 %531
        %v534 = vunpack.c.l.b16 %v483
        %v535 = vpack.c.b16 %v534, %v534
        %v537 = vshrl.u32 %v523, 16
        %v539 = vshll.u32 %v523, 16
        %v541 = vrot.slane %v539, 1
        %v542 = vor.u32 %v537, %v541
        %v544 = vshll.u32 %v535, 16
        %v546 = vrot.slane %v544, 1
        %v547 = vsel %vm256, %v542, %v546
        %548 = vrot.lane.b32.xlu0 %v547, 30
        %v549 = vpop.permute.xlu0 %548
        %v551 = vunpack.c.l.b16 %v490
        %v552 = vpack.c.b16 %v551, %v551
        %v554 = vshrl.u32 %v530, 16
        %v556 = vshll.u32 %v530, 16
        %v558 = vrot.slane %v556, 1
        %v559 = vor.u32 %v554, %v558
        %v561 = vshll.u32 %v552, 16
        %v563 = vrot.slane %v561, 1
        %v564 = vsel %vm256, %v559, %v563
        %565 = vrot.lane.b32.xlu0 %v564, 33
        %v566 = vpop.permute.xlu0 %565
        %v569 = vunpack.c.l.b16 %v495
        %v570 = vunpack.c.l.b16 %v496
        %v571 = vpack.c.b16 %v570, %v569
        %572 = vrot.lane.b32.xlu0 %v571, 36
        %v573 = vpop.permute.xlu0 %572
        %v576 = vunpack.c.l.b16 %v502
        %v577 = vunpack.c.l.b16 %v503
        %v578 = vpack.c.b16 %v577, %v576
        %579 = vrot.lane.b32.xlu0 %v578, 39
        %v580 = vpop.permute.xlu0 %579
        %v582 = vunpack.c.l.b16 %v497
        %v583 = vpack.c.b16 %v582, %v582
        %v585 = vshrl.u32 %v571, 16
        %v587 = vshll.u32 %v571, 16
        %v589 = vrot.slane %v587, 1
        %v590 = vor.u32 %v585, %v589
        %v592 = vshll.u32 %v583, 16
        %v594 = vrot.slane %v592, 1
        %v595 = vsel %vm256, %v590, %v594
        %596 = vrot.lane.b32.xlu0 %v595, 42
        %v597 = vpop.permute.xlu0 %596
        %v599 = vunpack.c.l.b16 %v504
        %v600 = vpack.c.b16 %v599, %v599
        %v602 = vshrl.u32 %v578, 16
        %v604 = vshll.u32 %v578, 16
        %v606 = vrot.slane %v604, 1
        %v607 = vor.u32 %v602, %v606
        %v609 = vshll.u32 %v600, 16
        %v611 = vrot.slane %v609, 1
        %v612 = vsel %vm256, %v607, %v611
        %613 = vrot.lane.b32.xlu0 %v612, 45
        %v614 = vpop.permute.xlu0 %613
        %v616 = vsel %vm432, %v340, %v506
        %v618 = vsel %vm435, %v616, %v508
        %v620 = vsel %vm438, %v618, %v510
        %v622 = vsel %vm441, %v620, %v512
        %v624 = vsel %vm444, %v622, %v514
        %v626 = vsel %vm447, %v624, %v516
        %v628 = vsel %vm450, %v626, %v518
        %v630 = vsel %vm453, %v628, %v525
        %v632 = vsel %vm456, %v630, %v532
        %v634 = vsel %vm459, %v632, %v549
        %v636 = vsel %vm462, %v634, %v566
        %v638 = vsel %vm465, %v636, %v573
        %v640 = vsel %vm468, %v638, %v580
        %v642 = vsel %vm471, %v640, %v597
        %v644 = vsel %vm474, %v642, %v614
        %s645 = sadd.s32 %s185, 3
        %s646 = smul.u32 %s645, 3
        %s647 = smul.addr %s646, 4
        %s648 = scalar_lea.vmem %s165, %s647
        %v649 = vld [vmem:[%s648] sm:$0xf]
        %v650 = vld [vmem:[%s648 + $0x4] sm:$0xf]
        %v651 = vld [vmem:[%s648 + $0x8] sm:$0x1]
        %s652 = sadd.s32 %s185, 20
        %s653 = smul.u32 %s652, 3
        %s654 = smul.addr %s653, 4
        %s655 = scalar_lea.vmem %s165, %s654
        %v656 = vld [vmem:[%s655] sm:$0xf]
        %v657 = vld [vmem:[%s655 + $0x4] sm:$0xf]
        %v658 = vld [vmem:[%s655 + $0x8] sm:$0x1]
        %s659 = sadd.s32 %s185, 37
        %s660 = smul.u32 %s659, 3
        %s661 = smul.addr %s660, 4
        %s662 = scalar_lea.vmem %s165, %s661
        %v663 = vld [vmem:[%s662] sm:$0xf]
        %v664 = vld [vmem:[%s662 + $0x4] sm:$0xf]
        %v665 = vld [vmem:[%s662 + $0x8] sm:$0x1]
        %s666 = sadd.s32 %s185, 54
        %s667 = smul.u32 %s666, 3
        %s668 = smul.addr %s667, 4
        %s669 = scalar_lea.vmem %s165, %s668
        %v670 = vld [vmem:[%s669] sm:$0xf]
        %v671 = vld [vmem:[%s669 + $0x4] sm:$0xf]
        %v672 = vld [vmem:[%s669 + $0x8] sm:$0x1]
        %673 = vrot.lane.b32.xlu0 %v530, 3
        %v674 = vpop.permute.xlu0 %673
        %675 = vrot.lane.b32.xlu0 %v547, 6
        %v676 = vpop.permute.xlu0 %675
        %677 = vrot.lane.b32.xlu0 %v564, 9
        %v678 = vpop.permute.xlu0 %677
        %679 = vrot.lane.b32.xlu0 %v571, 12
        %v680 = vpop.permute.xlu0 %679
        %681 = vrot.lane.b32.xlu0 %v578, 15
        %v682 = vpop.permute.xlu0 %681
        %683 = vrot.lane.b32.xlu0 %v595, 18
        %v684 = vpop.permute.xlu0 %683
        %685 = vrot.lane.b32.xlu0 %v612, 21
        %v686 = vpop.permute.xlu0 %685
        %v689 = vunpack.c.l.b16 %v649
        %v690 = vunpack.c.l.b16 %v650
        %v691 = vpack.c.b16 %v690, %v689
        %692 = vrot.lane.b32.xlu0 %v691, 24
        %v693 = vpop.permute.xlu0 %692
        %v696 = vunpack.c.l.b16 %v656
        %v697 = vunpack.c.l.b16 %v657
        %v698 = vpack.c.b16 %v697, %v696
        %699 = vrot.lane.b32.xlu0 %v698, 27
        %v700 = vpop.permute.xlu0 %699
        %v702 = vunpack.c.l.b16 %v651
        %v703 = vpack.c.b16 %v702, %v702
        %v705 = vshrl.u32 %v691, 16
        %v707 = vshll.u32 %v691, 16
        %v709 = vrot.slane %v707, 1
        %v710 = vor.u32 %v705, %v709
        %v712 = vshll.u32 %v703, 16
        %v714 = vrot.slane %v712, 1
        %v715 = vsel %vm256, %v710, %v714
        %716 = vrot.lane.b32.xlu0 %v715, 30
        %v717 = vpop.permute.xlu0 %716
        %v719 = vunpack.c.l.b16 %v658
        %v720 = vpack.c.b16 %v719, %v719
        %v722 = vshrl.u32 %v698, 16
        %v724 = vshll.u32 %v698, 16
        %v726 = vrot.slane %v724, 1
        %v727 = vor.u32 %v722, %v726
        %v729 = vshll.u32 %v720, 16
        %v731 = vrot.slane %v729, 1
        %v732 = vsel %vm256, %v727, %v731
        %733 = vrot.lane.b32.xlu0 %v732, 33
        %v734 = vpop.permute.xlu0 %733
        %v737 = vunpack.c.l.b16 %v663
        %v738 = vunpack.c.l.b16 %v664
        %v739 = vpack.c.b16 %v738, %v737
        %740 = vrot.lane.b32.xlu0 %v739, 36
        %v741 = vpop.permute.xlu0 %740
        %v744 = vunpack.c.l.b16 %v670
        %v745 = vunpack.c.l.b16 %v671
        %v746 = vpack.c.b16 %v745, %v744
        %747 = vrot.lane.b32.xlu0 %v746, 39
        %v748 = vpop.permute.xlu0 %747
        %v750 = vunpack.c.l.b16 %v665
        %v751 = vpack.c.b16 %v750, %v750
        %v753 = vshrl.u32 %v739, 16
        %v755 = vshll.u32 %v739, 16
        %v757 = vrot.slane %v755, 1
        %v758 = vor.u32 %v753, %v757
        %v760 = vshll.u32 %v751, 16
        %v762 = vrot.slane %v760, 1
        %v763 = vsel %vm256, %v758, %v762
        %764 = vrot.lane.b32.xlu0 %v763, 42
        %v765 = vpop.permute.xlu0 %764
        %v767 = vunpack.c.l.b16 %v672
        %v768 = vpack.c.b16 %v767, %v767
        %v770 = vshrl.u32 %v746, 16
        %v772 = vshll.u32 %v746, 16
        %v774 = vrot.slane %v772, 1
        %v775 = vor.u32 %v770, %v774
        %v777 = vshll.u32 %v768, 16
        %v779 = vrot.slane %v777, 1
        %v780 = vsel %vm256, %v775, %v779
        %781 = vrot.lane.b32.xlu0 %v780, 45
        %v782 = vpop.permute.xlu0 %781
        %v784 = vsel %vm432, %v523, %v674
        %v786 = vsel %vm435, %v784, %v676
        %v788 = vsel %vm438, %v786, %v678
        %v790 = vsel %vm441, %v788, %v680
        %v792 = vsel %vm444, %v790, %v682
        %v794 = vsel %vm447, %v792, %v684
        %v796 = vsel %vm450, %v794, %v686
        %v798 = vsel %vm453, %v796, %v693
        %v800 = vsel %vm456, %v798, %v700
        %v802 = vsel %vm459, %v800, %v717
        %v804 = vsel %vm462, %v802, %v734
        %v806 = vsel %vm465, %v804, %v741
        %v808 = vsel %vm468, %v806, %v748
        %v810 = vsel %vm471, %v808, %v765
        %v812 = vsel %vm474, %v810, %v782
        %s813 = sadd.s32 %s185, 4
        %s814 = smul.u32 %s813, 3
        %s815 = smul.addr %s814, 4
        %s816 = scalar_lea.vmem %s165, %s815
        %v817 = vld [vmem:[%s816] sm:$0xf]
        %v818 = vld [vmem:[%s816 + $0x4] sm:$0xf]
        %v819 = vld [vmem:[%s816 + $0x8] sm:$0x1]
        %s820 = sadd.s32 %s185, 21
        %s821 = smul.u32 %s820, 3
        %s822 = smul.addr %s821, 4
        %s823 = scalar_lea.vmem %s165, %s822
        %v824 = vld [vmem:[%s823] sm:$0xf]
        %v825 = vld [vmem:[%s823 + $0x4] sm:$0xf]
        %v826 = vld [vmem:[%s823 + $0x8] sm:$0x1]
        %s827 = sadd.s32 %s185, 38
        %s828 = smul.u32 %s827, 3
        %s829 = smul.addr %s828, 4
        %s830 = scalar_lea.vmem %s165, %s829
        %v831 = vld [vmem:[%s830] sm:$0xf]
        %v832 = vld [vmem:[%s830 + $0x4] sm:$0xf]
        %v833 = vld [vmem:[%s830 + $0x8] sm:$0x1]
        %s834 = sadd.s32 %s185, 55
        %s835 = smul.u32 %s834, 3
        %s836 = smul.addr %s835, 4
        %s837 = scalar_lea.vmem %s165, %s836
        %v838 = vld [vmem:[%s837] sm:$0xf]
        %v839 = vld [vmem:[%s837 + $0x4] sm:$0xf]
        %v840 = vld [vmem:[%s837 + $0x8] sm:$0x1]
        %841 = vrot.lane.b32.xlu0 %v698, 3
        %v842 = vpop.permute.xlu0 %841
        %843 = vrot.lane.b32.xlu0 %v715, 6
        %v844 = vpop.permute.xlu0 %843
        %845 = vrot.lane.b32.xlu0 %v732, 9
        %v846 = vpop.permute.xlu0 %845
        %847 = vrot.lane.b32.xlu0 %v739, 12
        %v848 = vpop.permute.xlu0 %847
        %849 = vrot.lane.b32.xlu0 %v746, 15
        %v850 = vpop.permute.xlu0 %849
        %851 = vrot.lane.b32.xlu0 %v763, 18
        %v852 = vpop.permute.xlu0 %851
        %853 = vrot.lane.b32.xlu0 %v780, 21
        %v854 = vpop.permute.xlu0 %853
        %v857 = vunpack.c.l.b16 %v817
        %v858 = vunpack.c.l.b16 %v818
        %v859 = vpack.c.b16 %v858, %v857
        %860 = vrot.lane.b32.xlu0 %v859, 24
        %v861 = vpop.permute.xlu0 %860
        %v864 = vunpack.c.l.b16 %v824
        %v865 = vunpack.c.l.b16 %v825
        %v866 = vpack.c.b16 %v865, %v864
        %867 = vrot.lane.b32.xlu0 %v866, 27
        %v868 = vpop.permute.xlu0 %867
        %v870 = vunpack.c.l.b16 %v819
        %v871 = vpack.c.b16 %v870, %v870
        %v873 = vshrl.u32 %v859, 16
        %v875 = vshll.u32 %v859, 16
        %v877 = vrot.slane %v875, 1
        %v878 = vor.u32 %v873, %v877
        %v880 = vshll.u32 %v871, 16
        %v882 = vrot.slane %v880, 1
        %v883 = vsel %vm256, %v878, %v882
        %884 = vrot.lane.b32.xlu0 %v883, 30
        %v885 = vpop.permute.xlu0 %884
        %v887 = vunpack.c.l.b16 %v826
        %v888 = vpack.c.b16 %v887, %v887
        %v890 = vshrl.u32 %v866, 16
        %v892 = vshll.u32 %v866, 16
        %v894 = vrot.slane %v892, 1
        %v895 = vor.u32 %v890, %v894
        %v897 = vshll.u32 %v888, 16
        %v899 = vrot.slane %v897, 1
        %v900 = vsel %vm256, %v895, %v899
        %901 = vrot.lane.b32.xlu0 %v900, 33
        %v902 = vpop.permute.xlu0 %901
        %v905 = vunpack.c.l.b16 %v831
        %v906 = vunpack.c.l.b16 %v832
        %v907 = vpack.c.b16 %v906, %v905
        %908 = vrot.lane.b32.xlu0 %v907, 36
        %v909 = vpop.permute.xlu0 %908
        %v912 = vunpack.c.l.b16 %v838
        %v913 = vunpack.c.l.b16 %v839
        %v914 = vpack.c.b16 %v913, %v912
        %915 = vrot.lane.b32.xlu0 %v914, 39
        %v916 = vpop.permute.xlu0 %915
        %v918 = vunpack.c.l.b16 %v833
        %v919 = vpack.c.b16 %v918, %v918
        %v921 = vshrl.u32 %v907, 16
        %v923 = vshll.u32 %v907, 16
        %v925 = vrot.slane %v923, 1
        %v926 = vor.u32 %v921, %v925
        %v928 = vshll.u32 %v919, 16
        %v930 = vrot.slane %v928, 1
        %v931 = vsel %vm256, %v926, %v930
        %932 = vrot.lane.b32.xlu0 %v931, 42
        %v933 = vpop.permute.xlu0 %932
        %v935 = vunpack.c.l.b16 %v840
        %v936 = vpack.c.b16 %v935, %v935
        %v938 = vshrl.u32 %v914, 16
        %v940 = vshll.u32 %v914, 16
        %v942 = vrot.slane %v940, 1
        %v943 = vor.u32 %v938, %v942
        %v945 = vshll.u32 %v936, 16
        %v947 = vrot.slane %v945, 1
        %v948 = vsel %vm256, %v943, %v947
        %949 = vrot.lane.b32.xlu0 %v948, 45
        %v950 = vpop.permute.xlu0 %949
        %v952 = vsel %vm432, %v691, %v842
        %v954 = vsel %vm435, %v952, %v844
        %v956 = vsel %vm438, %v954, %v846
        %v958 = vsel %vm441, %v956, %v848
        %v960 = vsel %vm444, %v958, %v850
        %v962 = vsel %vm447, %v960, %v852
        %v964 = vsel %vm450, %v962, %v854
        %v966 = vsel %vm453, %v964, %v861
        %v968 = vsel %vm456, %v966, %v868
        %v970 = vsel %vm459, %v968, %v885
        %v972 = vsel %vm462, %v970, %v902
        %v974 = vsel %vm465, %v972, %v909
        %v976 = vsel %vm468, %v974, %v916
        %v978 = vsel %vm471, %v976, %v933
        %v980 = vsel %vm474, %v978, %v950
        %s981 = sadd.s32 %s185, 5
        %s982 = smul.u32 %s981, 3
        %s983 = smul.addr %s982, 4
        %s984 = scalar_lea.vmem %s165, %s983
        %v985 = vld [vmem:[%s984] sm:$0xf]
        %v986 = vld [vmem:[%s984 + $0x4] sm:$0xf]
        %v987 = vld [vmem:[%s984 + $0x8] sm:$0x1]
        %s988 = sadd.s32 %s185, 22
        %s989 = smul.u32 %s988, 3
        %s990 = smul.addr %s989, 4
        %s991 = scalar_lea.vmem %s165, %s990
        %v992 = vld [vmem:[%s991] sm:$0xf]
        %v993 = vld [vmem:[%s991 + $0x4] sm:$0xf]
        %v994 = vld [vmem:[%s991 + $0x8] sm:$0x1]
        %s995 = sadd.s32 %s185, 39
        %s996 = smul.u32 %s995, 3
        %s997 = smul.addr %s996, 4
        %s998 = scalar_lea.vmem %s165, %s997
        %v999 = vld [vmem:[%s998] sm:$0xf]
        %v1000 = vld [vmem:[%s998 + $0x4] sm:$0xf]
        %v1001 = vld [vmem:[%s998 + $0x8] sm:$0x1]
        %s1002 = sadd.s32 %s185, 56
        %s1003 = smul.u32 %s1002, 3
        %s1004 = smul.addr %s1003, 4
        %s1005 = scalar_lea.vmem %s165, %s1004
        %v1006 = vld [vmem:[%s1005] sm:$0xf]
        %v1007 = vld [vmem:[%s1005 + $0x4] sm:$0xf]
        %v1008 = vld [vmem:[%s1005 + $0x8] sm:$0x1]
        %1009 = vrot.lane.b32.xlu0 %v866, 3
        %v1010 = vpop.permute.xlu0 %1009
        %1011 = vrot.lane.b32.xlu0 %v883, 6
        %v1012 = vpop.permute.xlu0 %1011
        %1013 = vrot.lane.b32.xlu0 %v900, 9
        %v1014 = vpop.permute.xlu0 %1013
        %1015 = vrot.lane.b32.xlu0 %v907, 12
        %v1016 = vpop.permute.xlu0 %1015
        %1017 = vrot.lane.b32.xlu0 %v914, 15
        %v1018 = vpop.permute.xlu0 %1017
        %1019 = vrot.lane.b32.xlu0 %v931, 18
        %v1020 = vpop.permute.xlu0 %1019
        %1021 = vrot.lane.b32.xlu0 %v948, 21
        %v1022 = vpop.permute.xlu0 %1021
        %v1025 = vunpack.c.l.b16 %v985
        %v1026 = vunpack.c.l.b16 %v986
        %v1027 = vpack.c.b16 %v1026, %v1025
        %1028 = vrot.lane.b32.xlu0 %v1027, 24
        %v1029 = vpop.permute.xlu0 %1028
        %v1032 = vunpack.c.l.b16 %v992
        %v1033 = vunpack.c.l.b16 %v993
        %v1034 = vpack.c.b16 %v1033, %v1032
        %1035 = vrot.lane.b32.xlu0 %v1034, 27
        %v1036 = vpop.permute.xlu0 %1035
        %v1038 = vunpack.c.l.b16 %v987
        %v1039 = vpack.c.b16 %v1038, %v1038
        %v1041 = vshrl.u32 %v1027, 16
        %v1043 = vshll.u32 %v1027, 16
        %v1045 = vrot.slane %v1043, 1
        %v1046 = vor.u32 %v1041, %v1045
        %v1048 = vshll.u32 %v1039, 16
        %v1050 = vrot.slane %v1048, 1
        %v1051 = vsel %vm256, %v1046, %v1050
        %1052 = vrot.lane.b32.xlu0 %v1051, 30
        %v1053 = vpop.permute.xlu0 %1052
        %v1055 = vunpack.c.l.b16 %v994
        %v1056 = vpack.c.b16 %v1055, %v1055
        %v1058 = vshrl.u32 %v1034, 16
        %v1060 = vshll.u32 %v1034, 16
        %v1062 = vrot.slane %v1060, 1
        %v1063 = vor.u32 %v1058, %v1062
        %v1065 = vshll.u32 %v1056, 16
        %v1067 = vrot.slane %v1065, 1
        %v1068 = vsel %vm256, %v1063, %v1067
        %1069 = vrot.lane.b32.xlu0 %v1068, 33
        %v1070 = vpop.permute.xlu0 %1069
        %v1073 = vunpack.c.l.b16 %v999
        %v1074 = vunpack.c.l.b16 %v1000
        %v1075 = vpack.c.b16 %v1074, %v1073
        %1076 = vrot.lane.b32.xlu0 %v1075, 36
        %v1077 = vpop.permute.xlu0 %1076
        %v1080 = vunpack.c.l.b16 %v1006
        %v1081 = vunpack.c.l.b16 %v1007
        %v1082 = vpack.c.b16 %v1081, %v1080
        %1083 = vrot.lane.b32.xlu0 %v1082, 39
        %v1084 = vpop.permute.xlu0 %1083
        %v1086 = vunpack.c.l.b16 %v1001
        %v1087 = vpack.c.b16 %v1086, %v1086
        %v1089 = vshrl.u32 %v1075, 16
        %v1091 = vshll.u32 %v1075, 16
        %v1093 = vrot.slane %v1091, 1
        %v1094 = vor.u32 %v1089, %v1093
        %v1096 = vshll.u32 %v1087, 16
        %v1098 = vrot.slane %v1096, 1
        %v1099 = vsel %vm256, %v1094, %v1098
        %1100 = vrot.lane.b32.xlu0 %v1099, 42
        %v1101 = vpop.permute.xlu0 %1100
        %v1103 = vunpack.c.l.b16 %v1008
        %v1104 = vpack.c.b16 %v1103, %v1103
        %v1106 = vshrl.u32 %v1082, 16
        %v1108 = vshll.u32 %v1082, 16
        %v1110 = vrot.slane %v1108, 1
        %v1111 = vor.u32 %v1106, %v1110
        %v1113 = vshll.u32 %v1104, 16
        %v1115 = vrot.slane %v1113, 1
        %v1116 = vsel %vm256, %v1111, %v1115
        %1117 = vrot.lane.b32.xlu0 %v1116, 45
        %v1118 = vpop.permute.xlu0 %1117
        %v1120 = vsel %vm432, %v859, %v1010
        %v1122 = vsel %vm435, %v1120, %v1012
        %v1124 = vsel %vm438, %v1122, %v1014
        %v1126 = vsel %vm441, %v1124, %v1016
        %v1128 = vsel %vm444, %v1126, %v1018
        %v1130 = vsel %vm447, %v1128, %v1020
        %v1132 = vsel %vm450, %v1130, %v1022
        %v1134 = vsel %vm453, %v1132, %v1029
        %v1136 = vsel %vm456, %v1134, %v1036
        %v1138 = vsel %vm459, %v1136, %v1053
        %v1140 = vsel %vm462, %v1138, %v1070
        %v1142 = vsel %vm465, %v1140, %v1077
        %v1144 = vsel %vm468, %v1142, %v1084
        %v1146 = vsel %vm471, %v1144, %v1101
        %v1148 = vsel %vm474, %v1146, %v1118
        %s1149 = sadd.s32 %s185, 6
        %s1150 = smul.u32 %s1149, 3
        %s1151 = smul.addr %s1150, 4
        %s1152 = scalar_lea.vmem %s165, %s1151
        %v1153 = vld [vmem:[%s1152] sm:$0xf]
        %v1154 = vld [vmem:[%s1152 + $0x4] sm:$0xf]
        %v1155 = vld [vmem:[%s1152 + $0x8] sm:$0x1]
        %s1156 = sadd.s32 %s185, 23
        %s1157 = smul.u32 %s1156, 3
        %s1158 = smul.addr %s1157, 4
        %s1159 = scalar_lea.vmem %s165, %s1158
        %v1160 = vld [vmem:[%s1159] sm:$0xf]
        %v1161 = vld [vmem:[%s1159 + $0x4] sm:$0xf]
        %v1162 = vld [vmem:[%s1159 + $0x8] sm:$0x1]
        %s1163 = sadd.s32 %s185, 40
        %s1164 = smul.u32 %s1163, 3
        %s1165 = smul.addr %s1164, 4
        %s1166 = scalar_lea.vmem %s165, %s1165
        %v1167 = vld [vmem:[%s1166] sm:$0xf]
        %v1168 = vld [vmem:[%s1166 + $0x4] sm:$0xf]
        %v1169 = vld [vmem:[%s1166 + $0x8] sm:$0x1]
        %s1170 = sadd.s32 %s185, 57
        %s1171 = smul.u32 %s1170, 3
        %s1172 = smul.addr %s1171, 4
        %s1173 = scalar_lea.vmem %s165, %s1172
        %v1174 = vld [vmem:[%s1173] sm:$0xf]
        %v1175 = vld [vmem:[%s1173 + $0x4] sm:$0xf]
        %v1176 = vld [vmem:[%s1173 + $0x8] sm:$0x1]
        %1177 = vrot.lane.b32.xlu0 %v1034, 3
        %v1178 = vpop.permute.xlu0 %1177
        %1179 = vrot.lane.b32.xlu0 %v1051, 6
        %v1180 = vpop.permute.xlu0 %1179
        %1181 = vrot.lane.b32.xlu0 %v1068, 9
        %v1182 = vpop.permute.xlu0 %1181
        %1183 = vrot.lane.b32.xlu0 %v1075, 12
        %v1184 = vpop.permute.xlu0 %1183
        %1185 = vrot.lane.b32.xlu0 %v1082, 15
        %v1186 = vpop.permute.xlu0 %1185
        %1187 = vrot.lane.b32.xlu0 %v1099, 18
        %v1188 = vpop.permute.xlu0 %1187
        %1189 = vrot.lane.b32.xlu0 %v1116, 21
        %v1190 = vpop.permute.xlu0 %1189
        %v1193 = vunpack.c.l.b16 %v1153
        %v1194 = vunpack.c.l.b16 %v1154
        %v1195 = vpack.c.b16 %v1194, %v1193
        %1196 = vrot.lane.b32.xlu0 %v1195, 24
        %v1197 = vpop.permute.xlu0 %1196
        %v1200 = vunpack.c.l.b16 %v1160
        %v1201 = vunpack.c.l.b16 %v1161
        %v1202 = vpack.c.b16 %v1201, %v1200
        %1203 = vrot.lane.b32.xlu0 %v1202, 27
        %v1204 = vpop.permute.xlu0 %1203
        %v1206 = vunpack.c.l.b16 %v1155
        %v1207 = vpack.c.b16 %v1206, %v1206
        %v1209 = vshrl.u32 %v1195, 16
        %v1211 = vshll.u32 %v1195, 16
        %v1213 = vrot.slane %v1211, 1
        %v1214 = vor.u32 %v1209, %v1213
        %v1216 = vshll.u32 %v1207, 16
        %v1218 = vrot.slane %v1216, 1
        %v1219 = vsel %vm256, %v1214, %v1218
        %1220 = vrot.lane.b32.xlu0 %v1219, 30
        %v1221 = vpop.permute.xlu0 %1220
        %v1223 = vunpack.c.l.b16 %v1162
        %v1224 = vpack.c.b16 %v1223, %v1223
        %v1226 = vshrl.u32 %v1202, 16
        %v1228 = vshll.u32 %v1202, 16
        %v1230 = vrot.slane %v1228, 1
        %v1231 = vor.u32 %v1226, %v1230
        %v1233 = vshll.u32 %v1224, 16
        %v1235 = vrot.slane %v1233, 1
        %v1236 = vsel %vm256, %v1231, %v1235
        %1237 = vrot.lane.b32.xlu0 %v1236, 33
        %v1238 = vpop.permute.xlu0 %1237
        %v1241 = vunpack.c.l.b16 %v1167
        %v1242 = vunpack.c.l.b16 %v1168
        %v1243 = vpack.c.b16 %v1242, %v1241
        %1244 = vrot.lane.b32.xlu0 %v1243, 36
        %v1245 = vpop.permute.xlu0 %1244
        %v1248 = vunpack.c.l.b16 %v1174
        %v1249 = vunpack.c.l.b16 %v1175
        %v1250 = vpack.c.b16 %v1249, %v1248
        %1251 = vrot.lane.b32.xlu0 %v1250, 39
        %v1252 = vpop.permute.xlu0 %1251
        %v1254 = vunpack.c.l.b16 %v1169
        %v1255 = vpack.c.b16 %v1254, %v1254
        %v1257 = vshrl.u32 %v1243, 16
        %v1259 = vshll.u32 %v1243, 16
        %v1261 = vrot.slane %v1259, 1
        %v1262 = vor.u32 %v1257, %v1261
        %v1264 = vshll.u32 %v1255, 16
        %v1266 = vrot.slane %v1264, 1
        %v1267 = vsel %vm256, %v1262, %v1266
        %1268 = vrot.lane.b32.xlu0 %v1267, 42
        %v1269 = vpop.permute.xlu0 %1268
        %v1271 = vunpack.c.l.b16 %v1176
        %v1272 = vpack.c.b16 %v1271, %v1271
        %v1274 = vshrl.u32 %v1250, 16
        %v1276 = vshll.u32 %v1250, 16
        %v1278 = vrot.slane %v1276, 1
        %v1279 = vor.u32 %v1274, %v1278
        %v1281 = vshll.u32 %v1272, 16
        %v1283 = vrot.slane %v1281, 1
        %v1284 = vsel %vm256, %v1279, %v1283
        %1285 = vrot.lane.b32.xlu0 %v1284, 45
        %v1286 = vpop.permute.xlu0 %1285
        %v1288 = vsel %vm432, %v1027, %v1178
        %v1290 = vsel %vm435, %v1288, %v1180
        %v1292 = vsel %vm438, %v1290, %v1182
        %v1294 = vsel %vm441, %v1292, %v1184
        %v1296 = vsel %vm444, %v1294, %v1186
        %v1298 = vsel %vm447, %v1296, %v1188
        %v1300 = vsel %vm450, %v1298, %v1190
        %v1302 = vsel %vm453, %v1300, %v1197
        %v1304 = vsel %vm456, %v1302, %v1204
        %v1306 = vsel %vm459, %v1304, %v1221
        %v1308 = vsel %vm462, %v1306, %v1238
        %v1310 = vsel %vm465, %v1308, %v1245
        %v1312 = vsel %vm468, %v1310, %v1252
        %v1314 = vsel %vm471, %v1312, %v1269
        %v1316 = vsel %vm474, %v1314, %v1286
        %s1317 = sadd.s32 %s185, 7
        %s1318 = smul.u32 %s1317, 3
        %s1319 = smul.addr %s1318, 4
        %s1320 = scalar_lea.vmem %s165, %s1319
        %v1321 = vld [vmem:[%s1320] sm:$0xf]
        %v1322 = vld [vmem:[%s1320 + $0x4] sm:$0xf]
        %v1323 = vld [vmem:[%s1320 + $0x8] sm:$0x1]
        %s1324 = sadd.s32 %s185, 24
        %s1325 = smul.u32 %s1324, 3
        %s1326 = smul.addr %s1325, 4
        %s1327 = scalar_lea.vmem %s165, %s1326
        %v1328 = vld [vmem:[%s1327] sm:$0xf]
        %v1329 = vld [vmem:[%s1327 + $0x4] sm:$0xf]
        %v1330 = vld [vmem:[%s1327 + $0x8] sm:$0x1]
        %s1331 = sadd.s32 %s185, 41
        %s1332 = smul.u32 %s1331, 3
        %s1333 = smul.addr %s1332, 4
        %s1334 = scalar_lea.vmem %s165, %s1333
        %v1335 = vld [vmem:[%s1334] sm:$0xf]
        %v1336 = vld [vmem:[%s1334 + $0x4] sm:$0xf]
        %v1337 = vld [vmem:[%s1334 + $0x8] sm:$0x1]
        %s1338 = sadd.s32 %s185, 58
        %s1339 = smul.u32 %s1338, 3
        %s1340 = smul.addr %s1339, 4
        %s1341 = scalar_lea.vmem %s165, %s1340
        %v1342 = vld [vmem:[%s1341] sm:$0xf]
        %v1343 = vld [vmem:[%s1341 + $0x4] sm:$0xf]
        %v1344 = vld [vmem:[%s1341 + $0x8] sm:$0x1]
        %1345 = vrot.lane.b32.xlu0 %v1202, 3
        %v1346 = vpop.permute.xlu0 %1345
        %1347 = vrot.lane.b32.xlu0 %v1219, 6
        %v1348 = vpop.permute.xlu0 %1347
        %1349 = vrot.lane.b32.xlu0 %v1236, 9
        %v1350 = vpop.permute.xlu0 %1349
        %1351 = vrot.lane.b32.xlu0 %v1243, 12
        %v1352 = vpop.permute.xlu0 %1351
        %1353 = vrot.lane.b32.xlu0 %v1250, 15
        %v1354 = vpop.permute.xlu0 %1353
        %1355 = vrot.lane.b32.xlu0 %v1267, 18
        %v1356 = vpop.permute.xlu0 %1355
        %1357 = vrot.lane.b32.xlu0 %v1284, 21
        %v1358 = vpop.permute.xlu0 %1357
        %v1361 = vunpack.c.l.b16 %v1321
        %v1362 = vunpack.c.l.b16 %v1322
        %v1363 = vpack.c.b16 %v1362, %v1361
        %1364 = vrot.lane.b32.xlu0 %v1363, 24
        %v1365 = vpop.permute.xlu0 %1364
        %v1368 = vunpack.c.l.b16 %v1328
        %v1369 = vunpack.c.l.b16 %v1329
        %v1370 = vpack.c.b16 %v1369, %v1368
        %1371 = vrot.lane.b32.xlu0 %v1370, 27
        %v1372 = vpop.permute.xlu0 %1371
        %v1374 = vunpack.c.l.b16 %v1323
        %v1375 = vpack.c.b16 %v1374, %v1374
        %v1377 = vshrl.u32 %v1363, 16
        %v1379 = vshll.u32 %v1363, 16
        %v1381 = vrot.slane %v1379, 1
        %v1382 = vor.u32 %v1377, %v1381
        %v1384 = vshll.u32 %v1375, 16
        %v1386 = vrot.slane %v1384, 1
        %v1387 = vsel %vm256, %v1382, %v1386
        %1388 = vrot.lane.b32.xlu0 %v1387, 30
        %v1389 = vpop.permute.xlu0 %1388
        %v1391 = vunpack.c.l.b16 %v1330
        %v1392 = vpack.c.b16 %v1391, %v1391
        %v1394 = vshrl.u32 %v1370, 16
        %v1396 = vshll.u32 %v1370, 16
        %v1398 = vrot.slane %v1396, 1
        %v1399 = vor.u32 %v1394, %v1398
        %v1401 = vshll.u32 %v1392, 16
        %v1403 = vrot.slane %v1401, 1
        %v1404 = vsel %vm256, %v1399, %v1403
        %1405 = vrot.lane.b32.xlu0 %v1404, 33
        %v1406 = vpop.permute.xlu0 %1405
        %v1409 = vunpack.c.l.b16 %v1335
        %v1410 = vunpack.c.l.b16 %v1336
        %v1411 = vpack.c.b16 %v1410, %v1409
        %1412 = vrot.lane.b32.xlu0 %v1411, 36
        %v1413 = vpop.permute.xlu0 %1412
        %v1416 = vunpack.c.l.b16 %v1342
        %v1417 = vunpack.c.l.b16 %v1343
        %v1418 = vpack.c.b16 %v1417, %v1416
        %1419 = vrot.lane.b32.xlu0 %v1418, 39
        %v1420 = vpop.permute.xlu0 %1419
        %v1422 = vunpack.c.l.b16 %v1337
        %v1423 = vpack.c.b16 %v1422, %v1422
        %v1425 = vshrl.u32 %v1411, 16
        %v1427 = vshll.u32 %v1411, 16
        %v1429 = vrot.slane %v1427, 1
        %v1430 = vor.u32 %v1425, %v1429
        %v1432 = vshll.u32 %v1423, 16
        %v1434 = vrot.slane %v1432, 1
        %v1435 = vsel %vm256, %v1430, %v1434
        %1436 = vrot.lane.b32.xlu0 %v1435, 42
        %v1437 = vpop.permute.xlu0 %1436
        %v1439 = vunpack.c.l.b16 %v1344
        %v1440 = vpack.c.b16 %v1439, %v1439
        %v1442 = vshrl.u32 %v1418, 16
        %v1444 = vshll.u32 %v1418, 16
        %v1446 = vrot.slane %v1444, 1
        %v1447 = vor.u32 %v1442, %v1446
        %v1449 = vshll.u32 %v1440, 16
        %v1451 = vrot.slane %v1449, 1
        %v1452 = vsel %vm256, %v1447, %v1451
        %1453 = vrot.lane.b32.xlu0 %v1452, 45
        %v1454 = vpop.permute.xlu0 %1453
        %v1456 = vsel %vm432, %v1195, %v1346
        %v1458 = vsel %vm435, %v1456, %v1348
        %v1460 = vsel %vm438, %v1458, %v1350
        %v1462 = vsel %vm441, %v1460, %v1352
        %v1464 = vsel %vm444, %v1462, %v1354
        %v1466 = vsel %vm447, %v1464, %v1356
        %v1468 = vsel %vm450, %v1466, %v1358
        %v1470 = vsel %vm453, %v1468, %v1365
        %v1472 = vsel %vm456, %v1470, %v1372
        %v1474 = vsel %vm459, %v1472, %v1389
        %v1476 = vsel %vm462, %v1474, %v1406
        %v1478 = vsel %vm465, %v1476, %v1413
        %v1480 = vsel %vm468, %v1478, %v1420
        %v1482 = vsel %vm471, %v1480, %v1437
        %v1484 = vsel %vm474, %v1482, %v1454
        %s1485 = sadd.s32 %s185, 8
        %s1486 = smul.u32 %s1485, 3
        %s1487 = smul.addr %s1486, 4
        %s1488 = scalar_lea.vmem %s165, %s1487
        %v1489 = vld [vmem:[%s1488] sm:$0xf]
        %v1490 = vld [vmem:[%s1488 + $0x4] sm:$0xf]
        %v1491 = vld [vmem:[%s1488 + $0x8] sm:$0x1]
        %s1492 = sadd.s32 %s185, 25
        %s1493 = smul.u32 %s1492, 3
        %s1494 = smul.addr %s1493, 4
        %s1495 = scalar_lea.vmem %s165, %s1494
        %v1496 = vld [vmem:[%s1495] sm:$0xf]
        %v1497 = vld [vmem:[%s1495 + $0x4] sm:$0xf]
        %v1498 = vld [vmem:[%s1495 + $0x8] sm:$0x1]
        %s1499 = sadd.s32 %s185, 42
        %s1500 = smul.u32 %s1499, 3
        %s1501 = smul.addr %s1500, 4
        %s1502 = scalar_lea.vmem %s165, %s1501
        %v1503 = vld [vmem:[%s1502] sm:$0xf]
        %v1504 = vld [vmem:[%s1502 + $0x4] sm:$0xf]
        %v1505 = vld [vmem:[%s1502 + $0x8] sm:$0x1]
        %s1506 = sadd.s32 %s185, 59
        %s1507 = smul.u32 %s1506, 3
        %s1508 = smul.addr %s1507, 4
        %s1509 = scalar_lea.vmem %s165, %s1508
        %v1510 = vld [vmem:[%s1509] sm:$0xf]
        %v1511 = vld [vmem:[%s1509 + $0x4] sm:$0xf]
        %v1512 = vld [vmem:[%s1509 + $0x8] sm:$0x1]
        %1513 = vrot.lane.b32.xlu0 %v1370, 3
        %v1514 = vpop.permute.xlu0 %1513
        %1515 = vrot.lane.b32.xlu0 %v1387, 6
        %v1516 = vpop.permute.xlu0 %1515
        %1517 = vrot.lane.b32.xlu0 %v1404, 9
        %v1518 = vpop.permute.xlu0 %1517
        %1519 = vrot.lane.b32.xlu0 %v1411, 12
        %v1520 = vpop.permute.xlu0 %1519
        %1521 = vrot.lane.b32.xlu0 %v1418, 15
        %v1522 = vpop.permute.xlu0 %1521
        %1523 = vrot.lane.b32.xlu0 %v1435, 18
        %v1524 = vpop.permute.xlu0 %1523
        %1525 = vrot.lane.b32.xlu0 %v1452, 21
        %v1526 = vpop.permute.xlu0 %1525
        %v1529 = vunpack.c.l.b16 %v1489
        %v1530 = vunpack.c.l.b16 %v1490
        %v1531 = vpack.c.b16 %v1530, %v1529
        %1532 = vrot.lane.b32.xlu0 %v1531, 24
        %v1533 = vpop.permute.xlu0 %1532
        %v1536 = vunpack.c.l.b16 %v1496
        %v1537 = vunpack.c.l.b16 %v1497
        %v1538 = vpack.c.b16 %v1537, %v1536
        %1539 = vrot.lane.b32.xlu0 %v1538, 27
        %v1540 = vpop.permute.xlu0 %1539
        %v1542 = vunpack.c.l.b16 %v1491
        %v1543 = vpack.c.b16 %v1542, %v1542
        %v1545 = vshrl.u32 %v1531, 16
        %v1547 = vshll.u32 %v1531, 16
        %v1549 = vrot.slane %v1547, 1
        %v1550 = vor.u32 %v1545, %v1549
        %v1552 = vshll.u32 %v1543, 16
        %v1554 = vrot.slane %v1552, 1
        %v1555 = vsel %vm256, %v1550, %v1554
        %1556 = vrot.lane.b32.xlu0 %v1555, 30
        %v1557 = vpop.permute.xlu0 %1556
        %v1559 = vunpack.c.l.b16 %v1498
        %v1560 = vpack.c.b16 %v1559, %v1559
        %v1562 = vshrl.u32 %v1538, 16
        %v1564 = vshll.u32 %v1538, 16
        %v1566 = vrot.slane %v1564, 1
        %v1567 = vor.u32 %v1562, %v1566
        %v1569 = vshll.u32 %v1560, 16
        %v1571 = vrot.slane %v1569, 1
        %v1572 = vsel %vm256, %v1567, %v1571
        %1573 = vrot.lane.b32.xlu0 %v1572, 33
        %v1574 = vpop.permute.xlu0 %1573
        %v1577 = vunpack.c.l.b16 %v1503
        %v1578 = vunpack.c.l.b16 %v1504
        %v1579 = vpack.c.b16 %v1578, %v1577
        %1580 = vrot.lane.b32.xlu0 %v1579, 36
        %v1581 = vpop.permute.xlu0 %1580
        %v1584 = vunpack.c.l.b16 %v1510
        %v1585 = vunpack.c.l.b16 %v1511
        %v1586 = vpack.c.b16 %v1585, %v1584
        %1587 = vrot.lane.b32.xlu0 %v1586, 39
        %v1588 = vpop.permute.xlu0 %1587
        %v1590 = vunpack.c.l.b16 %v1505
        %v1591 = vpack.c.b16 %v1590, %v1590
        %v1593 = vshrl.u32 %v1579, 16
        %v1595 = vshll.u32 %v1579, 16
        %v1597 = vrot.slane %v1595, 1
        %v1598 = vor.u32 %v1593, %v1597
        %v1600 = vshll.u32 %v1591, 16
        %v1602 = vrot.slane %v1600, 1
        %v1603 = vsel %vm256, %v1598, %v1602
        %1604 = vrot.lane.b32.xlu0 %v1603, 42
        %v1605 = vpop.permute.xlu0 %1604
        %v1607 = vunpack.c.l.b16 %v1512
        %v1608 = vpack.c.b16 %v1607, %v1607
        %v1610 = vshrl.u32 %v1586, 16
        %v1612 = vshll.u32 %v1586, 16
        %v1614 = vrot.slane %v1612, 1
        %v1615 = vor.u32 %v1610, %v1614
        %v1617 = vshll.u32 %v1608, 16
        %v1619 = vrot.slane %v1617, 1
        %v1620 = vsel %vm256, %v1615, %v1619
        %1621 = vrot.lane.b32.xlu0 %v1620, 45
        %v1622 = vpop.permute.xlu0 %1621
        %v1624 = vsel %vm432, %v1363, %v1514
        %v1626 = vsel %vm435, %v1624, %v1516
        %v1628 = vsel %vm438, %v1626, %v1518
        %v1630 = vsel %vm441, %v1628, %v1520
        %v1632 = vsel %vm444, %v1630, %v1522
        %v1634 = vsel %vm447, %v1632, %v1524
        %v1636 = vsel %vm450, %v1634, %v1526
        %v1638 = vsel %vm453, %v1636, %v1533
        %v1640 = vsel %vm456, %v1638, %v1540
        %v1642 = vsel %vm459, %v1640, %v1557
        %v1644 = vsel %vm462, %v1642, %v1574
        %v1646 = vsel %vm465, %v1644, %v1581
        %v1648 = vsel %vm468, %v1646, %v1588
        %v1650 = vsel %vm471, %v1648, %v1605
        %v1652 = vsel %vm474, %v1650, %v1622
        %v1654 = vlaneseq
        %v1655 = vshrl.u32 %v1654, 7
        %v1656 = vsub.s32 0, %v1655
        %v1657 = vrot.slane %v178, %v1656
        %v1665 = vunpack.c.l.b16 %v172
        %v1666 = vunpack.c.l.b16 %v173
        %v1667 = vunpack.c.l.b16 %v174
        %v1668 = vunpack.c.l.b16 %v175
        %v1669 = vunpack.c.l.b16 %v176
        %v1670 = vunpack.c.l.b16 %v177
        %v1671 = vpack.c.b16 %v1666, %v1665
        %v1672 = vpack.c.b16 %v1668, %v1667
        %v1673 = vpack.c.b16 %v1670, %v1669
        %vm1677 = vcmask 392192
        %v1678 = vsel %vm1677, %v476, 0
        %v1680 = vsel %vm1677, %v644, 0
        %v1682 = vsel %vm1677, %v812, 0
        %v1684 = vsel %vm1677, %v980, 0
        %v1686 = vsel %vm1677, %v1148, 0
        %v1688 = vsel %vm1677, %v1316, 0
        %v1690 = vsel %vm1677, %v1484, 0
        %v1692 = vsel %vm1677, %v1652, 0
        %1694 = vmatprep.subr.bf16.mxu0 0
        %1695 = vmatpush1.bf16.msra.mxu0 %v1671
        %1696 = vmatprep.subr.bf16.mxu0 0
        %1697 = vmatpush1.bf16.msra.mxu0 %v1672
        %1698 = vmatprep.subr.bf16.mxu0 0
        %1699 = vmatpush1.bf16.msra.mxu0 %v1673
        %1700 = vmatprep.subr.bf16.mxu0 0
        %1701 = vmatpush1.bf16.msra.mxu0 0
        %1702 = vmatprep.subr.bf16.mxu0 0
        %1703 = vmatpush1.bf16.msra.mxu0 0
        %1704 = vmatprep.subr.bf16.mxu0 0
        %1705 = vmatpush1.bf16.msra.mxu0 0
        %1706 = vmatprep.subr.bf16.mxu0 0
        %1707 = vmatpush1.bf16.msra.mxu0 0
        %1708 = vmatprep.subr.bf16.mxu0 0
        %1709 = vmatpush1.bf16.msra.mxu0 0
        %1710 = vmatprep.subr.bf16.mxu0 0
        %1711 = vmatpush1.bf16.msra.mxu0 0
        %1712 = vmatprep.subr.bf16.mxu0 0
        %1713 = vmatpush1.bf16.msra.mxu0 0
        %1714 = vmatprep.subr.bf16.mxu0 0
        %1715 = vmatpush1.bf16.msra.mxu0 0
        %1716 = vmatprep.subr.bf16.mxu0 0
        %1717 = vmatpush1.bf16.msra.mxu0 0
        %1718 = vmatprep.subr.bf16.mxu0 0
        %1719 = vmatpush1.bf16.msra.mxu0 0
        %1720 = vmatprep.subr.bf16.mxu0 0
        %1721 = vmatpush1.bf16.msra.mxu0 0
        %1722 = vmatprep.subr.bf16.mxu0 0
        %1723 = vmatpush1.bf16.msra.mxu0 0
        %1724 = vmatprep.subr.bf16.mxu0 0
        %1725 = vmatpush1.bf16.msra.mxu0 0
        %1726 = vmatprep.mubr.bf16.mxu0 0
        %1727 = vmatmul.mubr.bf16.gmra.mrb[0].mxu0 %v1678
        %v1728 = vpop.f32.mrb[0].mxu0
        %v1729 = vadd.f32 %v1657, %v1728
        %v1730 = vpop.f32.mrb[0].mxu0
        %v1731 = vpop.f32.mrb[0].mxu0
        %v1732 = vadd.f32 %v1657, %v1731
        %v1733 = vpop.f32.mrb[0].mxu0
        %1734 = vmatprep.mubr.bf16.mxu0 0
        %1735 = vmatmul.mubr.bf16.gmra.mrb[0].mxu0 %v1680
        %v1736 = vpop.f32.mrb[0].mxu0
        %v1737 = vadd.f32 %v1657, %v1736
        %v1738 = vpop.f32.mrb[0].mxu0
        %v1739 = vpop.f32.mrb[0].mxu0
        %v1740 = vadd.f32 %v1657, %v1739
        %v1741 = vpop.f32.mrb[0].mxu0
        %1742 = vmatprep.mubr.bf16.mxu0 0
        %1743 = vmatmul.mubr.bf16.gmra.mrb[0].mxu0 %v1682
        %v1744 = vpop.f32.mrb[0].mxu0
        %v1745 = vadd.f32 %v1657, %v1744
        %v1746 = vpop.f32.mrb[0].mxu0
        %v1747 = vpop.f32.mrb[0].mxu0
        %v1748 = vadd.f32 %v1657, %v1747
        %v1749 = vpop.f32.mrb[0].mxu0
        %1750 = vmatprep.mubr.bf16.mxu0 0
        %1751 = vmatmul.mubr.bf16.gmra.mrb[0].mxu0 %v1684
        %v1752 = vpop.f32.mrb[0].mxu0
        %v1753 = vadd.f32 %v1657, %v1752
        %v1754 = vpop.f32.mrb[0].mxu0
        %v1755 = vpop.f32.mrb[0].mxu0
        %v1756 = vadd.f32 %v1657, %v1755
        %v1757 = vpop.f32.mrb[0].mxu0
        %1758 = vmatprep.mubr.bf16.mxu0 0
        %1759 = vmatmul.mubr.bf16.gmra.mrb[0].mxu0 %v1686
        %v1760 = vpop.f32.mrb[0].mxu0
        %v1761 = vadd.f32 %v1657, %v1760
        %v1762 = vpop.f32.mrb[0].mxu0
        %v1763 = vpop.f32.mrb[0].mxu0
        %v1764 = vadd.f32 %v1657, %v1763
        %v1765 = vpop.f32.mrb[0].mxu0
        %1766 = vmatprep.mubr.bf16.mxu0 0
        %1767 = vmatmul.mubr.bf16.gmra.mrb[0].mxu0 %v1688
        %v1768 = vpop.f32.mrb[0].mxu0
        %v1769 = vadd.f32 %v1657, %v1768
        %v1770 = vpop.f32.mrb[0].mxu0
        %v1771 = vpop.f32.mrb[0].mxu0
        %v1772 = vadd.f32 %v1657, %v1771
        %v1773 = vpop.f32.mrb[0].mxu0
        %1774 = vmatprep.mubr.bf16.mxu0 0
        %1775 = vmatmul.mubr.bf16.gmra.mrb[0].mxu0 %v1690
        %v1776 = vpop.f32.mrb[0].mxu0
        %v1777 = vadd.f32 %v1657, %v1776
        %v1778 = vpop.f32.mrb[0].mxu0
        %v1779 = vpop.f32.mrb[0].mxu0
        %v1780 = vadd.f32 %v1657, %v1779
        %v1781 = vpop.f32.mrb[0].mxu0
        %1782 = vmatprep.mubr.bf16.mxu0 0
        %1783 = vmatmul.mubr.bf16.gmra.mrb[0].mxu0 %v1692
        %v1784 = vpop.f32.mrb[0].mxu0
        %v1785 = vadd.f32 %v1657, %v1784
        %v1786 = vpop.f32.mrb[0].mxu0
        %v1787 = vpop.f32.mrb[0].mxu0
        %v1788 = vadd.f32 %v1657, %v1787
        %v1789 = vpop.f32.mrb[0].mxu0
        %1790 = vdwg.mxu0
        %vm1791 = vcmp.gt.f32.partialorder %v1729, 0.0
        %vm1792 = vcmp.gt.f32.partialorder %v1732, 0.0
        %vm1793 = vcmp.gt.f32.partialorder %v1737, 0.0
        %vm1794 = vcmp.gt.f32.partialorder %v1740, 0.0
        %vm1795 = vcmp.gt.f32.partialorder %v1745, 0.0
        %vm1796 = vcmp.gt.f32.partialorder %v1748, 0.0
        %vm1797 = vcmp.gt.f32.partialorder %v1753, 0.0
        %vm1798 = vcmp.gt.f32.partialorder %v1756, 0.0
        %vm1799 = vcmp.gt.f32.partialorder %v1761, 0.0
        %vm1800 = vcmp.gt.f32.partialorder %v1764, 0.0
        %vm1801 = vcmp.gt.f32.partialorder %v1769, 0.0
        %vm1802 = vcmp.gt.f32.partialorder %v1772, 0.0
        %vm1803 = vcmp.gt.f32.partialorder %v1777, 0.0
        %vm1804 = vcmp.gt.f32.partialorder %v1780, 0.0
        %vm1805 = vcmp.gt.f32.partialorder %v1785, 0.0
        %vm1806 = vcmp.gt.f32.partialorder %v1788, 0.0
        %v1807 = vmul.f32 %v1729, 0.2
        %v1808 = vmul.f32 %v1732, 0.2
        %v1809 = vmul.f32 %v1737, 0.2
        %v1810 = vmul.f32 %v1740, 0.2
        %v1811 = vmul.f32 %v1745, 0.2
        %v1812 = vmul.f32 %v1748, 0.2
        %v1813 = vmul.f32 %v1753, 0.2
        %v1814 = vmul.f32 %v1756, 0.2
        %v1815 = vmul.f32 %v1761, 0.2
        %v1816 = vmul.f32 %v1764, 0.2
        %v1817 = vmul.f32 %v1769, 0.2
        %v1818 = vmul.f32 %v1772, 0.2
        %v1819 = vmul.f32 %v1777, 0.2
        %v1820 = vmul.f32 %v1780, 0.2
        %v1821 = vmul.f32 %v1785, 0.2
        %v1822 = vmul.f32 %v1788, 0.2
        %v1823 = vsel %vm1791, %v1729, %v1807
        %v1824 = vsel %vm1792, %v1732, %v1808
        %v1825 = vsel %vm1793, %v1737, %v1809
        %v1826 = vsel %vm1794, %v1740, %v1810
        %v1827 = vsel %vm1795, %v1745, %v1811
        %v1828 = vsel %vm1796, %v1748, %v1812
        %v1829 = vsel %vm1797, %v1753, %v1813
        %v1830 = vsel %vm1798, %v1756, %v1814
        %v1831 = vsel %vm1799, %v1761, %v1815
        %v1832 = vsel %vm1800, %v1764, %v1816
        %v1833 = vsel %vm1801, %v1769, %v1817
        %v1834 = vsel %vm1802, %v1772, %v1818
        %v1835 = vsel %vm1803, %v1777, %v1819
        %v1836 = vsel %vm1804, %v1780, %v1820
        %v1837 = vsel %vm1805, %v1785, %v1821
        %v1838 = vsel %vm1806, %v1788, %v1822
        %v1839 = vpack.c.bf16 %v1824, %v1823
        %v1840 = vpack.c.bf16 %v1826, %v1825
        %v1841 = vpack.c.bf16 %v1828, %v1827
        %v1842 = vpack.c.bf16 %v1830, %v1829
        %v1843 = vpack.c.bf16 %v1832, %v1831
        %v1844 = vpack.c.bf16 %v1834, %v1833
        %v1845 = vpack.c.bf16 %v1836, %v1835
        %v1846 = vpack.c.bf16 %v1838, %v1837
        %v1848 = vunpack.c.l.b16 %v1839
        %v1849 = vunpack.c.h.b16 %v1839
        %v1850 = vpack.c.b16 %v1848, %v1848
        %v1851 = vpack.c.b16 %v1849, %v1849
        %s1854 = smul.u32 %s185, 2
        %s1855 = smul.addr %s1854, 4
        %s1856 = scalar_lea.vmem %s170, %s1855
        %1857 = vst [vmem:[%s1856] sm:$0xf] %v1850
        %1858 = vst [vmem:[%s1856 + $0x4] sm:$0xf] %v1851
        %v1860 = vunpack.c.l.b16 %v1840
        %v1861 = vunpack.c.h.b16 %v1840
        %v1862 = vpack.c.b16 %v1860, %v1860
        %v1863 = vpack.c.b16 %v1861, %v1861
        %s1866 = smul.u32 %s213, 2
        %s1867 = smul.addr %s1866, 4
        %s1868 = scalar_lea.vmem %s170, %s1867
        %1869 = vst [vmem:[%s1868] sm:$0xf] %v1862
        %1870 = vst [vmem:[%s1868 + $0x4] sm:$0xf] %v1863
        %v1872 = vunpack.c.l.b16 %v1841
        %v1873 = vunpack.c.h.b16 %v1841
        %v1874 = vpack.c.b16 %v1872, %v1872
        %v1875 = vpack.c.b16 %v1873, %v1873
        %s1878 = smul.u32 %s477, 2
        %s1879 = smul.addr %s1878, 4
        %s1880 = scalar_lea.vmem %s170, %s1879
        %1881 = vst [vmem:[%s1880] sm:$0xf] %v1874
        %1882 = vst [vmem:[%s1880 + $0x4] sm:$0xf] %v1875
        %v1884 = vunpack.c.l.b16 %v1842
        %v1885 = vunpack.c.h.b16 %v1842
        %v1886 = vpack.c.b16 %v1884, %v1884
        %v1887 = vpack.c.b16 %v1885, %v1885
        %s1890 = smul.u32 %s645, 2
        %s1891 = smul.addr %s1890, 4
        %s1892 = scalar_lea.vmem %s170, %s1891
        %1893 = vst [vmem:[%s1892] sm:$0xf] %v1886
        %1894 = vst [vmem:[%s1892 + $0x4] sm:$0xf] %v1887
        %v1896 = vunpack.c.l.b16 %v1843
        %v1897 = vunpack.c.h.b16 %v1843
        %v1898 = vpack.c.b16 %v1896, %v1896
        %v1899 = vpack.c.b16 %v1897, %v1897
        %s1902 = smul.u32 %s813, 2
        %s1903 = smul.addr %s1902, 4
        %s1904 = scalar_lea.vmem %s170, %s1903
        %1905 = vst [vmem:[%s1904] sm:$0xf] %v1898
        %1906 = vst [vmem:[%s1904 + $0x4] sm:$0xf] %v1899
        %v1908 = vunpack.c.l.b16 %v1844
        %v1909 = vunpack.c.h.b16 %v1844
        %v1910 = vpack.c.b16 %v1908, %v1908
        %v1911 = vpack.c.b16 %v1909, %v1909
        %s1914 = smul.u32 %s981, 2
        %s1915 = smul.addr %s1914, 4
        %s1916 = scalar_lea.vmem %s170, %s1915
        %1917 = vst [vmem:[%s1916] sm:$0xf] %v1910
        %1918 = vst [vmem:[%s1916 + $0x4] sm:$0xf] %v1911
        %v1920 = vunpack.c.l.b16 %v1845
        %v1921 = vunpack.c.h.b16 %v1845
        %v1922 = vpack.c.b16 %v1920, %v1920
        %v1923 = vpack.c.b16 %v1921, %v1921
        %s1926 = smul.u32 %s1149, 2
        %s1927 = smul.addr %s1926, 4
        %s1928 = scalar_lea.vmem %s170, %s1927
        %1929 = vst [vmem:[%s1928] sm:$0xf] %v1922
        %1930 = vst [vmem:[%s1928 + $0x4] sm:$0xf] %v1923
        %v1932 = vunpack.c.l.b16 %v1846
        %v1933 = vunpack.c.h.b16 %v1846
        %v1934 = vpack.c.b16 %v1932, %v1932
        %v1935 = vpack.c.b16 %v1933, %v1933
        %s1938 = smul.u32 %s1317, 2
        %s1939 = smul.addr %s1938, 4
        %s1940 = scalar_lea.vmem %s170, %s1939
        %1941 = vst [vmem:[%s1940] sm:$0xf] %v1934
        %1942 = vst [vmem:[%s1940 + $0x4] sm:$0xf] %v1935
      $region37: #{discriminator_forward.5} parent=31 // loop_footer
        %s184 = sadd.s32 1, %s180
      $region38: #{discriminator_forward.5} parent=31 // loop_footer_branch
        %179 = sbr.rel target = $region34
      $region39: #{discriminator_forward.5} parent=31 // loop_exit
        _
      %p1943 = scmp.lt.s32.totalorder %s14, 1
      %s1944 = scalar_select %p1943, %s14, 1
      %s1945 = smul.addr %s1944, 32
      %s1946 = smul.addr %s1945, 4
      %s1947 = scalar_lea.vmem %s3, %s1946
      // Predicated region
      $region40: #{discriminator_forward.5} parent=31 // pred_check
        %p1948 = pneg %p100
      $region41: #{discriminator_forward.5} parent=31 // pred_check_branch
        %1950 = sbr.rel (%p1948) target = $region43
      $region42: #{discriminator_forward.5} parent=31 // pred_region
        _
      $region43: #{discriminator_forward.5} parent=31 // pred_fallthru
        _
    $region32: #{discriminator_forward.5} parent=5 // pred_fallthru
      _
    %p1951 = scmp.le.s32.totalorder 2, %s9
    // Predicated region
    $region44: #{discriminator_forward.5} parent=5 // pred_check
      %p1952 = pneg %p1951
    $region45: #{discriminator_forward.5} parent=5 // pred_check_branch
      %1954 = sbr.rel (%p1952) target = $region47
    $region46: #{discriminator_forward.5} parent=5 // pred_region
      %s1955 = ssub.s32 %s9, 2
      // Predicated region
      $region48: #{discriminator_forward.5} parent=46 // pred_check
        %p1956 = pneg %p106
      $region49: #{discriminator_forward.5} parent=46 // pred_check_branch
        %1958 = sbr.rel (%p1956) target = $region51
      $region50: #{discriminator_forward.5} parent=46 // pred_region
        %p1959 = scmp.lt.s32.totalorder %s15, 1
        %s1960 = scalar_select %p1959, %s15, 1
        %s1961 = smul.addr %s1960, 32
        %s1962 = smul.addr %s1961, 4
        %s1963 = scalar_lea.vmem %s3, %s1962
      $region51: #{discriminator_forward.5} parent=46 // pred_fallthru
        _
    $region47: #{discriminator_forward.5} parent=5 // pred_fallthru
      _
  $region6: #{discriminator_forward.5} parent=0 // loop_footer
    %s13 = sadd.s32 1, %s9
  $region7: #{discriminator_forward.5} parent=0 // loop_footer_branch
    %8 = sbr.rel target = $region3
  $region8: #{discriminator_forward.5} parent=0 // loop_exit
    _

// kernel: discriminator_forward.6
$region0: #{discriminator_forward.6}
  #allocation0 [shape = 'u32[]', space=smem, size = 0x4, offset = 0x4, fixed_abs, tag = 'smem constant byte address 0x4 - core index']
  #allocation1 [shape = 'u32[144,128]{1,0:T(1,128)}', space=vmem, size = 0x12000, scoped, tag = 'internal scratch']
  #allocation2 [shape = 'f32[8,8,128]{2,1,0:T(8,128)}', space=vmem, size = 0x8000, scoped, tag = 'scratch operand']
  %s0 = inlined_call_operand.vmem [shape: bf16[2,36,9,8], index: 0, kind: input, shape index: {}]
  %s1 = inlined_call_operand.vmem [shape: bf16[128,128], index: 1, kind: input, shape index: {}]
  %s2 = inlined_call_operand.vmem [shape: bf16[2,8,8,128], index: 2, kind: output, shape index: {}]
  %s3 = sld [smem:[#allocation0]]
  $region48: #{discriminator_forward.6} parent=0
    _
  %s5 = ssub.s32 1, %s3
  %s6 = scalar_select 0, %s5, %s3
  loop: start=0, step=1, limit=4
  $region2: #{discriminator_forward.6} parent=0 // loop_pre_header
    _
  $region3: #{discriminator_forward.6} parent=0 // loop_header
    %s8 = sphi 0, %s12
    %p9 = scmp.ge.s32.totalorder %s8, 4
    %s18 = sphi 0, %s20
    %s21 = sphi 0, %s18
    %s22 = sphi 0, %s21
    %s38 = sphi 0, %s22
    %s42 = sphi 0, %s42
    %s44 = sphi 0, %s42
    %s45 = sphi 0, %s44
    %s59 = sphi 0, %s45
    %s65 = sphi 0, %s67
    %s68 = sphi 0, %s65
    %s69 = sphi 0, %s68
    %s85 = sphi 0, %s69
  $region4: #{discriminator_forward.6} parent=0 // loop_header_branch
    %11 = sbr.rel (%p9) target = $region8
  $region5: #{discriminator_forward.6} parent=0 // loop_body
    %s13 = ssub.s32 %s8, 1
    %s14 = ssub.s32 %s8, 2
    %s15 = sadd.s32 %s8, 1
    %s16 = ssub.s32 %s8, %s15
    %p17 = scmp.eq.s32.totalorder %s16, 0
    %s19 = sadd.s32 %s18, 1
    %s20 = scalar_select %p17, %s18, %s19
    %p23 = pneg %p17
    %p24 = scmp.eq.s32.totalorder %s8, 1
    %p25 = por %p23, %p24
    %p26 = scmp.ne.s32.totalorder %s18, %s21
    %p27 = scmp.eq.s32.totalorder %s8, 0
    %p28 = por %p26, %p27
    %p29 = scmp.ne.s32.totalorder %s18, %s21
    %p30 = scmp.eq.s32.totalorder %s13, 1
    %p31 = por %p29, %p30
    %p32 = scmp.ne.s32.totalorder %s21, %s22
    %p33 = scmp.eq.s32.totalorder %s13, 0
    %p34 = por %p32, %p33
    %p35 = scmp.ne.s32.totalorder %s21, %s22
    %p36 = scmp.eq.s32.totalorder %s14, 1
    %p37 = por %p35, %p36
    %p39 = scmp.ne.s32.totalorder %s22, %s38
    %p40 = scmp.eq.s32.totalorder %s14, 0
    %p41 = por %p39, %p40
    %s43 = sadd.s32 %s42, 1
    %p46 = scmp.eq.s32.totalorder %s8, 1
    %p47 = scmp.ne.s32.totalorder %s42, %s44
    %p48 = scmp.eq.s32.totalorder %s8, 0
    %p49 = por %p47, %p48
    %p50 = scmp.ne.s32.totalorder %s42, %s44
    %p51 = scmp.eq.s32.totalorder %s13, 1
    %p52 = por %p50, %p51
    %p53 = scmp.ne.s32.totalorder %s44, %s45
    %p54 = scmp.eq.s32.totalorder %s13, 0
    %p55 = por %p53, %p54
    %p56 = scmp.ne.s32.totalorder %s44, %s45
    %p57 = scmp.eq.s32.totalorder %s14, 1
    %p58 = por %p56, %p57
    %p60 = scmp.ne.s32.totalorder %s45, %s59
    %p61 = scmp.eq.s32.totalorder %s14, 0
    %p62 = por %p60, %p61
    %s63 = ssub.s32 %s8, %s15
    %p64 = scmp.eq.s32.totalorder %s63, 0
    %s66 = sadd.s32 %s65, 1
    %s67 = scalar_select %p64, %s65, %s66
    %p70 = pneg %p64
    %p71 = scmp.eq.s32.totalorder %s8, 1
    %p72 = por %p70, %p71
    %p73 = scmp.ne.s32.totalorder %s65, %s68
    %p74 = scmp.eq.s32.totalorder %s8, 0
    %p75 = por %p73, %p74
    %p76 = scmp.ne.s32.totalorder %s65, %s68
    %p77 = scmp.eq.s32.totalorder %s13, 1
    %p78 = por %p76, %p77
    %p79 = scmp.ne.s32.totalorder %s68, %s69
    %p80 = scmp.eq.s32.totalorder %s13, 0
    %p81 = por %p79, %p80
    %p82 = scmp.ne.s32.totalorder %s68, %s69
    %p83 = scmp.eq.s32.totalorder %s14, 1
    %p84 = por %p82, %p83
    %p86 = scmp.ne.s32.totalorder %s69, %s85
    %p87 = scmp.eq.s32.totalorder %s14, 0
    %p88 = por %p86, %p87
    %p89 = scmp.le.s32.totalorder 1, %s8
    %p90 = scmp.lt.s32.totalorder %s8, 3
    %p91 = pnand %p89, %p90
    %p92 = pneg %p91
    // Predicated region
    $region9: #{discriminator_forward.6} parent=5 // pred_check
      _
    $region10: #{discriminator_forward.6} parent=5 // pred_check_branch
      %94 = sbr.rel (%p91) target = $region12
    $region11: #{discriminator_forward.6} parent=5 // pred_region
      %s95 = ssub.s32 %s8, 1
      // Predicated region
      $region13: #{discriminator_forward.6} parent=11 // pred_check
        %p96 = pneg %p55
      $region14: #{discriminator_forward.6} parent=11 // pred_check_branch
        %98 = sbr.rel (%p96) target = $region16
      $region15: #{discriminator_forward.6} parent=11 // pred_region
        _
      $region16: #{discriminator_forward.6} parent=11 // pred_fallthru
        _
    $region12: #{discriminator_forward.6} parent=5 // pred_fallthru
      _
    %p99 = scmp.lt.s32.totalorder %s8, 2
    // Predicated region
    $region17: #{discriminator_forward.6} parent=5 // pred_check
      %p100 = pneg %p99
    $region18: #{discriminator_forward.6} parent=5 // pred_check_branch
      %102 = sbr.rel (%p100) target = $region20
    $region19: #{discriminator_forward.6} parent=5 // pred_region
      // Predicated region
      $region21: #{discriminator_forward.6} parent=19 // pred_check
        %p103 = pneg %p28
      $region22: #{discriminator_forward.6} parent=19 // pred_check_branch
        %105 = sbr.rel (%p103) target = $region24
      $region23: #{discriminator_forward.6} parent=19 // pred_region
        %p106 = scmp.lt.s32.totalorder %s8, 1
        %s107 = scalar_select %p106, %s8, 1
        %s108 = smul.addr %s107, 72
        %s109 = smul.addr %s108, 4
        %s110 = scalar_lea.vmem %s0, %s109
      $region24: #{discriminator_forward.6} parent=19 // pred_fallthru
        _
    $region20: #{discriminator_forward.6} parent=5 // pred_fallthru
      _
    %p111 = scmp.le.s32.totalorder 1, %s8
    %p112 = scmp.lt.s32.totalorder %s8, 3
    %p113 = pnand %p111, %p112
    %p114 = pneg %p113
    // Predicated region
    $region25: #{discriminator_forward.6} parent=5 // pred_check
      _
    $region26: #{discriminator_forward.6} parent=5 // pred_check_branch
      %116 = sbr.rel (%p113) target = $region28
    $region27: #{discriminator_forward.6} parent=5 // pred_region
      %s117 = ssub.s32 %s8, 1
      %p118 = scmp.lt.s32.totalorder %s13, 1
      %s119 = scalar_select %p118, %s13, 1
      %s120 = smul.addr %s119, 72
      %s121 = smul.addr %s120, 4
      %s122 = scalar_lea.vmem %s0, %s121
      %p123 = pneg %p34
      %p124 = pneg %p31
      %p125 = pneg %p55
      %p126 = pneg %p52
      %p127 = pneg %p81
      %p128 = pneg %p78
      %p129 = scmp.lt.s32.totalorder %s13, 1
      %s130 = scalar_select %p129, %s13, 1
      %s131 = smul.addr %s130, 8
      %s132 = smul.addr %s131, 4
      %s133 = scalar_lea.vmem %s2, %s132
      %p134 = scmp.lt.s32.totalorder %s13, 1
      %s135 = scalar_select %p134, %s13, 1
      %s136 = smul.addr %s135, 72
      %s137 = smul.addr %s136, 4
      %s138 = scalar_lea.vmem %s0, %s137
      %p139 = scmp.lt.s32.totalorder %s13, 1
      %s140 = scalar_select %p139, %s13, 1
      %s141 = smul.addr %s140, 8
      %s142 = smul.addr %s141, 4
      %s143 = scalar_lea.vmem %s2, %s142
      %v145 = vld [vmem:[%s1] sm:$0xf]
      %v146 = vld [vmem:[%s1 + $0x4] sm:$0xf]
      %v147 = vld [vmem:[%s1 + $0x8] sm:$0xf]
      %v148 = vld [vmem:[%s1 + $0xc] sm:$0xf]
      %v149 = vld [vmem:[%s1 + $0x10] sm:$0xf]
      %v150 = vld [vmem:[%s1 + $0x14] sm:$0xf]
      %v151 = vld [vmem:[%s1 + $0x18] sm:$0xf]
      %v152 = vld [vmem:[%s1 + $0x1c] sm:$0xf]
      %v153 = vld [vmem:[%s1 + $0x20] sm:$0xf]
      %v154 = vld [vmem:[%s1 + $0x24] sm:$0xf]
      %v155 = vld [vmem:[%s1 + $0x28] sm:$0xf]
      %v156 = vld [vmem:[%s1 + $0x2c] sm:$0xf]
      %v157 = vld [vmem:[%s1 + $0x30] sm:$0xf]
      %v158 = vld [vmem:[%s1 + $0x34] sm:$0xf]
      %v159 = vld [vmem:[%s1 + $0x38] sm:$0xf]
      %v160 = vld [vmem:[%s1 + $0x3c] sm:$0xf]
      %v161 = vld [vmem:[%s138] sm:$0xf]
      %v162 = vld [vmem:[%s138 + $0x4] sm:$0x1]
      %s163 = scalar_lea.vmem %s138, 72
      %v164 = vld [vmem:[%s163] sm:$0xf]
      %v165 = vld [vmem:[%s163 + $0x4] sm:$0x1]
      %s166 = scalar_lea.vmem %s138, 144
      %v167 = vld [vmem:[%s166] sm:$0xf]
      %v168 = vld [vmem:[%s166 + $0x4] sm:$0x1]
      %s169 = scalar_lea.vmem %s138, 216
      %v170 = vld [vmem:[%s169] sm:$0xf]
      %v171 = vld [vmem:[%s169 + $0x4] sm:$0x1]
      %s172 = scalar_lea.vmem %s138, 8
      %v173 = vld [vmem:[%s172] sm:$0xf]
      %v174 = vld [vmem:[%s172 + $0x4] sm:$0x1]
      %s175 = scalar_lea.vmem %s138, 80
      %v176 = vld [vmem:[%s175] sm:$0xf]
      %v177 = vld [vmem:[%s175 + $0x4] sm:$0x1]
      %s178 = scalar_lea.vmem %s138, 152
      %v179 = vld [vmem:[%s178] sm:$0xf]
      %v180 = vld [vmem:[%s178 + $0x4] sm:$0x1]
      %s181 = scalar_lea.vmem %s138, 224
      %v182 = vld [vmem:[%s181] sm:$0xf]
      %v183 = vld [vmem:[%s181 + $0x4] sm:$0x1]
      %v185 = vunpack.c.l.b16 %v164
      %v186 = vpack.c.b16 %v185, %v185
      %187 = vrot.lane.b32.xlu0 %v186, 8
      %v188 = vpop.permute.xlu0 %187
      %v191 = vunpack.c.l.b16 %v161
      %v192 = vunpack.c.l.b16 %v162
      %v193 = vpack.c.b16 %v192, %v191
      %v195 = vshrl.u32 %v193, 16
      %v197 = vshll.u32 %v193, 16
      %v199 = vrot.slane %v197, 1
      %v200 = vor.u32 %v195, %v199
      %201 = vrot.lane.b32.xlu0 %v200, 16
      %v202 = vpop.permute.xlu0 %201
      %v204 = vunpack.c.l.b16 %v165
      %v205 = vpack.c.b16 %v204, %v185
      %v207 = vshrl.u32 %v205, 16
      %v209 = vshll.u32 %v205, 16
      %v211 = vrot.slane %v209, 1
      %v212 = vor.u32 %v207, %v211
      %213 = vrot.lane.b32.xlu0 %v212, 24
      %v214 = vpop.permute.xlu0 %213
      %v216 = vunpack.c.l.b16 %v167
      %v217 = vpack.c.b16 %v216, %v216
      %218 = vrot.lane.b32.xlu0 %v217, 32
      %v219 = vpop.permute.xlu0 %218
      %v221 = vunpack.c.l.b16 %v170
      %v222 = vpack.c.b16 %v221, %v221
      %223 = vrot.lane.b32.xlu0 %v222, 40
      %v224 = vpop.permute.xlu0 %223
      %v226 = vunpack.c.l.b16 %v168
      %v227 = vpack.c.b16 %v226, %v216
      %v229 = vshrl.u32 %v227, 16
      %v231 = vshll.u32 %v227, 16
      %v233 = vrot.slane %v231, 1
      %v234 = vor.u32 %v229, %v233
      %235 = vrot.lane.b32.xlu0 %v234, 48
      %v236 = vpop.permute.xlu0 %235
      %v238 = vunpack.c.l.b16 %v171
      %v239 = vpack.c.b16 %v238, %v221
      %v241 = vshrl.u32 %v239, 16
      %v243 = vshll.u32 %v239, 16
      %v245 = vrot.slane %v243, 1
      %v246 = vor.u32 %v241, %v245
      %247 = vrot.lane.b32.xlu0 %v246, 56
      %v248 = vpop.permute.xlu0 %247
      %v250 = vunpack.c.l.b16 %v173
      %v251 = vpack.c.b16 %v250, %v250
      %252 = vrot.lane.b32.xlu0 %v251, 64
      %v253 = vpop.permute.xlu0 %252
      %v255 = vunpack.c.l.b16 %v176
      %v256 = vpack.c.b16 %v255, %v255
      %257 = vrot.lane.b32.xlu0 %v256, 72
      %v258 = vpop.permute.xlu0 %257
      %v260 = vunpack.c.l.b16 %v174
      %v261 = vpack.c.b16 %v260, %v250
      %v263 = vshrl.u32 %v261, 16
      %v265 = vshll.u32 %v261, 16
      %v267 = vrot.slane %v265, 1
      %v268 = vor.u32 %v263, %v267
      %269 = vrot.lane.b32.xlu0 %v268, 80
      %v270 = vpop.permute.xlu0 %269
      %v272 = vunpack.c.l.b16 %v177
      %v273 = vpack.c.b16 %v272, %v255
      %v275 = vshrl.u32 %v273, 16
      %v277 = vshll.u32 %v273, 16
      %v279 = vrot.slane %v277, 1
      %v280 = vor.u32 %v275, %v279
      %281 = vrot.lane.b32.xlu0 %v280, 88
      %v282 = vpop.permute.xlu0 %281
      %v284 = vunpack.c.l.b16 %v179
      %v285 = vpack.c.b16 %v284, %v284
      %286 = vrot.lane.b32.xlu0 %v285, 96
      %v287 = vpop.permute.xlu0 %286
      %v289 = vunpack.c.l.b16 %v182
      %v290 = vpack.c.b16 %v289, %v289
      %291 = vrot.lane.b32.xlu0 %v290, 104
      %v292 = vpop.permute.xlu0 %291
      %v294 = vunpack.c.l.b16 %v180
      %v295 = vpack.c.b16 %v294, %v284
      %v297 = vshrl.u32 %v295, 16
      %v299 = vshll.u32 %v295, 16
      %v301 = vrot.slane %v299, 1
      %v302 = vor.u32 %v297, %v301
      %303 = vrot.lane.b32.xlu0 %v302, 112
      %v304 = vpop.permute.xlu0 %303
      %v306 = vunpack.c.l.b16 %v183
      %v307 = vpack.c.b16 %v306, %v289
      %v309 = vshrl.u32 %v307, 16
      %v311 = vshll.u32 %v307, 16
      %v313 = vrot.slane %v311, 1
      %v314 = vor.u32 %v309, %v313
      %315 = vrot.lane.b32.xlu0 %v314, 120
      %v316 = vpop.permute.xlu0 %315
      %vm317 = vcmask 64512
      %v320 = vsel %vm317, %v161, %v188
      %vm321 = vcmask 130048
      %v323 = vsel %vm321, %v320, %v202
      %vm324 = vcmask 195584
      %v326 = vsel %vm324, %v323, %v214
      %vm327 = vcmask 261120
      %v329 = vsel %vm327, %v326, %v219
      %vm330 = vcmask 326656
      %v332 = vsel %vm330, %v329, %v224
      %vm333 = vcmask 392192
      %v335 = vsel %vm333, %v332, %v236
      %vm336 = vcmask 457728
      %v338 = vsel %vm336, %v335, %v248
      %vm339 = vcmask 523264
      %v341 = vsel %vm339, %v338, %v253
      %vm342 = vcmask 588800
      %v344 = vsel %vm342, %v341, %v258
      %vm345 = vcmask 654336
      %v347 = vsel %vm345, %v344, %v270
      %vm348 = vcmask 719872
      %v350 = vsel %vm348, %v347, %v282
      %vm351 = vcmask 785408
      %v353 = vsel %vm351, %v350, %v287
      %vm354 = vcmask 850944
      %v356 = vsel %vm354, %v353, %v292
      %vm357 = vcmask 916480
      %v359 = vsel %vm357, %v356, %v304
      %vm360 = vcmask 982016
      %v362 = vsel %vm360, %v359, %v316
      %s363 = scalar_lea.vmem %s138, 16
      %v364 = vld [vmem:[%s363] sm:$0xf]
      %v365 = vld [vmem:[%s363 + $0x4] sm:$0x1]
      %s366 = scalar_lea.vmem %s138, 88
      %v367 = vld [vmem:[%s366] sm:$0xf]
      %v368 = vld [vmem:[%s366 + $0x4] sm:$0x1]
      %s369 = scalar_lea.vmem %s138, 160
      %v370 = vld [vmem:[%s369] sm:$0xf]
      %v371 = vld [vmem:[%s369 + $0x4] sm:$0x1]
      %s372 = scalar_lea.vmem %s138, 232
      %v373 = vld [vmem:[%s372] sm:$0xf]
      %v374 = vld [vmem:[%s372 + $0x4] sm:$0x1]
      %375 = vrot.lane.b32.xlu0 %v256, 8
      %v376 = vpop.permute.xlu0 %375
      %377 = vrot.lane.b32.xlu0 %v268, 16
      %v378 = vpop.permute.xlu0 %377
      %379 = vrot.lane.b32.xlu0 %v280, 24
      %v380 = vpop.permute.xlu0 %379
      %381 = vrot.lane.b32.xlu0 %v285, 32
      %v382 = vpop.permute.xlu0 %381
      %383 = vrot.lane.b32.xlu0 %v290, 40
      %v384 = vpop.permute.xlu0 %383
      %385 = vrot.lane.b32.xlu0 %v302, 48
      %v386 = vpop.permute.xlu0 %385
      %387 = vrot.lane.b32.xlu0 %v314, 56
      %v388 = vpop.permute.xlu0 %387
      %v390 = vunpack.c.l.b16 %v364
      %v391 = vpack.c.b16 %v390, %v390
      %392 = vrot.lane.b32.xlu0 %v391, 64
      %v393 = vpop.permute.xlu0 %392
      %v395 = vunpack.c.l.b16 %v367
      %v396 = vpack.c.b16 %v395, %v395
      %397 = vrot.lane.b32.xlu0 %v396, 72
      %v398 = vpop.permute.xlu0 %397
      %v400 = vunpack.c.l.b16 %v365
      %v401 = vpack.c.b16 %v400, %v390
      %v403 = vshrl.u32 %v401, 16
      %v405 = vshll.u32 %v401, 16
      %v407 = vrot.slane %v405, 1
      %v408 = vor.u32 %v403, %v407
      %409 = vrot.lane.b32.xlu0 %v408, 80
      %v410 = vpop.permute.xlu0 %409
      %v412 = vunpack.c.l.b16 %v368
      %v413 = vpack.c.b16 %v412, %v395
      %v415 = vshrl.u32 %v413, 16
      %v417 = vshll.u32 %v413, 16
      %v419 = vrot.slane %v417, 1
      %v420 = vor.u32 %v415, %v419
      %421 = vrot.lane.b32.xlu0 %v420, 88
      %v422 = vpop.permute.xlu0 %421
      %v424 = vunpack.c.l.b16 %v370
      %v425 = vpack.c.b16 %v424, %v424
      %426 = vrot.lane.b32.xlu0 %v425, 96
      %v427 = vpop.permute.xlu0 %426
      %v429 = vunpack.c.l.b16 %v373
      %v430 = vpack.c.b16 %v429, %v429
      %431 = vrot.lane.b32.xlu0 %v430, 104
      %v432 = vpop.permute.xlu0 %431
      %v434 = vunpack.c.l.b16 %v371
      %v435 = vpack.c.b16 %v434, %v424
      %v437 = vshrl.u32 %v435, 16
      %v439 = vshll.u32 %v435, 16
      %v441 = vrot.slane %v439, 1
      %v442 = vor.u32 %v437, %v441
      %443 = vrot.lane.b32.xlu0 %v442, 112
      %v444 = vpop.permute.xlu0 %443
      %v446 = vunpack.c.l.b16 %v374
      %v447 = vpack.c.b16 %v446, %v429
      %v449 = vshrl.u32 %v447, 16
      %v451 = vshll.u32 %v447, 16
      %v453 = vrot.slane %v451, 1
      %v454 = vor.u32 %v449, %v453
      %455 = vrot.lane.b32.xlu0 %v454, 120
      %v456 = vpop.permute.xlu0 %455
      %v459 = vsel %vm317, %v173, %v376
      %v461 = vsel %vm321, %v459, %v378
      %v463 = vsel %vm324, %v461, %v380
      %v465 = vsel %vm327, %v463, %v382
      %v467 = vsel %vm330, %v465, %v384
      %v469 = vsel %vm333, %v467, %v386
      %v471 = vsel %vm336, %v469, %v388
      %v473 = vsel %vm339, %v471, %v393
      %v475 = vsel %vm342, %v473, %v398
      %v477 = vsel %vm345, %v475, %v410
      %v479 = vsel %vm348, %v477, %v422
      %v481 = vsel %vm351, %v479, %v427
      %v483 = vsel %vm354, %v481, %v432
      %v485 = vsel %vm357, %v483, %v444
      %v487 = vsel %vm360, %v485, %v456
      %s488 = scalar_lea.vmem %s138, 24
      %v489 = vld [vmem:[%s488] sm:$0xf]
      %v490 = vld [vmem:[%s488 + $0x4] sm:$0x1]
      %s491 = scalar_lea.vmem %s138, 96
      %v492 = vld [vmem:[%s491] sm:$0xf]
      %v493 = vld [vmem:[%s491 + $0x4] sm:$0x1]
      %s494 = scalar_lea.vmem %s138, 168
      %v495 = vld [vmem:[%s494] sm:$0xf]
      %v496 = vld [vmem:[%s494 + $0x4] sm:$0x1]
      %s497 = scalar_lea.vmem %s138, 240
      %v498 = vld [vmem:[%s497] sm:$0xf]
      %v499 = vld [vmem:[%s497 + $0x4] sm:$0x1]
      %500 = vrot.lane.b32.xlu0 %v396, 8
      %v501 = vpop.permute.xlu0 %500
      %502 = vrot.lane.b32.xlu0 %v408, 16
      %v503 = vpop.permute.xlu0 %502
      %504 = vrot.lane.b32.xlu0 %v420, 24
      %v505 = vpop.permute.xlu0 %504
      %506 = vrot.lane.b32.xlu0 %v425, 32
      %v507 = vpop.permute.xlu0 %506
      %508 = vrot.lane.b32.xlu0 %v430, 40
      %v509 = vpop.permute.xlu0 %508
      %510 = vrot.lane.b32.xlu0 %v442, 48
      %v511 = vpop.permute.xlu0 %510
      %512 = vrot.lane.b32.xlu0 %v454, 56
      %v513 = vpop.permute.xlu0 %512
      %v515 = vunpack.c.l.b16 %v489
      %v516 = vpack.c.b16 %v515, %v515
      %517 = vrot.lane.b32.xlu0 %v516, 64
      %v518 = vpop.permute.xlu0 %517
      %v520 = vunpack.c.l.b16 %v492
      %v521 = vpack.c.b16 %v520, %v520
      %522 = vrot.lane.b32.xlu0 %v521, 72
      %v523 = vpop.permute.xlu0 %522
      %v525 = vunpack.c.l.b16 %v490
      %v526 = vpack.c.b16 %v525, %v515
      %v528 = vshrl.u32 %v526, 16
      %v530 = vshll.u32 %v526, 16
      %v532 = vrot.slane %v530, 1
      %v533 = vor.u32 %v528, %v532
      %534 = vrot.lane.b32.xlu0 %v533, 80
      %v535 = vpop.permute.xlu0 %534
      %v537 = vunpack.c.l.b16 %v493
      %v538 = vpack.c.b16 %v537, %v520
      %v540 = vshrl.u32 %v538, 16
      %v542 = vshll.u32 %v538, 16
      %v544 = vrot.slane %v542, 1
      %v545 = vor.u32 %v540, %v544
      %546 = vrot.lane.b32.xlu0 %v545, 88
      %v547 = vpop.permute.xlu0 %546
      %v549 = vunpack.c.l.b16 %v495
      %v550 = vpack.c.b16 %v549, %v549
      %551 = vrot.lane.b32.xlu0 %v550, 96
      %v552 = vpop.permute.xlu0 %551
      %v554 = vunpack.c.l.b16 %v498
      %v555 = vpack.c.b16 %v554, %v554
      %556 = vrot.lane.b32.xlu0 %v555, 104
      %v557 = vpop.permute.xlu0 %556
      %v559 = vunpack.c.l.b16 %v496
      %v560 = vpack.c.b16 %v559, %v549
      %v562 = vshrl.u32 %v560, 16
      %v564 = vshll.u32 %v560, 16
      %v566 = vrot.slane %v564, 1
      %v567 = vor.u32 %v562, %v566
      %568 = vrot.lane.b32.xlu0 %v567, 112
      %v569 = vpop.permute.xlu0 %568
      %v571 = vunpack.c.l.b16 %v499
      %v572 = vpack.c.b16 %v571, %v554
      %v574 = vshrl.u32 %v572, 16
      %v576 = vshll.u32 %v572, 16
      %v578 = vrot.slane %v576, 1
      %v579 = vor.u32 %v574, %v578
      %580 = vrot.lane.b32.xlu0 %v579, 120
      %v581 = vpop.permute.xlu0 %580
      %v584 = vsel %vm317, %v364, %v501
      %v586 = vsel %vm321, %v584, %v503
      %v588 = vsel %vm324, %v586, %v505
      %v590 = vsel %vm327, %v588, %v507
      %v592 = vsel %vm330, %v590, %v509
      %v594 = vsel %vm333, %v592, %v511
      %v596 = vsel %vm336, %v594, %v513
      %v598 = vsel %vm339, %v596, %v518
      %v600 = vsel %vm342, %v598, %v523
      %v602 = vsel %vm345, %v600, %v535
      %v604 = vsel %vm348, %v602, %v547
      %v606 = vsel %vm351, %v604, %v552
      %v608 = vsel %vm354, %v606, %v557
      %v610 = vsel %vm357, %v608, %v569
      %v612 = vsel %vm360, %v610, %v581
      %s613 = scalar_lea.vmem %s138, 32
      %v614 = vld [vmem:[%s613] sm:$0xf]
      %v615 = vld [vmem:[%s613 + $0x4] sm:$0x1]
      %s616 = scalar_lea.vmem %s138, 104
      %v617 = vld [vmem:[%s616] sm:$0xf]
      %v618 = vld [vmem:[%s616 + $0x4] sm:$0x1]
      %s619 = scalar_lea.vmem %s138, 176
      %v620 = vld [vmem:[%s619] sm:$0xf]
      %v621 = vld [vmem:[%s619 + $0x4] sm:$0x1]
      %s622 = scalar_lea.vmem %s138, 248
      %v623 = vld [vmem:[%s622] sm:$0xf]
      %v624 = vld [vmem:[%s622 + $0x4] sm:$0x1]
      %625 = vrot.lane.b32.xlu0 %v521, 8
      %v626 = vpop.permute.xlu0 %625
      %627 = vrot.lane.b32.xlu0 %v533, 16
      %v628 = vpop.permute.xlu0 %627
      %629 = vrot.lane.b32.xlu0 %v545, 24
      %v630 = vpop.permute.xlu0 %629
      %631 = vrot.lane.b32.xlu0 %v550, 32
      %v632 = vpop.permute.xlu0 %631
      %633 = vrot.lane.b32.xlu0 %v555, 40
      %v634 = vpop.permute.xlu0 %633
      %635 = vrot.lane.b32.xlu0 %v567, 48
      %v636 = vpop.permute.xlu0 %635
      %637 = vrot.lane.b32.xlu0 %v579, 56
      %v638 = vpop.permute.xlu0 %637
      %v640 = vunpack.c.l.b16 %v614
      %v641 = vpack.c.b16 %v640, %v640
      %642 = vrot.lane.b32.xlu0 %v641, 64
      %v643 = vpop.permute.xlu0 %642
      %v645 = vunpack.c.l.b16 %v617
      %v646 = vpack.c.b16 %v645, %v645
      %647 = vrot.lane.b32.xlu0 %v646, 72
      %v648 = vpop.permute.xlu0 %647
      %v650 = vunpack.c.l.b16 %v615
      %v651 = vpack.c.b16 %v650, %v640
      %v653 = vshrl.u32 %v651, 16
      %v655 = vshll.u32 %v651, 16
      %v657 = vrot.slane %v655, 1
      %v658 = vor.u32 %v653, %v657
      %659 = vrot.lane.b32.xlu0 %v658, 80
      %v660 = vpop.permute.xlu0 %659
      %v662 = vunpack.c.l.b16 %v618
      %v663 = vpack.c.b16 %v662, %v645
      %v665 = vshrl.u32 %v663, 16
      %v667 = vshll.u32 %v663, 16
      %v669 = vrot.slane %v667, 1
      %v670 = vor.u32 %v665, %v669
      %671 = vrot.lane.b32.xlu0 %v670, 88
      %v672 = vpop.permute.xlu0 %671
      %v674 = vunpack.c.l.b16 %v620
      %v675 = vpack.c.b16 %v674, %v674
      %676 = vrot.lane.b32.xlu0 %v675, 96
      %v677 = vpop.permute.xlu0 %676
      %v679 = vunpack.c.l.b16 %v623
      %v680 = vpack.c.b16 %v679, %v679
      %681 = vrot.lane.b32.xlu0 %v680, 104
      %v682 = vpop.permute.xlu0 %681
      %v684 = vunpack.c.l.b16 %v621
      %v685 = vpack.c.b16 %v684, %v674
      %v687 = vshrl.u32 %v685, 16
      %v689 = vshll.u32 %v685, 16
      %v691 = vrot.slane %v689, 1
      %v692 = vor.u32 %v687, %v691
      %693 = vrot.lane.b32.xlu0 %v692, 112
      %v694 = vpop.permute.xlu0 %693
      %v696 = vunpack.c.l.b16 %v624
      %v697 = vpack.c.b16 %v696, %v679
      %v699 = vshrl.u32 %v697, 16
      %v701 = vshll.u32 %v697, 16
      %v703 = vrot.slane %v701, 1
      %v704 = vor.u32 %v699, %v703
      %705 = vrot.lane.b32.xlu0 %v704, 120
      %v706 = vpop.permute.xlu0 %705
      %v709 = vsel %vm317, %v489, %v626
      %v711 = vsel %vm321, %v709, %v628
      %v713 = vsel %vm324, %v711, %v630
      %v715 = vsel %vm327, %v713, %v632
      %v717 = vsel %vm330, %v715, %v634
      %v719 = vsel %vm333, %v717, %v636
      %v721 = vsel %vm336, %v719, %v638
      %v723 = vsel %vm339, %v721, %v643
      %v725 = vsel %vm342, %v723, %v648
      %v727 = vsel %vm345, %v725, %v660
      %v729 = vsel %vm348, %v727, %v672
      %v731 = vsel %vm351, %v729, %v677
      %v733 = vsel %vm354, %v731, %v682
      %v735 = vsel %vm357, %v733, %v694
      %v737 = vsel %vm360, %v735, %v706
      %s738 = scalar_lea.vmem %s138, 40
      %v739 = vld [vmem:[%s738] sm:$0xf]
      %v740 = vld [vmem:[%s738 + $0x4] sm:$0x1]
      %s741 = scalar_lea.vmem %s138, 112
      %v742 = vld [vmem:[%s741] sm:$0xf]
      %v743 = vld [vmem:[%s741 + $0x4] sm:$0x1]
      %s744 = scalar_lea.vmem %s138, 184
      %v745 = vld [vmem:[%s744] sm:$0xf]
      %v746 = vld [vmem:[%s744 + $0x4] sm:$0x1]
      %s747 = scalar_lea.vmem %s138, 256
      %v748 = vld [vmem:[%s747] sm:$0xf]
      %v749 = vld [vmem:[%s747 + $0x4] sm:$0x1]
      %750 = vrot.lane.b32.xlu0 %v646, 8
      %v751 = vpop.permute.xlu0 %750
      %752 = vrot.lane.b32.xlu0 %v658, 16
      %v753 = vpop.permute.xlu0 %752
      %754 = vrot.lane.b32.xlu0 %v670, 24
      %v755 = vpop.permute.xlu0 %754
      %756 = vrot.lane.b32.xlu0 %v675, 32
      %v757 = vpop.permute.xlu0 %756
      %758 = vrot.lane.b32.xlu0 %v680, 40
      %v759 = vpop.permute.xlu0 %758
      %760 = vrot.lane.b32.xlu0 %v692, 48
      %v761 = vpop.permute.xlu0 %760
      %762 = vrot.lane.b32.xlu0 %v704, 56
      %v763 = vpop.permute.xlu0 %762
      %v765 = vunpack.c.l.b16 %v739
      %v766 = vpack.c.b16 %v765, %v765
      %767 = vrot.lane.b32.xlu0 %v766, 64
      %v768 = vpop.permute.xlu0 %767
      %v770 = vunpack.c.l.b16 %v742
      %v771 = vpack.c.b16 %v770, %v770
      %772 = vrot.lane.b32.xlu0 %v771, 72
      %v773 = vpop.permute.xlu0 %772
      %v775 = vunpack.c.l.b16 %v740
      %v776 = vpack.c.b16 %v775, %v765
      %v778 = vshrl.u32 %v776, 16
      %v780 = vshll.u32 %v776, 16
      %v782 = vrot.slane %v780, 1
      %v783 = vor.u32 %v778, %v782
      %784 = vrot.lane.b32.xlu0 %v783, 80
      %v785 = vpop.permute.xlu0 %784
      %v787 = vunpack.c.l.b16 %v743
      %v788 = vpack.c.b16 %v787, %v770
      %v790 = vshrl.u32 %v788, 16
      %v792 = vshll.u32 %v788, 16
      %v794 = vrot.slane %v792, 1
      %v795 = vor.u32 %v790, %v794
      %796 = vrot.lane.b32.xlu0 %v795, 88
      %v797 = vpop.permute.xlu0 %796
      %v799 = vunpack.c.l.b16 %v745
      %v800 = vpack.c.b16 %v799, %v799
      %801 = vrot.lane.b32.xlu0 %v800, 96
      %v802 = vpop.permute.xlu0 %801
      %v804 = vunpack.c.l.b16 %v748
      %v805 = vpack.c.b16 %v804, %v804
      %806 = vrot.lane.b32.xlu0 %v805, 104
      %v807 = vpop.permute.xlu0 %806
      %v809 = vunpack.c.l.b16 %v746
      %v810 = vpack.c.b16 %v809, %v799
      %v812 = vshrl.u32 %v810, 16
      %v814 = vshll.u32 %v810, 16
      %v816 = vrot.slane %v814, 1
      %v817 = vor.u32 %v812, %v816
      %818 = vrot.lane.b32.xlu0 %v817, 112
      %v819 = vpop.permute.xlu0 %818
      %v821 = vunpack.c.l.b16 %v749
      %v822 = vpack.c.b16 %v821, %v804
      %v824 = vshrl.u32 %v822, 16
      %v826 = vshll.u32 %v822, 16
      %v828 = vrot.slane %v826, 1
      %v829 = vor.u32 %v824, %v828
      %830 = vrot.lane.b32.xlu0 %v829, 120
      %v831 = vpop.permute.xlu0 %830
      %v834 = vsel %vm317, %v614, %v751
      %v836 = vsel %vm321, %v834, %v753
      %v838 = vsel %vm324, %v836, %v755
      %v840 = vsel %vm327, %v838, %v757
      %v842 = vsel %vm330, %v840, %v759
      %v844 = vsel %vm333, %v842, %v761
      %v846 = vsel %vm336, %v844, %v763
      %v848 = vsel %vm339, %v846, %v768
      %v850 = vsel %vm342, %v848, %v773
      %v852 = vsel %vm345, %v850, %v785
      %v854 = vsel %vm348, %v852, %v797
      %v856 = vsel %vm351, %v854, %v802
      %v858 = vsel %vm354, %v856, %v807
      %v860 = vsel %vm357, %v858, %v819
      %v862 = vsel %vm360, %v860, %v831
      %s863 = scalar_lea.vmem %s138, 48
      %v864 = vld [vmem:[%s863] sm:$0xf]
      %v865 = vld [vmem:[%s863 + $0x4] sm:$0x1]
      %s866 = scalar_lea.vmem %s138, 120
      %v867 = vld [vmem:[%s866] sm:$0xf]
      %v868 = vld [vmem:[%s866 + $0x4] sm:$0x1]
      %s869 = scalar_lea.vmem %s138, 192
      %v870 = vld [vmem:[%s869] sm:$0xf]
      %v871 = vld [vmem:[%s869 + $0x4] sm:$0x1]
      %s872 = scalar_lea.vmem %s138, 264
      %v873 = vld [vmem:[%s872] sm:$0xf]
      %v874 = vld [vmem:[%s872 + $0x4] sm:$0x1]
      %875 = vrot.lane.b32.xlu0 %v771, 8
      %v876 = vpop.permute.xlu0 %875
      %877 = vrot.lane.b32.xlu0 %v783, 16
      %v878 = vpop.permute.xlu0 %877
      %879 = vrot.lane.b32.xlu0 %v795, 24
      %v880 = vpop.permute.xlu0 %879
      %881 = vrot.lane.b32.xlu0 %v800, 32
      %v882 = vpop.permute.xlu0 %881
      %883 = vrot.lane.b32.xlu0 %v805, 40
      %v884 = vpop.permute.xlu0 %883
      %885 = vrot.lane.b32.xlu0 %v817, 48
      %v886 = vpop.permute.xlu0 %885
      %887 = vrot.lane.b32.xlu0 %v829, 56
      %v888 = vpop.permute.xlu0 %887
      %v890 = vunpack.c.l.b16 %v864
      %v891 = vpack.c.b16 %v890, %v890
      %892 = vrot.lane.b32.xlu0 %v891, 64
      %v893 = vpop.permute.xlu0 %892
      %v895 = vunpack.c.l.b16 %v867
      %v896 = vpack.c.b16 %v895, %v895
      %897 = vrot.lane.b32.xlu0 %v896, 72
      %v898 = vpop.permute.xlu0 %897
      %v900 = vunpack.c.l.b16 %v865
      %v901 = vpack.c.b16 %v900, %v890
      %v903 = vshrl.u32 %v901, 16
      %v905 = vshll.u32 %v901, 16
      %v907 = vrot.slane %v905, 1
      %v908 = vor.u32 %v903, %v907
      %909 = vrot.lane.b32.xlu0 %v908, 80
      %v910 = vpop.permute.xlu0 %909
      %v912 = vunpack.c.l.b16 %v868
      %v913 = vpack.c.b16 %v912, %v895
      %v915 = vshrl.u32 %v913, 16
      %v917 = vshll.u32 %v913, 16
      %v919 = vrot.slane %v917, 1
      %v920 = vor.u32 %v915, %v919
      %921 = vrot.lane.b32.xlu0 %v920, 88
      %v922 = vpop.permute.xlu0 %921
      %v924 = vunpack.c.l.b16 %v870
      %v925 = vpack.c.b16 %v924, %v924
      %926 = vrot.lane.b32.xlu0 %v925, 96
      %v927 = vpop.permute.xlu0 %926
      %v929 = vunpack.c.l.b16 %v873
      %v930 = vpack.c.b16 %v929, %v929
      %931 = vrot.lane.b32.xlu0 %v930, 104
      %v932 = vpop.permute.xlu0 %931
      %v934 = vunpack.c.l.b16 %v871
      %v935 = vpack.c.b16 %v934, %v924
      %v937 = vshrl.u32 %v935, 16
      %v939 = vshll.u32 %v935, 16
      %v941 = vrot.slane %v939, 1
      %v942 = vor.u32 %v937, %v941
      %943 = vrot.lane.b32.xlu0 %v942, 112
      %v944 = vpop.permute.xlu0 %943
      %v946 = vunpack.c.l.b16 %v874
      %v947 = vpack.c.b16 %v946, %v929
      %v949 = vshrl.u32 %v947, 16
      %v951 = vshll.u32 %v947, 16
      %v953 = vrot.slane %v951, 1
      %v954 = vor.u32 %v949, %v953
      %955 = vrot.lane.b32.xlu0 %v954, 120
      %v956 = vpop.permute.xlu0 %955
      %v959 = vsel %vm317, %v739, %v876
      %v961 = vsel %vm321, %v959, %v878
      %v963 = vsel %vm324, %v961, %v880
      %v965 = vsel %vm327, %v963, %v882
      %v967 = vsel %vm330, %v965, %v884
      %v969 = vsel %vm333, %v967, %v886
      %v971 = vsel %vm336, %v969, %v888
      %v973 = vsel %vm339, %v971, %v893
      %v975 = vsel %vm342, %v973, %v898
      %v977 = vsel %vm345, %v975, %v910
      %v979 = vsel %vm348, %v977, %v922
      %v981 = vsel %vm351, %v979, %v927
      %v983 = vsel %vm354, %v981, %v932
      %v985 = vsel %vm357, %v983, %v944
      %v987 = vsel %vm360, %v985, %v956
      %s988 = scalar_lea.vmem %s138, 56
      %v989 = vld [vmem:[%s988] sm:$0xf]
      %v990 = vld [vmem:[%s988 + $0x4] sm:$0x1]
      %s991 = scalar_lea.vmem %s138, 128
      %v992 = vld [vmem:[%s991] sm:$0xf]
      %v993 = vld [vmem:[%s991 + $0x4] sm:$0x1]
      %s994 = scalar_lea.vmem %s138, 200
      %v995 = vld [vmem:[%s994] sm:$0xf]
      %v996 = vld [vmem:[%s994 + $0x4] sm:$0x1]
      %s997 = scalar_lea.vmem %s138, 272
      %v998 = vld [vmem:[%s997] sm:$0xf]
      %v999 = vld [vmem:[%s997 + $0x4] sm:$0x1]
      %1000 = vrot.lane.b32.xlu0 %v896, 8
      %v1001 = vpop.permute.xlu0 %1000
      %1002 = vrot.lane.b32.xlu0 %v908, 16
      %v1003 = vpop.permute.xlu0 %1002
      %1004 = vrot.lane.b32.xlu0 %v920, 24
      %v1005 = vpop.permute.xlu0 %1004
      %1006 = vrot.lane.b32.xlu0 %v925, 32
      %v1007 = vpop.permute.xlu0 %1006
      %1008 = vrot.lane.b32.xlu0 %v930, 40
      %v1009 = vpop.permute.xlu0 %1008
      %1010 = vrot.lane.b32.xlu0 %v942, 48
      %v1011 = vpop.permute.xlu0 %1010
      %1012 = vrot.lane.b32.xlu0 %v954, 56
      %v1013 = vpop.permute.xlu0 %1012
      %v1015 = vunpack.c.l.b16 %v989
      %v1016 = vpack.c.b16 %v1015, %v1015
      %1017 = vrot.lane.b32.xlu0 %v1016, 64
      %v1018 = vpop.permute.xlu0 %1017
      %v1020 = vunpack.c.l.b16 %v992
      %v1021 = vpack.c.b16 %v1020, %v1020
      %1022 = vrot.lane.b32.xlu0 %v1021, 72
      %v1023 = vpop.permute.xlu0 %1022
      %v1025 = vunpack.c.l.b16 %v990
      %v1026 = vpack.c.b16 %v1025, %v1015
      %v1028 = vshrl.u32 %v1026, 16
      %v1030 = vshll.u32 %v1026, 16
      %v1032 = vrot.slane %v1030, 1
      %v1033 = vor.u32 %v1028, %v1032
      %1034 = vrot.lane.b32.xlu0 %v1033, 80
      %v1035 = vpop.permute.xlu0 %1034
      %v1037 = vunpack.c.l.b16 %v993
      %v1038 = vpack.c.b16 %v1037, %v1020
      %v1040 = vshrl.u32 %v1038, 16
      %v1042 = vshll.u32 %v1038, 16
      %v1044 = vrot.slane %v1042, 1
      %v1045 = vor.u32 %v1040, %v1044
      %1046 = vrot.lane.b32.xlu0 %v1045, 88
      %v1047 = vpop.permute.xlu0 %1046
      %v1049 = vunpack.c.l.b16 %v995
      %v1050 = vpack.c.b16 %v1049, %v1049
      %1051 = vrot.lane.b32.xlu0 %v1050, 96
      %v1052 = vpop.permute.xlu0 %1051
      %v1054 = vunpack.c.l.b16 %v998
      %v1055 = vpack.c.b16 %v1054, %v1054
      %1056 = vrot.lane.b32.xlu0 %v1055, 104
      %v1057 = vpop.permute.xlu0 %1056
      %v1059 = vunpack.c.l.b16 %v996
      %v1060 = vpack.c.b16 %v1059, %v1049
      %v1062 = vshrl.u32 %v1060, 16
      %v1064 = vshll.u32 %v1060, 16
      %v1066 = vrot.slane %v1064, 1
      %v1067 = vor.u32 %v1062, %v1066
      %1068 = vrot.lane.b32.xlu0 %v1067, 112
      %v1069 = vpop.permute.xlu0 %1068
      %v1071 = vunpack.c.l.b16 %v999
      %v1072 = vpack.c.b16 %v1071, %v1054
      %v1074 = vshrl.u32 %v1072, 16
      %v1076 = vshll.u32 %v1072, 16
      %v1078 = vrot.slane %v1076, 1
      %v1079 = vor.u32 %v1074, %v1078
      %1080 = vrot.lane.b32.xlu0 %v1079, 120
      %v1081 = vpop.permute.xlu0 %1080
      %v1084 = vsel %vm317, %v864, %v1001
      %v1086 = vsel %vm321, %v1084, %v1003
      %v1088 = vsel %vm324, %v1086, %v1005
      %v1090 = vsel %vm327, %v1088, %v1007
      %v1092 = vsel %vm330, %v1090, %v1009
      %v1094 = vsel %vm333, %v1092, %v1011
      %v1096 = vsel %vm336, %v1094, %v1013
      %v1098 = vsel %vm339, %v1096, %v1018
      %v1100 = vsel %vm342, %v1098, %v1023
      %v1102 = vsel %vm345, %v1100, %v1035
      %v1104 = vsel %vm348, %v1102, %v1047
      %v1106 = vsel %vm351, %v1104, %v1052
      %v1108 = vsel %vm354, %v1106, %v1057
      %v1110 = vsel %vm357, %v1108, %v1069
      %v1112 = vsel %vm360, %v1110, %v1081
      %s1113 = scalar_lea.vmem %s138, 64
      %v1114 = vld [vmem:[%s1113] sm:$0xf]
      %v1115 = vld [vmem:[%s1113 + $0x4] sm:$0x1]
      %s1116 = scalar_lea.vmem %s138, 136
      %v1117 = vld [vmem:[%s1116] sm:$0xf]
      %v1118 = vld [vmem:[%s1116 + $0x4] sm:$0x1]
      %s1119 = scalar_lea.vmem %s138, 208
      %v1120 = vld [vmem:[%s1119] sm:$0xf]
      %v1121 = vld [vmem:[%s1119 + $0x4] sm:$0x1]
      %s1122 = scalar_lea.vmem %s138, 280
      %v1123 = vld [vmem:[%s1122] sm:$0xf]
      %v1124 = vld [vmem:[%s1122 + $0x4] sm:$0x1]
      %1125 = vrot.lane.b32.xlu0 %v1021, 8
      %v1126 = vpop.permute.xlu0 %1125
      %1127 = vrot.lane.b32.xlu0 %v1033, 16
      %v1128 = vpop.permute.xlu0 %1127
      %1129 = vrot.lane.b32.xlu0 %v1045, 24
      %v1130 = vpop.permute.xlu0 %1129
      %1131 = vrot.lane.b32.xlu0 %v1050, 32
      %v1132 = vpop.permute.xlu0 %1131
      %1133 = vrot.lane.b32.xlu0 %v1055, 40
      %v1134 = vpop.permute.xlu0 %1133
      %1135 = vrot.lane.b32.xlu0 %v1067, 48
      %v1136 = vpop.permute.xlu0 %1135
      %1137 = vrot.lane.b32.xlu0 %v1079, 56
      %v1138 = vpop.permute.xlu0 %1137
      %v1140 = vunpack.c.l.b16 %v1114
      %v1141 = vpack.c.b16 %v1140, %v1140
      %1142 = vrot.lane.b32.xlu0 %v1141, 64
      %v1143 = vpop.permute.xlu0 %1142
      %v1145 = vunpack.c.l.b16 %v1117
      %v1146 = vpack.c.b16 %v1145, %v1145
      %1147 = vrot.lane.b32.xlu0 %v1146, 72
      %v1148 = vpop.permute.xlu0 %1147
      %v1150 = vunpack.c.l.b16 %v1115
      %v1151 = vpack.c.b16 %v1150, %v1140
      %v1153 = vshrl.u32 %v1151, 16
      %v1155 = vshll.u32 %v1151, 16
      %v1157 = vrot.slane %v1155, 1
      %v1158 = vor.u32 %v1153, %v1157
      %1159 = vrot.lane.b32.xlu0 %v1158, 80
      %v1160 = vpop.permute.xlu0 %1159
      %v1162 = vunpack.c.l.b16 %v1118
      %v1163 = vpack.c.b16 %v1162, %v1145
      %v1165 = vshrl.u32 %v1163, 16
      %v1167 = vshll.u32 %v1163, 16
      %v1169 = vrot.slane %v1167, 1
      %v1170 = vor.u32 %v1165, %v1169
      %1171 = vrot.lane.b32.xlu0 %v1170, 88
      %v1172 = vpop.permute.xlu0 %1171
      %v1174 = vunpack.c.l.b16 %v1120
      %v1175 = vpack.c.b16 %v1174, %v1174
      %1176 = vrot.lane.b32.xlu0 %v1175, 96
      %v1177 = vpop.permute.xlu0 %1176
      %v1179 = vunpack.c.l.b16 %v1123
      %v1180 = vpack.c.b16 %v1179, %v1179
      %1181 = vrot.lane.b32.xlu0 %v1180, 104
      %v1182 = vpop.permute.xlu0 %1181
      %v1184 = vunpack.c.l.b16 %v1121
      %v1185 = vpack.c.b16 %v1184, %v1174
      %v1187 = vshrl.u32 %v1185, 16
      %v1189 = vshll.u32 %v1185, 16
      %v1191 = vrot.slane %v1189, 1
      %v1192 = vor.u32 %v1187, %v1191
      %1193 = vrot.lane.b32.xlu0 %v1192, 112
      %v1194 = vpop.permute.xlu0 %1193
      %v1196 = vunpack.c.l.b16 %v1124
      %v1197 = vpack.c.b16 %v1196, %v1179
      %v1199 = vshrl.u32 %v1197, 16
      %v1201 = vshll.u32 %v1197, 16
      %v1203 = vrot.slane %v1201, 1
      %v1204 = vor.u32 %v1199, %v1203
      %1205 = vrot.lane.b32.xlu0 %v1204, 120
      %v1206 = vpop.permute.xlu0 %1205
      %v1209 = vsel %vm317, %v989, %v1126
      %v1211 = vsel %vm321, %v1209, %v1128
      %v1213 = vsel %vm324, %v1211, %v1130
      %v1215 = vsel %vm327, %v1213, %v1132
      %v1217 = vsel %vm330, %v1215, %v1134
      %v1219 = vsel %vm333, %v1217, %v1136
      %v1221 = vsel %vm336, %v1219, %v1138
      %v1223 = vsel %vm339, %v1221, %v1143
      %v1225 = vsel %vm342, %v1223, %v1148
      %v1227 = vsel %vm345, %v1225, %v1160
      %v1229 = vsel %vm348, %v1227, %v1172
      %v1231 = vsel %vm351, %v1229, %v1177
      %v1233 = vsel %vm354, %v1231, %v1182
      %v1235 = vsel %vm357, %v1233, %v1194
      %v1237 = vsel %vm360, %v1235, %v1206
      %v1239 = vrot.slane %v487, 4
      %v1241 = vrot.slane %v737, 4
      %v1243 = vrot.slane %v987, 4
      %v1245 = vrot.slane %v1237, 4
      %vm1246 = vcmask 1043456
      %v1248 = vsel %vm1246, %v362, %v1239
      %v1251 = vsel %vm1246, %v612, %v1241
      %v1254 = vsel %vm1246, %v862, %v1243
      %v1257 = vsel %vm1246, %v1112, %v1245
      %v1275 = vunpack.c.l.b16 %v145
      %v1276 = vunpack.c.l.b16 %v146
      %v1277 = vunpack.c.l.b16 %v147
      %v1278 = vunpack.c.l.b16 %v148
      %v1279 = vunpack.c.l.b16 %v149
      %v1280 = vunpack.c.l.b16 %v150
      %v1281 = vunpack.c.l.b16 %v151
      %v1282 = vunpack.c.l.b16 %v152
      %v1283 = vunpack.c.l.b16 %v153
      %v1284 = vunpack.c.l.b16 %v154
      %v1285 = vunpack.c.l.b16 %v155
      %v1286 = vunpack.c.l.b16 %v156
      %v1287 = vunpack.c.l.b16 %v157
      %v1288 = vunpack.c.l.b16 %v158
      %v1289 = vunpack.c.l.b16 %v159
      %v1290 = vunpack.c.l.b16 %v160
      %v1291 = vpack.c.b16 %v1276, %v1275
      %v1292 = vpack.c.b16 %v1278, %v1277
      %v1293 = vpack.c.b16 %v1280, %v1279
      %v1294 = vpack.c.b16 %v1282, %v1281
      %v1295 = vpack.c.b16 %v1284, %v1283
      %v1296 = vpack.c.b16 %v1286, %v1285
      %v1297 = vpack.c.b16 %v1288, %v1287
      %v1298 = vpack.c.b16 %v1290, %v1289
      %1307 = vmatprep.subr.bf16.mxu0 0
      %1308 = vmatpush1.bf16.msra.mxu0 %v1291
      %1309 = vmatprep.subr.bf16.mxu0 0
      %1310 = vmatpush1.bf16.msra.mxu0 %v1292
      %1311 = vmatprep.subr.bf16.mxu0 0
      %1312 = vmatpush1.bf16.msra.mxu0 %v1293
      %1313 = vmatprep.subr.bf16.mxu0 0
      %1314 = vmatpush1.bf16.msra.mxu0 %v1294
      %1315 = vmatprep.subr.bf16.mxu0 0
      %1316 = vmatpush1.bf16.msra.mxu0 %v1295
      %1317 = vmatprep.subr.bf16.mxu0 0
      %1318 = vmatpush1.bf16.msra.mxu0 %v1296
      %1319 = vmatprep.subr.bf16.mxu0 0
      %1320 = vmatpush1.bf16.msra.mxu0 %v1297
      %1321 = vmatprep.subr.bf16.mxu0 0
      %1322 = vmatpush1.bf16.msra.mxu0 %v1298
      %1323 = vmatprep.subr.bf16.mxu0 0
      %1324 = vmatpush1.bf16.msra.mxu0 0
      %1325 = vmatprep.subr.bf16.mxu0 0
      %1326 = vmatpush1.bf16.msra.mxu0 0
      %1327 = vmatprep.subr.bf16.mxu0 0
      %1328 = vmatpush1.bf16.msra.mxu0 0
      %1329 = vmatprep.subr.bf16.mxu0 0
      %1330 = vmatpush1.bf16.msra.mxu0 0
      %1331 = vmatprep.subr.bf16.mxu0 0
      %1332 = vmatpush1.bf16.msra.mxu0 0
      %1333 = vmatprep.subr.bf16.mxu0 0
      %1334 = vmatpush1.bf16.msra.mxu0 0
      %1335 = vmatprep.subr.bf16.mxu0 0
      %1336 = vmatpush1.bf16.msra.mxu0 0
      %1337 = vmatprep.subr.bf16.mxu0 0
      %1338 = vmatpush1.bf16.msra.mxu0 0
      %1339 = vmatprep.mubr.bf16.mxu0 0
      %1340 = vmatmul.mubr.bf16.gmra.mrb[0].mxu0 %v1248
      %v1341 = vpop.f32.mrb[0].mxu0
      %v1342 = vadd.f32 0.0, %v1341
      %v1343 = vpop.f32.mrb[0].mxu0
      %v1344 = vpop.f32.mrb[0].mxu0
      %v1345 = vadd.f32 0.0, %v1344
      %v1346 = vpop.f32.mrb[0].mxu0
      %1347 = vmatprep.mubr.bf16.mxu0 0
      %1348 = vmatmul.mubr.bf16.gmra.mrb[0].mxu0 %v1251
      %v1349 = vpop.f32.mrb[0].mxu0
      %v1350 = vadd.f32 0.0, %v1349
      %v1351 = vpop.f32.mrb[0].mxu0
      %v1352 = vpop.f32.mrb[0].mxu0
      %v1353 = vadd.f32 0.0, %v1352
      %v1354 = vpop.f32.mrb[0].mxu0
      %1355 = vmatprep.mubr.bf16.mxu0 0
      %1356 = vmatmul.mubr.bf16.gmra.mrb[0].mxu0 %v1254
      %v1357 = vpop.f32.mrb[0].mxu0
      %v1358 = vadd.f32 0.0, %v1357
      %v1359 = vpop.f32.mrb[0].mxu0
      %v1360 = vpop.f32.mrb[0].mxu0
      %v1361 = vadd.f32 0.0, %v1360
      %v1362 = vpop.f32.mrb[0].mxu0
      %1363 = vmatprep.mubr.bf16.mxu0 0
      %1364 = vmatmul.mubr.bf16.gmra.mrb[0].mxu0 %v1257
      %v1365 = vpop.f32.mrb[0].mxu0
      %v1366 = vadd.f32 0.0, %v1365
      %v1367 = vpop.f32.mrb[0].mxu0
      %v1368 = vpop.f32.mrb[0].mxu0
      %v1369 = vadd.f32 0.0, %v1368
      %v1370 = vpop.f32.mrb[0].mxu0
      %1371 = vdwg.mxu0
      %1372 = vst [vmem:[#allocation2] sm:$0xff] %v1342
      %s1373 = scalar_lea.vmem [#allocation2], 8
      %1374 = vst [vmem:[%s1373] sm:$0xff] %v1345
      %s1375 = scalar_lea.vmem [#allocation2], 16
      %1376 = vst [vmem:[%s1375] sm:$0xff] %v1350
      %s1377 = scalar_lea.vmem [#allocation2], 24
      %1378 = vst [vmem:[%s1377] sm:$0xff] %v1353
      %s1379 = scalar_lea.vmem [#allocation2], 32
      %1380 = vst [vmem:[%s1379] sm:$0xff] %v1358
      %s1381 = scalar_lea.vmem [#allocation2], 40
      %1382 = vst [vmem:[%s1381] sm:$0xff] %v1361
      %s1383 = scalar_lea.vmem [#allocation2], 48
      %1384 = vst [vmem:[%s1383] sm:$0xff] %v1366
      %s1385 = scalar_lea.vmem [#allocation2], 56
      %1386 = vst [vmem:[%s1385] sm:$0xff] %v1369
      %v1387 = vadd.f32 %v1342, %v1345
      %v1388 = vadd.f32 %v1387, %v1350
      %v1389 = vadd.f32 %v1388, %v1353
      %v1390 = vadd.f32 %v1389, %v1358
      %v1391 = vadd.f32 %v1390, %v1361
      %v1392 = vadd.f32 %v1391, %v1366
      %v1393 = vadd.f32 %v1392, %v1369
      %v1394 = vrot.slane %v1393, 4
      %v1395 = vadd.f32 %v1393, %v1394
      %v1396 = vrot.slane %v1395, 2
      %v1397 = vadd.f32 %v1395, %v1396
      %v1398 = vrot.slane %v1397, 1
      %v1399 = vadd.f32 %v1397, %v1398
      %v1400 = vadd.f32 %v1399, 0.0
      %v1401 = vmul.f32 %v1342, %v1342
      %v1402 = vmul.f32 %v1345, %v1345
      %v1403 = vmul.f32 %v1350, %v1350
      %v1404 = vmul.f32 %v1353, %v1353
      %v1405 = vmul.f32 %v1358, %v1358
      %v1406 = vmul.f32 %v1361, %v1361
      %v1407 = vmul.f32 %v1366, %v1366
      %v1408 = vmul.f32 %v1369, %v1369
      %v1409 = vadd.f32 %v1401, %v1402
      %v1410 = vadd.f32 %v1409, %v1403
      %v1411 = vadd.f32 %v1410, %v1404
      %v1412 = vadd.f32 %v1411, %v1405
      %v1413 = vadd.f32 %v1412, %v1406
      %v1414 = vadd.f32 %v1413, %v1407
      %v1415 = vadd.f32 %v1414, %v1408
      %v1416 = vrot.slane %v1415, 4
      %v1417 = vadd.f32 %v1415, %v1416
      %v1418 = vrot.slane %v1417, 2
      %v1419 = vadd.f32 %v1417, %v1418
      %v1420 = vrot.slane %v1419, 1
      %v1421 = vadd.f32 %v1419, %v1420
      %v1422 = vadd.f32 %v1421, 0.0
      %v1423 = vmul.f32 %v1400, 0.015625
      %v1424 = vmul.f32 %v1422, 0.015625
      %v1425 = vmul.f32 %v1423, %v1423
      %v1426 = vsub.f32 %v1424, %v1425
      %v1427 = vmax.f32 %v1426, 0.0
      %v1428 = vadd.f32 %v1427, 1e-05
      %v1429 = vrsqrt.pop %v1428
      loop: start=0, step=1, limit=8
      $region29: #{discriminator_forward.6} parent=27 // loop_pre_header
        _
      $region30: #{discriminator_forward.6} parent=27 // loop_header
        %s1431 = sphi 0, %s1435
        %p1432 = scmp.ge.s32.totalorder %s1431, 8
      $region31: #{discriminator_forward.6} parent=27 // loop_header_branch
        %1434 = sbr.rel (%p1432) target = $region35
      $region32: #{discriminator_forward.6} parent=27 // loop_body
        %s1436 = smul.u32 %s1431, 8
        %s1437 = scalar_lea.vmem [#allocation2], %s1436
        %v1438 = vld [vmem:[%s1437] sm:$0xff]
        %v1439 = vsub.f32 %v1438, %v1423
        %v1440 = vmul.f32 %v1439, %v1429
        %vm1441 = vcmp.gt.f32.partialorder %v1440, 0.0
        %v1442 = vmul.f32 %v1440, 0.2
        %v1443 = vsel %vm1441, %v1440, %v1442
        %v1444 = vpack.c.bf16 %v1443, %v1443
        %s1445 = smul.addr %s1431, 4
        %s1446 = scalar_lea.vmem %s143, %s1445
        %1447 = vst [vmem:[%s1446] sm:$0xf] %v1444
      $region33: #{discriminator_forward.6} parent=27 // loop_footer
        %s1435 = sadd.s32 1, %s1431
      $region34: #{discriminator_forward.6} parent=27 // loop_footer_branch
        %1430 = sbr.rel target = $region30
      $region35: #{discriminator_forward.6} parent=27 // loop_exit
        _
      %p1448 = scmp.lt.s32.totalorder %s13, 1
      %s1449 = scalar_select %p1448, %s13, 1
      %s1450 = smul.addr %s1449, 8
      %s1451 = smul.addr %s1450, 4
      %s1452 = scalar_lea.vmem %s2, %s1451
      // Predicated region
      $region36: #{discriminator_forward.6} parent=27 // pred_check
        %p1453 = pneg %p78
      $region37: #{discriminator_forward.6} parent=27 // pred_check_branch
        %1455 = sbr.rel (%p1453) target = $region39
      $region38: #{discriminator_forward.6} parent=27 // pred_region
        _
      $region39: #{discriminator_forward.6} parent=27 // pred_fallthru
        _
    $region28: #{discriminator_forward.6} parent=5 // pred_fallthru
      _
    %p1456 = scmp.le.s32.totalorder 2, %s8
    // Predicated region
    $region40: #{discriminator_forward.6} parent=5 // pred_check
      %p1457 = pneg %p1456
    $region41: #{discriminator_forward.6} parent=5 // pred_check_branch
      %1459 = sbr.rel (%p1457) target = $region43
    $region42: #{discriminator_forward.6} parent=5 // pred_region
      %s1460 = ssub.s32 %s8, 2
      // Predicated region
      $region44: #{discriminator_forward.6} parent=42 // pred_check
        %p1461 = pneg %p84
      $region45: #{discriminator_forward.6} parent=42 // pred_check_branch
        %1463 = sbr.rel (%p1461) target = $region47
      $region46: #{discriminator_forward.6} parent=42 // pred_region
        %p1464 = scmp.lt.s32.totalorder %s14, 1
        %s1465 = scalar_select %p1464, %s14, 1
        %s1466 = smul.addr %s1465, 8
        %s1467 = smul.addr %s1466, 4
        %s1468 = scalar_lea.vmem %s2, %s1467
      $region47: #{discriminator_forward.6} parent=42 // pred_fallthru
        _
    $region43: #{discriminator_forward.6} parent=5 // pred_fallthru
      _
  $region6: #{discriminator_forward.6} parent=0 // loop_footer
    %s12 = sadd.s32 1, %s8
  $region7: #{discriminator_forward.6} parent=0 // loop_footer_branch
    %7 = sbr.rel target = $region3
  $region8: #{discriminator_forward.6} parent=0 // loop_exit
    _

// kernel: discriminator_forward.7
$region0: #{discriminator_forward.7}
  #allocation0 [shape = 'u32[]', space=smem, size = 0x4, offset = 0x4, fixed_abs, tag = 'smem constant byte address 0x4 - core index']
  #allocation1 [shape = 'u32[144,128]{1,0:T(1,128)}', space=vmem, size = 0x12000, scoped, tag = 'internal scratch']
  #allocation2 [shape = 'f32[4,4,128]{2,1,0:T(4,128)}', space=vmem, size = 0x2000, scoped, tag = 'scratch operand']
  %s0 = inlined_call_operand.vmem [shape: bf16[2,20,5,16], index: 0, kind: input, shape index: {}]
  %s1 = inlined_call_operand.vmem [shape: bf16[256,128], index: 1, kind: input, shape index: {}]
  %s2 = inlined_call_operand.vmem [shape: bf16[2,4,4,128], index: 2, kind: output, shape index: {}]
  %s3 = sld [smem:[#allocation0]]
  $region48: #{discriminator_forward.7} parent=0
    _
  %s5 = ssub.s32 1, %s3
  %s6 = scalar_select 0, %s5, %s3
  loop: start=0, step=1, limit=4
  $region2: #{discriminator_forward.7} parent=0 // loop_pre_header
    _
  $region3: #{discriminator_forward.7} parent=0 // loop_header
    %s8 = sphi 0, %s12
    %p9 = scmp.ge.s32.totalorder %s8, 4
    %s18 = sphi 0, %s20
    %s21 = sphi 0, %s18
    %s22 = sphi 0, %s21
    %s38 = sphi 0, %s22
    %s42 = sphi 0, %s42
    %s44 = sphi 0, %s42
    %s45 = sphi 0, %s44
    %s59 = sphi 0, %s45
    %s65 = sphi 0, %s67
    %s68 = sphi 0, %s65
    %s69 = sphi 0, %s68
    %s85 = sphi 0, %s69
  $region4: #{discriminator_forward.7} parent=0 // loop_header_branch
    %11 = sbr.rel (%p9) target = $region8
  $region5: #{discriminator_forward.7} parent=0 // loop_body
    %s13 = ssub.s32 %s8, 1
    %s14 = ssub.s32 %s8, 2
    %s15 = sadd.s32 %s8, 1
    %s16 = ssub.s32 %s8, %s15
    %p17 = scmp.eq.s32.totalorder %s16, 0
    %s19 = sadd.s32 %s18, 1
    %s20 = scalar_select %p17, %s18, %s19
    %p23 = pneg %p17
    %p24 = scmp.eq.s32.totalorder %s8, 1
    %p25 = por %p23, %p24
    %p26 = scmp.ne.s32.totalorder %s18, %s21
    %p27 = scmp.eq.s32.totalorder %s8, 0
    %p28 = por %p26, %p27
    %p29 = scmp.ne.s32.totalorder %s18, %s21
    %p30 = scmp.eq.s32.totalorder %s13, 1
    %p31 = por %p29, %p30
    %p32 = scmp.ne.s32.totalorder %s21, %s22
    %p33 = scmp.eq.s32.totalorder %s13, 0
    %p34 = por %p32, %p33
    %p35 = scmp.ne.s32.totalorder %s21, %s22
    %p36 = scmp.eq.s32.totalorder %s14, 1
    %p37 = por %p35, %p36
    %p39 = scmp.ne.s32.totalorder %s22, %s38
    %p40 = scmp.eq.s32.totalorder %s14, 0
    %p41 = por %p39, %p40
    %s43 = sadd.s32 %s42, 1
    %p46 = scmp.eq.s32.totalorder %s8, 1
    %p47 = scmp.ne.s32.totalorder %s42, %s44
    %p48 = scmp.eq.s32.totalorder %s8, 0
    %p49 = por %p47, %p48
    %p50 = scmp.ne.s32.totalorder %s42, %s44
    %p51 = scmp.eq.s32.totalorder %s13, 1
    %p52 = por %p50, %p51
    %p53 = scmp.ne.s32.totalorder %s44, %s45
    %p54 = scmp.eq.s32.totalorder %s13, 0
    %p55 = por %p53, %p54
    %p56 = scmp.ne.s32.totalorder %s44, %s45
    %p57 = scmp.eq.s32.totalorder %s14, 1
    %p58 = por %p56, %p57
    %p60 = scmp.ne.s32.totalorder %s45, %s59
    %p61 = scmp.eq.s32.totalorder %s14, 0
    %p62 = por %p60, %p61
    %s63 = ssub.s32 %s8, %s15
    %p64 = scmp.eq.s32.totalorder %s63, 0
    %s66 = sadd.s32 %s65, 1
    %s67 = scalar_select %p64, %s65, %s66
    %p70 = pneg %p64
    %p71 = scmp.eq.s32.totalorder %s8, 1
    %p72 = por %p70, %p71
    %p73 = scmp.ne.s32.totalorder %s65, %s68
    %p74 = scmp.eq.s32.totalorder %s8, 0
    %p75 = por %p73, %p74
    %p76 = scmp.ne.s32.totalorder %s65, %s68
    %p77 = scmp.eq.s32.totalorder %s13, 1
    %p78 = por %p76, %p77
    %p79 = scmp.ne.s32.totalorder %s68, %s69
    %p80 = scmp.eq.s32.totalorder %s13, 0
    %p81 = por %p79, %p80
    %p82 = scmp.ne.s32.totalorder %s68, %s69
    %p83 = scmp.eq.s32.totalorder %s14, 1
    %p84 = por %p82, %p83
    %p86 = scmp.ne.s32.totalorder %s69, %s85
    %p87 = scmp.eq.s32.totalorder %s14, 0
    %p88 = por %p86, %p87
    %p89 = scmp.le.s32.totalorder 1, %s8
    %p90 = scmp.lt.s32.totalorder %s8, 3
    %p91 = pnand %p89, %p90
    %p92 = pneg %p91
    // Predicated region
    $region9: #{discriminator_forward.7} parent=5 // pred_check
      _
    $region10: #{discriminator_forward.7} parent=5 // pred_check_branch
      %94 = sbr.rel (%p91) target = $region12
    $region11: #{discriminator_forward.7} parent=5 // pred_region
      %s95 = ssub.s32 %s8, 1
      // Predicated region
      $region13: #{discriminator_forward.7} parent=11 // pred_check
        %p96 = pneg %p55
      $region14: #{discriminator_forward.7} parent=11 // pred_check_branch
        %98 = sbr.rel (%p96) target = $region16
      $region15: #{discriminator_forward.7} parent=11 // pred_region
        _
      $region16: #{discriminator_forward.7} parent=11 // pred_fallthru
        _
    $region12: #{discriminator_forward.7} parent=5 // pred_fallthru
      _
    %p99 = scmp.lt.s32.totalorder %s8, 2
    // Predicated region
    $region17: #{discriminator_forward.7} parent=5 // pred_check
      %p100 = pneg %p99
    $region18: #{discriminator_forward.7} parent=5 // pred_check_branch
      %102 = sbr.rel (%p100) target = $region20
    $region19: #{discriminator_forward.7} parent=5 // pred_region
      // Predicated region
      $region21: #{discriminator_forward.7} parent=19 // pred_check
        %p103 = pneg %p28
      $region22: #{discriminator_forward.7} parent=19 // pred_check_branch
        %105 = sbr.rel (%p103) target = $region24
      $region23: #{discriminator_forward.7} parent=19 // pred_region
        %p106 = scmp.lt.s32.totalorder %s8, 1
        %s107 = scalar_select %p106, %s8, 1
        %s108 = smul.addr %s107, 20
        %s109 = smul.addr %s108, 4
        %s110 = scalar_lea.vmem %s0, %s109
      $region24: #{discriminator_forward.7} parent=19 // pred_fallthru
        _
    $region20: #{discriminator_forward.7} parent=5 // pred_fallthru
      _
    %p111 = scmp.le.s32.totalorder 1, %s8
    %p112 = scmp.lt.s32.totalorder %s8, 3
    %p113 = pnand %p111, %p112
    %p114 = pneg %p113
    // Predicated region
    $region25: #{discriminator_forward.7} parent=5 // pred_check
      _
    $region26: #{discriminator_forward.7} parent=5 // pred_check_branch
      %116 = sbr.rel (%p113) target = $region28
    $region27: #{discriminator_forward.7} parent=5 // pred_region
      %s117 = ssub.s32 %s8, 1
      %p118 = scmp.lt.s32.totalorder %s13, 1
      %s119 = scalar_select %p118, %s13, 1
      %s120 = smul.addr %s119, 20
      %s121 = smul.addr %s120, 4
      %s122 = scalar_lea.vmem %s0, %s121
      %p123 = pneg %p34
      %p124 = pneg %p31
      %p125 = pneg %p55
      %p126 = pneg %p52
      %p127 = pneg %p81
      %p128 = pneg %p78
      %p129 = scmp.lt.s32.totalorder %s13, 1
      %s130 = scalar_select %p129, %s13, 1
      %s131 = smul.addr %s130, 4
      %s132 = smul.addr %s131, 2
      %s133 = scalar_lea.vmem %s2, %s132
      %p134 = scmp.lt.s32.totalorder %s13, 1
      %s135 = scalar_select %p134, %s13, 1
      %s136 = smul.addr %s135, 20
      %s137 = smul.addr %s136, 4
      %s138 = scalar_lea.vmem %s0, %s137
      %p139 = scmp.lt.s32.totalorder %s13, 1
      %s140 = scalar_select %p139, %s13, 1
      %s141 = smul.addr %s140, 4
      %s142 = smul.addr %s141, 2
      %s143 = scalar_lea.vmem %s2, %s142
      %v145 = vld [vmem:[%s1] sm:$0xf]
      %v146 = vld [vmem:[%s1 + $0x4] sm:$0xf]
      %v147 = vld [vmem:[%s1 + $0x8] sm:$0xf]
      %v148 = vld [vmem:[%s1 + $0xc] sm:$0xf]
      %v149 = vld [vmem:[%s1 + $0x10] sm:$0xf]
      %v150 = vld [vmem:[%s1 + $0x14] sm:$0xf]
      %v151 = vld [vmem:[%s1 + $0x18] sm:$0xf]
      %v152 = vld [vmem:[%s1 + $0x1c] sm:$0xf]
      %v153 = vld [vmem:[%s1 + $0x20] sm:$0xf]
      %v154 = vld [vmem:[%s1 + $0x24] sm:$0xf]
      %v155 = vld [vmem:[%s1 + $0x28] sm:$0xf]
      %v156 = vld [vmem:[%s1 + $0x2c] sm:$0xf]
      %v157 = vld [vmem:[%s1 + $0x30] sm:$0xf]
      %v158 = vld [vmem:[%s1 + $0x34] sm:$0xf]
      %v159 = vld [vmem:[%s1 + $0x38] sm:$0xf]
      %v160 = vld [vmem:[%s1 + $0x3c] sm:$0xf]
      %v161 = vld [vmem:[%s1 + $0x40] sm:$0xf]
      %v162 = vld [vmem:[%s1 + $0x44] sm:$0xf]
      %v163 = vld [vmem:[%s1 + $0x48] sm:$0xf]
      %v164 = vld [vmem:[%s1 + $0x4c] sm:$0xf]
      %v165 = vld [vmem:[%s1 + $0x50] sm:$0xf]
      %v166 = vld [vmem:[%s1 + $0x54] sm:$0xf]
      %v167 = vld [vmem:[%s1 + $0x58] sm:$0xf]
      %v168 = vld [vmem:[%s1 + $0x5c] sm:$0xf]
      %v169 = vld [vmem:[%s1 + $0x60] sm:$0xf]
      %v170 = vld [vmem:[%s1 + $0x64] sm:$0xf]
      %v171 = vld [vmem:[%s1 + $0x68] sm:$0xf]
      %v172 = vld [vmem:[%s1 + $0x6c] sm:$0xf]
      %v173 = vld [vmem:[%s1 + $0x70] sm:$0xf]
      %v174 = vld [vmem:[%s1 + $0x74] sm:$0xf]
      %v175 = vld [vmem:[%s1 + $0x78] sm:$0xf]
      %v176 = vld [vmem:[%s1 + $0x7c] sm:$0xf]
      %v177 = vld [vmem:[%s138] sm:$0x7]
      %s178 = scalar_lea.vmem %s138, 20
      %v179 = vld [vmem:[%s178] sm:$0x7]
      %s180 = scalar_lea.vmem %s138, 40
      %v181 = vld [vmem:[%s180] sm:$0x7]
      %s182 = scalar_lea.vmem %s138, 60
      %v183 = vld [vmem:[%s182] sm:$0x7]
      %s184 = scalar_lea.vmem %s138, 4
      %v185 = vld [vmem:[%s184] sm:$0x7]
      %s186 = scalar_lea.vmem %s138, 24
      %v187 = vld [vmem:[%s186] sm:$0x7]
      %s188 = scalar_lea.vmem %s138, 44
      %v189 = vld [vmem:[%s188] sm:$0x7]
      %s190 = scalar_lea.vmem %s138, 64
      %v191 = vld [vmem:[%s190] sm:$0x7]
      %v193 = vunpack.c.l.b16 %v179
      %v194 = vpack.c.b16 %v193, %v193
      %195 = vrot.lane.b32.xlu0 %v194, 16
      %v196 = vpop.permute.xlu0 %195
      %v198 = vunpack.c.l.b16 %v177
      %v199 = vpack.c.b16 %v198, %v198
      %v201 = vshrl.u32 %v199, 16
      %v203 = vshll.u32 %v199, 16
      %v205 = vrot.slane %v203, 1
      %v206 = vor.u32 %v201, %v205
      %207 = vrot.lane.b32.xlu0 %v206, 32
      %v208 = vpop.permute.xlu0 %207
      %v210 = vshrl.u32 %v194, 16
      %v212 = vshll.u32 %v194, 16
      %v214 = vrot.slane %v212, 1
      %v215 = vor.u32 %v210, %v214
      %216 = vrot.lane.b32.xlu0 %v215, 48
      %v217 = vpop.permute.xlu0 %216
      %v219 = vunpack.c.l.b16 %v181
      %v220 = vpack.c.b16 %v219, %v219
      %221 = vrot.lane.b32.xlu0 %v220, 64
      %v222 = vpop.permute.xlu0 %221
      %v224 = vunpack.c.l.b16 %v183
      %v225 = vpack.c.b16 %v224, %v224
      %226 = vrot.lane.b32.xlu0 %v225, 80
      %v227 = vpop.permute.xlu0 %226
      %v229 = vshrl.u32 %v220, 16
      %v231 = vshll.u32 %v220, 16
      %v233 = vrot.slane %v231, 1
      %v234 = vor.u32 %v229, %v233
      %235 = vrot.lane.b32.xlu0 %v234, 96
      %v236 = vpop.permute.xlu0 %235
      %v238 = vshrl.u32 %v225, 16
      %v240 = vshll.u32 %v225, 16
      %v242 = vrot.slane %v240, 1
      %v243 = vor.u32 %v238, %v242
      %244 = vrot.lane.b32.xlu0 %v243, 112
      %v245 = vpop.permute.xlu0 %244
      %v247 = vunpack.c.l.b16 %v187
      %v248 = vpack.c.b16 %v247, %v247
      %249 = vrot.lane.b32.xlu0 %v248, 16
      %v250 = vpop.permute.xlu0 %249
      %v252 = vunpack.c.l.b16 %v185
      %v253 = vpack.c.b16 %v252, %v252
      %v255 = vshrl.u32 %v253, 16
      %v257 = vshll.u32 %v253, 16
      %v259 = vrot.slane %v257, 1
      %v260 = vor.u32 %v255, %v259
      %261 = vrot.lane.b32.xlu0 %v260, 32
      %v262 = vpop.permute.xlu0 %261
      %v264 = vshrl.u32 %v248, 16
      %v266 = vshll.u32 %v248, 16
      %v268 = vrot.slane %v266, 1
      %v269 = vor.u32 %v264, %v268
      %270 = vrot.lane.b32.xlu0 %v269, 48
      %v271 = vpop.permute.xlu0 %270
      %v273 = vunpack.c.l.b16 %v189
      %v274 = vpack.c.b16 %v273, %v273
      %275 = vrot.lane.b32.xlu0 %v274, 64
      %v276 = vpop.permute.xlu0 %275
      %v278 = vunpack.c.l.b16 %v191
      %v279 = vpack.c.b16 %v278, %v278
      %280 = vrot.lane.b32.xlu0 %v279, 80
      %v281 = vpop.permute.xlu0 %280
      %v283 = vshrl.u32 %v274, 16
      %v285 = vshll.u32 %v274, 16
      %v287 = vrot.slane %v285, 1
      %v288 = vor.u32 %v283, %v287
      %289 = vrot.lane.b32.xlu0 %v288, 96
      %v290 = vpop.permute.xlu0 %289
      %v292 = vshrl.u32 %v279, 16
      %v294 = vshll.u32 %v279, 16
      %v296 = vrot.slane %v294, 1
      %v297 = vor.u32 %v292, %v296
      %298 = vrot.lane.b32.xlu0 %v297, 112
      %v299 = vpop.permute.xlu0 %298
      %vm300 = vcmask 130048
      %v303 = vsel %vm300, %v177, %v196
      %vm304 = vcmask 261120
      %v306 = vsel %vm304, %v303, %v208
      %vm307 = vcmask 392192
      %v309 = vsel %vm307, %v306, %v217
      %vm310 = vcmask 523264
      %v312 = vsel %vm310, %v309, %v222
      %vm313 = vcmask 654336
      %v315 = vsel %vm313, %v312, %v227
      %vm316 = vcmask 785408
      %v318 = vsel %vm316, %v315, %v236
      %vm319 = vcmask 916480
      %v321 = vsel %vm319, %v318, %v245
      %v324 = vsel %vm300, %v185, %v250
      %v326 = vsel %vm304, %v324, %v262
      %v328 = vsel %vm307, %v326, %v271
      %v330 = vsel %vm310, %v328, %v276
      %v332 = vsel %vm313, %v330, %v281
      %v334 = vsel %vm316, %v332, %v290
      %v336 = vsel %vm319, %v334, %v299
      %s337 = scalar_lea.vmem %s138, 8
      %v338 = vld [vmem:[%s337] sm:$0x7]
      %s339 = scalar_lea.vmem %s138, 28
      %v340 = vld [vmem:[%s339] sm:$0x7]
      %s341 = scalar_lea.vmem %s138, 48
      %v342 = vld [vmem:[%s341] sm:$0x7]
      %s343 = scalar_lea.vmem %s138, 68
      %v344 = vld [vmem:[%s343] sm:$0x7]
      %v346 = vunpack.c.l.b16 %v340
      %v347 = vpack.c.b16 %v346, %v346
      %348 = vrot.lane.b32.xlu0 %v347, 16
      %v349 = vpop.permute.xlu0 %348
      %v351 = vunpack.c.l.b16 %v338
      %v352 = vpack.c.b16 %v351, %v351
      %v354 = vshrl.u32 %v352, 16
      %v356 = vshll.u32 %v352, 16
      %v358 = vrot.slane %v356, 1
      %v359 = vor.u32 %v354, %v358
      %360 = vrot.lane.b32.xlu0 %v359, 32
      %v361 = vpop.permute.xlu0 %360
      %v363 = vshrl.u32 %v347, 16
      %v365 = vshll.u32 %v347, 16
      %v367 = vrot.slane %v365, 1
      %v368 = vor.u32 %v363, %v367
      %369 = vrot.lane.b32.xlu0 %v368, 48
      %v370 = vpop.permute.xlu0 %369
      %v372 = vunpack.c.l.b16 %v342
      %v373 = vpack.c.b16 %v372, %v372
      %374 = vrot.lane.b32.xlu0 %v373, 64
      %v375 = vpop.permute.xlu0 %374
      %v377 = vunpack.c.l.b16 %v344
      %v378 = vpack.c.b16 %v377, %v377
      %379 = vrot.lane.b32.xlu0 %v378, 80
      %v380 = vpop.permute.xlu0 %379
      %v382 = vshrl.u32 %v373, 16
      %v384 = vshll.u32 %v373, 16
      %v386 = vrot.slane %v384, 1
      %v387 = vor.u32 %v382, %v386
      %388 = vrot.lane.b32.xlu0 %v387, 96
      %v389 = vpop.permute.xlu0 %388
      %v391 = vshrl.u32 %v378, 16
      %v393 = vshll.u32 %v378, 16
      %v395 = vrot.slane %v393, 1
      %v396 = vor.u32 %v391, %v395
      %397 = vrot.lane.b32.xlu0 %v396, 112
      %v398 = vpop.permute.xlu0 %397
      %v401 = vsel %vm300, %v338, %v349
      %v403 = vsel %vm304, %v401, %v361
      %v405 = vsel %vm307, %v403, %v370
      %v407 = vsel %vm310, %v405, %v375
      %v409 = vsel %vm313, %v407, %v380
      %v411 = vsel %vm316, %v409, %v389
      %v413 = vsel %vm319, %v411, %v398
      %s414 = scalar_lea.vmem %s138, 12
      %v415 = vld [vmem:[%s414] sm:$0x7]
      %s416 = scalar_lea.vmem %s138, 32
      %v417 = vld [vmem:[%s416] sm:$0x7]
      %s418 = scalar_lea.vmem %s138, 52
      %v419 = vld [vmem:[%s418] sm:$0x7]
      %s420 = scalar_lea.vmem %s138, 72
      %v421 = vld [vmem:[%s420] sm:$0x7]
      %v423 = vunpack.c.l.b16 %v417
      %v424 = vpack.c.b16 %v423, %v423
      %425 = vrot.lane.b32.xlu0 %v424, 16
      %v426 = vpop.permute.xlu0 %425
      %v428 = vunpack.c.l.b16 %v415
      %v429 = vpack.c.b16 %v428, %v428
      %v431 = vshrl.u32 %v429, 16
      %v433 = vshll.u32 %v429, 16
      %v435 = vrot.slane %v433, 1
      %v436 = vor.u32 %v431, %v435
      %437 = vrot.lane.b32.xlu0 %v436, 32
      %v438 = vpop.permute.xlu0 %437
      %v440 = vshrl.u32 %v424, 16
      %v442 = vshll.u32 %v424, 16
      %v444 = vrot.slane %v442, 1
      %v445 = vor.u32 %v440, %v444
      %446 = vrot.lane.b32.xlu0 %v445, 48
      %v447 = vpop.permute.xlu0 %446
      %v449 = vunpack.c.l.b16 %v419
      %v450 = vpack.c.b16 %v449, %v449
      %451 = vrot.lane.b32.xlu0 %v450, 64
      %v452 = vpop.permute.xlu0 %451
      %v454 = vunpack.c.l.b16 %v421
      %v455 = vpack.c.b16 %v454, %v454
      %456 = vrot.lane.b32.xlu0 %v455, 80
      %v457 = vpop.permute.xlu0 %456
      %v459 = vshrl.u32 %v450, 16
      %v461 = vshll.u32 %v450, 16
      %v463 = vrot.slane %v461, 1
      %v464 = vor.u32 %v459, %v463
      %465 = vrot.lane.b32.xlu0 %v464, 96
      %v466 = vpop.permute.xlu0 %465
      %v468 = vshrl.u32 %v455, 16
      %v470 = vshll.u32 %v455, 16
      %v472 = vrot.slane %v470, 1
      %v473 = vor.u32 %v468, %v472
      %474 = vrot.lane.b32.xlu0 %v473, 112
      %v475 = vpop.permute.xlu0 %474
      %v478 = vsel %vm300, %v415, %v426
      %v480 = vsel %vm304, %v478, %v438
      %v482 = vsel %vm307, %v480, %v447
      %v484 = vsel %vm310, %v482, %v452
      %v486 = vsel %vm313, %v484, %v457
      %v488 = vsel %vm316, %v486, %v466
      %v490 = vsel %vm319, %v488, %v475
      %s491 = scalar_lea.vmem %s138, 16
      %v492 = vld [vmem:[%s491] sm:$0x7]
      %s493 = scalar_lea.vmem %s138, 36
      %v494 = vld [vmem:[%s493] sm:$0x7]
      %s495 = scalar_lea.vmem %s138, 56
      %v496 = vld [vmem:[%s495] sm:$0x7]
      %s497 = scalar_lea.vmem %s138, 76
      %v498 = vld [vmem:[%s497] sm:$0x7]
      %v500 = vunpack.c.l.b16 %v494
      %v501 = vpack.c.b16 %v500, %v500
      %502 = vrot.lane.b32.xlu0 %v501, 16
      %v503 = vpop.permute.xlu0 %502
      %v505 = vunpack.c.l.b16 %v492
      %v506 = vpack.c.b16 %v505, %v505
      %v508 = vshrl.u32 %v506, 16
      %v510 = vshll.u32 %v506, 16
      %v512 = vrot.slane %v510, 1
      %v513 = vor.u32 %v508, %v512
      %514 = vrot.lane.b32.xlu0 %v513, 32
      %v515 = vpop.permute.xlu0 %514
      %v517 = vshrl.u32 %v501, 16
      %v519 = vshll.u32 %v501, 16
      %v521 = vrot.slane %v519, 1
      %v522 = vor.u32 %v517, %v521
      %523 = vrot.lane.b32.xlu0 %v522, 48
      %v524 = vpop.permute.xlu0 %523
      %v526 = vunpack.c.l.b16 %v496
      %v527 = vpack.c.b16 %v526, %v526
      %528 = vrot.lane.b32.xlu0 %v527, 64
      %v529 = vpop.permute.xlu0 %528
      %v531 = vunpack.c.l.b16 %v498
      %v532 = vpack.c.b16 %v531, %v531
      %533 = vrot.lane.b32.xlu0 %v532, 80
      %v534 = vpop.permute.xlu0 %533
      %v536 = vshrl.u32 %v527, 16
      %v538 = vshll.u32 %v527, 16
      %v540 = vrot.slane %v538, 1
      %v541 = vor.u32 %v536, %v540
      %542 = vrot.lane.b32.xlu0 %v541, 96
      %v543 = vpop.permute.xlu0 %542
      %v545 = vshrl.u32 %v532, 16
      %v547 = vshll.u32 %v532, 16
      %v549 = vrot.slane %v547, 1
      %v550 = vor.u32 %v545, %v549
      %551 = vrot.lane.b32.xlu0 %v550, 112
      %v552 = vpop.permute.xlu0 %551
      %v555 = vsel %vm300, %v492, %v503
      %v557 = vsel %vm304, %v555, %v515
      %v559 = vsel %vm307, %v557, %v524
      %v561 = vsel %vm310, %v559, %v529
      %v563 = vsel %vm313, %v561, %v534
      %v565 = vsel %vm316, %v563, %v543
      %v567 = vsel %vm319, %v565, %v552
      %v570 = vrot.slane %v336, 6
      %v571 = vrot.slane %v413, 6
      %v573 = vrot.slane %v413, 4
      %v574 = vrot.slane %v490, 4
      %v576 = vrot.slane %v490, 2
      %v577 = vrot.slane %v567, 2
      %vm578 = vcmask 1041408
      %v580 = vsel %vm578, %v321, %v570
      %v582 = vsel %vm578, %v336, %v571
      %vm583 = vcmask 1043456
      %v585 = vsel %vm583, %v580, %v573
      %v587 = vsel %vm583, %v582, %v574
      %vm588 = vcmask 1045504
      %v590 = vsel %vm588, %v585, %v576
      %v593 = vsel %vm588, %v587, %v577
      %v627 = vunpack.c.l.b16 %v145
      %v628 = vunpack.c.l.b16 %v146
      %v629 = vunpack.c.l.b16 %v147
      %v630 = vunpack.c.l.b16 %v148
      %v631 = vunpack.c.l.b16 %v149
      %v632 = vunpack.c.l.b16 %v150
      %v633 = vunpack.c.l.b16 %v151
      %v634 = vunpack.c.l.b16 %v152
      %v635 = vunpack.c.l.b16 %v153
      %v636 = vunpack.c.l.b16 %v154
      %v637 = vunpack.c.l.b16 %v155
      %v638 = vunpack.c.l.b16 %v156
      %v639 = vunpack.c.l.b16 %v157
      %v640 = vunpack.c.l.b16 %v158
      %v641 = vunpack.c.l.b16 %v159
      %v642 = vunpack.c.l.b16 %v160
      %v643 = vunpack.c.l.b16 %v161
      %v644 = vunpack.c.l.b16 %v162
      %v645 = vunpack.c.l.b16 %v163
      %v646 = vunpack.c.l.b16 %v164
      %v647 = vunpack.c.l.b16 %v165
      %v648 = vunpack.c.l.b16 %v166
      %v649 = vunpack.c.l.b16 %v167
      %v650 = vunpack.c.l.b16 %v168
      %v651 = vunpack.c.l.b16 %v169
      %v652 = vunpack.c.l.b16 %v170
      %v653 = vunpack.c.l.b16 %v171
      %v654 = vunpack.c.l.b16 %v172
      %v655 = vunpack.c.l.b16 %v173
      %v656 = vunpack.c.l.b16 %v174
      %v657 = vunpack.c.l.b16 %v175
      %v658 = vunpack.c.l.b16 %v176
      %v659 = vpack.c.b16 %v628, %v627
      %v660 = vpack.c.b16 %v630, %v629
      %v661 = vpack.c.b16 %v632, %v631
      %v662 = vpack.c.b16 %v634, %v633
      %v663 = vpack.c.b16 %v636, %v635
      %v664 = vpack.c.b16 %v638, %v637
      %v665 = vpack.c.b16 %v640, %v639
      %v666 = vpack.c.b16 %v642, %v641
      %v667 = vpack.c.b16 %v644, %v643
      %v668 = vpack.c.b16 %v646, %v645
      %v669 = vpack.c.b16 %v648, %v647
      %v670 = vpack.c.b16 %v650, %v649
      %v671 = vpack.c.b16 %v652, %v651
      %v672 = vpack.c.b16 %v654, %v653
      %v673 = vpack.c.b16 %v656, %v655
      %v674 = vpack.c.b16 %v658, %v657
      %691 = vmatprep.subr.bf16.mxu0 0
      %692 = vmatpush1.bf16.msra.mxu0 %v659
      %693 = vmatprep.subr.bf16.mxu0 0
      %694 = vmatpush1.bf16.msra.mxu0 %v660
      %695 = vmatprep.subr.bf16.mxu0 0
      %696 = vmatpush1.bf16.msra.mxu0 %v661
      %697 = vmatprep.subr.bf16.mxu0 0
      %698 = vmatpush1.bf16.msra.mxu0 %v662
      %699 = vmatprep.subr.bf16.mxu0 0
      %700 = vmatpush1.bf16.msra.mxu0 %v663
      %701 = vmatprep.subr.bf16.mxu0 0
      %702 = vmatpush1.bf16.msra.mxu0 %v664
      %703 = vmatprep.subr.bf16.mxu0 0
      %704 = vmatpush1.bf16.msra.mxu0 %v665
      %705 = vmatprep.subr.bf16.mxu0 0
      %706 = vmatpush1.bf16.msra.mxu0 %v666
      %707 = vmatprep.subr.bf16.mxu0 0
      %708 = vmatpush1.bf16.msra.mxu0 %v667
      %709 = vmatprep.subr.bf16.mxu0 0
      %710 = vmatpush1.bf16.msra.mxu0 %v668
      %711 = vmatprep.subr.bf16.mxu0 0
      %712 = vmatpush1.bf16.msra.mxu0 %v669
      %713 = vmatprep.subr.bf16.mxu0 0
      %714 = vmatpush1.bf16.msra.mxu0 %v670
      %715 = vmatprep.subr.bf16.mxu0 0
      %716 = vmatpush1.bf16.msra.mxu0 %v671
      %717 = vmatprep.subr.bf16.mxu0 0
      %718 = vmatpush1.bf16.msra.mxu0 %v672
      %719 = vmatprep.subr.bf16.mxu0 0
      %720 = vmatpush1.bf16.msra.mxu0 %v673
      %721 = vmatprep.subr.bf16.mxu0 0
      %722 = vmatpush1.bf16.msra.mxu0 %v674
      %723 = vmatprep.mubr.bf16.mxu0 %v593
      %724 = vmatmul.mubr.bf16.gmra.mrb[0].mxu0 %v590
      %v725 = vpop.f32.mrb[0].mxu0
      %v726 = vadd.f32 0.0, %v725
      %v727 = vpop.f32.mrb[0].mxu0
      %v728 = vpop.f32.mrb[0].mxu0
      %v729 = vadd.f32 0.0, %v728
      %v730 = vpop.f32.mrb[0].mxu0
      %731 = vdwg.mxu0
      %732 = vst [vmem:[#allocation2] sm:$0xf] %v726
      %s733 = scalar_lea.vmem [#allocation2], 4
      %734 = vst [vmem:[%s733 - $0x4] sm:$0xf0] %v726
      %s735 = scalar_lea.vmem [#allocation2], 8
      %736 = vst [vmem:[%s735] sm:$0xf] %v729
      %s737 = scalar_lea.vmem [#allocation2], 12
      %738 = vst [vmem:[%s737 - $0x4] sm:$0xf0] %v729
      %v739 = vadd.f32 %v726, %v729
      %v740 = vrot.slane %v739, 4
      %v741 = vadd.f32 %v739, %v740
      %v742 = vrot.slane %v741, 2
      %v743 = vadd.f32 %v741, %v742
      %v744 = vrot.slane %v743, 1
      %v745 = vadd.f32 %v743, %v744
      %v746 = vadd.f32 %v745, 0.0
      %v747 = vmul.f32 %v726, %v726
      %v748 = vmul.f32 %v729, %v729
      %v749 = vadd.f32 %v747, %v748
      %v750 = vrot.slane %v749, 4
      %v751 = vadd.f32 %v749, %v750
      %v752 = vrot.slane %v751, 2
      %v753 = vadd.f32 %v751, %v752
      %v754 = vrot.slane %v753, 1
      %v755 = vadd.f32 %v753, %v754
      %v756 = vadd.f32 %v755, 0.0
      %v757 = vmul.f32 %v746, 0.0625
      %v758 = vmul.f32 %v756, 0.0625
      %v759 = vmul.f32 %v757, %v757
      %v760 = vsub.f32 %v758, %v759
      %v761 = vmax.f32 %v760, 0.0
      %v762 = vadd.f32 %v761, 1e-05
      %v763 = vrsqrt.pop %v762
      loop: start=0, step=1, limit=4
      $region29: #{discriminator_forward.7} parent=27 // loop_pre_header
        _
      $region30: #{discriminator_forward.7} parent=27 // loop_header
        %s765 = sphi 0, %s769
        %p766 = scmp.ge.s32.totalorder %s765, 4
      $region31: #{discriminator_forward.7} parent=27 // loop_header_branch
        %768 = sbr.rel (%p766) target = $region35
      $region32: #{discriminator_forward.7} parent=27 // loop_body
        %s770 = smul.u32 %s765, 4
        %s771 = scalar_lea.vmem [#allocation2], %s770
        %v772 = vld [vmem:[%s771] sm:$0xf]
        %v773 = vsub.f32 %v772, %v757
        %v774 = vmul.f32 %v773, %v763
        %vm775 = vcmp.gt.f32.partialorder %v774, 0.0
        %v776 = vmul.f32 %v774, 0.2
        %v777 = vsel %vm775, %v774, %v776
        %v778 = vpack.c.bf16 %v777, %v777
        %s779 = smul.addr %s765, 2
        %s780 = scalar_lea.vmem %s143, %s779
        %781 = vst [vmem:[%s780] sm:$0x3] %v778
      $region33: #{discriminator_forward.7} parent=27 // loop_footer
        %s769 = sadd.s32 1, %s765
      $region34: #{discriminator_forward.7} parent=27 // loop_footer_branch
        %764 = sbr.rel target = $region30
      $region35: #{discriminator_forward.7} parent=27 // loop_exit
        _
      %p782 = scmp.lt.s32.totalorder %s13, 1
      %s783 = scalar_select %p782, %s13, 1
      %s784 = smul.addr %s783, 4
      %s785 = smul.addr %s784, 2
      %s786 = scalar_lea.vmem %s2, %s785
      // Predicated region
      $region36: #{discriminator_forward.7} parent=27 // pred_check
        %p787 = pneg %p78
      $region37: #{discriminator_forward.7} parent=27 // pred_check_branch
        %789 = sbr.rel (%p787) target = $region39
      $region38: #{discriminator_forward.7} parent=27 // pred_region
        _
      $region39: #{discriminator_forward.7} parent=27 // pred_fallthru
        _
    $region28: #{discriminator_forward.7} parent=5 // pred_fallthru
      _
    %p790 = scmp.le.s32.totalorder 2, %s8
    // Predicated region
    $region40: #{discriminator_forward.7} parent=5 // pred_check
      %p791 = pneg %p790
    $region41: #{discriminator_forward.7} parent=5 // pred_check_branch
      %793 = sbr.rel (%p791) target = $region43
    $region42: #{discriminator_forward.7} parent=5 // pred_region
      %s794 = ssub.s32 %s8, 2
      // Predicated region
      $region44: #{discriminator_forward.7} parent=42 // pred_check
        %p795 = pneg %p84
      $region45: #{discriminator_forward.7} parent=42 // pred_check_branch
        %797 = sbr.rel (%p795) target = $region47
      $region46: #{discriminator_forward.7} parent=42 // pred_region
        %p798 = scmp.lt.s32.totalorder %s14, 1
        %s799 = scalar_select %p798, %s14, 1
        %s800 = smul.addr %s799, 4
        %s801 = smul.addr %s800, 2
        %s802 = scalar_lea.vmem %s2, %s801
      $region47: #{discriminator_forward.7} parent=42 // pred_fallthru
        _
    $region43: #{discriminator_forward.7} parent=5 // pred_fallthru
      _
  $region6: #{discriminator_forward.7} parent=0 // loop_footer
    %s12 = sadd.s32 1, %s8
  $region7: #{discriminator_forward.7} parent=0 // loop_footer_branch
    %7 = sbr.rel target = $region3
  $region8: #{discriminator_forward.7} parent=0 // loop_exit
    _

// kernel: discriminator_forward.8
$region0: #{discriminator_forward.8}
  #allocation0 [shape = 'u32[]', space=smem, size = 0x4, offset = 0x4, fixed_abs, tag = 'smem constant byte address 0x4 - core index']
  #allocation1 [shape = 'u32[144,128]{1,0:T(1,128)}', space=vmem, size = 0x12000, scoped, tag = 'internal scratch']
  #allocation2 [shape = 'f32[3,3,128]{2,1,0:T(4,128)}', space=vmem, size = 0x1800, scoped, tag = 'scratch operand']
  %s0 = inlined_call_operand.vmem [shape: bf16[2,6,6,32], index: 0, kind: input, shape index: {}]
  %s1 = inlined_call_operand.vmem [shape: bf16[512,128], index: 1, kind: input, shape index: {}]
  %s2 = inlined_call_operand.vmem [shape: bf16[2,3,3,128], index: 2, kind: output, shape index: {}]
  %s3 = sld [smem:[#allocation0]]
  $region48: #{discriminator_forward.8} parent=0
    _
  %s5 = ssub.s32 1, %s3
  %s6 = scalar_select 0, %s5, %s3
  loop: start=0, step=1, limit=4
  $region2: #{discriminator_forward.8} parent=0 // loop_pre_header
    _
  $region3: #{discriminator_forward.8} parent=0 // loop_header
    %s8 = sphi 0, %s12
    %p9 = scmp.ge.s32.totalorder %s8, 4
    %s18 = sphi 0, %s20
    %s21 = sphi 0, %s18
    %s22 = sphi 0, %s21
    %s38 = sphi 0, %s22
    %s42 = sphi 0, %s42
    %s44 = sphi 0, %s42
    %s45 = sphi 0, %s44
    %s59 = sphi 0, %s45
    %s65 = sphi 0, %s67
    %s68 = sphi 0, %s65
    %s69 = sphi 0, %s68
    %s85 = sphi 0, %s69
  $region4: #{discriminator_forward.8} parent=0 // loop_header_branch
    %11 = sbr.rel (%p9) target = $region8
  $region5: #{discriminator_forward.8} parent=0 // loop_body
    %s13 = ssub.s32 %s8, 1
    %s14 = ssub.s32 %s8, 2
    %s15 = sadd.s32 %s8, 1
    %s16 = ssub.s32 %s8, %s15
    %p17 = scmp.eq.s32.totalorder %s16, 0
    %s19 = sadd.s32 %s18, 1
    %s20 = scalar_select %p17, %s18, %s19
    %p23 = pneg %p17
    %p24 = scmp.eq.s32.totalorder %s8, 1
    %p25 = por %p23, %p24
    %p26 = scmp.ne.s32.totalorder %s18, %s21
    %p27 = scmp.eq.s32.totalorder %s8, 0
    %p28 = por %p26, %p27
    %p29 = scmp.ne.s32.totalorder %s18, %s21
    %p30 = scmp.eq.s32.totalorder %s13, 1
    %p31 = por %p29, %p30
    %p32 = scmp.ne.s32.totalorder %s21, %s22
    %p33 = scmp.eq.s32.totalorder %s13, 0
    %p34 = por %p32, %p33
    %p35 = scmp.ne.s32.totalorder %s21, %s22
    %p36 = scmp.eq.s32.totalorder %s14, 1
    %p37 = por %p35, %p36
    %p39 = scmp.ne.s32.totalorder %s22, %s38
    %p40 = scmp.eq.s32.totalorder %s14, 0
    %p41 = por %p39, %p40
    %s43 = sadd.s32 %s42, 1
    %p46 = scmp.eq.s32.totalorder %s8, 1
    %p47 = scmp.ne.s32.totalorder %s42, %s44
    %p48 = scmp.eq.s32.totalorder %s8, 0
    %p49 = por %p47, %p48
    %p50 = scmp.ne.s32.totalorder %s42, %s44
    %p51 = scmp.eq.s32.totalorder %s13, 1
    %p52 = por %p50, %p51
    %p53 = scmp.ne.s32.totalorder %s44, %s45
    %p54 = scmp.eq.s32.totalorder %s13, 0
    %p55 = por %p53, %p54
    %p56 = scmp.ne.s32.totalorder %s44, %s45
    %p57 = scmp.eq.s32.totalorder %s14, 1
    %p58 = por %p56, %p57
    %p60 = scmp.ne.s32.totalorder %s45, %s59
    %p61 = scmp.eq.s32.totalorder %s14, 0
    %p62 = por %p60, %p61
    %s63 = ssub.s32 %s8, %s15
    %p64 = scmp.eq.s32.totalorder %s63, 0
    %s66 = sadd.s32 %s65, 1
    %s67 = scalar_select %p64, %s65, %s66
    %p70 = pneg %p64
    %p71 = scmp.eq.s32.totalorder %s8, 1
    %p72 = por %p70, %p71
    %p73 = scmp.ne.s32.totalorder %s65, %s68
    %p74 = scmp.eq.s32.totalorder %s8, 0
    %p75 = por %p73, %p74
    %p76 = scmp.ne.s32.totalorder %s65, %s68
    %p77 = scmp.eq.s32.totalorder %s13, 1
    %p78 = por %p76, %p77
    %p79 = scmp.ne.s32.totalorder %s68, %s69
    %p80 = scmp.eq.s32.totalorder %s13, 0
    %p81 = por %p79, %p80
    %p82 = scmp.ne.s32.totalorder %s68, %s69
    %p83 = scmp.eq.s32.totalorder %s14, 1
    %p84 = por %p82, %p83
    %p86 = scmp.ne.s32.totalorder %s69, %s85
    %p87 = scmp.eq.s32.totalorder %s14, 0
    %p88 = por %p86, %p87
    %p89 = scmp.le.s32.totalorder 1, %s8
    %p90 = scmp.lt.s32.totalorder %s8, 3
    %p91 = pnand %p89, %p90
    %p92 = pneg %p91
    // Predicated region
    $region9: #{discriminator_forward.8} parent=5 // pred_check
      _
    $region10: #{discriminator_forward.8} parent=5 // pred_check_branch
      %94 = sbr.rel (%p91) target = $region12
    $region11: #{discriminator_forward.8} parent=5 // pred_region
      %s95 = ssub.s32 %s8, 1
      // Predicated region
      $region13: #{discriminator_forward.8} parent=11 // pred_check
        %p96 = pneg %p55
      $region14: #{discriminator_forward.8} parent=11 // pred_check_branch
        %98 = sbr.rel (%p96) target = $region16
      $region15: #{discriminator_forward.8} parent=11 // pred_region
        _
      $region16: #{discriminator_forward.8} parent=11 // pred_fallthru
        _
    $region12: #{discriminator_forward.8} parent=5 // pred_fallthru
      _
    %p99 = scmp.lt.s32.totalorder %s8, 2
    // Predicated region
    $region17: #{discriminator_forward.8} parent=5 // pred_check
      %p100 = pneg %p99
    $region18: #{discriminator_forward.8} parent=5 // pred_check_branch
      %102 = sbr.rel (%p100) target = $region20
    $region19: #{discriminator_forward.8} parent=5 // pred_region
      // Predicated region
      $region21: #{discriminator_forward.8} parent=19 // pred_check
        %p103 = pneg %p28
      $region22: #{discriminator_forward.8} parent=19 // pred_check_branch
        %105 = sbr.rel (%p103) target = $region24
      $region23: #{discriminator_forward.8} parent=19 // pred_region
        %p106 = scmp.lt.s32.totalorder %s8, 1
        %s107 = scalar_select %p106, %s8, 1
        %s108 = smul.addr %s107, 6
        %s109 = smul.addr %s108, 4
        %s110 = scalar_lea.vmem %s0, %s109
      $region24: #{discriminator_forward.8} parent=19 // pred_fallthru
        _
    $region20: #{discriminator_forward.8} parent=5 // pred_fallthru
      _
    %p111 = scmp.le.s32.totalorder 1, %s8
    %p112 = scmp.lt.s32.totalorder %s8, 3
    %p113 = pnand %p111, %p112
    %p114 = pneg %p113
    // Predicated region
    $region25: #{discriminator_forward.8} parent=5 // pred_check
      _
    $region26: #{discriminator_forward.8} parent=5 // pred_check_branch
      %116 = sbr.rel (%p113) target = $region28
    $region27: #{discriminator_forward.8} parent=5 // pred_region
      %s117 = ssub.s32 %s8, 1
      %p118 = scmp.lt.s32.totalorder %s13, 1
      %s119 = scalar_select %p118, %s13, 1
      %s120 = smul.addr %s119, 6
      %s121 = smul.addr %s120, 4
      %s122 = scalar_lea.vmem %s0, %s121
      %p123 = pneg %p34
      %p124 = pneg %p31
      %p125 = pneg %p55
      %p126 = pneg %p52
      %p127 = pneg %p81
      %p128 = pneg %p78
      %p129 = scmp.lt.s32.totalorder %s13, 1
      %s130 = scalar_select %p129, %s13, 1
      %s131 = smul.addr %s130, 3
      %s132 = smul.addr %s131, 2
      %s133 = scalar_lea.vmem %s2, %s132
      %p134 = scmp.lt.s32.totalorder %s13, 1
      %s135 = scalar_select %p134, %s13, 1
      %s136 = smul.addr %s135, 6
      %s137 = smul.addr %s136, 4
      %s138 = scalar_lea.vmem %s0, %s137
      %p139 = scmp.lt.s32.totalorder %s13, 1
      %s140 = scalar_select %p139, %s13, 1
      %s141 = smul.addr %s140, 3
      %s142 = smul.addr %s141, 2
      %s143 = scalar_lea.vmem %s2, %s142
      %v145 = vld [vmem:[%s1] sm:$0xf]
      %v146 = vld [vmem:[%s1 + $0x4] sm:$0xf]
      %v147 = vld [vmem:[%s1 + $0x8] sm:$0xf]
      %v148 = vld [vmem:[%s1 + $0xc] sm:$0xf]
      %v149 = vld [vmem:[%s1 + $0x10] sm:$0xf]
      %v150 = vld [vmem:[%s1 + $0x14] sm:$0xf]
      %v151 = vld [vmem:[%s1 + $0x18] sm:$0xf]
      %v152 = vld [vmem:[%s1 + $0x1c] sm:$0xf]
      %v153 = vld [vmem:[%s1 + $0x20] sm:$0xf]
      %v154 = vld [vmem:[%s1 + $0x24] sm:$0xf]
      %v155 = vld [vmem:[%s1 + $0x28] sm:$0xf]
      %v156 = vld [vmem:[%s1 + $0x2c] sm:$0xf]
      %v157 = vld [vmem:[%s1 + $0x30] sm:$0xf]
      %v158 = vld [vmem:[%s1 + $0x34] sm:$0xf]
      %v159 = vld [vmem:[%s1 + $0x38] sm:$0xf]
      %v160 = vld [vmem:[%s1 + $0x3c] sm:$0xf]
      %v161 = vld [vmem:[%s1 + $0x40] sm:$0xf]
      %v162 = vld [vmem:[%s1 + $0x44] sm:$0xf]
      %v163 = vld [vmem:[%s1 + $0x48] sm:$0xf]
      %v164 = vld [vmem:[%s1 + $0x4c] sm:$0xf]
      %v165 = vld [vmem:[%s1 + $0x50] sm:$0xf]
      %v166 = vld [vmem:[%s1 + $0x54] sm:$0xf]
      %v167 = vld [vmem:[%s1 + $0x58] sm:$0xf]
      %v168 = vld [vmem:[%s1 + $0x5c] sm:$0xf]
      %v169 = vld [vmem:[%s1 + $0x60] sm:$0xf]
      %v170 = vld [vmem:[%s1 + $0x64] sm:$0xf]
      %v171 = vld [vmem:[%s1 + $0x68] sm:$0xf]
      %v172 = vld [vmem:[%s1 + $0x6c] sm:$0xf]
      %v173 = vld [vmem:[%s1 + $0x70] sm:$0xf]
      %v174 = vld [vmem:[%s1 + $0x74] sm:$0xf]
      %v175 = vld [vmem:[%s1 + $0x78] sm:$0xf]
      %v176 = vld [vmem:[%s1 + $0x7c] sm:$0xf]
      %v177 = vld [vmem:[%s1 + $0x80] sm:$0xf]
      %v178 = vld [vmem:[%s1 + $0x84] sm:$0xf]
      %v179 = vld [vmem:[%s1 + $0x88] sm:$0xf]
      %v180 = vld [vmem:[%s1 + $0x8c] sm:$0xf]
      %v181 = vld [vmem:[%s1 + $0x90] sm:$0xf]
      %v182 = vld [vmem:[%s1 + $0x94] sm:$0xf]
      %v183 = vld [vmem:[%s1 + $0x98] sm:$0xf]
      %v184 = vld [vmem:[%s1 + $0x9c] sm:$0xf]
      %v185 = vld [vmem:[%s1 + $0xa0] sm:$0xf]
      %v186 = vld [vmem:[%s1 + $0xa4] sm:$0xf]
      %v187 = vld [vmem:[%s1 + $0xa8] sm:$0xf]
      %v188 = vld [vmem:[%s1 + $0xac] sm:$0xf]
      %v189 = vld [vmem:[%s1 + $0xb0] sm:$0xf]
      %v190 = vld [vmem:[%s1 + $0xb4] sm:$0xf]
      %v191 = vld [vmem:[%s1 + $0xb8] sm:$0xf]
      %v192 = vld [vmem:[%s1 + $0xbc] sm:$0xf]
      %v193 = vld [vmem:[%s1 + $0xc0] sm:$0xf]
      %v194 = vld [vmem:[%s1 + $0xc4] sm:$0xf]
      %v195 = vld [vmem:[%s1 + $0xc8] sm:$0xf]
      %v196 = vld [vmem:[%s1 + $0xcc] sm:$0xf]
      %v197 = vld [vmem:[%s1 + $0xd0] sm:$0xf]
      %v198 = vld [vmem:[%s1 + $0xd4] sm:$0xf]
      %v199 = vld [vmem:[%s1 + $0xd8] sm:$0xf]
      %v200 = vld [vmem:[%s1 + $0xdc] sm:$0xf]
      %v201 = vld [vmem:[%s1 + $0xe0] sm:$0xf]
      %v202 = vld [vmem:[%s1 + $0xe4] sm:$0xf]
      %v203 = vld [vmem:[%s1 + $0xe8] sm:$0xf]
      %v204 = vld [vmem:[%s1 + $0xec] sm:$0xf]
      %v205 = vld [vmem:[%s1 + $0xf0] sm:$0xf]
      %v206 = vld [vmem:[%s1 + $0xf4] sm:$0xf]
      %v207 = vld [vmem:[%s1 + $0xf8] sm:$0xf]
      %v208 = vld [vmem:[%s1 + $0xfc] sm:$0xf]
      %v209 = vld [vmem:[%s138] sm:$0x7]
      %s210 = scalar_lea.vmem %s138, 4
      %v211 = vld [vmem:[%s210] sm:$0x7]
      %s212 = scalar_lea.vmem %s138, 8
      %v213 = vld [vmem:[%s212] sm:$0x7]
      %s214 = scalar_lea.vmem %s138, 12
      %v215 = vld [vmem:[%s214] sm:$0x7]
      %v217 = vunpack.c.l.b16 %v209
      %v218 = vpack.c.b16 %v217, %v217
      %v220 = vshrl.u32 %v218, 16
      %v222 = vshll.u32 %v218, 16
      %v224 = vrot.slane %v222, 1
      %v225 = vor.u32 %v220, %v224
      %226 = vrot.lane.b32.xlu0 %v225, 32
      %v227 = vpop.permute.xlu0 %226
      %v228 = vrot.slane %v218, 1
      %229 = vrot.lane.b32.xlu0 %v228, 64
      %v230 = vpop.permute.xlu0 %229
      %v231 = vrot.slane %v220, 1
      %v232 = vrot.slane %v222, 2
      %v233 = vor.u32 %v231, %v232
      %234 = vrot.lane.b32.xlu0 %v233, 96
      %v235 = vpop.permute.xlu0 %234
      %v237 = vunpack.c.l.b16 %v211
      %v238 = vpack.c.b16 %v237, %v237
      %v240 = vshrl.u32 %v238, 16
      %v242 = vshll.u32 %v238, 16
      %v244 = vrot.slane %v242, 1
      %v245 = vor.u32 %v240, %v244
      %246 = vrot.lane.b32.xlu0 %v245, 32
      %v247 = vpop.permute.xlu0 %246
      %v248 = vrot.slane %v238, 1
      %249 = vrot.lane.b32.xlu0 %v248, 64
      %v250 = vpop.permute.xlu0 %249
      %v251 = vrot.slane %v240, 1
      %v252 = vrot.slane %v242, 2
      %v253 = vor.u32 %v251, %v252
      %254 = vrot.lane.b32.xlu0 %v253, 96
      %v255 = vpop.permute.xlu0 %254
      %v257 = vunpack.c.l.b16 %v213
      %v258 = vpack.c.b16 %v257, %v257
      %v260 = vshrl.u32 %v258, 16
      %v262 = vshll.u32 %v258, 16
      %v264 = vrot.slane %v262, 1
      %v265 = vor.u32 %v260, %v264
      %266 = vrot.lane.b32.xlu0 %v265, 32
      %v267 = vpop.permute.xlu0 %266
      %v268 = vrot.slane %v258, 1
      %269 = vrot.lane.b32.xlu0 %v268, 64
      %v270 = vpop.permute.xlu0 %269
      %v271 = vrot.slane %v260, 1
      %v272 = vrot.slane %v262, 2
      %v273 = vor.u32 %v271, %v272
      %274 = vrot.lane.b32.xlu0 %v273, 96
      %v275 = vpop.permute.xlu0 %274
      %v277 = vunpack.c.l.b16 %v215
      %v278 = vpack.c.b16 %v277, %v277
      %v280 = vshrl.u32 %v278, 16
      %v282 = vshll.u32 %v278, 16
      %v284 = vrot.slane %v282, 1
      %v285 = vor.u32 %v280, %v284
      %286 = vrot.lane.b32.xlu0 %v285, 32
      %v287 = vpop.permute.xlu0 %286
      %v288 = vrot.slane %v278, 1
      %289 = vrot.lane.b32.xlu0 %v288, 64
      %v290 = vpop.permute.xlu0 %289
      %v291 = vrot.slane %v280, 1
      %v292 = vrot.slane %v282, 2
      %v293 = vor.u32 %v291, %v292
      %294 = vrot.lane.b32.xlu0 %v293, 96
      %v295 = vpop.permute.xlu0 %294
      %vm296 = vcmask 261120
      %v299 = vsel %vm296, %v209, %v227
      %vm300 = vcmask 523264
      %v302 = vsel %vm300, %v299, %v230
      %vm303 = vcmask 785408
      %v305 = vsel %vm303, %v302, %v235
      %v309 = vsel %vm296, %v211, %v247
      %v311 = vsel %vm300, %v309, %v250
      %v313 = vsel %vm303, %v311, %v255
      %v317 = vsel %vm296, %v213, %v267
      %v319 = vsel %vm300, %v317, %v270
      %v321 = vsel %vm303, %v319, %v275
      %v325 = vsel %vm296, %v215, %v287
      %v327 = vsel %vm300, %v325, %v290
      %v329 = vsel %vm303, %v327, %v295
      %s331 = scalar_lea.vmem %s138, 16
      %v332 = vld [vmem:[%s331] sm:$0x7]
      %v334 = vunpack.c.l.b16 %v332
      %v335 = vpack.c.b16 %v334, %v334
      %v337 = vshrl.u32 %v335, 16
      %v339 = vshll.u32 %v335, 16
      %v341 = vrot.slane %v339, 1
      %v342 = vor.u32 %v337, %v341
      %343 = vrot.lane.b32.xlu0 %v342, 32
      %v344 = vpop.permute.xlu0 %343
      %v345 = vrot.slane %v335, 1
      %346 = vrot.lane.b32.xlu0 %v345, 64
      %v347 = vpop.permute.xlu0 %346
      %v348 = vrot.slane %v337, 1
      %v349 = vrot.slane %v339, 2
      %v350 = vor.u32 %v348, %v349
      %351 = vrot.lane.b32.xlu0 %v350, 96
      %v352 = vpop.permute.xlu0 %351
      %v355 = vsel %vm296, %v332, %v344
      %v357 = vsel %vm300, %v355, %v347
      %v359 = vsel %vm303, %v357, %v352
      %s360 = scalar_lea.vmem %s138, 20
      %v361 = vld [vmem:[%s360] sm:$0x7]
      %v363 = vunpack.c.l.b16 %v361
      %v364 = vpack.c.b16 %v363, %v363
      %v366 = vshrl.u32 %v364, 16
      %v368 = vshll.u32 %v364, 16
      %v370 = vrot.slane %v368, 1
      %v371 = vor.u32 %v366, %v370
      %372 = vrot.lane.b32.xlu0 %v371, 32
      %v373 = vpop.permute.xlu0 %372
      %v374 = vrot.slane %v364, 1
      %375 = vrot.lane.b32.xlu0 %v374, 64
      %v376 = vpop.permute.xlu0 %375
      %v377 = vrot.slane %v366, 1
      %v378 = vrot.slane %v368, 2
      %v379 = vor.u32 %v377, %v378
      %380 = vrot.lane.b32.xlu0 %v379, 96
      %v381 = vpop.permute.xlu0 %380
      %v384 = vsel %vm296, %v361, %v373
      %v386 = vsel %vm300, %v384, %v376
      %v388 = vsel %vm303, %v386, %v381
      %v389 = vshrl.u32 %v313, 16
      %v391 = vrot.slane %v389, 6
      %v392 = vshll.u32 %v313, 16
      %v394 = vrot.slane %v392, 7
      %v395 = vor.u32 %v391, %v394
      %v396 = vshrl.u32 %v321, 16
      %v398 = vrot.slane %v396, 6
      %v399 = vshll.u32 %v321, 16
      %v401 = vrot.slane %v399, 7
      %v402 = vor.u32 %v398, %v401
      %v403 = vshrl.u32 %v329, 16
      %v405 = vrot.slane %v403, 6
      %v406 = vshll.u32 %v329, 16
      %v408 = vrot.slane %v406, 7
      %v409 = vor.u32 %v405, %v408
      %v410 = vshrl.u32 %v359, 16
      %v412 = vrot.slane %v410, 6
      %v413 = vshll.u32 %v359, 16
      %v415 = vrot.slane %v413, 7
      %v416 = vor.u32 %v412, %v415
      %v425 = vrot.slane %v321, 5
      %v426 = vrot.slane %v329, 5
      %v427 = vrot.slane %v359, 5
      %v428 = vrot.slane %v388, 5
      %vm429 = vcmask 1041408
      %vm430 = vsmask.f32 1280
      %vm431 = vmand %vm429, %vm430
      %v432 = vsel %vm431, %v305, %v395
      %v433 = vsel %vm431, %v313, %v402
      %v434 = vsel %vm431, %v321, %v409
      %v435 = vsel %vm431, %v329, %v416
      %vm436 = vcmask 1042432
      %v439 = vsel %vm436, %v432, %v425
      %v443 = vsel %vm436, %v433, %v426
      %v447 = vsel %vm436, %v434, %v427
      %v451 = vsel %vm436, %v435, %v428
      %v517 = vunpack.c.l.b16 %v145
      %v518 = vunpack.c.l.b16 %v146
      %v519 = vunpack.c.l.b16 %v147
      %v520 = vunpack.c.l.b16 %v148
      %v521 = vunpack.c.l.b16 %v149
      %v522 = vunpack.c.l.b16 %v150
      %v523 = vunpack.c.l.b16 %v151
      %v524 = vunpack.c.l.b16 %v152
      %v525 = vunpack.c.l.b16 %v153
      %v526 = vunpack.c.l.b16 %v154
      %v527 = vunpack.c.l.b16 %v155
      %v528 = vunpack.c.l.b16 %v156
      %v529 = vunpack.c.l.b16 %v157
      %v530 = vunpack.c.l.b16 %v158
      %v531 = vunpack.c.l.b16 %v159
      %v532 = vunpack.c.l.b16 %v160
      %v533 = vunpack.c.l.b16 %v161
      %v534 = vunpack.c.l.b16 %v162
      %v535 = vunpack.c.l.b16 %v163
      %v536 = vunpack.c.l.b16 %v164
      %v537 = vunpack.c.l.b16 %v165
      %v538 = vunpack.c.l.b16 %v166
      %v539 = vunpack.c.l.b16 %v167
      %v540 = vunpack.c.l.b16 %v168
      %v541 = vunpack.c.l.b16 %v169
      %v542 = vunpack.c.l.b16 %v170
      %v543 = vunpack.c.l.b16 %v171
      %v544 = vunpack.c.l.b16 %v172
      %v545 = vunpack.c.l.b16 %v173
      %v546 = vunpack.c.l.b16 %v174
      %v547 = vunpack.c.l.b16 %v175
      %v548 = vunpack.c.l.b16 %v176
      %v549 = vunpack.c.l.b16 %v177
      %v550 = vunpack.c.l.b16 %v178
      %v551 = vunpack.c.l.b16 %v179
      %v552 = vunpack.c.l.b16 %v180
      %v553 = vunpack.c.l.b16 %v181
      %v554 = vunpack.c.l.b16 %v182
      %v555 = vunpack.c.l.b16 %v183
      %v556 = vunpack.c.l.b16 %v184
      %v557 = vunpack.c.l.b16 %v185
      %v558 = vunpack.c.l.b16 %v186
      %v559 = vunpack.c.l.b16 %v187
      %v560 = vunpack.c.l.b16 %v188
      %v561 = vunpack.c.l.b16 %v189
      %v562 = vunpack.c.l.b16 %v190
      %v563 = vunpack.c.l.b16 %v191
      %v564 = vunpack.c.l.b16 %v192
      %v565 = vunpack.c.l.b16 %v193
      %v566 = vunpack.c.l.b16 %v194
      %v567 = vunpack.c.l.b16 %v195
      %v568 = vunpack.c.l.b16 %v196
      %v569 = vunpack.c.l.b16 %v197
      %v570 = vunpack.c.l.b16 %v198
      %v571 = vunpack.c.l.b16 %v199
      %v572 = vunpack.c.l.b16 %v200
      %v573 = vunpack.c.l.b16 %v201
      %v574 = vunpack.c.l.b16 %v202
      %v575 = vunpack.c.l.b16 %v203
      %v576 = vunpack.c.l.b16 %v204
      %v577 = vunpack.c.l.b16 %v205
      %v578 = vunpack.c.l.b16 %v206
      %v579 = vunpack.c.l.b16 %v207
      %v580 = vunpack.c.l.b16 %v208
      %v581 = vpack.c.b16 %v518, %v517
      %v582 = vpack.c.b16 %v520, %v519
      %v583 = vpack.c.b16 %v522, %v521
      %v584 = vpack.c.b16 %v524, %v523
      %v585 = vpack.c.b16 %v526, %v525
      %v586 = vpack.c.b16 %v528, %v527
      %v587 = vpack.c.b16 %v530, %v529
      %v588 = vpack.c.b16 %v532, %v531
      %v589 = vpack.c.b16 %v534, %v533
      %v590 = vpack.c.b16 %v536, %v535
      %v591 = vpack.c.b16 %v538, %v537
      %v592 = vpack.c.b16 %v540, %v539
      %v593 = vpack.c.b16 %v542, %v541
      %v594 = vpack.c.b16 %v544, %v543
      %v595 = vpack.c.b16 %v546, %v545
      %v596 = vpack.c.b16 %v548, %v547
      %v597 = vpack.c.b16 %v550, %v549
      %v598 = vpack.c.b16 %v552, %v551
      %v599 = vpack.c.b16 %v554, %v553
      %v600 = vpack.c.b16 %v556, %v555
      %v601 = vpack.c.b16 %v558, %v557
      %v602 = vpack.c.b16 %v560, %v559
      %v603 = vpack.c.b16 %v562, %v561
      %v604 = vpack.c.b16 %v564, %v563
      %v605 = vpack.c.b16 %v566, %v565
      %v606 = vpack.c.b16 %v568, %v567
      %v607 = vpack.c.b16 %v570, %v569
      %v608 = vpack.c.b16 %v572, %v571
      %v609 = vpack.c.b16 %v574, %v573
      %v610 = vpack.c.b16 %v576, %v575
      %v611 = vpack.c.b16 %v578, %v577
      %v612 = vpack.c.b16 %v580, %v579
      %645 = vmatprep.subr.bf16.mxu0 0
      %646 = vmatpush1.bf16.msra.mxu0 %v581
      %647 = vmatprep.subr.bf16.mxu0 0
      %648 = vmatpush1.bf16.msra.mxu0 %v582
      %649 = vmatprep.subr.bf16.mxu0 0
      %650 = vmatpush1.bf16.msra.mxu0 %v583
      %651 = vmatprep.subr.bf16.mxu0 0
      %652 = vmatpush1.bf16.msra.mxu0 %v584
      %653 = vmatprep.subr.bf16.mxu0 0
      %654 = vmatpush1.bf16.msra.mxu0 %v585
      %655 = vmatprep.subr.bf16.mxu0 0
      %656 = vmatpush1.bf16.msra.mxu0 %v586
      %657 = vmatprep.subr.bf16.mxu0 0
      %658 = vmatpush1.bf16.msra.mxu0 %v587
      %659 = vmatprep.subr.bf16.mxu0 0
      %660 = vmatpush1.bf16.msra.mxu0 %v588
      %661 = vmatprep.subr.bf16.mxu0 0
      %662 = vmatpush1.bf16.msra.mxu0 %v589
      %663 = vmatprep.subr.bf16.mxu0 0
      %664 = vmatpush1.bf16.msra.mxu0 %v590
      %665 = vmatprep.subr.bf16.mxu0 0
      %666 = vmatpush1.bf16.msra.mxu0 %v591
      %667 = vmatprep.subr.bf16.mxu0 0
      %668 = vmatpush1.bf16.msra.mxu0 %v592
      %669 = vmatprep.subr.bf16.mxu0 0
      %670 = vmatpush1.bf16.msra.mxu0 %v593
      %671 = vmatprep.subr.bf16.mxu0 0
      %672 = vmatpush1.bf16.msra.mxu0 %v594
      %673 = vmatprep.subr.bf16.mxu0 0
      %674 = vmatpush1.bf16.msra.mxu0 %v595
      %675 = vmatprep.subr.bf16.mxu0 0
      %676 = vmatpush1.bf16.msra.mxu0 %v596
      %677 = vmatprep.mubr.bf16.mxu0 %v443
      %678 = vmatmul.mubr.bf16.gmra.mrb[0].mxu0 %v439
      %v679 = vpop.f32.mrb[0].mxu0
      %v680 = vadd.f32 0.0, %v679
      %v681 = vpop.f32.mrb[0].mxu0
      %v682 = vpop.f32.mrb[0].mxu0
      %v683 = vadd.f32 0.0, %v682
      %v684 = vpop.f32.mrb[0].mxu0
      %685 = vdwg.mxu0
      %686 = vmatprep.subr.bf16.mxu0 0
      %687 = vmatpush1.bf16.msra.mxu0 %v597
      %688 = vmatprep.subr.bf16.mxu0 0
      %689 = vmatpush1.bf16.msra.mxu0 %v598
      %690 = vmatprep.subr.bf16.mxu0 0
      %691 = vmatpush1.bf16.msra.mxu0 %v599
      %692 = vmatprep.subr.bf16.mxu0 0
      %693 = vmatpush1.bf16.msra.mxu0 %v600
      %694 = vmatprep.subr.bf16.mxu0 0
      %695 = vmatpush1.bf16.msra.mxu0 %v601
      %696 = vmatprep.subr.bf16.mxu0 0
      %697 = vmatpush1.bf16.msra.mxu0 %v602
      %698 = vmatprep.subr.bf16.mxu0 0
      %699 = vmatpush1.bf16.msra.mxu0 %v603
      %700 = vmatprep.subr.bf16.mxu0 0
      %701 = vmatpush1.bf16.msra.mxu0 %v604
      %702 = vmatprep.subr.bf16.mxu0 0
      %703 = vmatpush1.bf16.msra.mxu0 %v605
      %704 = vmatprep.subr.bf16.mxu0 0
      %705 = vmatpush1.bf16.msra.mxu0 %v606
      %706 = vmatprep.subr.bf16.mxu0 0
      %707 = vmatpush1.bf16.msra.mxu0 %v607
      %708 = vmatprep.subr.bf16.mxu0 0
      %709 = vmatpush1.bf16.msra.mxu0 %v608
      %710 = vmatprep.subr.bf16.mxu0 0
      %711 = vmatpush1.bf16.msra.mxu0 %v609
      %712 = vmatprep.subr.bf16.mxu0 0
      %713 = vmatpush1.bf16.msra.mxu0 %v610
      %714 = vmatprep.subr.bf16.mxu0 0
      %715 = vmatpush1.bf16.msra.mxu0 %v611
      %716 = vmatprep.subr.bf16.mxu0 0
      %717 = vmatpush1.bf16.msra.mxu0 %v612
      %718 = vmatprep.mubr.bf16.mxu0 %v451
      %719 = vmatmul.mubr.bf16.gmra.mrb[0].mxu0 %v447
      %v720 = vpop.f32.mrb[0].mxu0
      %v721 = vadd.f32 %v680, %v720
      %v722 = vpop.f32.mrb[0].mxu0
      %v723 = vpop.f32.mrb[0].mxu0
      %v724 = vadd.f32 %v683, %v723
      %v725 = vpop.f32.mrb[0].mxu0
      %726 = vdwg.mxu0
      %727 = vst [vmem:[#allocation2] sm:$0x7] %v721
      %s728 = scalar_lea.vmem [#allocation2], 4
      %729 = vst [vmem:[%s728 - $0x3] sm:$0x38] %v721
      %s730 = scalar_lea.vmem [#allocation2], 8
      %731 = vst [vmem:[%s730 - $0x6] sm:$0xc0] %v721
      %732 = vst [vmem:[%s730 + $0x2] sm:$0x1] %v724
      %vm733 = vcmask 1040384
      %v734 = vsel %vm733, %v724, 0.0
      %v735 = vadd.f32 %v721, %v734
      %v736 = vrot.slane %v735, 4
      %v737 = vadd.f32 %v735, %v736
      %v738 = vrot.slane %v737, 2
      %v739 = vadd.f32 %v737, %v738
      %v740 = vrot.slane %v739, 1
      %v741 = vadd.f32 %v739, %v740
      %v742 = vadd.f32 %v741, 0.0
      %v743 = vmul.f32 %v721, %v721
      %v744 = vmul.f32 %v724, %v724
      %v745 = vsel %vm733, %v744, 0.0
      %v746 = vadd.f32 %v743, %v745
      %v747 = vrot.slane %v746, 4
      %v748 = vadd.f32 %v746, %v747
      %v749 = vrot.slane %v748, 2
      %v750 = vadd.f32 %v748, %v749
      %v751 = vrot.slane %v750, 1
      %v752 = vadd.f32 %v750, %v751
      %v753 = vadd.f32 %v752, 0.0
      %v754 = vmul.f32 %v742, 0.11111111
      %v755 = vmul.f32 %v753, 0.11111111
      %v756 = vmul.f32 %v754, %v754
      %v757 = vsub.f32 %v755, %v756
      %v758 = vmax.f32 %v757, 0.0
      %v759 = vadd.f32 %v758, 1e-05
      %v760 = vrsqrt.pop %v759
      loop: start=0, step=1, limit=3
      $region29: #{discriminator_forward.8} parent=27 // loop_pre_header
        _
      $region30: #{discriminator_forward.8} parent=27 // loop_header
        %s762 = sphi 0, %s766
        %p763 = scmp.ge.s32.totalorder %s762, 3
      $region31: #{discriminator_forward.8} parent=27 // loop_header_branch
        %765 = sbr.rel (%p763) target = $region35
      $region32: #{discriminator_forward.8} parent=27 // loop_body
        %s767 = smul.u32 %s762, 4
        %s768 = scalar_lea.vmem [#allocation2], %s767
        %v769 = vld [vmem:[%s768] sm:$0x7]
        %v770 = vsub.f32 %v769, %v754
        %v771 = vmul.f32 %v770, %v760
        %vm772 = vcmp.gt.f32.partialorder %v771, 0.0
        %v773 = vmul.f32 %v771, 0.2
        %v774 = vsel %vm772, %v771, %v773
        %v775 = vpack.c.bf16 %v774, %v774
        %s776 = smul.addr %s762, 2
        %s777 = scalar_lea.vmem %s143, %s776
        %v778 = vld [vmem:[%s777] sm:$0x3]
        %v779 = vsel %vm431, %v775, %v778
        %780 = vst [vmem:[%s777] sm:$0x3] %v779
      $region33: #{discriminator_forward.8} parent=27 // loop_footer
        %s766 = sadd.s32 1, %s762
      $region34: #{discriminator_forward.8} parent=27 // loop_footer_branch
        %761 = sbr.rel target = $region30
      $region35: #{discriminator_forward.8} parent=27 // loop_exit
        _
      %p781 = scmp.lt.s32.totalorder %s13, 1
      %s782 = scalar_select %p781, %s13, 1
      %s783 = smul.addr %s782, 3
      %s784 = smul.addr %s783, 2
      %s785 = scalar_lea.vmem %s2, %s784
      // Predicated region
      $region36: #{discriminator_forward.8} parent=27 // pred_check
        %p786 = pneg %p78
      $region37: #{discriminator_forward.8} parent=27 // pred_check_branch
        %788 = sbr.rel (%p786) target = $region39
      $region38: #{discriminator_forward.8} parent=27 // pred_region
        _
      $region39: #{discriminator_forward.8} parent=27 // pred_fallthru
        _
    $region28: #{discriminator_forward.8} parent=5 // pred_fallthru
      _
    %p789 = scmp.le.s32.totalorder 2, %s8
    // Predicated region
    $region40: #{discriminator_forward.8} parent=5 // pred_check
      %p790 = pneg %p789
    $region41: #{discriminator_forward.8} parent=5 // pred_check_branch
      %792 = sbr.rel (%p790) target = $region43
    $region42: #{discriminator_forward.8} parent=5 // pred_region
      %s793 = ssub.s32 %s8, 2
      // Predicated region
      $region44: #{discriminator_forward.8} parent=42 // pred_check
        %p794 = pneg %p84
      $region45: #{discriminator_forward.8} parent=42 // pred_check_branch
        %796 = sbr.rel (%p794) target = $region47
      $region46: #{discriminator_forward.8} parent=42 // pred_region
        %p797 = scmp.lt.s32.totalorder %s14, 1
        %s798 = scalar_select %p797, %s14, 1
        %s799 = smul.addr %s798, 3
        %s800 = smul.addr %s799, 2
        %s801 = scalar_lea.vmem %s2, %s800
      $region47: #{discriminator_forward.8} parent=42 // pred_fallthru
        _
    $region43: #{discriminator_forward.8} parent=5 // pred_fallthru
      _
  $region6: #{discriminator_forward.8} parent=0 // loop_footer
    %s12 = sadd.s32 1, %s8
  $region7: #{discriminator_forward.8} parent=0 // loop_footer_branch
    %7 = sbr.rel target = $region3
  $region8: #{discriminator_forward.8} parent=0 // loop_exit
    _

// kernel: discriminator_forward.9
$region0: #{discriminator_forward.9}
  #allocation0 [shape = 'u32[]', space=smem, size = 0x4, offset = 0x4, fixed_abs, tag = 'smem constant byte address 0x4 - core index']
  #allocation1 [shape = 'u32[144,128]{1,0:T(1,128)}', space=vmem, size = 0x12000, scoped, tag = 'internal scratch']
  %s0 = inlined_call_operand.vmem [shape: bf16[2,5,5,64], index: 0, kind: input, shape index: {}]
  %s1 = inlined_call_operand.vmem [shape: bf16[1024,128], index: 1, kind: input, shape index: {}]
  %s2 = inlined_call_operand.vmem [shape: f32[1,128], index: 2, kind: input, shape index: {}]
  %s3 = inlined_call_operand.vmem [shape: f32[2,2,2,128], index: 3, kind: output, shape index: {}]
  %s4 = sld [smem:[#allocation0]]
  $region45: #{discriminator_forward.9} parent=0
    _
  %s6 = ssub.s32 1, %s4
  %s7 = scalar_select 0, %s6, %s4
  loop: start=0, step=1, limit=4
  $region2: #{discriminator_forward.9} parent=0 // loop_pre_header
    _
  $region3: #{discriminator_forward.9} parent=0 // loop_header
    %s9 = sphi 0, %s13
    %p10 = scmp.ge.s32.totalorder %s9, 4
    %s19 = sphi 0, %s21
    %s22 = sphi 0, %s19
    %s23 = sphi 0, %s22
    %s39 = sphi 0, %s23
    %s43 = sphi 0, %s43
    %s45 = sphi 0, %s43
    %s46 = sphi 0, %s45
    %s60 = sphi 0, %s46
    %s64 = sphi 0, %s64
    %s66 = sphi 0, %s64
    %s67 = sphi 0, %s66
    %s81 = sphi 0, %s67
    %s87 = sphi 0, %s89
    %s90 = sphi 0, %s87
    %s91 = sphi 0, %s90
    %s107 = sphi 0, %s91
  $region4: #{discriminator_forward.9} parent=0 // loop_header_branch
    %12 = sbr.rel (%p10) target = $region8
  $region5: #{discriminator_forward.9} parent=0 // loop_body
    %s14 = ssub.s32 %s9, 1
    %s15 = ssub.s32 %s9, 2
    %s16 = sadd.s32 %s9, 1
    %s17 = ssub.s32 %s9, %s16
    %p18 = scmp.eq.s32.totalorder %s17, 0
    %s20 = sadd.s32 %s19, 1
    %s21 = scalar_select %p18, %s19, %s20
    %p24 = pneg %p18
    %p25 = scmp.eq.s32.totalorder %s9, 1
    %p26 = por %p24, %p25
    %p27 = scmp.ne.s32.totalorder %s19, %s22
    %p28 = scmp.eq.s32.totalorder %s9, 0
    %p29 = por %p27, %p28
    %p30 = scmp.ne.s32.totalorder %s19, %s22
    %p31 = scmp.eq.s32.totalorder %s14, 1
    %p32 = por %p30, %p31
    %p33 = scmp.ne.s32.totalorder %s22, %s23
    %p34 = scmp.eq.s32.totalorder %s14, 0
    %p35 = por %p33, %p34
    %p36 = scmp.ne.s32.totalorder %s22, %s23
    %p37 = scmp.eq.s32.totalorder %s15, 1
    %p38 = por %p36, %p37
    %p40 = scmp.ne.s32.totalorder %s23, %s39
    %p41 = scmp.eq.s32.totalorder %s15, 0
    %p42 = por %p40, %p41
    %s44 = sadd.s32 %s43, 1
    %p47 = scmp.eq.s32.totalorder %s9, 1
    %p48 = scmp.ne.s32.totalorder %s43, %s45
    %p49 = scmp.eq.s32.totalorder %s9, 0
    %p50 = por %p48, %p49
    %p51 = scmp.ne.s32.totalorder %s43, %s45
    %p52 = scmp.eq.s32.totalorder %s14, 1
    %p53 = por %p51, %p52
    %p54 = scmp.ne.s32.totalorder %s45, %s46
    %p55 = scmp.eq.s32.totalorder %s14, 0
    %p56 = por %p54, %p55
    %p57 = scmp.ne.s32.totalorder %s45, %s46
    %p58 = scmp.eq.s32.totalorder %s15, 1
    %p59 = por %p57, %p58
    %p61 = scmp.ne.s32.totalorder %s46, %s60
    %p62 = scmp.eq.s32.totalorder %s15, 0
    %p63 = por %p61, %p62
    %s65 = sadd.s32 %s64, 1
    %p68 = scmp.eq.s32.totalorder %s9, 1
    %p69 = scmp.ne.s32.totalorder %s64, %s66
    %p70 = scmp.eq.s32.totalorder %s9, 0
    %p71 = por %p69, %p70
    %p72 = scmp.ne.s32.totalorder %s64, %s66
    %p73 = scmp.eq.s32.totalorder %s14, 1
    %p74 = por %p72, %p73
    %p75 = scmp.ne.s32.totalorder %s66, %s67
    %p76 = scmp.eq.s32.totalorder %s14, 0
    %p77 = por %p75, %p76
    %p78 = scmp.ne.s32.totalorder %s66, %s67
    %p79 = scmp.eq.s32.totalorder %s15, 1
    %p80 = por %p78, %p79
    %p82 = scmp.ne.s32.totalorder %s67, %s81
    %p83 = scmp.eq.s32.totalorder %s15, 0
    %p84 = por %p82, %p83
    %s85 = ssub.s32 %s9, %s16
    %p86 = scmp.eq.s32.totalorder %s85, 0
    %s88 = sadd.s32 %s87, 1
    %s89 = scalar_select %p86, %s87, %s88
    %p92 = pneg %p86
    %p93 = scmp.eq.s32.totalorder %s9, 1
    %p94 = por %p92, %p93
    %p95 = scmp.ne.s32.totalorder %s87, %s90
    %p96 = scmp.eq.s32.totalorder %s9, 0
    %p97 = por %p95, %p96
    %p98 = scmp.ne.s32.totalorder %s87, %s90
    %p99 = scmp.eq.s32.totalorder %s14, 1
    %p100 = por %p98, %p99
    %p101 = scmp.ne.s32.totalorder %s90, %s91
    %p102 = scmp.eq.s32.totalorder %s14, 0
    %p103 = por %p101, %p102
    %p104 = scmp.ne.s32.totalorder %s90, %s91
    %p105 = scmp.eq.s32.totalorder %s15, 1
    %p106 = por %p104, %p105
    %p108 = scmp.ne.s32.totalorder %s91, %s107
    %p109 = scmp.eq.s32.totalorder %s15, 0
    %p110 = por %p108, %p109
    %p111 = scmp.le.s32.totalorder 1, %s9
    %p112 = scmp.lt.s32.totalorder %s9, 3
    %p113 = pnand %p111, %p112
    %p114 = pneg %p113
    // Predicated region
    $region9: #{discriminator_forward.9} parent=5 // pred_check
      _
    $region10: #{discriminator_forward.9} parent=5 // pred_check_branch
      %116 = sbr.rel (%p113) target = $region12
    $region11: #{discriminator_forward.9} parent=5 // pred_region
      %s117 = ssub.s32 %s9, 1
      // Predicated region
      $region13: #{discriminator_forward.9} parent=11 // pred_check
        %p118 = pneg %p56
      $region14: #{discriminator_forward.9} parent=11 // pred_check_branch
        %120 = sbr.rel (%p118) target = $region16
      $region15: #{discriminator_forward.9} parent=11 // pred_region
        _
      $region16: #{discriminator_forward.9} parent=11 // pred_fallthru
        _
      // Predicated region
      $region17: #{discriminator_forward.9} parent=11 // pred_check
        %p121 = pneg %p77
      $region18: #{discriminator_forward.9} parent=11 // pred_check_branch
        %123 = sbr.rel (%p121) target = $region20
      $region19: #{discriminator_forward.9} parent=11 // pred_region
        _
      $region20: #{discriminator_forward.9} parent=11 // pred_fallthru
        _
    $region12: #{discriminator_forward.9} parent=5 // pred_fallthru
      _
    %p124 = scmp.lt.s32.totalorder %s9, 2
    // Predicated region
    $region21: #{discriminator_forward.9} parent=5 // pred_check
      %p125 = pneg %p124
    $region22: #{discriminator_forward.9} parent=5 // pred_check_branch
      %127 = sbr.rel (%p125) target = $region24
    $region23: #{discriminator_forward.9} parent=5 // pred_region
      // Predicated region
      $region25: #{discriminator_forward.9} parent=23 // pred_check
        %p128 = pneg %p29
      $region26: #{discriminator_forward.9} parent=23 // pred_check_branch
        %130 = sbr.rel (%p128) target = $region28
      $region27: #{discriminator_forward.9} parent=23 // pred_region
        %p131 = scmp.lt.s32.totalorder %s9, 1
        %s132 = scalar_select %p131, %s9, 1
        %s133 = smul.addr %s132, 5
        %s134 = smul.addr %s133, 4
        %s135 = scalar_lea.vmem %s0, %s134
      $region28: #{discriminator_forward.9} parent=23 // pred_fallthru
        _
    $region24: #{discriminator_forward.9} parent=5 // pred_fallthru
      _
    %p136 = scmp.le.s32.totalorder 1, %s9
    %p137 = scmp.lt.s32.totalorder %s9, 3
    %p138 = pnand %p136, %p137
    %p139 = pneg %p138
    // Predicated region
    $region29: #{discriminator_forward.9} parent=5 // pred_check
      _
    $region30: #{discriminator_forward.9} parent=5 // pred_check_branch
      %141 = sbr.rel (%p138) target = $region32
    $region31: #{discriminator_forward.9} parent=5 // pred_region
      %s142 = ssub.s32 %s9, 1
      %p143 = scmp.lt.s32.totalorder %s14, 1
      %s144 = scalar_select %p143, %s14, 1
      %s145 = smul.addr %s144, 5
      %s146 = smul.addr %s145, 4
      %s147 = scalar_lea.vmem %s0, %s146
      %p148 = pneg %p35
      %p149 = pneg %p32
      %p150 = pneg %p56
      %p151 = pneg %p53
      %p152 = pneg %p77
      %p153 = pneg %p74
      %p154 = pneg %p103
      %p155 = pneg %p100
      %p156 = scmp.lt.s32.totalorder %s14, 1
      %s157 = scalar_select %p156, %s14, 1
      %s158 = smul.addr %s157, 2
      %s159 = smul.addr %s158, 2
      %s160 = scalar_lea.vmem %s3, %s159
      %p161 = scmp.lt.s32.totalorder %s14, 1
      %s162 = scalar_select %p161, %s14, 1
      %s163 = smul.addr %s162, 5
      %s164 = smul.addr %s163, 4
      %s165 = scalar_lea.vmem %s0, %s164
      %p166 = scmp.lt.s32.totalorder %s14, 1
      %s167 = scalar_select %p166, %s14, 1
      %s168 = smul.addr %s167, 2
      %s169 = smul.addr %s168, 2
      %s170 = scalar_lea.vmem %s3, %s169
      %v172 = vld [vmem:[%s1] sm:$0xf]
      %v173 = vld [vmem:[%s1 + $0x4] sm:$0xf]
      %v174 = vld [vmem:[%s1 + $0x8] sm:$0xf]
      %v175 = vld [vmem:[%s1 + $0xc] sm:$0xf]
      %v176 = vld [vmem:[%s1 + $0x10] sm:$0xf]
      %v177 = vld [vmem:[%s1 + $0x14] sm:$0xf]
      %v178 = vld [vmem:[%s1 + $0x18] sm:$0xf]
      %v179 = vld [vmem:[%s1 + $0x1c] sm:$0xf]
      %v180 = vld [vmem:[%s1 + $0x20] sm:$0xf]
      %v181 = vld [vmem:[%s1 + $0x24] sm:$0xf]
      %v182 = vld [vmem:[%s1 + $0x28] sm:$0xf]
      %v183 = vld [vmem:[%s1 + $0x2c] sm:$0xf]
      %v184 = vld [vmem:[%s1 + $0x30] sm:$0xf]
      %v185 = vld [vmem:[%s1 + $0x34] sm:$0xf]
      %v186 = vld [vmem:[%s1 + $0x38] sm:$0xf]
      %v187 = vld [vmem:[%s1 + $0x3c] sm:$0xf]
      %v188 = vld [vmem:[%s1 + $0x40] sm:$0xf]
      %v189 = vld [vmem:[%s1 + $0x44] sm:$0xf]
      %v190 = vld [vmem:[%s1 + $0x48] sm:$0xf]
      %v191 = vld [vmem:[%s1 + $0x4c] sm:$0xf]
      %v192 = vld [vmem:[%s1 + $0x50] sm:$0xf]
      %v193 = vld [vmem:[%s1 + $0x54] sm:$0xf]
      %v194 = vld [vmem:[%s1 + $0x58] sm:$0xf]
      %v195 = vld [vmem:[%s1 + $0x5c] sm:$0xf]
      %v196 = vld [vmem:[%s1 + $0x60] sm:$0xf]
      %v197 = vld [vmem:[%s1 + $0x64] sm:$0xf]
      %v198 = vld [vmem:[%s1 + $0x68] sm:$0xf]
      %v199 = vld [vmem:[%s1 + $0x6c] sm:$0xf]
      %v200 = vld [vmem:[%s1 + $0x70] sm:$0xf]
      %v201 = vld [vmem:[%s1 + $0x74] sm:$0xf]
      %v202 = vld [vmem:[%s1 + $0x78] sm:$0xf]
      %v203 = vld [vmem:[%s1 + $0x7c] sm:$0xf]
      %v204 = vld [vmem:[%s1 + $0x80] sm:$0xf]
      %v205 = vld [vmem:[%s1 + $0x84] sm:$0xf]
      %v206 = vld [vmem:[%s1 + $0x88] sm:$0xf]
      %v207 = vld [vmem:[%s1 + $0x8c] sm:$0xf]
      %v208 = vld [vmem:[%s1 + $0x90] sm:$0xf]
      %v209 = vld [vmem:[%s1 + $0x94] sm:$0xf]
      %v210 = vld [vmem:[%s1 + $0x98] sm:$0xf]
      %v211 = vld [vmem:[%s1 + $0x9c] sm:$0xf]
      %v212 = vld [vmem:[%s1 + $0xa0] sm:$0xf]
      %v213 = vld [vmem:[%s1 + $0xa4] sm:$0xf]
      %v214 = vld [vmem:[%s1 + $0xa8] sm:$0xf]
      %v215 = vld [vmem:[%s1 + $0xac] sm:$0xf]
      %v216 = vld [vmem:[%s1 + $0xb0] sm:$0xf]
      %v217 = vld [vmem:[%s1 + $0xb4] sm:$0xf]
      %v218 = vld [vmem:[%s1 + $0xb8] sm:$0xf]
      %v219 = vld [vmem:[%s1 + $0xbc] sm:$0xf]
      %v220 = vld [vmem:[%s1 + $0xc0] sm:$0xf]
      %v221 = vld [vmem:[%s1 + $0xc4] sm:$0xf]
      %v222 = vld [vmem:[%s1 + $0xc8] sm:$0xf]
      %v223 = vld [vmem:[%s1 + $0xcc] sm:$0xf]
      %v224 = vld [vmem:[%s1 + $0xd0] sm:$0xf]
      %v225 = vld [vmem:[%s1 + $0xd4] sm:$0xf]
      %v226 = vld [vmem:[%s1 + $0xd8] sm:$0xf]
      %v227 = vld [vmem:[%s1 + $0xdc] sm:$0xf]
      %v228 = vld [vmem:[%s1 + $0xe0] sm:$0xf]
      %v229 = vld [vmem:[%s1 + $0xe4] sm:$0xf]
      %v230 = vld [vmem:[%s1 + $0xe8] sm:$0xf]
      %v231 = vld [vmem:[%s1 + $0xec] sm:$0xf]
      %v232 = vld [vmem:[%s1 + $0xf0] sm:$0xf]
      %v233 = vld [vmem:[%s1 + $0xf4] sm:$0xf]
      %v234 = vld [vmem:[%s1 + $0xf8] sm:$0xf]
      %v235 = vld [vmem:[%s1 + $0xfc] sm:$0xf]
      %v236 = vld [vmem:[%s1 + $0x100] sm:$0xf]
      %v237 = vld [vmem:[%s1 + $0x104] sm:$0xf]
      %v238 = vld [vmem:[%s1 + $0x108] sm:$0xf]
      %v239 = vld [vmem:[%s1 + $0x10c] sm:$0xf]
      %v240 = vld [vmem:[%s1 + $0x110] sm:$0xf]
      %v241 = vld [vmem:[%s1 + $0x114] sm:$0xf]
      %v242 = vld [vmem:[%s1 + $0x118] sm:$0xf]
      %v243 = vld [vmem:[%s1 + $0x11c] sm:$0xf]
      %v244 = vld [vmem:[%s1 + $0x120] sm:$0xf]
      %v245 = vld [vmem:[%s1 + $0x124] sm:$0xf]
      %v246 = vld [vmem:[%s1 + $0x128] sm:$0xf]
      %v247 = vld [vmem:[%s1 + $0x12c] sm:$0xf]
      %v248 = vld [vmem:[%s1 + $0x130] sm:$0xf]
      %v249 = vld [vmem:[%s1 + $0x134] sm:$0xf]
      %v250 = vld [vmem:[%s1 + $0x138] sm:$0xf]
      %v251 = vld [vmem:[%s1 + $0x13c] sm:$0xf]
      %v252 = vld [vmem:[%s1 + $0x140] sm:$0xf]
      %v253 = vld [vmem:[%s1 + $0x144] sm:$0xf]
      %v254 = vld [vmem:[%s1 + $0x148] sm:$0xf]
      %v255 = vld [vmem:[%s1 + $0x14c] sm:$0xf]
      %v256 = vld [vmem:[%s1 + $0x150] sm:$0xf]
      %v257 = vld [vmem:[%s1 + $0x154] sm:$0xf]
      %v258 = vld [vmem:[%s1 + $0x158] sm:$0xf]
      %v259 = vld [vmem:[%s1 + $0x15c] sm:$0xf]
      %v260 = vld [vmem:[%s1 + $0x160] sm:$0xf]
      %v261 = vld [vmem:[%s1 + $0x164] sm:$0xf]
      %v262 = vld [vmem:[%s1 + $0x168] sm:$0xf]
      %v263 = vld [vmem:[%s1 + $0x16c] sm:$0xf]
      %v264 = vld [vmem:[%s1 + $0x170] sm:$0xf]
      %v265 = vld [vmem:[%s1 + $0x174] sm:$0xf]
      %v266 = vld [vmem:[%s1 + $0x178] sm:$0xf]
      %v267 = vld [vmem:[%s1 + $0x17c] sm:$0xf]
      %v268 = vld [vmem:[%s1 + $0x180] sm:$0xf]
      %v269 = vld [vmem:[%s1 + $0x184] sm:$0xf]
      %v270 = vld [vmem:[%s1 + $0x188] sm:$0xf]
      %v271 = vld [vmem:[%s1 + $0x18c] sm:$0xf]
      %v272 = vld [vmem:[%s1 + $0x190] sm:$0xf]
      %v273 = vld [vmem:[%s1 + $0x194] sm:$0xf]
      %v274 = vld [vmem:[%s1 + $0x198] sm:$0xf]
      %v275 = vld [vmem:[%s1 + $0x19c] sm:$0xf]
      %v276 = vld [vmem:[%s1 + $0x1a0] sm:$0xf]
      %v277 = vld [vmem:[%s1 + $0x1a4] sm:$0xf]
      %v278 = vld [vmem:[%s1 + $0x1a8] sm:$0xf]
      %v279 = vld [vmem:[%s1 + $0x1ac] sm:$0xf]
      %v280 = vld [vmem:[%s1 + $0x1b0] sm:$0xf]
      %v281 = vld [vmem:[%s1 + $0x1b4] sm:$0xf]
      %v282 = vld [vmem:[%s1 + $0x1b8] sm:$0xf]
      %v283 = vld [vmem:[%s1 + $0x1bc] sm:$0xf]
      %v284 = vld [vmem:[%s1 + $0x1c0] sm:$0xf]
      %v285 = vld [vmem:[%s1 + $0x1c4] sm:$0xf]
      %v286 = vld [vmem:[%s1 + $0x1c8] sm:$0xf]
      %v287 = vld [vmem:[%s1 + $0x1cc] sm:$0xf]
      %v288 = vld [vmem:[%s1 + $0x1d0] sm:$0xf]
      %v289 = vld [vmem:[%s1 + $0x1d4] sm:$0xf]
      %v290 = vld [vmem:[%s1 + $0x1d8] sm:$0xf]
      %v291 = vld [vmem:[%s1 + $0x1dc] sm:$0xf]
      %v292 = vld [vmem:[%s1 + $0x1e0] sm:$0xf]
      %v293 = vld [vmem:[%s1 + $0x1e4] sm:$0xf]
      %v294 = vld [vmem:[%s1 + $0x1e8] sm:$0xf]
      %v295 = vld [vmem:[%s1 + $0x1ec] sm:$0xf]
      %v296 = vld [vmem:[%s1 + $0x1f0] sm:$0xf]
      %v297 = vld [vmem:[%s1 + $0x1f4] sm:$0xf]
      %v298 = vld [vmem:[%s1 + $0x1f8] sm:$0xf]
      %v299 = vld [vmem:[%s1 + $0x1fc] sm:$0xf]
      %v300 = vld [vmem:[%s2] sm:$0x1]
      %v301 = vld [vmem:[%s165] sm:$0x7]
      %s302 = scalar_lea.vmem %s165, 4
      %v303 = vld [vmem:[%s302] sm:$0x7]
      %s304 = scalar_lea.vmem %s165, 8
      %v305 = vld [vmem:[%s304] sm:$0x7]
      %s306 = scalar_lea.vmem %s165, 12
      %v307 = vld [vmem:[%s306] sm:$0x7]
      %v309 = vunpack.c.l.b16 %v301
      %v310 = vpack.c.b16 %v309, %v309
      %v312 = vshrl.u32 %v310, 16
      %v314 = vshll.u32 %v310, 16
      %v316 = vrot.slane %v314, 1
      %v317 = vor.u32 %v312, %v316
      %318 = vrot.lane.b32.xlu0 %v317, 64
      %v319 = vpop.permute.xlu0 %318
      %v320 = vrot.slane %v310, 1
      %v321 = vrot.slane %v312, 1
      %v322 = vrot.slane %v314, 2
      %v323 = vor.u32 %v321, %v322
      %324 = vrot.lane.b32.xlu0 %v323, 64
      %v325 = vpop.permute.xlu0 %324
      %v327 = vunpack.c.l.b16 %v303
      %v328 = vpack.c.b16 %v327, %v327
      %v330 = vshrl.u32 %v328, 16
      %v332 = vshll.u32 %v328, 16
      %v334 = vrot.slane %v332, 1
      %v335 = vor.u32 %v330, %v334
      %336 = vrot.lane.b32.xlu0 %v335, 64
      %v337 = vpop.permute.xlu0 %336
      %v338 = vrot.slane %v328, 1
      %v339 = vrot.slane %v330, 1
      %v340 = vrot.slane %v332, 2
      %v341 = vor.u32 %v339, %v340
      %342 = vrot.lane.b32.xlu0 %v341, 64
      %v343 = vpop.permute.xlu0 %342
      %v345 = vunpack.c.l.b16 %v305
      %v346 = vpack.c.b16 %v345, %v345
      %v348 = vshrl.u32 %v346, 16
      %v350 = vshll.u32 %v346, 16
      %v352 = vrot.slane %v350, 1
      %v353 = vor.u32 %v348, %v352
      %354 = vrot.lane.b32.xlu0 %v353, 64
      %v355 = vpop.permute.xlu0 %354
      %v356 = vrot.slane %v346, 1
      %v357 = vrot.slane %v348, 1
      %v358 = vrot.slane %v350, 2
      %v359 = vor.u32 %v357, %v358
      %360 = vrot.lane.b32.xlu0 %v359, 64
      %v361 = vpop.permute.xlu0 %360
      %v363 = vunpack.c.l.b16 %v307
      %v364 = vpack.c.b16 %v363, %v363
      %v366 = vshrl.u32 %v364, 16
      %v368 = vshll.u32 %v364, 16
      %v370 = vrot.slane %v368, 1
      %v371 = vor.u32 %v366, %v370
      %372 = vrot.lane.b32.xlu0 %v371, 64
      %v373 = vpop.permute.xlu0 %372
      %v374 = vrot.slane %v364, 1
      %v375 = vrot.slane %v366, 1
      %v376 = vrot.slane %v368, 2
      %v377 = vor.u32 %v375, %v376
      %378 = vrot.lane.b32.xlu0 %v377, 64
      %v379 = vpop.permute.xlu0 %378
      %vm380 = vcmask 523264
      %v383 = vsel %vm380, %v301, %v319
      %v386 = vsel %vm380, %v320, %v325
      %v389 = vsel %vm380, %v303, %v337
      %v392 = vsel %vm380, %v338, %v343
      %v395 = vsel %vm380, %v305, %v355
      %v398 = vsel %vm380, %v356, %v361
      %v401 = vsel %vm380, %v307, %v373
      %v404 = vsel %vm380, %v374, %v379
      %s405 = scalar_lea.vmem %s165, 16
      %v406 = vld [vmem:[%s405] sm:$0x7]
      %v408 = vunpack.c.l.b16 %v406
      %v409 = vpack.c.b16 %v408, %v408
      %v411 = vshrl.u32 %v409, 16
      %v413 = vshll.u32 %v409, 16
      %v415 = vrot.slane %v413, 1
      %v416 = vor.u32 %v411, %v415
      %417 = vrot.lane.b32.xlu0 %v416, 64
      %v418 = vpop.permute.xlu0 %417
      %v419 = vrot.slane %v409, 1
      %v420 = vrot.slane %v411, 1
      %v421 = vrot.slane %v413, 2
      %v422 = vor.u32 %v420, %v421
      %423 = vrot.lane.b32.xlu0 %v422, 64
      %v424 = vpop.permute.xlu0 %423
      %v427 = vsel %vm380, %v406, %v418
      %v430 = vsel %vm380, %v419, %v424
      %v439 = vrot.slane %v389, 7
      %v440 = vrot.slane %v392, 7
      %v441 = vrot.slane %v395, 7
      %v442 = vrot.slane %v398, 7
      %v443 = vrot.slane %v401, 7
      %v444 = vrot.slane %v404, 7
      %v445 = vrot.slane %v427, 7
      %v446 = vrot.slane %v430, 7
      %vm447 = vcmask 1040384
      %v449 = vsel %vm447, %v383, %v439
      %v452 = vsel %vm447, %v386, %v440
      %v455 = vsel %vm447, %v389, %v441
      %v458 = vsel %vm447, %v392, %v442
      %v461 = vsel %vm447, %v395, %v443
      %v464 = vsel %vm447, %v398, %v444
      %v467 = vsel %vm447, %v401, %v445
      %v470 = vsel %vm447, %v404, %v446
      %v473 = vlaneseq
      %v474 = vshrl.u32 %v473, 7
      %v475 = vsub.s32 0, %v474
      %v476 = vrot.slane %v300, %v475
      %v606 = vunpack.c.l.b16 %v172
      %v607 = vunpack.c.l.b16 %v173
      %v608 = vunpack.c.l.b16 %v174
      %v609 = vunpack.c.l.b16 %v175
      %v610 = vunpack.c.l.b16 %v176
      %v611 = vunpack.c.l.b16 %v177
      %v612 = vunpack.c.l.b16 %v178
      %v613 = vunpack.c.l.b16 %v179
      %v614 = vunpack.c.l.b16 %v180
      %v615 = vunpack.c.l.b16 %v181
      %v616 = vunpack.c.l.b16 %v182
      %v617 = vunpack.c.l.b16 %v183
      %v618 = vunpack.c.l.b16 %v184
      %v619 = vunpack.c.l.b16 %v185
      %v620 = vunpack.c.l.b16 %v186
      %v621 = vunpack.c.l.b16 %v187
      %v622 = vunpack.c.l.b16 %v188
      %v623 = vunpack.c.l.b16 %v189
      %v624 = vunpack.c.l.b16 %v190
      %v625 = vunpack.c.l.b16 %v191
      %v626 = vunpack.c.l.b16 %v192
      %v627 = vunpack.c.l.b16 %v193
      %v628 = vunpack.c.l.b16 %v194
      %v629 = vunpack.c.l.b16 %v195
      %v630 = vunpack.c.l.b16 %v196
      %v631 = vunpack.c.l.b16 %v197
      %v632 = vunpack.c.l.b16 %v198
      %v633 = vunpack.c.l.b16 %v199
      %v634 = vunpack.c.l.b16 %v200
      %v635 = vunpack.c.l.b16 %v201
      %v636 = vunpack.c.l.b16 %v202
      %v637 = vunpack.c.l.b16 %v203
      %v638 = vunpack.c.l.b16 %v204
      %v639 = vunpack.c.l.b16 %v205
      %v640 = vunpack.c.l.b16 %v206
      %v641 = vunpack.c.l.b16 %v207
      %v642 = vunpack.c.l.b16 %v208
      %v643 = vunpack.c.l.b16 %v209
      %v644 = vunpack.c.l.b16 %v210
      %v645 = vunpack.c.l.b16 %v211
      %v646 = vunpack.c.l.b16 %v212
      %v647 = vunpack.c.l.b16 %v213
      %v648 = vunpack.c.l.b16 %v214
      %v649 = vunpack.c.l.b16 %v215
      %v650 = vunpack.c.l.b16 %v216
      %v651 = vunpack.c.l.b16 %v217
      %v652 = vunpack.c.l.b16 %v218
      %v653 = vunpack.c.l.b16 %v219
      %v654 = vunpack.c.l.b16 %v220
      %v655 = vunpack.c.l.b16 %v221
      %v656 = vunpack.c.l.b16 %v222
      %v657 = vunpack.c.l.b16 %v223
      %v658 = vunpack.c.l.b16 %v224
      %v659 = vunpack.c.l.b16 %v225
      %v660 = vunpack.c.l.b16 %v226
      %v661 = vunpack.c.l.b16 %v227
      %v662 = vunpack.c.l.b16 %v228
      %v663 = vunpack.c.l.b16 %v229
      %v664 = vunpack.c.l.b16 %v230
      %v665 = vunpack.c.l.b16 %v231
      %v666 = vunpack.c.l.b16 %v232
      %v667 = vunpack.c.l.b16 %v233
      %v668 = vunpack.c.l.b16 %v234
      %v669 = vunpack.c.l.b16 %v235
      %v670 = vunpack.c.l.b16 %v236
      %v671 = vunpack.c.l.b16 %v237
      %v672 = vunpack.c.l.b16 %v238
      %v673 = vunpack.c.l.b16 %v239
      %v674 = vunpack.c.l.b16 %v240
      %v675 = vunpack.c.l.b16 %v241
      %v676 = vunpack.c.l.b16 %v242
      %v677 = vunpack.c.l.b16 %v243
      %v678 = vunpack.c.l.b16 %v244
      %v679 = vunpack.c.l.b16 %v245
      %v680 = vunpack.c.l.b16 %v246
      %v681 = vunpack.c.l.b16 %v247
      %v682 = vunpack.c.l.b16 %v248
      %v683 = vunpack.c.l.b16 %v249
      %v684 = vunpack.c.l.b16 %v250
      %v685 = vunpack.c.l.b16 %v251
      %v686 = vunpack.c.l.b16 %v252
      %v687 = vunpack.c.l.b16 %v253
      %v688 = vunpack.c.l.b16 %v254
      %v689 = vunpack.c.l.b16 %v255
      %v690 = vunpack.c.l.b16 %v256
      %v691 = vunpack.c.l.b16 %v257
      %v692 = vunpack.c.l.b16 %v258
      %v693 = vunpack.c.l.b16 %v259
      %v694 = vunpack.c.l.b16 %v260
      %v695 = vunpack.c.l.b16 %v261
      %v696 = vunpack.c.l.b16 %v262
      %v697 = vunpack.c.l.b16 %v263
      %v698 = vunpack.c.l.b16 %v264
      %v699 = vunpack.c.l.b16 %v265
      %v700 = vunpack.c.l.b16 %v266
      %v701 = vunpack.c.l.b16 %v267
      %v702 = vunpack.c.l.b16 %v268
      %v703 = vunpack.c.l.b16 %v269
      %v704 = vunpack.c.l.b16 %v270
      %v705 = vunpack.c.l.b16 %v271
      %v706 = vunpack.c.l.b16 %v272
      %v707 = vunpack.c.l.b16 %v273
      %v708 = vunpack.c.l.b16 %v274
      %v709 = vunpack.c.l.b16 %v275
      %v710 = vunpack.c.l.b16 %v276
      %v711 = vunpack.c.l.b16 %v277
      %v712 = vunpack.c.l.b16 %v278
      %v713 = vunpack.c.l.b16 %v279
      %v714 = vunpack.c.l.b16 %v280
      %v715 = vunpack.c.l.b16 %v281
      %v716 = vunpack.c.l.b16 %v282
      %v717 = vunpack.c.l.b16 %v283
      %v718 = vunpack.c.l.b16 %v284
      %v719 = vunpack.c.l.b16 %v285
      %v720 = vunpack.c.l.b16 %v286
      %v721 = vunpack.c.l.b16 %v287
      %v722 = vunpack.c.l.b16 %v288
      %v723 = vunpack.c.l.b16 %v289
      %v724 = vunpack.c.l.b16 %v290
      %v725 = vunpack.c.l.b16 %v291
      %v726 = vunpack.c.l.b16 %v292
      %v727 = vunpack.c.l.b16 %v293
      %v728 = vunpack.c.l.b16 %v294
      %v729 = vunpack.c.l.b16 %v295
      %v730 = vunpack.c.l.b16 %v296
      %v731 = vunpack.c.l.b16 %v297
      %v732 = vunpack.c.l.b16 %v298
      %v733 = vunpack.c.l.b16 %v299
      %v734 = vpack.c.b16 %v607, %v606
      %v735 = vpack.c.b16 %v609, %v608
      %v736 = vpack.c.b16 %v611, %v610
      %v737 = vpack.c.b16 %v613, %v612
      %v738 = vpack.c.b16 %v615, %v614
      %v739 = vpack.c.b16 %v617, %v616
      %v740 = vpack.c.b16 %v619, %v618
      %v741 = vpack.c.b16 %v621, %v620
      %v742 = vpack.c.b16 %v623, %v622
      %v743 = vpack.c.b16 %v625, %v624
      %v744 = vpack.c.b16 %v627, %v626
      %v745 = vpack.c.b16 %v629, %v628
      %v746 = vpack.c.b16 %v631, %v630
      %v747 = vpack.c.b16 %v633, %v632
      %v748 = vpack.c.b16 %v635, %v634
      %v749 = vpack.c.b16 %v637, %v636
      %v750 = vpack.c.b16 %v639, %v638
      %v751 = vpack.c.b16 %v641, %v640
      %v752 = vpack.c.b16 %v643, %v642
      %v753 = vpack.c.b16 %v645, %v644
      %v754 = vpack.c.b16 %v647, %v646
      %v755 = vpack.c.b16 %v649, %v648
      %v756 = vpack.c.b16 %v651, %v650
      %v757 = vpack.c.b16 %v653, %v652
      %v758 = vpack.c.b16 %v655, %v654
      %v759 = vpack.c.b16 %v657, %v656
      %v760 = vpack.c.b16 %v659, %v658
      %v761 = vpack.c.b16 %v661, %v660
      %v762 = vpack.c.b16 %v663, %v662
      %v763 = vpack.c.b16 %v665, %v664
      %v764 = vpack.c.b16 %v667, %v666
      %v765 = vpack.c.b16 %v669, %v668
      %v766 = vpack.c.b16 %v671, %v670
      %v767 = vpack.c.b16 %v673, %v672
      %v768 = vpack.c.b16 %v675, %v674
      %v769 = vpack.c.b16 %v677, %v676
      %v770 = vpack.c.b16 %v679, %v678
      %v771 = vpack.c.b16 %v681, %v680
      %v772 = vpack.c.b16 %v683, %v682
      %v773 = vpack.c.b16 %v685, %v684
      %v774 = vpack.c.b16 %v687, %v686
      %v775 = vpack.c.b16 %v689, %v688
      %v776 = vpack.c.b16 %v691, %v690
      %v777 = vpack.c.b16 %v693, %v692
      %v778 = vpack.c.b16 %v695, %v694
      %v779 = vpack.c.b16 %v697, %v696
      %v780 = vpack.c.b16 %v699, %v698
      %v781 = vpack.c.b16 %v701, %v700
      %v782 = vpack.c.b16 %v703, %v702
      %v783 = vpack.c.b16 %v705, %v704
      %v784 = vpack.c.b16 %v707, %v706
      %v785 = vpack.c.b16 %v709, %v708
      %v786 = vpack.c.b16 %v711, %v710
      %v787 = vpack.c.b16 %v713, %v712
      %v788 = vpack.c.b16 %v715, %v714
      %v789 = vpack.c.b16 %v717, %v716
      %v790 = vpack.c.b16 %v719, %v718
      %v791 = vpack.c.b16 %v721, %v720
      %v792 = vpack.c.b16 %v723, %v722
      %v793 = vpack.c.b16 %v725, %v724
      %v794 = vpack.c.b16 %v727, %v726
      %v795 = vpack.c.b16 %v729, %v728
      %v796 = vpack.c.b16 %v731, %v730
      %v797 = vpack.c.b16 %v733, %v732
      %862 = vmatprep.subr.bf16.mxu0 0
      %863 = vmatpush1.bf16.msra.mxu0 %v734
      %864 = vmatprep.subr.bf16.mxu0 0
      %865 = vmatpush1.bf16.msra.mxu0 %v735
      %866 = vmatprep.subr.bf16.mxu0 0
      %867 = vmatpush1.bf16.msra.mxu0 %v736
      %868 = vmatprep.subr.bf16.mxu0 0
      %869 = vmatpush1.bf16.msra.mxu0 %v737
      %870 = vmatprep.subr.bf16.mxu0 0
      %871 = vmatpush1.bf16.msra.mxu0 %v738
      %872 = vmatprep.subr.bf16.mxu0 0
      %873 = vmatpush1.bf16.msra.mxu0 %v739
      %874 = vmatprep.subr.bf16.mxu0 0
      %875 = vmatpush1.bf16.msra.mxu0 %v740
      %876 = vmatprep.subr.bf16.mxu0 0
      %877 = vmatpush1.bf16.msra.mxu0 %v741
      %878 = vmatprep.subr.bf16.mxu0 0
      %879 = vmatpush1.bf16.msra.mxu0 %v742
      %880 = vmatprep.subr.bf16.mxu0 0
      %881 = vmatpush1.bf16.msra.mxu0 %v743
      %882 = vmatprep.subr.bf16.mxu0 0
      %883 = vmatpush1.bf16.msra.mxu0 %v744
      %884 = vmatprep.subr.bf16.mxu0 0
      %885 = vmatpush1.bf16.msra.mxu0 %v745
      %886 = vmatprep.subr.bf16.mxu0 0
      %887 = vmatpush1.bf16.msra.mxu0 %v746
      %888 = vmatprep.subr.bf16.mxu0 0
      %889 = vmatpush1.bf16.msra.mxu0 %v747
      %890 = vmatprep.subr.bf16.mxu0 0
      %891 = vmatpush1.bf16.msra.mxu0 %v748
      %892 = vmatprep.subr.bf16.mxu0 0
      %893 = vmatpush1.bf16.msra.mxu0 %v749
      %894 = vmatprep.mubr.bf16.mxu0 %v452
      %895 = vmatmul.mubr.bf16.gmra.mrb[0].mxu0 %v449
      %v896 = vpop.f32.mrb[0].mxu0
      %v897 = vadd.f32 %v476, %v896
      %v898 = vpop.f32.mrb[0].mxu0
      %v899 = vpop.f32.mrb[0].mxu0
      %v900 = vpop.f32.mrb[0].mxu0
      %901 = vdwg.mxu0
      %902 = vmatprep.subr.bf16.mxu0 0
      %903 = vmatpush1.bf16.msra.mxu0 %v750
      %904 = vmatprep.subr.bf16.mxu0 0
      %905 = vmatpush1.bf16.msra.mxu0 %v751
      %906 = vmatprep.subr.bf16.mxu0 0
      %907 = vmatpush1.bf16.msra.mxu0 %v752
      %908 = vmatprep.subr.bf16.mxu0 0
      %909 = vmatpush1.bf16.msra.mxu0 %v753
      %910 = vmatprep.subr.bf16.mxu0 0
      %911 = vmatpush1.bf16.msra.mxu0 %v754
      %912 = vmatprep.subr.bf16.mxu0 0
      %913 = vmatpush1.bf16.msra.mxu0 %v755
      %914 = vmatprep.subr.bf16.mxu0 0
      %915 = vmatpush1.bf16.msra.mxu0 %v756
      %916 = vmatprep.subr.bf16.mxu0 0
      %917 = vmatpush1.bf16.msra.mxu0 %v757
      %918 = vmatprep.subr.bf16.mxu0 0
      %919 = vmatpush1.bf16.msra.mxu0 %v758
      %920 = vmatprep.subr.bf16.mxu0 0
      %921 = vmatpush1.bf16.msra.mxu0 %v759
      %922 = vmatprep.subr.bf16.mxu0 0
      %923 = vmatpush1.bf16.msra.mxu0 %v760
      %924 = vmatprep.subr.bf16.mxu0 0
      %925 = vmatpush1.bf16.msra.mxu0 %v761
      %926 = vmatprep.subr.bf16.mxu0 0
      %927 = vmatpush1.bf16.msra.mxu0 %v762
      %928 = vmatprep.subr.bf16.mxu0 0
      %929 = vmatpush1.bf16.msra.mxu0 %v763
      %930 = vmatprep.subr.bf16.mxu0 0
      %931 = vmatpush1.bf16.msra.mxu0 %v764
      %932 = vmatprep.subr.bf16.mxu0 0
      %933 = vmatpush1.bf16.msra.mxu0 %v765
      %934 = vmatprep.mubr.bf16.mxu0 %v458
      %935 = vmatmul.mubr.bf16.gmra.mrb[0].mxu0 %v455
      %v936 = vpop.f32.mrb[0].mxu0
      %v937 = vadd.f32 %v897, %v936
      %v938 = vpop.f32.mrb[0].mxu0
      %v939 = vpop.f32.mrb[0].mxu0
      %v940 = vpop.f32.mrb[0].mxu0
      %941 = vdwg.mxu0
      %942 = vmatprep.subr.bf16.mxu0 0
      %943 = vmatpush1.bf16.msra.mxu0 %v766
      %944 = vmatprep.subr.bf16.mxu0 0
      %945 = vmatpush1.bf16.msra.mxu0 %v767
      %946 = vmatprep.subr.bf16.mxu0 0
      %947 = vmatpush1.bf16.msra.mxu0 %v768
      %948 = vmatprep.subr.bf16.mxu0 0
      %949 = vmatpush1.bf16.msra.mxu0 %v769
      %950 = vmatprep.subr.bf16.mxu0 0
      %951 = vmatpush1.bf16.msra.mxu0 %v770
      %952 = vmatprep.subr.bf16.mxu0 0
      %953 = vmatpush1.bf16.msra.mxu0 %v771
      %954 = vmatprep.subr.bf16.mxu0 0
      %955 = vmatpush1.bf16.msra.mxu0 %v772
      %956 = vmatprep.subr.bf16.mxu0 0
      %957 = vmatpush1.bf16.msra.mxu0 %v773
      %958 = vmatprep.subr.bf16.mxu0 0
      %959 = vmatpush1.bf16.msra.mxu0 %v774
      %960 = vmatprep.subr.bf16.mxu0 0
      %961 = vmatpush1.bf16.msra.mxu0 %v775
      %962 = vmatprep.subr.bf16.mxu0 0
      %963 = vmatpush1.bf16.msra.mxu0 %v776
      %964 = vmatprep.subr.bf16.mxu0 0
      %965 = vmatpush1.bf16.msra.mxu0 %v777
      %966 = vmatprep.subr.bf16.mxu0 0
      %967 = vmatpush1.bf16.msra.mxu0 %v778
      %968 = vmatprep.subr.bf16.mxu0 0
      %969 = vmatpush1.bf16.msra.mxu0 %v779
      %970 = vmatprep.subr.bf16.mxu0 0
      %971 = vmatpush1.bf16.msra.mxu0 %v780
      %972 = vmatprep.subr.bf16.mxu0 0
      %973 = vmatpush1.bf16.msra.mxu0 %v781
      %974 = vmatprep.mubr.bf16.mxu0 %v464
      %975 = vmatmul.mubr.bf16.gmra.mrb[0].mxu0 %v461
      %v976 = vpop.f32.mrb[0].mxu0
      %v977 = vadd.f32 %v937, %v976
      %v978 = vpop.f32.mrb[0].mxu0
      %v979 = vpop.f32.mrb[0].mxu0
      %v980 = vpop.f32.mrb[0].mxu0
      %981 = vdwg.mxu0
      %982 = vmatprep.subr.bf16.mxu0 0
      %983 = vmatpush1.bf16.msra.mxu0 %v782
      %984 = vmatprep.subr.bf16.mxu0 0
      %985 = vmatpush1.bf16.msra.mxu0 %v783
      %986 = vmatprep.subr.bf16.mxu0 0
      %987 = vmatpush1.bf16.msra.mxu0 %v784
      %988 = vmatprep.subr.bf16.mxu0 0
      %989 = vmatpush1.bf16.msra.mxu0 %v785
      %990 = vmatprep.subr.bf16.mxu0 0
      %991 = vmatpush1.bf16.msra.mxu0 %v786
      %992 = vmatprep.subr.bf16.mxu0 0
      %993 = vmatpush1.bf16.msra.mxu0 %v787
      %994 = vmatprep.subr.bf16.mxu0 0
      %995 = vmatpush1.bf16.msra.mxu0 %v788
      %996 = vmatprep.subr.bf16.mxu0 0
      %997 = vmatpush1.bf16.msra.mxu0 %v789
      %998 = vmatprep.subr.bf16.mxu0 0
      %999 = vmatpush1.bf16.msra.mxu0 %v790
      %1000 = vmatprep.subr.bf16.mxu0 0
      %1001 = vmatpush1.bf16.msra.mxu0 %v791
      %1002 = vmatprep.subr.bf16.mxu0 0
      %1003 = vmatpush1.bf16.msra.mxu0 %v792
      %1004 = vmatprep.subr.bf16.mxu0 0
      %1005 = vmatpush1.bf16.msra.mxu0 %v793
      %1006 = vmatprep.subr.bf16.mxu0 0
      %1007 = vmatpush1.bf16.msra.mxu0 %v794
      %1008 = vmatprep.subr.bf16.mxu0 0
      %1009 = vmatpush1.bf16.msra.mxu0 %v795
      %1010 = vmatprep.subr.bf16.mxu0 0
      %1011 = vmatpush1.bf16.msra.mxu0 %v796
      %1012 = vmatprep.subr.bf16.mxu0 0
      %1013 = vmatpush1.bf16.msra.mxu0 %v797
      %1014 = vmatprep.mubr.bf16.mxu0 %v470
      %1015 = vmatmul.mubr.bf16.gmra.mrb[0].mxu0 %v467
      %v1016 = vpop.f32.mrb[0].mxu0
      %v1017 = vadd.f32 %v977, %v1016
      %v1018 = vpop.f32.mrb[0].mxu0
      %v1019 = vpop.f32.mrb[0].mxu0
      %v1020 = vpop.f32.mrb[0].mxu0
      %1021 = vdwg.mxu0
      %1022 = vst [vmem:[%s170] sm:$0x3] %v1017
      %s1023 = scalar_lea.vmem %s170, 2
      %1024 = vst [vmem:[%s1023 - $0x2] sm:$0xc] %v1017
      %p1025 = scmp.lt.s32.totalorder %s14, 1
      %s1026 = scalar_select %p1025, %s14, 1
      %s1027 = smul.addr %s1026, 2
      %s1028 = smul.addr %s1027, 2
      %s1029 = scalar_lea.vmem %s3, %s1028
      // Predicated region
      $region33: #{discriminator_forward.9} parent=31 // pred_check
        %p1030 = pneg %p100
      $region34: #{discriminator_forward.9} parent=31 // pred_check_branch
        %1032 = sbr.rel (%p1030) target = $region36
      $region35: #{discriminator_forward.9} parent=31 // pred_region
        _
      $region36: #{discriminator_forward.9} parent=31 // pred_fallthru
        _
    $region32: #{discriminator_forward.9} parent=5 // pred_fallthru
      _
    %p1033 = scmp.le.s32.totalorder 2, %s9
    // Predicated region
    $region37: #{discriminator_forward.9} parent=5 // pred_check
      %p1034 = pneg %p1033
    $region38: #{discriminator_forward.9} parent=5 // pred_check_branch
      %1036 = sbr.rel (%p1034) target = $region40
    $region39: #{discriminator_forward.9} parent=5 // pred_region
      %s1037 = ssub.s32 %s9, 2
      // Predicated region
      $region41: #{discriminator_forward.9} parent=39 // pred_check
        %p1038 = pneg %p106
      $region42: #{discriminator_forward.9} parent=39 // pred_check_branch
        %1040 = sbr.rel (%p1038) target = $region44
      $region43: #{discriminator_forward.9} parent=39 // pred_region
        %p1041 = scmp.lt.s32.totalorder %s15, 1
        %s1042 = scalar_select %p1041, %s15, 1
        %s1043 = smul.addr %s1042, 2
        %s1044 = smul.addr %s1043, 2
        %s1045 = scalar_lea.vmem %s3, %s1044
      $region44: #{discriminator_forward.9} parent=39 // pred_fallthru
        _
    $region40: #{discriminator_forward.9} parent=5 // pred_fallthru
      _
  $region6: #{discriminator_forward.9} parent=0 // loop_footer
    %s13 = sadd.s32 1, %s9
  $region7: #{discriminator_forward.9} parent=0 // loop_footer_branch
    %8 = sbr.rel target = $region3
  $region8: #{discriminator_forward.9} parent=0 // loop_exit
    _

</llo_original>
